<compile_context>
chip_gen: v7x
topology: tpu7x:2x2x1
jax: 0.10.0
libtpu: 0.0.40
codegen_flags: <defaults>
</compile_context>

<pallas_src>
import functools

import jax
import jax.numpy as jnp
from jax.experimental import pallas as pl
from jax.experimental.pallas import tpu as pltpu


def dnn_kernel(x_ref, w1_ref, b1_ref, w2_ref, b2_ref, w3_ref, b3_ref,
               w4_ref, b4_ref, out_ref, *, seq_len):
    x = x_ref[...]                                                       # (Mt, 128) bf16
    h1 = jnp.maximum(
        jnp.dot(x, w1_ref[...], preferred_element_type=jnp.float32)
        + b1_ref[...], 0.0)                                              # (Mt, 1024) f32
    h2 = jnp.maximum(
        jnp.dot(h1.astype(jnp.bfloat16), w2_ref[...],
                preferred_element_type=jnp.float32) + b2_ref[...], 0.0)  # (Mt, 512) f32
    h3 = jnp.maximum(
        jnp.dot(h2.astype(jnp.bfloat16), w3_ref[...],
                preferred_element_type=jnp.float32) + b3_ref[...], 0.0)  # (Mt, 64) f32
    mt, n3 = h3.shape
    gt = mt // seq_len
    # mean over the seq axis: cheap sublane reduction, no dense pooling matmul.
    pooled = jnp.sum(h3.reshape(gt, seq_len, n3), axis=1) * (1.0 / seq_len)  # (Gt, 64)
    out_ref[...] = (
        jnp.dot(pooled, w4_ref[...], preferred_element_type=jnp.float32)
        + b4_ref[...])                                                   # (Gt, 6) f32


def init_params(key):
    """PyTorch nn.Linear-style init, weights stored (fan_in, fan_out)."""
    def linear(k, fan_in, fan_out):
        k1, k2 = jax.random.split(k)
        bound = 1.0 / float(fan_in) ** 0.5
        w = jax.random.uniform(k1, (fan_in, fan_out), jnp.float32, -bound, bound)
        b = jax.random.uniform(k2, (1, fan_out), jnp.float32, -bound, bound)
        return w, b
    keys = jax.random.split(key, 4)
    w1, b1 = linear(keys[0], 101, 1024)
    w2, b2 = linear(keys[1], 1024, 512)
    w3, b3 = linear(keys[2], 512, 64)
    w4, b4 = linear(keys[3], 64, 6)
    return (w1, b1, w2, b2, w3, b3, w4, b4)


def _round_up(n, m):
    return (n + m - 1) // m * m


def dnn_forward(x, params, *, target_rows_per_tile=512):
    w1, b1, w2, b2, w3, b3, w4, b4 = params
    B, C, T, F = x.shape
    G = B * C

    F_PAD = 128
    # groups per tile: multiple of 8 so every block's sublane dim is 8-aligned.
    gt = _round_up(max(1, -(-target_rows_per_tile // T)), 8)
    G_pad = _round_up(G, gt)
    Mt = gt * T                  # rows per grid step
    M_pad = G_pad * T

    # Zero-pad groups to G_pad and features to 128 lanes; cast matmul inputs to bf16.
    xg = x.reshape(G, T, F)
    xg = jnp.pad(xg, ((0, G_pad - G), (0, 0), (0, F_PAD - F)))
    x2 = xg.reshape(M_pad, F_PAD).astype(jnp.bfloat16)

    w1p = jnp.pad(w1, ((0, F_PAD - F), (0, 0))).astype(jnp.bfloat16)
    w2b = w2.astype(jnp.bfloat16)
    w3b = w3.astype(jnp.bfloat16)
    # layer 4 is tiny (64x6) -> keep it (and all biases) in f32.

    grid = (G_pad // gt,)
    resident = lambda i: (0, 0)  # weights/biases: same block every step -> fetched once

    flops = 2 * M_pad * (F_PAD * 1024 + 1024 * 512 + 512 * 64) + 2 * G_pad * 64 * 6
    bytes_accessed = (x2.size * 2 + w1p.size * 2 + w2b.size * 2 + w3b.size * 2
                      + (b1.size + b2.size + b3.size + w4.size + b4.size) * 4
                      + G_pad * 6 * 4)

    out = pl.pallas_call(
        functools.partial(dnn_kernel, seq_len=T),
        out_shape=jax.ShapeDtypeStruct((G_pad, 6), jnp.float32),
        grid=grid,
        in_specs=[
            pl.BlockSpec((Mt, F_PAD), lambda i: (i, 0)),   # x tile (double-buffered)
            pl.BlockSpec((F_PAD, 1024), resident),         # w1
            pl.BlockSpec((1, 1024), resident),             # b1
            pl.BlockSpec((1024, 512), resident),           # w2
            pl.BlockSpec((1, 512), resident),              # b2
            pl.BlockSpec((512, 64), resident),             # w3
            pl.BlockSpec((1, 64), resident),               # b3
            pl.BlockSpec((64, 6), resident),               # w4
            pl.BlockSpec((1, 6), resident),                # b4
        ],
        out_specs=pl.BlockSpec((gt, 6), lambda i: (i, 0)),
        compiler_params=pltpu.CompilerParams(
            dimension_semantics=("parallel",)),
        cost_estimate=pl.CostEstimate(
            flops=flops, transcendentals=0, bytes_accessed=bytes_accessed),
    )(x2, w1p, b1, w2b, b2, w3b, b3, w4, b4)

    out = out[:G].reshape(B, C, 6)
    # torch.squeeze removes all size-1 dims before l4; since l4 acts on the last dim,
    # squeezing the (B, C, 6) result here is equivalent.
    return jnp.squeeze(out)


def dnn_ref(x, params):
    """JAX reference with the same precision policy as the kernel
    (bf16 matmul inputs, f32 accumulation) so the check isolates kernel logic."""
    w1, b1, w2, b2, w3, b3, w4, b4 = params

    def mm(a, w):
        return jnp.dot(a.astype(jnp.bfloat16), w.astype(jnp.bfloat16),
                       preferred_element_type=jnp.float32)

    h = jax.nn.relu(mm(x, w1) + b1[0])
    h = jax.nn.relu(mm(h, w2) + b2[0])
    h = jax.nn.relu(mm(h, w3) + b3[0])
    h = jnp.mean(h, axis=2)
    h = jnp.squeeze(h)
    return jnp.dot(h, w4, preferred_element_type=jnp.float32) + b4[0]


if __name__ == "__main__":
    key = jax.random.PRNGKey(0)
    pkey, xkey = jax.random.split(key)
    params = init_params(pkey)

    # small shapes consistent with the module: (batch=2, channel=1, seq=8, feat=101)
    x = jax.random.normal(xkey, (2, 1, 8, 101), dtype=jnp.float32)

    out = jax.block_until_ready(dnn_forward(x, params))
    ref = dnn_ref(x, params)

    assert out.shape == ref.shape, (out.shape, ref.shape)
    assert jnp.allclose(out, ref, atol=2e-3, rtol=2e-3), (
        "mismatch vs JAX reference, max abs err = %g"
        % float(jnp.max(jnp.abs(out - ref))))

    print("KERNEL_OK")
</pallas_src>

<mosaic_0001>
module attributes {stable_mosaic.version = 11 : i64} {
  func.func @dnn_kernel(%arg0: i32, %arg1: memref<512x128xbf16, #tpu.memory_space<vmem>>, %arg2: memref<128x1024xbf16, #tpu.memory_space<vmem>>, %arg3: memref<1x1024xf32, #tpu.memory_space<vmem>>, %arg4: memref<1024x512xbf16, #tpu.memory_space<vmem>>, %arg5: memref<1x512xf32, #tpu.memory_space<vmem>>, %arg6: memref<512x64xbf16, #tpu.memory_space<vmem>>, %arg7: memref<1x64xf32, #tpu.memory_space<vmem>>, %arg8: memref<64x6xf32, #tpu.memory_space<vmem>>, %arg9: memref<1x6xf32, #tpu.memory_space<vmem>>, %arg10: memref<64x6xf32, #tpu.memory_space<vmem>>) attributes {dimension_semantics = [#tpu.dimension_semantics<parallel>], iteration_bounds = array<i64: 1>, scalar_prefetch = 0 : i64, scratch_operands = 0 : i64, tpu.core_type = #tpu.core_type<tc>, window_params = [{transform_indices = @transform_0, window_bounds = array<i64: 512, 128>}, {pipeline_mode = #tpu.pipeline_mode<synchronous>, transform_indices = @transform_1, window_bounds = array<i64: 128, 1024>}, {pipeline_mode = #tpu.pipeline_mode<synchronous>, transform_indices = @transform_2, window_bounds = array<i64: 1, 1024>}, {pipeline_mode = #tpu.pipeline_mode<synchronous>, transform_indices = @transform_3, window_bounds = array<i64: 1024, 512>}, {pipeline_mode = #tpu.pipeline_mode<synchronous>, transform_indices = @transform_4, window_bounds = array<i64: 1, 512>}, {pipeline_mode = #tpu.pipeline_mode<synchronous>, transform_indices = @transform_5, window_bounds = array<i64: 512, 64>}, {pipeline_mode = #tpu.pipeline_mode<synchronous>, transform_indices = @transform_6, window_bounds = array<i64: 1, 64>}, {pipeline_mode = #tpu.pipeline_mode<synchronous>, transform_indices = @transform_7, window_bounds = array<i64: 64, 6>}, {pipeline_mode = #tpu.pipeline_mode<synchronous>, transform_indices = @transform_8, window_bounds = array<i64: 1, 6>}, {transform_indices = @transform_9, window_bounds = array<i64: 64, 6>}]} {
    %c0 = arith.constant 0 : index
    %c0_0 = arith.constant 0 : index
    %0 = vector.load %arg1[%c0, %c0_0] : memref<512x128xbf16, #tpu.memory_space<vmem>>, vector<512x128xbf16>
    %c0_1 = arith.constant 0 : index
    %c0_2 = arith.constant 0 : index
    %1 = vector.load %arg2[%c0_1, %c0_2] : memref<128x1024xbf16, #tpu.memory_space<vmem>>, vector<128x1024xbf16>
    %cst = arith.constant dense<0.000000e+00> : vector<512x1024xf32>
    %2 = tpu.matmul %0, %1, %cst {dimension_numbers = #tpu.dot_dimension_numbers<[1], [0], [0], [1], [0, 0, 1, 1], [], []>} : vector<512x128xbf16>, vector<128x1024xbf16>, vector<512x1024xf32> -> vector<512x1024xf32>
    %c0_3 = arith.constant 0 : index
    %c0_4 = arith.constant 0 : index
    %3 = vector.load %arg3[%c0_3, %c0_4] : memref<1x1024xf32, #tpu.memory_space<vmem>>, vector<1x1024xf32>
    %4 = vector.broadcast %3 : vector<1x1024xf32> to vector<512x1024xf32>
    %5 = arith.addf %2, %4 : vector<512x1024xf32>
    %cst_5 = arith.constant 0.000000e+00 : f32
    %6 = vector.broadcast %cst_5 : f32 to vector<512x1024xf32>
    %7 = arith.maximumf %5, %6 : vector<512x1024xf32>
    %8 = arith.truncf %7 : vector<512x1024xf32> to vector<512x1024xbf16>
    %c0_6 = arith.constant 0 : index
    %c0_7 = arith.constant 0 : index
    %9 = vector.load %arg4[%c0_6, %c0_7] : memref<1024x512xbf16, #tpu.memory_space<vmem>>, vector<1024x512xbf16>
    %cst_8 = arith.constant dense<0.000000e+00> : vector<512x512xf32>
    %10 = tpu.matmul %8, %9, %cst_8 {dimension_numbers = #tpu.dot_dimension_numbers<[1], [0], [0], [1], [0, 0, 1, 1], [], []>} : vector<512x1024xbf16>, vector<1024x512xbf16>, vector<512x512xf32> -> vector<512x512xf32>
    %c0_9 = arith.constant 0 : index
    %c0_10 = arith.constant 0 : index
    %11 = vector.load %arg5[%c0_9, %c0_10] : memref<1x512xf32, #tpu.memory_space<vmem>>, vector<1x512xf32>
    %12 = vector.broadcast %11 : vector<1x512xf32> to vector<512x512xf32>
    %13 = arith.addf %10, %12 : vector<512x512xf32>
    %cst_11 = arith.constant 0.000000e+00 : f32
    %14 = vector.broadcast %cst_11 : f32 to vector<512x512xf32>
    %15 = arith.maximumf %13, %14 : vector<512x512xf32>
    %16 = arith.truncf %15 : vector<512x512xf32> to vector<512x512xbf16>
    %c0_12 = arith.constant 0 : index
    %c0_13 = arith.constant 0 : index
    %17 = vector.load %arg6[%c0_12, %c0_13] : memref<512x64xbf16, #tpu.memory_space<vmem>>, vector<512x64xbf16>
    %cst_14 = arith.constant dense<0.000000e+00> : vector<512x64xf32>
    %18 = tpu.matmul %16, %17, %cst_14 {dimension_numbers = #tpu.dot_dimension_numbers<[1], [0], [0], [1], [0, 0, 1, 1], [], []>} : vector<512x512xbf16>, vector<512x64xbf16>, vector<512x64xf32> -> vector<512x64xf32>
    %c0_15 = arith.constant 0 : index
    %c0_16 = arith.constant 0 : index
    %19 = vector.load %arg7[%c0_15, %c0_16] : memref<1x64xf32, #tpu.memory_space<vmem>>, vector<1x64xf32>
    %20 = vector.broadcast %19 : vector<1x64xf32> to vector<512x64xf32>
    %21 = arith.addf %18, %20 : vector<512x64xf32>
    %cst_17 = arith.constant 0.000000e+00 : f32
    %22 = vector.broadcast %cst_17 : f32 to vector<512x64xf32>
    %23 = arith.maximumf %21, %22 : vector<512x64xf32>
    %24 = vector.shape_cast %23 : vector<512x64xf32> to vector<64x8x64xf32>
    %cst_18 = arith.constant dense<0.000000e+00> : vector<64x64xf32>
    %25 = vector.multi_reduction <add>, %24, %cst_18 [1] : vector<64x8x64xf32> to vector<64x64xf32>
    %cst_19 = arith.constant 1.250000e-01 : f32
    %26 = vector.broadcast %cst_19 : f32 to vector<64x64xf32>
    %27 = arith.mulf %25, %26 : vector<64x64xf32>
    %c0_20 = arith.constant 0 : index
    %c0_21 = arith.constant 0 : index
    %28 = vector.load %arg8[%c0_20, %c0_21] : memref<64x6xf32, #tpu.memory_space<vmem>>, vector<64x6xf32>
    %cst_22 = arith.constant dense<0.000000e+00> : vector<64x6xf32>
    %29 = tpu.matmul %27, %28, %cst_22 {dimension_numbers = #tpu.dot_dimension_numbers<[1], [0], [0], [1], [0, 0, 1, 1], [], []>} : vector<64x64xf32>, vector<64x6xf32>, vector<64x6xf32> -> vector<64x6xf32>
    %c0_23 = arith.constant 0 : index
    %c0_24 = arith.constant 0 : index
    %30 = vector.load %arg9[%c0_23, %c0_24] : memref<1x6xf32, #tpu.memory_space<vmem>>, vector<1x6xf32>
    %31 = vector.broadcast %30 : vector<1x6xf32> to vector<64x6xf32>
    %32 = arith.addf %29, %31 : vector<64x6xf32>
    %c0_25 = arith.constant 0 : index
    %c0_26 = arith.constant 0 : index
    %33 = vector.load %arg10[%c0_25, %c0_26] : memref<64x6xf32, #tpu.memory_space<vmem>>, vector<64x6xf32>
    tpu.vector_store %arg10[%c0_25, %c0_26], %32 {strides = array<i32>} : memref<64x6xf32, #tpu.memory_space<vmem>>, vector<64x6xf32>,
    return
  }
  func.func @transform_0(%arg0: i32) -> (i32, i32) {
    %c0_i32 = arith.constant 0 : i32
    %c0_i32_0 = arith.constant 0 : i32
    return %arg0, %c0_i32 : i32, i32
  }
  func.func @transform_1(%arg0: i32) -> (i32, i32) {
    %c0_i32 = arith.constant 0 : i32
    %c0_i32_0 = arith.constant 0 : i32
    %c0_i32_1 = arith.constant 0 : i32
    return %c0_i32, %c0_i32_0 : i32, i32
  }
  func.func @transform_2(%arg0: i32) -> (i32, i32) {
    %c0_i32 = arith.constant 0 : i32
    %c0_i32_0 = arith.constant 0 : i32
    %c0_i32_1 = arith.constant 0 : i32
    return %c0_i32, %c0_i32_0 : i32, i32
  }
  func.func @transform_3(%arg0: i32) -> (i32, i32) {
    %c0_i32 = arith.constant 0 : i32
    %c0_i32_0 = arith.constant 0 : i32
    %c0_i32_1 = arith.constant 0 : i32
    return %c0_i32, %c0_i32_0 : i32, i32
  }
  func.func @transform_4(%arg0: i32) -> (i32, i32) {
    %c0_i32 = arith.constant 0 : i32
    %c0_i32_0 = arith.constant 0 : i32
    %c0_i32_1 = arith.constant 0 : i32
    return %c0_i32, %c0_i32_0 : i32, i32
  }
  func.func @transform_5(%arg0: i32) -> (i32, i32) {
    %c0_i32 = arith.constant 0 : i32
    %c0_i32_0 = arith.constant 0 : i32
    %c0_i32_1 = arith.constant 0 : i32
    return %c0_i32, %c0_i32_0 : i32, i32
  }
  func.func @transform_6(%arg0: i32) -> (i32, i32) {
    %c0_i32 = arith.constant 0 : i32
    %c0_i32_0 = arith.constant 0 : i32
    %c0_i32_1 = arith.constant 0 : i32
    return %c0_i32, %c0_i32_0 : i32, i32
  }
  func.func @transform_7(%arg0: i32) -> (i32, i32) {
    %c0_i32 = arith.constant 0 : i32
    %c0_i32_0 = arith.constant 0 : i32
    %c0_i32_1 = arith.constant 0 : i32
    return %c0_i32, %c0_i32_0 : i32, i32
  }
  func.func @transform_8(%arg0: i32) -> (i32, i32) {
    %c0_i32 = arith.constant 0 : i32
    %c0_i32_0 = arith.constant 0 : i32
    %c0_i32_1 = arith.constant 0 : i32
    return %c0_i32, %c0_i32_0 : i32, i32
  }
  func.func @transform_9(%arg0: i32) -> (i32, i32) {
    %c0_i32 = arith.constant 0 : i32
    %c0_i32_0 = arith.constant 0 : i32
    return %arg0, %c0_i32 : i32, i32
  }
}

</mosaic_0001>

<llo_original>
// kernel: tpu_custom_call.1
$region0: #{tpu_custom_call.1}
  #allocation0 [shape = 'u32[]', space=smem, size = 0x4, offset = 0x4, fixed_abs, tag = 'smem constant byte address 0x4 - core index']
  #allocation1 [shape = 'u32[144,128]{1,0:T(1,128)}', space=vmem, size = 0x12000, scoped, tag = 'internal scratch']
  %s0 = inlined_call_operand.vmem [shape: bf16[512,128], index: 0, kind: input, shape index: {}]
  %s1 = inlined_call_operand.hbm [shape: bf16[128,1024], index: 1, kind: input, shape index: {}]
  %s2 = inlined_call_operand.vmem [shape: f32[1,1024], index: 2, kind: input, shape index: {}]
  %s3 = inlined_call_operand.hbm [shape: bf16[1024,512], index: 3, kind: input, shape index: {}]
  %s4 = inlined_call_operand.vmem [shape: f32[1,512], index: 4, kind: input, shape index: {}]
  %s5 = inlined_call_operand.vmem [shape: bf16[512,64], index: 5, kind: input, shape index: {}]
  %s6 = inlined_call_operand.vmem [shape: f32[1,64], index: 6, kind: input, shape index: {}]
  %s7 = inlined_call_operand.vmem [shape: f32[64,6], index: 7, kind: input, shape index: {}]
  %s8 = inlined_call_operand.vmem [shape: f32[1,6], index: 8, kind: input, shape index: {}]
  %s9 = inlined_call_operand.vmem [shape: f32[64,6], index: 9, kind: output, shape index: {}]
  %s10 = sld [smem:[#allocation0]]
  $region54: #{tpu_custom_call.1} parent=0
    _
  %s12 = ssub.s32 1, %s10
  %s13 = scalar_select 0, %s12, %s10
  $region1: #{tpu_custom_call.1} parent=0
    #allocation2 [shape = 'u8[262144]{0}', space=vmem, size = 0x40000, scoped, tag = 'input window, operand 1, single buffered']
    #allocation3 [shape = 's32[1]{0}', space=sflag, size = 0x4, scoped, tag = 'scoped memory for tpu_custom_call.1']
    #allocation4 [shape = 'u8[1048576]{0}', space=vmem, size = 0x100000, scoped, tag = 'input window, operand 3, single buffered']
    #allocation5 [shape = 's32[1]{0}', space=sflag, size = 0x4, scoped, tag = 'scoped memory for tpu_custom_call.1']
    %14 = vsyncpa [#allocation3], 0
    %15 = vsyncpa [#allocation5], 0
    // Predicated region
    $region2: #{tpu_custom_call.1} parent=1 // pred_check
      _
    $region3: #{tpu_custom_call.1} parent=1 // pred_check_branch
      %17 = sbr.rel (0) target = $region5
    $region4: #{tpu_custom_call.1} parent=1 // pred_region
      _
    $region5: #{tpu_custom_call.1} parent=1 // pred_fallthru
      _
    // Predicated region
    $region6: #{tpu_custom_call.1} parent=1 // pred_check
      _
    $region7: #{tpu_custom_call.1} parent=1 // pred_check_branch
      %19 = sbr.rel (0) target = $region9
    $region8: #{tpu_custom_call.1} parent=1 // pred_region
      %s21 = ssub.s32 8192, 8192
      %22 = vsyncadd [#allocation3], %s21
      %s23 = sshll.u32 [#allocation2], 4
      %s24 = int_to_ptr.vmem [resolvable:$true] %s23
      %29 = dma.hbm_to_vmem [thread:$0]  %s1, 8192, %s24, [#allocation3], 512, 512, 32
    $region9: #{tpu_custom_call.1} parent=1 // pred_fallthru
      _
    // Predicated region
    $region10: #{tpu_custom_call.1} parent=1 // pred_check
      _
    $region11: #{tpu_custom_call.1} parent=1 // pred_check_branch
      %31 = sbr.rel (0) target = $region13
    $region12: #{tpu_custom_call.1} parent=1 // pred_region
      _
    $region13: #{tpu_custom_call.1} parent=1 // pred_fallthru
      _
    // Predicated region
    $region14: #{tpu_custom_call.1} parent=1 // pred_check
      _
    $region15: #{tpu_custom_call.1} parent=1 // pred_check_branch
      %33 = sbr.rel (0) target = $region17
    $region16: #{tpu_custom_call.1} parent=1 // pred_region
      %s35 = ssub.s32 32768, 32768
      %36 = vsyncadd [#allocation5], %s35
      %s37 = sshll.u32 [#allocation4], 4
      %s38 = int_to_ptr.vmem [resolvable:$true] %s37
      %43 = dma.hbm_to_vmem [thread:$0]  %s3, 32768, %s38, [#allocation5], 256, 256, 16
    $region17: #{tpu_custom_call.1} parent=1 // pred_fallthru
      _
    // Predicated region
    $region18: #{tpu_custom_call.1} parent=1 // pred_check
      _
    $region19: #{tpu_custom_call.1} parent=1 // pred_check_branch
      %45 = sbr.rel (0) target = $region21
    $region20: #{tpu_custom_call.1} parent=1 // pred_region
      _
    $region21: #{tpu_custom_call.1} parent=1 // pred_fallthru
      _
    // Predicated region
    $region22: #{tpu_custom_call.1} parent=1 // pred_check
      _
    $region23: #{tpu_custom_call.1} parent=1 // pred_check_branch
      %47 = sbr.rel (0) target = $region25
    $region24: #{tpu_custom_call.1} parent=1 // pred_region
      _
    $region25: #{tpu_custom_call.1} parent=1 // pred_fallthru
      _
    // Predicated region
    $region26: #{tpu_custom_call.1} parent=1 // pred_check
      _
    $region27: #{tpu_custom_call.1} parent=1 // pred_check_branch
      %49 = sbr.rel (0) target = $region29
    $region28: #{tpu_custom_call.1} parent=1 // pred_region
      _
    $region29: #{tpu_custom_call.1} parent=1 // pred_fallthru
      _
    // Predicated region
    $region30: #{tpu_custom_call.1} parent=1 // pred_check
      _
    $region31: #{tpu_custom_call.1} parent=1 // pred_check_branch
      %51 = sbr.rel (0) target = $region33
    $region32: #{tpu_custom_call.1} parent=1 // pred_region
      _
    $region33: #{tpu_custom_call.1} parent=1 // pred_fallthru
      _
    // Predicated region
    $region34: #{tpu_custom_call.1} parent=1 // pred_check
      _
    $region35: #{tpu_custom_call.1} parent=1 // pred_check_branch
      %53 = sbr.rel (0) target = $region37
    $region36: #{tpu_custom_call.1} parent=1 // pred_region
      _
    $region37: #{tpu_custom_call.1} parent=1 // pred_fallthru
      _
    // Predicated region
    $region38: #{tpu_custom_call.1} parent=1 // pred_check
      _
    $region39: #{tpu_custom_call.1} parent=1 // pred_check_branch
      %55 = sbr.rel (0) target = $region41
    $region40: #{tpu_custom_call.1} parent=1 // pred_region
      %56 = dma.done [#allocation3], 8192
    $region41: #{tpu_custom_call.1} parent=1 // pred_fallthru
      _
    // Predicated region
    $region42: #{tpu_custom_call.1} parent=1 // pred_check
      _
    $region43: #{tpu_custom_call.1} parent=1 // pred_check_branch
      %58 = sbr.rel (0) target = $region45
    $region44: #{tpu_custom_call.1} parent=1 // pred_region
      %59 = dma.done [#allocation5], 32768
    $region45: #{tpu_custom_call.1} parent=1 // pred_fallthru
      _
    %v61 = vld [vmem:[%s0] sm:$0xf]
    %v62 = vld [vmem:[%s0 + $0x4] sm:$0xf]
    %v63 = vld [vmem:[%s0 + $0x8] sm:$0xf]
    %v64 = vld [vmem:[%s0 + $0xc] sm:$0xf]
    %v65 = vld [vmem:[%s0 + $0x10] sm:$0xf]
    %v66 = vld [vmem:[%s0 + $0x14] sm:$0xf]
    %v67 = vld [vmem:[%s0 + $0x18] sm:$0xf]
    %v68 = vld [vmem:[%s0 + $0x1c] sm:$0xf]
    %v69 = vld [vmem:[%s0 + $0x20] sm:$0xf]
    %v70 = vld [vmem:[%s0 + $0x24] sm:$0xf]
    %v71 = vld [vmem:[%s0 + $0x28] sm:$0xf]
    %v72 = vld [vmem:[%s0 + $0x2c] sm:$0xf]
    %v73 = vld [vmem:[%s0 + $0x30] sm:$0xf]
    %v74 = vld [vmem:[%s0 + $0x34] sm:$0xf]
    %v75 = vld [vmem:[%s0 + $0x38] sm:$0xf]
    %v76 = vld [vmem:[%s0 + $0x3c] sm:$0xf]
    %v77 = vld [vmem:[%s0 + $0x40] sm:$0xf]
    %v78 = vld [vmem:[%s0 + $0x44] sm:$0xf]
    %v79 = vld [vmem:[%s0 + $0x48] sm:$0xf]
    %v80 = vld [vmem:[%s0 + $0x4c] sm:$0xf]
    %v81 = vld [vmem:[%s0 + $0x50] sm:$0xf]
    %v82 = vld [vmem:[%s0 + $0x54] sm:$0xf]
    %v83 = vld [vmem:[%s0 + $0x58] sm:$0xf]
    %v84 = vld [vmem:[%s0 + $0x5c] sm:$0xf]
    %v85 = vld [vmem:[%s0 + $0x60] sm:$0xf]
    %v86 = vld [vmem:[%s0 + $0x64] sm:$0xf]
    %v87 = vld [vmem:[%s0 + $0x68] sm:$0xf]
    %v88 = vld [vmem:[%s0 + $0x6c] sm:$0xf]
    %v89 = vld [vmem:[%s0 + $0x70] sm:$0xf]
    %v90 = vld [vmem:[%s0 + $0x74] sm:$0xf]
    %v91 = vld [vmem:[%s0 + $0x78] sm:$0xf]
    %v92 = vld [vmem:[%s0 + $0x7c] sm:$0xf]
    %v93 = vld [vmem:[%s0 + $0x80] sm:$0xf]
    %v94 = vld [vmem:[%s0 + $0x84] sm:$0xf]
    %v95 = vld [vmem:[%s0 + $0x88] sm:$0xf]
    %v96 = vld [vmem:[%s0 + $0x8c] sm:$0xf]
    %v97 = vld [vmem:[%s0 + $0x90] sm:$0xf]
    %v98 = vld [vmem:[%s0 + $0x94] sm:$0xf]
    %v99 = vld [vmem:[%s0 + $0x98] sm:$0xf]
    %v100 = vld [vmem:[%s0 + $0x9c] sm:$0xf]
    %v101 = vld [vmem:[%s0 + $0xa0] sm:$0xf]
    %v102 = vld [vmem:[%s0 + $0xa4] sm:$0xf]
    %v103 = vld [vmem:[%s0 + $0xa8] sm:$0xf]
    %v104 = vld [vmem:[%s0 + $0xac] sm:$0xf]
    %v105 = vld [vmem:[%s0 + $0xb0] sm:$0xf]
    %v106 = vld [vmem:[%s0 + $0xb4] sm:$0xf]
    %v107 = vld [vmem:[%s0 + $0xb8] sm:$0xf]
    %v108 = vld [vmem:[%s0 + $0xbc] sm:$0xf]
    %v109 = vld [vmem:[%s0 + $0xc0] sm:$0xf]
    %v110 = vld [vmem:[%s0 + $0xc4] sm:$0xf]
    %v111 = vld [vmem:[%s0 + $0xc8] sm:$0xf]
    %v112 = vld [vmem:[%s0 + $0xcc] sm:$0xf]
    %v113 = vld [vmem:[%s0 + $0xd0] sm:$0xf]
    %v114 = vld [vmem:[%s0 + $0xd4] sm:$0xf]
    %v115 = vld [vmem:[%s0 + $0xd8] sm:$0xf]
    %v116 = vld [vmem:[%s0 + $0xdc] sm:$0xf]
    %v117 = vld [vmem:[%s0 + $0xe0] sm:$0xf]
    %v118 = vld [vmem:[%s0 + $0xe4] sm:$0xf]
    %v119 = vld [vmem:[%s0 + $0xe8] sm:$0xf]
    %v120 = vld [vmem:[%s0 + $0xec] sm:$0xf]
    %v121 = vld [vmem:[%s0 + $0xf0] sm:$0xf]
    %v122 = vld [vmem:[%s0 + $0xf4] sm:$0xf]
    %v123 = vld [vmem:[%s0 + $0xf8] sm:$0xf]
    %v124 = vld [vmem:[%s0 + $0xfc] sm:$0xf]
    %v125 = vld [vmem:[#allocation2] sm:$0xff]
    %v126 = vld [vmem:[#allocation2 + $0x8] sm:$0xff]
    %v127 = vld [vmem:[#allocation2 + $0x10] sm:$0xff]
    %v128 = vld [vmem:[#allocation2 + $0x18] sm:$0xff]
    %v129 = vld [vmem:[#allocation2 + $0x20] sm:$0xff]
    %v130 = vld [vmem:[#allocation2 + $0x28] sm:$0xff]
    %v131 = vld [vmem:[#allocation2 + $0x30] sm:$0xff]
    %v132 = vld [vmem:[#allocation2 + $0x38] sm:$0xff]
    %v133 = vld [vmem:[#allocation2 + $0x40] sm:$0xff]
    %v134 = vld [vmem:[#allocation2 + $0x48] sm:$0xff]
    %v135 = vld [vmem:[#allocation2 + $0x50] sm:$0xff]
    %v136 = vld [vmem:[#allocation2 + $0x58] sm:$0xff]
    %v137 = vld [vmem:[#allocation2 + $0x60] sm:$0xff]
    %v138 = vld [vmem:[#allocation2 + $0x68] sm:$0xff]
    %v139 = vld [vmem:[#allocation2 + $0x70] sm:$0xff]
    %v140 = vld [vmem:[#allocation2 + $0x78] sm:$0xff]
    %v141 = vld [vmem:[#allocation2 + $0x80] sm:$0xff]
    %v142 = vld [vmem:[#allocation2 + $0x88] sm:$0xff]
    %v143 = vld [vmem:[#allocation2 + $0x90] sm:$0xff]
    %v144 = vld [vmem:[#allocation2 + $0x98] sm:$0xff]
    %v145 = vld [vmem:[#allocation2 + $0xa0] sm:$0xff]
    %v146 = vld [vmem:[#allocation2 + $0xa8] sm:$0xff]
    %v147 = vld [vmem:[#allocation2 + $0xb0] sm:$0xff]
    %v148 = vld [vmem:[#allocation2 + $0xb8] sm:$0xff]
    %v149 = vld [vmem:[#allocation2 + $0xc0] sm:$0xff]
    %v150 = vld [vmem:[#allocation2 + $0xc8] sm:$0xff]
    %v151 = vld [vmem:[#allocation2 + $0xd0] sm:$0xff]
    %v152 = vld [vmem:[#allocation2 + $0xd8] sm:$0xff]
    %v153 = vld [vmem:[#allocation2 + $0xe0] sm:$0xff]
    %v154 = vld [vmem:[#allocation2 + $0xe8] sm:$0xff]
    %v155 = vld [vmem:[#allocation2 + $0xf0] sm:$0xff]
    %v156 = vld [vmem:[#allocation2 + $0xf8] sm:$0xff]
    %v157 = vld [vmem:[#allocation2 + $0x100] sm:$0xff]
    %v158 = vld [vmem:[#allocation2 + $0x108] sm:$0xff]
    %v159 = vld [vmem:[#allocation2 + $0x110] sm:$0xff]
    %v160 = vld [vmem:[#allocation2 + $0x118] sm:$0xff]
    %v161 = vld [vmem:[#allocation2 + $0x120] sm:$0xff]
    %v162 = vld [vmem:[#allocation2 + $0x128] sm:$0xff]
    %v163 = vld [vmem:[#allocation2 + $0x130] sm:$0xff]
    %v164 = vld [vmem:[#allocation2 + $0x138] sm:$0xff]
    %v165 = vld [vmem:[#allocation2 + $0x140] sm:$0xff]
    %v166 = vld [vmem:[#allocation2 + $0x148] sm:$0xff]
    %v167 = vld [vmem:[#allocation2 + $0x150] sm:$0xff]
    %v168 = vld [vmem:[#allocation2 + $0x158] sm:$0xff]
    %v169 = vld [vmem:[#allocation2 + $0x160] sm:$0xff]
    %v170 = vld [vmem:[#allocation2 + $0x168] sm:$0xff]
    %v171 = vld [vmem:[#allocation2 + $0x170] sm:$0xff]
    %v172 = vld [vmem:[#allocation2 + $0x178] sm:$0xff]
    %v173 = vld [vmem:[#allocation2 + $0x180] sm:$0xff]
    %v174 = vld [vmem:[#allocation2 + $0x188] sm:$0xff]
    %v175 = vld [vmem:[#allocation2 + $0x190] sm:$0xff]
    %v176 = vld [vmem:[#allocation2 + $0x198] sm:$0xff]
    %v177 = vld [vmem:[#allocation2 + $0x1a0] sm:$0xff]
    %v178 = vld [vmem:[#allocation2 + $0x1a8] sm:$0xff]
    %v179 = vld [vmem:[#allocation2 + $0x1b0] sm:$0xff]
    %v180 = vld [vmem:[#allocation2 + $0x1b8] sm:$0xff]
    %v181 = vld [vmem:[#allocation2 + $0x1c0] sm:$0xff]
    %v182 = vld [vmem:[#allocation2 + $0x1c8] sm:$0xff]
    %v183 = vld [vmem:[#allocation2 + $0x1d0] sm:$0xff]
    %v184 = vld [vmem:[#allocation2 + $0x1d8] sm:$0xff]
    %v185 = vld [vmem:[#allocation2 + $0x1e0] sm:$0xff]
    %v186 = vld [vmem:[#allocation2 + $0x1e8] sm:$0xff]
    %v187 = vld [vmem:[#allocation2 + $0x1f0] sm:$0xff]
    %v188 = vld [vmem:[#allocation2 + $0x1f8] sm:$0xff]
    %v189 = vld [vmem:[%s2] sm:$0xff]
    %v191 = vlaneseq
    %v192 = vshrl.u32 %v191, 7
    %v193 = vsub.s32 0, %v192
    %v194 = vrot.slane %v189, %v193
    %v195 = vlaneseq
    %v196 = vshrl.u32 %v195, 7
    %v197 = vsub.s32 1, %v196
    %v198 = vrot.slane %v189, %v197
    %v199 = vlaneseq
    %v200 = vshrl.u32 %v199, 7
    %v201 = vsub.s32 2, %v200
    %v202 = vrot.slane %v189, %v201
    %v203 = vlaneseq
    %v204 = vshrl.u32 %v203, 7
    %v205 = vsub.s32 3, %v204
    %v206 = vrot.slane %v189, %v205
    %v207 = vlaneseq
    %v208 = vshrl.u32 %v207, 7
    %v209 = vsub.s32 4, %v208
    %v210 = vrot.slane %v189, %v209
    %v211 = vlaneseq
    %v212 = vshrl.u32 %v211, 7
    %v213 = vsub.s32 5, %v212
    %v214 = vrot.slane %v189, %v213
    %v215 = vlaneseq
    %v216 = vshrl.u32 %v215, 7
    %v217 = vsub.s32 6, %v216
    %v218 = vrot.slane %v189, %v217
    %v219 = vlaneseq
    %v220 = vshrl.u32 %v219, 7
    %v221 = vsub.s32 7, %v220
    %v222 = vrot.slane %v189, %v221
    %v295 = vunpack.c.l.b16 %v61
    %v296 = vunpack.c.l.b16 %v62
    %v297 = vunpack.c.l.b16 %v63
    %v298 = vunpack.c.l.b16 %v64
    %v299 = vunpack.c.l.b16 %v65
    %v300 = vunpack.c.l.b16 %v66
    %v301 = vunpack.c.l.b16 %v67
    %v302 = vunpack.c.l.b16 %v68
    %v303 = vunpack.c.l.b16 %v69
    %v304 = vunpack.c.l.b16 %v70
    %v305 = vunpack.c.l.b16 %v71
    %v306 = vunpack.c.l.b16 %v72
    %v307 = vunpack.c.l.b16 %v73
    %v308 = vunpack.c.l.b16 %v74
    %v309 = vunpack.c.l.b16 %v75
    %v310 = vunpack.c.l.b16 %v76
    %v311 = vunpack.c.l.b16 %v77
    %v312 = vunpack.c.l.b16 %v78
    %v313 = vunpack.c.l.b16 %v79
    %v314 = vunpack.c.l.b16 %v80
    %v315 = vunpack.c.l.b16 %v81
    %v316 = vunpack.c.l.b16 %v82
    %v317 = vunpack.c.l.b16 %v83
    %v318 = vunpack.c.l.b16 %v84
    %v319 = vunpack.c.l.b16 %v85
    %v320 = vunpack.c.l.b16 %v86
    %v321 = vunpack.c.l.b16 %v87
    %v322 = vunpack.c.l.b16 %v88
    %v323 = vunpack.c.l.b16 %v89
    %v324 = vunpack.c.l.b16 %v90
    %v325 = vunpack.c.l.b16 %v91
    %v326 = vunpack.c.l.b16 %v92
    %v327 = vunpack.c.l.b16 %v93
    %v328 = vunpack.c.l.b16 %v94
    %v329 = vunpack.c.l.b16 %v95
    %v330 = vunpack.c.l.b16 %v96
    %v331 = vunpack.c.l.b16 %v97
    %v332 = vunpack.c.l.b16 %v98
    %v333 = vunpack.c.l.b16 %v99
    %v334 = vunpack.c.l.b16 %v100
    %v335 = vunpack.c.l.b16 %v101
    %v336 = vunpack.c.l.b16 %v102
    %v337 = vunpack.c.l.b16 %v103
    %v338 = vunpack.c.l.b16 %v104
    %v339 = vunpack.c.l.b16 %v105
    %v340 = vunpack.c.l.b16 %v106
    %v341 = vunpack.c.l.b16 %v107
    %v342 = vunpack.c.l.b16 %v108
    %v343 = vunpack.c.l.b16 %v109
    %v344 = vunpack.c.l.b16 %v110
    %v345 = vunpack.c.l.b16 %v111
    %v346 = vunpack.c.l.b16 %v112
    %v347 = vunpack.c.l.b16 %v113
    %v348 = vunpack.c.l.b16 %v114
    %v349 = vunpack.c.l.b16 %v115
    %v350 = vunpack.c.l.b16 %v116
    %v351 = vunpack.c.l.b16 %v117
    %v352 = vunpack.c.l.b16 %v118
    %v353 = vunpack.c.l.b16 %v119
    %v354 = vunpack.c.l.b16 %v120
    %v355 = vunpack.c.l.b16 %v121
    %v356 = vunpack.c.l.b16 %v122
    %v357 = vunpack.c.l.b16 %v123
    %v358 = vunpack.c.l.b16 %v124
    %v359 = vpack.c.b16 %v296, %v295
    %v360 = vpack.c.b16 %v298, %v297
    %v361 = vpack.c.b16 %v300, %v299
    %v362 = vpack.c.b16 %v302, %v301
    %v363 = vpack.c.b16 %v304, %v303
    %v364 = vpack.c.b16 %v306, %v305
    %v365 = vpack.c.b16 %v308, %v307
    %v366 = vpack.c.b16 %v310, %v309
    %v367 = vpack.c.b16 %v312, %v311
    %v368 = vpack.c.b16 %v314, %v313
    %v369 = vpack.c.b16 %v316, %v315
    %v370 = vpack.c.b16 %v318, %v317
    %v371 = vpack.c.b16 %v320, %v319
    %v372 = vpack.c.b16 %v322, %v321
    %v373 = vpack.c.b16 %v324, %v323
    %v374 = vpack.c.b16 %v326, %v325
    %v375 = vpack.c.b16 %v328, %v327
    %v376 = vpack.c.b16 %v330, %v329
    %v377 = vpack.c.b16 %v332, %v331
    %v378 = vpack.c.b16 %v334, %v333
    %v379 = vpack.c.b16 %v336, %v335
    %v380 = vpack.c.b16 %v338, %v337
    %v381 = vpack.c.b16 %v340, %v339
    %v382 = vpack.c.b16 %v342, %v341
    %v383 = vpack.c.b16 %v344, %v343
    %v384 = vpack.c.b16 %v346, %v345
    %v385 = vpack.c.b16 %v348, %v347
    %v386 = vpack.c.b16 %v350, %v349
    %v387 = vpack.c.b16 %v352, %v351
    %v388 = vpack.c.b16 %v354, %v353
    %v389 = vpack.c.b16 %v356, %v355
    %v390 = vpack.c.b16 %v358, %v357
    %v487 = vunpack.c.l.b16 %v125
    %v488 = vunpack.c.h.b16 %v125
    %v489 = vunpack.c.l.b16 %v126
    %v490 = vunpack.c.h.b16 %v126
    %v491 = vunpack.c.l.b16 %v127
    %v492 = vunpack.c.h.b16 %v127
    %v493 = vunpack.c.l.b16 %v128
    %v494 = vunpack.c.h.b16 %v128
    %v495 = vunpack.c.l.b16 %v129
    %v496 = vunpack.c.h.b16 %v129
    %v497 = vunpack.c.l.b16 %v130
    %v498 = vunpack.c.h.b16 %v130
    %v499 = vunpack.c.l.b16 %v131
    %v500 = vunpack.c.h.b16 %v131
    %v501 = vunpack.c.l.b16 %v132
    %v502 = vunpack.c.h.b16 %v132
    %v503 = vunpack.c.l.b16 %v133
    %v504 = vunpack.c.h.b16 %v133
    %v505 = vunpack.c.l.b16 %v134
    %v506 = vunpack.c.h.b16 %v134
    %v507 = vunpack.c.l.b16 %v135
    %v508 = vunpack.c.h.b16 %v135
    %v509 = vunpack.c.l.b16 %v136
    %v510 = vunpack.c.h.b16 %v136
    %v511 = vunpack.c.l.b16 %v137
    %v512 = vunpack.c.h.b16 %v137
    %v513 = vunpack.c.l.b16 %v138
    %v514 = vunpack.c.h.b16 %v138
    %v515 = vunpack.c.l.b16 %v139
    %v516 = vunpack.c.h.b16 %v139
    %v517 = vunpack.c.l.b16 %v140
    %v518 = vunpack.c.h.b16 %v140
    %v519 = vunpack.c.l.b16 %v141
    %v520 = vunpack.c.h.b16 %v141
    %v521 = vunpack.c.l.b16 %v142
    %v522 = vunpack.c.h.b16 %v142
    %v523 = vunpack.c.l.b16 %v143
    %v524 = vunpack.c.h.b16 %v143
    %v525 = vunpack.c.l.b16 %v144
    %v526 = vunpack.c.h.b16 %v144
    %v527 = vunpack.c.l.b16 %v145
    %v528 = vunpack.c.h.b16 %v145
    %v529 = vunpack.c.l.b16 %v146
    %v530 = vunpack.c.h.b16 %v146
    %v531 = vunpack.c.l.b16 %v147
    %v532 = vunpack.c.h.b16 %v147
    %v533 = vunpack.c.l.b16 %v148
    %v534 = vunpack.c.h.b16 %v148
    %v535 = vunpack.c.l.b16 %v149
    %v536 = vunpack.c.h.b16 %v149
    %v537 = vunpack.c.l.b16 %v150
    %v538 = vunpack.c.h.b16 %v150
    %v539 = vunpack.c.l.b16 %v151
    %v540 = vunpack.c.h.b16 %v151
    %v541 = vunpack.c.l.b16 %v152
    %v542 = vunpack.c.h.b16 %v152
    %v543 = vunpack.c.l.b16 %v153
    %v544 = vunpack.c.h.b16 %v153
    %v545 = vunpack.c.l.b16 %v154
    %v546 = vunpack.c.h.b16 %v154
    %v547 = vunpack.c.l.b16 %v155
    %v548 = vunpack.c.h.b16 %v155
    %v549 = vunpack.c.l.b16 %v156
    %v550 = vunpack.c.h.b16 %v156
    %v551 = vunpack.c.l.b16 %v157
    %v552 = vunpack.c.h.b16 %v157
    %v553 = vunpack.c.l.b16 %v158
    %v554 = vunpack.c.h.b16 %v158
    %v555 = vunpack.c.l.b16 %v159
    %v556 = vunpack.c.h.b16 %v159
    %v557 = vunpack.c.l.b16 %v160
    %v558 = vunpack.c.h.b16 %v160
    %v559 = vunpack.c.l.b16 %v161
    %v560 = vunpack.c.h.b16 %v161
    %v561 = vunpack.c.l.b16 %v162
    %v562 = vunpack.c.h.b16 %v162
    %v563 = vunpack.c.l.b16 %v163
    %v564 = vunpack.c.h.b16 %v163
    %v565 = vunpack.c.l.b16 %v164
    %v566 = vunpack.c.h.b16 %v164
    %v567 = vunpack.c.l.b16 %v165
    %v568 = vunpack.c.h.b16 %v165
    %v569 = vunpack.c.l.b16 %v166
    %v570 = vunpack.c.h.b16 %v166
    %v571 = vunpack.c.l.b16 %v167
    %v572 = vunpack.c.h.b16 %v167
    %v573 = vunpack.c.l.b16 %v168
    %v574 = vunpack.c.h.b16 %v168
    %v575 = vunpack.c.l.b16 %v169
    %v576 = vunpack.c.h.b16 %v169
    %v577 = vunpack.c.l.b16 %v170
    %v578 = vunpack.c.h.b16 %v170
    %v579 = vunpack.c.l.b16 %v171
    %v580 = vunpack.c.h.b16 %v171
    %v581 = vunpack.c.l.b16 %v172
    %v582 = vunpack.c.h.b16 %v172
    %v583 = vunpack.c.l.b16 %v173
    %v584 = vunpack.c.h.b16 %v173
    %v585 = vunpack.c.l.b16 %v174
    %v586 = vunpack.c.h.b16 %v174
    %v587 = vunpack.c.l.b16 %v175
    %v588 = vunpack.c.h.b16 %v175
    %v589 = vunpack.c.l.b16 %v176
    %v590 = vunpack.c.h.b16 %v176
    %v591 = vunpack.c.l.b16 %v177
    %v592 = vunpack.c.h.b16 %v177
    %v593 = vunpack.c.l.b16 %v178
    %v594 = vunpack.c.h.b16 %v178
    %v595 = vunpack.c.l.b16 %v179
    %v596 = vunpack.c.h.b16 %v179
    %v597 = vunpack.c.l.b16 %v180
    %v598 = vunpack.c.h.b16 %v180
    %v599 = vunpack.c.l.b16 %v181
    %v600 = vunpack.c.h.b16 %v181
    %v601 = vunpack.c.l.b16 %v182
    %v602 = vunpack.c.h.b16 %v182
    %v603 = vunpack.c.l.b16 %v183
    %v604 = vunpack.c.h.b16 %v183
    %v605 = vunpack.c.l.b16 %v184
    %v606 = vunpack.c.h.b16 %v184
    %v607 = vunpack.c.l.b16 %v185
    %v608 = vunpack.c.h.b16 %v185
    %v609 = vunpack.c.l.b16 %v186
    %v610 = vunpack.c.h.b16 %v186
    %v611 = vunpack.c.l.b16 %v187
    %v612 = vunpack.c.h.b16 %v187
    %v613 = vunpack.c.l.b16 %v188
    %v614 = vunpack.c.h.b16 %v188
    %v615 = vpack.c.b16 %v495, %v487
    %v616 = vpack.c.b16 %v496, %v488
    %v617 = vpack.c.b16 %v497, %v489
    %v618 = vpack.c.b16 %v498, %v490
    %v619 = vpack.c.b16 %v499, %v491
    %v620 = vpack.c.b16 %v500, %v492
    %v621 = vpack.c.b16 %v501, %v493
    %v622 = vpack.c.b16 %v502, %v494
    %v623 = vpack.c.b16 %v511, %v503
    %v624 = vpack.c.b16 %v512, %v504
    %v625 = vpack.c.b16 %v513, %v505
    %v626 = vpack.c.b16 %v514, %v506
    %v627 = vpack.c.b16 %v515, %v507
    %v628 = vpack.c.b16 %v516, %v508
    %v629 = vpack.c.b16 %v517, %v509
    %v630 = vpack.c.b16 %v518, %v510
    %v631 = vpack.c.b16 %v527, %v519
    %v632 = vpack.c.b16 %v528, %v520
    %v633 = vpack.c.b16 %v529, %v521
    %v634 = vpack.c.b16 %v530, %v522
    %v635 = vpack.c.b16 %v531, %v523
    %v636 = vpack.c.b16 %v532, %v524
    %v637 = vpack.c.b16 %v533, %v525
    %v638 = vpack.c.b16 %v534, %v526
    %v639 = vpack.c.b16 %v543, %v535
    %v640 = vpack.c.b16 %v544, %v536
    %v641 = vpack.c.b16 %v545, %v537
    %v642 = vpack.c.b16 %v546, %v538
    %v643 = vpack.c.b16 %v547, %v539
    %v644 = vpack.c.b16 %v548, %v540
    %v645 = vpack.c.b16 %v549, %v541
    %v646 = vpack.c.b16 %v550, %v542
    %v647 = vpack.c.b16 %v559, %v551
    %v648 = vpack.c.b16 %v560, %v552
    %v649 = vpack.c.b16 %v561, %v553
    %v650 = vpack.c.b16 %v562, %v554
    %v651 = vpack.c.b16 %v563, %v555
    %v652 = vpack.c.b16 %v564, %v556
    %v653 = vpack.c.b16 %v565, %v557
    %v654 = vpack.c.b16 %v566, %v558
    %v655 = vpack.c.b16 %v575, %v567
    %v656 = vpack.c.b16 %v576, %v568
    %v657 = vpack.c.b16 %v577, %v569
    %v658 = vpack.c.b16 %v578, %v570
    %v659 = vpack.c.b16 %v579, %v571
    %v660 = vpack.c.b16 %v580, %v572
    %v661 = vpack.c.b16 %v581, %v573
    %v662 = vpack.c.b16 %v582, %v574
    %v663 = vpack.c.b16 %v591, %v583
    %v664 = vpack.c.b16 %v592, %v584
    %v665 = vpack.c.b16 %v593, %v585
    %v666 = vpack.c.b16 %v594, %v586
    %v667 = vpack.c.b16 %v595, %v587
    %v668 = vpack.c.b16 %v596, %v588
    %v669 = vpack.c.b16 %v597, %v589
    %v670 = vpack.c.b16 %v598, %v590
    %v671 = vpack.c.b16 %v607, %v599
    %v672 = vpack.c.b16 %v608, %v600
    %v673 = vpack.c.b16 %v609, %v601
    %v674 = vpack.c.b16 %v610, %v602
    %v675 = vpack.c.b16 %v611, %v603
    %v676 = vpack.c.b16 %v612, %v604
    %v677 = vpack.c.b16 %v613, %v605
    %v678 = vpack.c.b16 %v614, %v606
    %743 = vmatprep.subr.bf16.mxu0 %v616
    %744 = vmatpush1.bf16.msra.mxu0 %v615
    %745 = vmatprep.subr.bf16.mxu0 %v624
    %746 = vmatpush1.bf16.msra.mxu0 %v623
    %747 = vmatprep.subr.bf16.mxu0 %v632
    %748 = vmatpush1.bf16.msra.mxu0 %v631
    %749 = vmatprep.subr.bf16.mxu0 %v640
    %750 = vmatpush1.bf16.msra.mxu0 %v639
    %751 = vmatprep.subr.bf16.mxu0 %v648
    %752 = vmatpush1.bf16.msra.mxu0 %v647
    %753 = vmatprep.subr.bf16.mxu0 %v656
    %754 = vmatpush1.bf16.msra.mxu0 %v655
    %755 = vmatprep.subr.bf16.mxu0 %v664
    %756 = vmatpush1.bf16.msra.mxu0 %v663
    %757 = vmatprep.subr.bf16.mxu0 %v672
    %758 = vmatpush1.bf16.msra.mxu0 %v671
    %759 = vmatprep.subr.bf16.mxu0 0
    %760 = vmatpush1.bf16.msra.mxu0 0
    %761 = vmatprep.subr.bf16.mxu0 0
    %762 = vmatpush1.bf16.msra.mxu0 0
    %763 = vmatprep.subr.bf16.mxu0 0
    %764 = vmatpush1.bf16.msra.mxu0 0
    %765 = vmatprep.subr.bf16.mxu0 0
    %766 = vmatpush1.bf16.msra.mxu0 0
    %767 = vmatprep.subr.bf16.mxu0 0
    %768 = vmatpush1.bf16.msra.mxu0 0
    %769 = vmatprep.subr.bf16.mxu0 0
    %770 = vmatpush1.bf16.msra.mxu0 0
    %771 = vmatprep.subr.bf16.mxu0 0
    %772 = vmatpush1.bf16.msra.mxu0 0
    %773 = vmatprep.subr.bf16.mxu0 0
    %774 = vmatpush1.bf16.msra.mxu0 0
    %775 = vmatprep.mubr.bf16.mxu0 0
    %776 = vmatmul.mubr.bf16.gmra.mrb[0].mxu0 %v359
    %v777 = vpop.f32.mrb[0].mxu0
    %v778 = vadd.f32 %v194, %v777
    %v779 = vpop.f32.mrb[0].mxu0
    %v780 = vadd.f32 %v198, %v779
    %v781 = vpop.f32.mrb[0].mxu0
    %v782 = vadd.f32 %v194, %v781
    %v783 = vpop.f32.mrb[0].mxu0
    %v784 = vadd.f32 %v198, %v783
    %785 = vmatprep.mubr.bf16.mxu0 0
    %786 = vmatmul.mubr.bf16.gmra.mrb[0].mxu0 %v360
    %v787 = vpop.f32.mrb[0].mxu0
    %v788 = vadd.f32 %v194, %v787
    %v789 = vpop.f32.mrb[0].mxu0
    %v790 = vadd.f32 %v198, %v789
    %v791 = vpop.f32.mrb[0].mxu0
    %v792 = vadd.f32 %v194, %v791
    %v793 = vpop.f32.mrb[0].mxu0
    %v794 = vadd.f32 %v198, %v793
    %795 = vmatprep.mubr.bf16.mxu0 0
    %796 = vmatmul.mubr.bf16.gmra.mrb[0].mxu0 %v361
    %v797 = vpop.f32.mrb[0].mxu0
    %v798 = vadd.f32 %v194, %v797
    %v799 = vpop.f32.mrb[0].mxu0
    %v800 = vadd.f32 %v198, %v799
    %v801 = vpop.f32.mrb[0].mxu0
    %v802 = vadd.f32 %v194, %v801
    %v803 = vpop.f32.mrb[0].mxu0
    %v804 = vadd.f32 %v198, %v803
    %805 = vmatprep.mubr.bf16.mxu0 0
    %806 = vmatmul.mubr.bf16.gmra.mrb[0].mxu0 %v362
    %v807 = vpop.f32.mrb[0].mxu0
    %v808 = vadd.f32 %v194, %v807
    %v809 = vpop.f32.mrb[0].mxu0
    %v810 = vadd.f32 %v198, %v809
    %v811 = vpop.f32.mrb[0].mxu0
    %v812 = vadd.f32 %v194, %v811
    %v813 = vpop.f32.mrb[0].mxu0
    %v814 = vadd.f32 %v198, %v813
    %815 = vmatprep.mubr.bf16.mxu0 0
    %816 = vmatmul.mubr.bf16.gmra.mrb[0].mxu0 %v363
    %v817 = vpop.f32.mrb[0].mxu0
    %v818 = vadd.f32 %v194, %v817
    %v819 = vpop.f32.mrb[0].mxu0
    %v820 = vadd.f32 %v198, %v819
    %v821 = vpop.f32.mrb[0].mxu0
    %v822 = vadd.f32 %v194, %v821
    %v823 = vpop.f32.mrb[0].mxu0
    %v824 = vadd.f32 %v198, %v823
    %825 = vmatprep.mubr.bf16.mxu0 0
    %826 = vmatmul.mubr.bf16.gmra.mrb[0].mxu0 %v364
    %v827 = vpop.f32.mrb[0].mxu0
    %v828 = vadd.f32 %v194, %v827
    %v829 = vpop.f32.mrb[0].mxu0
    %v830 = vadd.f32 %v198, %v829
    %v831 = vpop.f32.mrb[0].mxu0
    %v832 = vadd.f32 %v194, %v831
    %v833 = vpop.f32.mrb[0].mxu0
    %v834 = vadd.f32 %v198, %v833
    %835 = vmatprep.mubr.bf16.mxu0 0
    %836 = vmatmul.mubr.bf16.gmra.mrb[0].mxu0 %v365
    %v837 = vpop.f32.mrb[0].mxu0
    %v838 = vadd.f32 %v194, %v837
    %v839 = vpop.f32.mrb[0].mxu0
    %v840 = vadd.f32 %v198, %v839
    %v841 = vpop.f32.mrb[0].mxu0
    %v842 = vadd.f32 %v194, %v841
    %v843 = vpop.f32.mrb[0].mxu0
    %v844 = vadd.f32 %v198, %v843
    %845 = vmatprep.mubr.bf16.mxu0 0
    %846 = vmatmul.mubr.bf16.gmra.mrb[0].mxu0 %v366
    %v847 = vpop.f32.mrb[0].mxu0
    %v848 = vadd.f32 %v194, %v847
    %v849 = vpop.f32.mrb[0].mxu0
    %v850 = vadd.f32 %v198, %v849
    %v851 = vpop.f32.mrb[0].mxu0
    %v852 = vadd.f32 %v194, %v851
    %v853 = vpop.f32.mrb[0].mxu0
    %v854 = vadd.f32 %v198, %v853
    %855 = vmatprep.mubr.bf16.mxu0 0
    %856 = vmatmul.mubr.bf16.gmra.mrb[0].mxu0 %v367
    %v857 = vpop.f32.mrb[0].mxu0
    %v858 = vadd.f32 %v194, %v857
    %v859 = vpop.f32.mrb[0].mxu0
    %v860 = vadd.f32 %v198, %v859
    %v861 = vpop.f32.mrb[0].mxu0
    %v862 = vadd.f32 %v194, %v861
    %v863 = vpop.f32.mrb[0].mxu0
    %v864 = vadd.f32 %v198, %v863
    %865 = vmatprep.mubr.bf16.mxu0 0
    %866 = vmatmul.mubr.bf16.gmra.mrb[0].mxu0 %v368
    %v867 = vpop.f32.mrb[0].mxu0
    %v868 = vadd.f32 %v194, %v867
    %v869 = vpop.f32.mrb[0].mxu0
    %v870 = vadd.f32 %v198, %v869
    %v871 = vpop.f32.mrb[0].mxu0
    %v872 = vadd.f32 %v194, %v871
    %v873 = vpop.f32.mrb[0].mxu0
    %v874 = vadd.f32 %v198, %v873
    %875 = vmatprep.mubr.bf16.mxu0 0
    %876 = vmatmul.mubr.bf16.gmra.mrb[0].mxu0 %v369
    %v877 = vpop.f32.mrb[0].mxu0
    %v878 = vadd.f32 %v194, %v877
    %v879 = vpop.f32.mrb[0].mxu0
    %v880 = vadd.f32 %v198, %v879
    %v881 = vpop.f32.mrb[0].mxu0
    %v882 = vadd.f32 %v194, %v881
    %v883 = vpop.f32.mrb[0].mxu0
    %v884 = vadd.f32 %v198, %v883
    %885 = vmatprep.mubr.bf16.mxu0 0
    %886 = vmatmul.mubr.bf16.gmra.mrb[0].mxu0 %v370
    %v887 = vpop.f32.mrb[0].mxu0
    %v888 = vadd.f32 %v194, %v887
    %v889 = vpop.f32.mrb[0].mxu0
    %v890 = vadd.f32 %v198, %v889
    %v891 = vpop.f32.mrb[0].mxu0
    %v892 = vadd.f32 %v194, %v891
    %v893 = vpop.f32.mrb[0].mxu0
    %v894 = vadd.f32 %v198, %v893
    %895 = vmatprep.mubr.bf16.mxu0 0
    %896 = vmatmul.mubr.bf16.gmra.mrb[0].mxu0 %v371
    %v897 = vpop.f32.mrb[0].mxu0
    %v898 = vadd.f32 %v194, %v897
    %v899 = vpop.f32.mrb[0].mxu0
    %v900 = vadd.f32 %v198, %v899
    %v901 = vpop.f32.mrb[0].mxu0
    %v902 = vadd.f32 %v194, %v901
    %v903 = vpop.f32.mrb[0].mxu0
    %v904 = vadd.f32 %v198, %v903
    %905 = vmatprep.mubr.bf16.mxu0 0
    %906 = vmatmul.mubr.bf16.gmra.mrb[0].mxu0 %v372
    %v907 = vpop.f32.mrb[0].mxu0
    %v908 = vadd.f32 %v194, %v907
    %v909 = vpop.f32.mrb[0].mxu0
    %v910 = vadd.f32 %v198, %v909
    %v911 = vpop.f32.mrb[0].mxu0
    %v912 = vadd.f32 %v194, %v911
    %v913 = vpop.f32.mrb[0].mxu0
    %v914 = vadd.f32 %v198, %v913
    %915 = vmatprep.mubr.bf16.mxu0 0
    %916 = vmatmul.mubr.bf16.gmra.mrb[0].mxu0 %v373
    %v917 = vpop.f32.mrb[0].mxu0
    %v918 = vadd.f32 %v194, %v917
    %v919 = vpop.f32.mrb[0].mxu0
    %v920 = vadd.f32 %v198, %v919
    %v921 = vpop.f32.mrb[0].mxu0
    %v922 = vadd.f32 %v194, %v921
    %v923 = vpop.f32.mrb[0].mxu0
    %v924 = vadd.f32 %v198, %v923
    %925 = vmatprep.mubr.bf16.mxu0 0
    %926 = vmatmul.mubr.bf16.gmra.mrb[0].mxu0 %v374
    %v927 = vpop.f32.mrb[0].mxu0
    %v928 = vadd.f32 %v194, %v927
    %v929 = vpop.f32.mrb[0].mxu0
    %v930 = vadd.f32 %v198, %v929
    %v931 = vpop.f32.mrb[0].mxu0
    %v932 = vadd.f32 %v194, %v931
    %v933 = vpop.f32.mrb[0].mxu0
    %v934 = vadd.f32 %v198, %v933
    %935 = vmatprep.mubr.bf16.mxu0 0
    %936 = vmatmul.mubr.bf16.gmra.mrb[0].mxu0 %v375
    %v937 = vpop.f32.mrb[0].mxu0
    %v938 = vadd.f32 %v194, %v937
    %v939 = vpop.f32.mrb[0].mxu0
    %v940 = vadd.f32 %v198, %v939
    %v941 = vpop.f32.mrb[0].mxu0
    %v942 = vadd.f32 %v194, %v941
    %v943 = vpop.f32.mrb[0].mxu0
    %v944 = vadd.f32 %v198, %v943
    %945 = vmatprep.mubr.bf16.mxu0 0
    %946 = vmatmul.mubr.bf16.gmra.mrb[0].mxu0 %v376
    %v947 = vpop.f32.mrb[0].mxu0
    %v948 = vadd.f32 %v194, %v947
    %v949 = vpop.f32.mrb[0].mxu0
    %v950 = vadd.f32 %v198, %v949
    %v951 = vpop.f32.mrb[0].mxu0
    %v952 = vadd.f32 %v194, %v951
    %v953 = vpop.f32.mrb[0].mxu0
    %v954 = vadd.f32 %v198, %v953
    %955 = vmatprep.mubr.bf16.mxu0 0
    %956 = vmatmul.mubr.bf16.gmra.mrb[0].mxu0 %v377
    %v957 = vpop.f32.mrb[0].mxu0
    %v958 = vadd.f32 %v194, %v957
    %v959 = vpop.f32.mrb[0].mxu0
    %v960 = vadd.f32 %v198, %v959
    %v961 = vpop.f32.mrb[0].mxu0
    %v962 = vadd.f32 %v194, %v961
    %v963 = vpop.f32.mrb[0].mxu0
    %v964 = vadd.f32 %v198, %v963
    %965 = vmatprep.mubr.bf16.mxu0 0
    %966 = vmatmul.mubr.bf16.gmra.mrb[0].mxu0 %v378
    %v967 = vpop.f32.mrb[0].mxu0
    %v968 = vadd.f32 %v194, %v967
    %v969 = vpop.f32.mrb[0].mxu0
    %v970 = vadd.f32 %v198, %v969
    %v971 = vpop.f32.mrb[0].mxu0
    %v972 = vadd.f32 %v194, %v971
    %v973 = vpop.f32.mrb[0].mxu0
    %v974 = vadd.f32 %v198, %v973
    %975 = vmatprep.mubr.bf16.mxu0 0
    %976 = vmatmul.mubr.bf16.gmra.mrb[0].mxu0 %v379
    %v977 = vpop.f32.mrb[0].mxu0
    %v978 = vadd.f32 %v194, %v977
    %v979 = vpop.f32.mrb[0].mxu0
    %v980 = vadd.f32 %v198, %v979
    %v981 = vpop.f32.mrb[0].mxu0
    %v982 = vadd.f32 %v194, %v981
    %v983 = vpop.f32.mrb[0].mxu0
    %v984 = vadd.f32 %v198, %v983
    %985 = vmatprep.mubr.bf16.mxu0 0
    %986 = vmatmul.mubr.bf16.gmra.mrb[0].mxu0 %v380
    %v987 = vpop.f32.mrb[0].mxu0
    %v988 = vadd.f32 %v194, %v987
    %v989 = vpop.f32.mrb[0].mxu0
    %v990 = vadd.f32 %v198, %v989
    %v991 = vpop.f32.mrb[0].mxu0
    %v992 = vadd.f32 %v194, %v991
    %v993 = vpop.f32.mrb[0].mxu0
    %v994 = vadd.f32 %v198, %v993
    %995 = vmatprep.mubr.bf16.mxu0 0
    %996 = vmatmul.mubr.bf16.gmra.mrb[0].mxu0 %v381
    %v997 = vpop.f32.mrb[0].mxu0
    %v998 = vadd.f32 %v194, %v997
    %v999 = vpop.f32.mrb[0].mxu0
    %v1000 = vadd.f32 %v198, %v999
    %v1001 = vpop.f32.mrb[0].mxu0
    %v1002 = vadd.f32 %v194, %v1001
    %v1003 = vpop.f32.mrb[0].mxu0
    %v1004 = vadd.f32 %v198, %v1003
    %1005 = vmatprep.mubr.bf16.mxu0 0
    %1006 = vmatmul.mubr.bf16.gmra.mrb[0].mxu0 %v382
    %v1007 = vpop.f32.mrb[0].mxu0
    %v1008 = vadd.f32 %v194, %v1007
    %v1009 = vpop.f32.mrb[0].mxu0
    %v1010 = vadd.f32 %v198, %v1009
    %v1011 = vpop.f32.mrb[0].mxu0
    %v1012 = vadd.f32 %v194, %v1011
    %v1013 = vpop.f32.mrb[0].mxu0
    %v1014 = vadd.f32 %v198, %v1013
    %1015 = vmatprep.mubr.bf16.mxu0 0
    %1016 = vmatmul.mubr.bf16.gmra.mrb[0].mxu0 %v383
    %v1017 = vpop.f32.mrb[0].mxu0
    %v1018 = vadd.f32 %v194, %v1017
    %v1019 = vpop.f32.mrb[0].mxu0
    %v1020 = vadd.f32 %v198, %v1019
    %v1021 = vpop.f32.mrb[0].mxu0
    %v1022 = vadd.f32 %v194, %v1021
    %v1023 = vpop.f32.mrb[0].mxu0
    %v1024 = vadd.f32 %v198, %v1023
    %1025 = vmatprep.mubr.bf16.mxu0 0
    %1026 = vmatmul.mubr.bf16.gmra.mrb[0].mxu0 %v384
    %v1027 = vpop.f32.mrb[0].mxu0
    %v1028 = vadd.f32 %v194, %v1027
    %v1029 = vpop.f32.mrb[0].mxu0
    %v1030 = vadd.f32 %v198, %v1029
    %v1031 = vpop.f32.mrb[0].mxu0
    %v1032 = vadd.f32 %v194, %v1031
    %v1033 = vpop.f32.mrb[0].mxu0
    %v1034 = vadd.f32 %v198, %v1033
    %1035 = vmatprep.mubr.bf16.mxu0 0
    %1036 = vmatmul.mubr.bf16.gmra.mrb[0].mxu0 %v385
    %v1037 = vpop.f32.mrb[0].mxu0
    %v1038 = vadd.f32 %v194, %v1037
    %v1039 = vpop.f32.mrb[0].mxu0
    %v1040 = vadd.f32 %v198, %v1039
    %v1041 = vpop.f32.mrb[0].mxu0
    %v1042 = vadd.f32 %v194, %v1041
    %v1043 = vpop.f32.mrb[0].mxu0
    %v1044 = vadd.f32 %v198, %v1043
    %1045 = vmatprep.mubr.bf16.mxu0 0
    %1046 = vmatmul.mubr.bf16.gmra.mrb[0].mxu0 %v386
    %v1047 = vpop.f32.mrb[0].mxu0
    %v1048 = vadd.f32 %v194, %v1047
    %v1049 = vpop.f32.mrb[0].mxu0
    %v1050 = vadd.f32 %v198, %v1049
    %v1051 = vpop.f32.mrb[0].mxu0
    %v1052 = vadd.f32 %v194, %v1051
    %v1053 = vpop.f32.mrb[0].mxu0
    %v1054 = vadd.f32 %v198, %v1053
    %1055 = vmatprep.mubr.bf16.mxu0 0
    %1056 = vmatmul.mubr.bf16.gmra.mrb[0].mxu0 %v387
    %v1057 = vpop.f32.mrb[0].mxu0
    %v1058 = vadd.f32 %v194, %v1057
    %v1059 = vpop.f32.mrb[0].mxu0
    %v1060 = vadd.f32 %v198, %v1059
    %v1061 = vpop.f32.mrb[0].mxu0
    %v1062 = vadd.f32 %v194, %v1061
    %v1063 = vpop.f32.mrb[0].mxu0
    %v1064 = vadd.f32 %v198, %v1063
    %1065 = vmatprep.mubr.bf16.mxu0 0
    %1066 = vmatmul.mubr.bf16.gmra.mrb[0].mxu0 %v388
    %v1067 = vpop.f32.mrb[0].mxu0
    %v1068 = vadd.f32 %v194, %v1067
    %v1069 = vpop.f32.mrb[0].mxu0
    %v1070 = vadd.f32 %v198, %v1069
    %v1071 = vpop.f32.mrb[0].mxu0
    %v1072 = vadd.f32 %v194, %v1071
    %v1073 = vpop.f32.mrb[0].mxu0
    %v1074 = vadd.f32 %v198, %v1073
    %1075 = vmatprep.mubr.bf16.mxu0 0
    %1076 = vmatmul.mubr.bf16.gmra.mrb[0].mxu0 %v389
    %v1077 = vpop.f32.mrb[0].mxu0
    %v1078 = vadd.f32 %v194, %v1077
    %v1079 = vpop.f32.mrb[0].mxu0
    %v1080 = vadd.f32 %v198, %v1079
    %v1081 = vpop.f32.mrb[0].mxu0
    %v1082 = vadd.f32 %v194, %v1081
    %v1083 = vpop.f32.mrb[0].mxu0
    %v1084 = vadd.f32 %v198, %v1083
    %1085 = vmatprep.mubr.bf16.mxu0 0
    %1086 = vmatmul.mubr.bf16.gmra.mrb[0].mxu0 %v390
    %v1087 = vpop.f32.mrb[0].mxu0
    %v1088 = vadd.f32 %v194, %v1087
    %v1089 = vpop.f32.mrb[0].mxu0
    %v1090 = vadd.f32 %v198, %v1089
    %v1091 = vpop.f32.mrb[0].mxu0
    %v1092 = vadd.f32 %v194, %v1091
    %v1093 = vpop.f32.mrb[0].mxu0
    %v1094 = vadd.f32 %v198, %v1093
    %1095 = vdwg.mxu0
    %1096 = vmatprep.subr.bf16.mxu0 %v618
    %1097 = vmatpush1.bf16.msra.mxu0 %v617
    %1098 = vmatprep.subr.bf16.mxu0 %v626
    %1099 = vmatpush1.bf16.msra.mxu0 %v625
    %1100 = vmatprep.subr.bf16.mxu0 %v634
    %1101 = vmatpush1.bf16.msra.mxu0 %v633
    %1102 = vmatprep.subr.bf16.mxu0 %v642
    %1103 = vmatpush1.bf16.msra.mxu0 %v641
    %1104 = vmatprep.subr.bf16.mxu0 %v650
    %1105 = vmatpush1.bf16.msra.mxu0 %v649
    %1106 = vmatprep.subr.bf16.mxu0 %v658
    %1107 = vmatpush1.bf16.msra.mxu0 %v657
    %1108 = vmatprep.subr.bf16.mxu0 %v666
    %1109 = vmatpush1.bf16.msra.mxu0 %v665
    %1110 = vmatprep.subr.bf16.mxu0 %v674
    %1111 = vmatpush1.bf16.msra.mxu0 %v673
    %1112 = vmatprep.subr.bf16.mxu0 0
    %1113 = vmatpush1.bf16.msra.mxu0 0
    %1114 = vmatprep.subr.bf16.mxu0 0
    %1115 = vmatpush1.bf16.msra.mxu0 0
    %1116 = vmatprep.subr.bf16.mxu0 0
    %1117 = vmatpush1.bf16.msra.mxu0 0
    %1118 = vmatprep.subr.bf16.mxu0 0
    %1119 = vmatpush1.bf16.msra.mxu0 0
    %1120 = vmatprep.subr.bf16.mxu0 0
    %1121 = vmatpush1.bf16.msra.mxu0 0
    %1122 = vmatprep.subr.bf16.mxu0 0
    %1123 = vmatpush1.bf16.msra.mxu0 0
    %1124 = vmatprep.subr.bf16.mxu0 0
    %1125 = vmatpush1.bf16.msra.mxu0 0
    %1126 = vmatprep.subr.bf16.mxu0 0
    %1127 = vmatpush1.bf16.msra.mxu0 0
    %1128 = vmatprep.mubr.bf16.mxu0 0
    %1129 = vmatmul.mubr.bf16.gmra.mrb[0].mxu0 %v359
    %v1130 = vpop.f32.mrb[0].mxu0
    %v1131 = vadd.f32 %v202, %v1130
    %v1132 = vpop.f32.mrb[0].mxu0
    %v1133 = vadd.f32 %v206, %v1132
    %v1134 = vpop.f32.mrb[0].mxu0
    %v1135 = vadd.f32 %v202, %v1134
    %v1136 = vpop.f32.mrb[0].mxu0
    %v1137 = vadd.f32 %v206, %v1136
    %1138 = vmatprep.mubr.bf16.mxu0 0
    %1139 = vmatmul.mubr.bf16.gmra.mrb[0].mxu0 %v360
    %v1140 = vpop.f32.mrb[0].mxu0
    %v1141 = vadd.f32 %v202, %v1140
    %v1142 = vpop.f32.mrb[0].mxu0
    %v1143 = vadd.f32 %v206, %v1142
    %v1144 = vpop.f32.mrb[0].mxu0
    %v1145 = vadd.f32 %v202, %v1144
    %v1146 = vpop.f32.mrb[0].mxu0
    %v1147 = vadd.f32 %v206, %v1146
    %1148 = vmatprep.mubr.bf16.mxu0 0
    %1149 = vmatmul.mubr.bf16.gmra.mrb[0].mxu0 %v361
    %v1150 = vpop.f32.mrb[0].mxu0
    %v1151 = vadd.f32 %v202, %v1150
    %v1152 = vpop.f32.mrb[0].mxu0
    %v1153 = vadd.f32 %v206, %v1152
    %v1154 = vpop.f32.mrb[0].mxu0
    %v1155 = vadd.f32 %v202, %v1154
    %v1156 = vpop.f32.mrb[0].mxu0
    %v1157 = vadd.f32 %v206, %v1156
    %1158 = vmatprep.mubr.bf16.mxu0 0
    %1159 = vmatmul.mubr.bf16.gmra.mrb[0].mxu0 %v362
    %v1160 = vpop.f32.mrb[0].mxu0
    %v1161 = vadd.f32 %v202, %v1160
    %v1162 = vpop.f32.mrb[0].mxu0
    %v1163 = vadd.f32 %v206, %v1162
    %v1164 = vpop.f32.mrb[0].mxu0
    %v1165 = vadd.f32 %v202, %v1164
    %v1166 = vpop.f32.mrb[0].mxu0
    %v1167 = vadd.f32 %v206, %v1166
    %1168 = vmatprep.mubr.bf16.mxu0 0
    %1169 = vmatmul.mubr.bf16.gmra.mrb[0].mxu0 %v363
    %v1170 = vpop.f32.mrb[0].mxu0
    %v1171 = vadd.f32 %v202, %v1170
    %v1172 = vpop.f32.mrb[0].mxu0
    %v1173 = vadd.f32 %v206, %v1172
    %v1174 = vpop.f32.mrb[0].mxu0
    %v1175 = vadd.f32 %v202, %v1174
    %v1176 = vpop.f32.mrb[0].mxu0
    %v1177 = vadd.f32 %v206, %v1176
    %1178 = vmatprep.mubr.bf16.mxu0 0
    %1179 = vmatmul.mubr.bf16.gmra.mrb[0].mxu0 %v364
    %v1180 = vpop.f32.mrb[0].mxu0
    %v1181 = vadd.f32 %v202, %v1180
    %v1182 = vpop.f32.mrb[0].mxu0
    %v1183 = vadd.f32 %v206, %v1182
    %v1184 = vpop.f32.mrb[0].mxu0
    %v1185 = vadd.f32 %v202, %v1184
    %v1186 = vpop.f32.mrb[0].mxu0
    %v1187 = vadd.f32 %v206, %v1186
    %1188 = vmatprep.mubr.bf16.mxu0 0
    %1189 = vmatmul.mubr.bf16.gmra.mrb[0].mxu0 %v365
    %v1190 = vpop.f32.mrb[0].mxu0
    %v1191 = vadd.f32 %v202, %v1190
    %v1192 = vpop.f32.mrb[0].mxu0
    %v1193 = vadd.f32 %v206, %v1192
    %v1194 = vpop.f32.mrb[0].mxu0
    %v1195 = vadd.f32 %v202, %v1194
    %v1196 = vpop.f32.mrb[0].mxu0
    %v1197 = vadd.f32 %v206, %v1196
    %1198 = vmatprep.mubr.bf16.mxu0 0
    %1199 = vmatmul.mubr.bf16.gmra.mrb[0].mxu0 %v366
    %v1200 = vpop.f32.mrb[0].mxu0
    %v1201 = vadd.f32 %v202, %v1200
    %v1202 = vpop.f32.mrb[0].mxu0
    %v1203 = vadd.f32 %v206, %v1202
    %v1204 = vpop.f32.mrb[0].mxu0
    %v1205 = vadd.f32 %v202, %v1204
    %v1206 = vpop.f32.mrb[0].mxu0
    %v1207 = vadd.f32 %v206, %v1206
    %1208 = vmatprep.mubr.bf16.mxu0 0
    %1209 = vmatmul.mubr.bf16.gmra.mrb[0].mxu0 %v367
    %v1210 = vpop.f32.mrb[0].mxu0
    %v1211 = vadd.f32 %v202, %v1210
    %v1212 = vpop.f32.mrb[0].mxu0
    %v1213 = vadd.f32 %v206, %v1212
    %v1214 = vpop.f32.mrb[0].mxu0
    %v1215 = vadd.f32 %v202, %v1214
    %v1216 = vpop.f32.mrb[0].mxu0
    %v1217 = vadd.f32 %v206, %v1216
    %1218 = vmatprep.mubr.bf16.mxu0 0
    %1219 = vmatmul.mubr.bf16.gmra.mrb[0].mxu0 %v368
    %v1220 = vpop.f32.mrb[0].mxu0
    %v1221 = vadd.f32 %v202, %v1220
    %v1222 = vpop.f32.mrb[0].mxu0
    %v1223 = vadd.f32 %v206, %v1222
    %v1224 = vpop.f32.mrb[0].mxu0
    %v1225 = vadd.f32 %v202, %v1224
    %v1226 = vpop.f32.mrb[0].mxu0
    %v1227 = vadd.f32 %v206, %v1226
    %1228 = vmatprep.mubr.bf16.mxu0 0
    %1229 = vmatmul.mubr.bf16.gmra.mrb[0].mxu0 %v369
    %v1230 = vpop.f32.mrb[0].mxu0
    %v1231 = vadd.f32 %v202, %v1230
    %v1232 = vpop.f32.mrb[0].mxu0
    %v1233 = vadd.f32 %v206, %v1232
    %v1234 = vpop.f32.mrb[0].mxu0
    %v1235 = vadd.f32 %v202, %v1234
    %v1236 = vpop.f32.mrb[0].mxu0
    %v1237 = vadd.f32 %v206, %v1236
    %1238 = vmatprep.mubr.bf16.mxu0 0
    %1239 = vmatmul.mubr.bf16.gmra.mrb[0].mxu0 %v370
    %v1240 = vpop.f32.mrb[0].mxu0
    %v1241 = vadd.f32 %v202, %v1240
    %v1242 = vpop.f32.mrb[0].mxu0
    %v1243 = vadd.f32 %v206, %v1242
    %v1244 = vpop.f32.mrb[0].mxu0
    %v1245 = vadd.f32 %v202, %v1244
    %v1246 = vpop.f32.mrb[0].mxu0
    %v1247 = vadd.f32 %v206, %v1246
    %1248 = vmatprep.mubr.bf16.mxu0 0
    %1249 = vmatmul.mubr.bf16.gmra.mrb[0].mxu0 %v371
    %v1250 = vpop.f32.mrb[0].mxu0
    %v1251 = vadd.f32 %v202, %v1250
    %v1252 = vpop.f32.mrb[0].mxu0
    %v1253 = vadd.f32 %v206, %v1252
    %v1254 = vpop.f32.mrb[0].mxu0
    %v1255 = vadd.f32 %v202, %v1254
    %v1256 = vpop.f32.mrb[0].mxu0
    %v1257 = vadd.f32 %v206, %v1256
    %1258 = vmatprep.mubr.bf16.mxu0 0
    %1259 = vmatmul.mubr.bf16.gmra.mrb[0].mxu0 %v372
    %v1260 = vpop.f32.mrb[0].mxu0
    %v1261 = vadd.f32 %v202, %v1260
    %v1262 = vpop.f32.mrb[0].mxu0
    %v1263 = vadd.f32 %v206, %v1262
    %v1264 = vpop.f32.mrb[0].mxu0
    %v1265 = vadd.f32 %v202, %v1264
    %v1266 = vpop.f32.mrb[0].mxu0
    %v1267 = vadd.f32 %v206, %v1266
    %1268 = vmatprep.mubr.bf16.mxu0 0
    %1269 = vmatmul.mubr.bf16.gmra.mrb[0].mxu0 %v373
    %v1270 = vpop.f32.mrb[0].mxu0
    %v1271 = vadd.f32 %v202, %v1270
    %v1272 = vpop.f32.mrb[0].mxu0
    %v1273 = vadd.f32 %v206, %v1272
    %v1274 = vpop.f32.mrb[0].mxu0
    %v1275 = vadd.f32 %v202, %v1274
    %v1276 = vpop.f32.mrb[0].mxu0
    %v1277 = vadd.f32 %v206, %v1276
    %1278 = vmatprep.mubr.bf16.mxu0 0
    %1279 = vmatmul.mubr.bf16.gmra.mrb[0].mxu0 %v374
    %v1280 = vpop.f32.mrb[0].mxu0
    %v1281 = vadd.f32 %v202, %v1280
    %v1282 = vpop.f32.mrb[0].mxu0
    %v1283 = vadd.f32 %v206, %v1282
    %v1284 = vpop.f32.mrb[0].mxu0
    %v1285 = vadd.f32 %v202, %v1284
    %v1286 = vpop.f32.mrb[0].mxu0
    %v1287 = vadd.f32 %v206, %v1286
    %1288 = vmatprep.mubr.bf16.mxu0 0
    %1289 = vmatmul.mubr.bf16.gmra.mrb[0].mxu0 %v375
    %v1290 = vpop.f32.mrb[0].mxu0
    %v1291 = vadd.f32 %v202, %v1290
    %v1292 = vpop.f32.mrb[0].mxu0
    %v1293 = vadd.f32 %v206, %v1292
    %v1294 = vpop.f32.mrb[0].mxu0
    %v1295 = vadd.f32 %v202, %v1294
    %v1296 = vpop.f32.mrb[0].mxu0
    %v1297 = vadd.f32 %v206, %v1296
    %1298 = vmatprep.mubr.bf16.mxu0 0
    %1299 = vmatmul.mubr.bf16.gmra.mrb[0].mxu0 %v376
    %v1300 = vpop.f32.mrb[0].mxu0
    %v1301 = vadd.f32 %v202, %v1300
    %v1302 = vpop.f32.mrb[0].mxu0
    %v1303 = vadd.f32 %v206, %v1302
    %v1304 = vpop.f32.mrb[0].mxu0
    %v1305 = vadd.f32 %v202, %v1304
    %v1306 = vpop.f32.mrb[0].mxu0
    %v1307 = vadd.f32 %v206, %v1306
    %1308 = vmatprep.mubr.bf16.mxu0 0
    %1309 = vmatmul.mubr.bf16.gmra.mrb[0].mxu0 %v377
    %v1310 = vpop.f32.mrb[0].mxu0
    %v1311 = vadd.f32 %v202, %v1310
    %v1312 = vpop.f32.mrb[0].mxu0
    %v1313 = vadd.f32 %v206, %v1312
    %v1314 = vpop.f32.mrb[0].mxu0
    %v1315 = vadd.f32 %v202, %v1314
    %v1316 = vpop.f32.mrb[0].mxu0
    %v1317 = vadd.f32 %v206, %v1316
    %1318 = vmatprep.mubr.bf16.mxu0 0
    %1319 = vmatmul.mubr.bf16.gmra.mrb[0].mxu0 %v378
    %v1320 = vpop.f32.mrb[0].mxu0
    %v1321 = vadd.f32 %v202, %v1320
    %v1322 = vpop.f32.mrb[0].mxu0
    %v1323 = vadd.f32 %v206, %v1322
    %v1324 = vpop.f32.mrb[0].mxu0
    %v1325 = vadd.f32 %v202, %v1324
    %v1326 = vpop.f32.mrb[0].mxu0
    %v1327 = vadd.f32 %v206, %v1326
    %1328 = vmatprep.mubr.bf16.mxu0 0
    %1329 = vmatmul.mubr.bf16.gmra.mrb[0].mxu0 %v379
    %v1330 = vpop.f32.mrb[0].mxu0
    %v1331 = vadd.f32 %v202, %v1330
    %v1332 = vpop.f32.mrb[0].mxu0
    %v1333 = vadd.f32 %v206, %v1332
    %v1334 = vpop.f32.mrb[0].mxu0
    %v1335 = vadd.f32 %v202, %v1334
    %v1336 = vpop.f32.mrb[0].mxu0
    %v1337 = vadd.f32 %v206, %v1336
    %1338 = vmatprep.mubr.bf16.mxu0 0
    %1339 = vmatmul.mubr.bf16.gmra.mrb[0].mxu0 %v380
    %v1340 = vpop.f32.mrb[0].mxu0
    %v1341 = vadd.f32 %v202, %v1340
    %v1342 = vpop.f32.mrb[0].mxu0
    %v1343 = vadd.f32 %v206, %v1342
    %v1344 = vpop.f32.mrb[0].mxu0
    %v1345 = vadd.f32 %v202, %v1344
    %v1346 = vpop.f32.mrb[0].mxu0
    %v1347 = vadd.f32 %v206, %v1346
    %1348 = vmatprep.mubr.bf16.mxu0 0
    %1349 = vmatmul.mubr.bf16.gmra.mrb[0].mxu0 %v381
    %v1350 = vpop.f32.mrb[0].mxu0
    %v1351 = vadd.f32 %v202, %v1350
    %v1352 = vpop.f32.mrb[0].mxu0
    %v1353 = vadd.f32 %v206, %v1352
    %v1354 = vpop.f32.mrb[0].mxu0
    %v1355 = vadd.f32 %v202, %v1354
    %v1356 = vpop.f32.mrb[0].mxu0
    %v1357 = vadd.f32 %v206, %v1356
    %1358 = vmatprep.mubr.bf16.mxu0 0
    %1359 = vmatmul.mubr.bf16.gmra.mrb[0].mxu0 %v382
    %v1360 = vpop.f32.mrb[0].mxu0
    %v1361 = vadd.f32 %v202, %v1360
    %v1362 = vpop.f32.mrb[0].mxu0
    %v1363 = vadd.f32 %v206, %v1362
    %v1364 = vpop.f32.mrb[0].mxu0
    %v1365 = vadd.f32 %v202, %v1364
    %v1366 = vpop.f32.mrb[0].mxu0
    %v1367 = vadd.f32 %v206, %v1366
    %1368 = vmatprep.mubr.bf16.mxu0 0
    %1369 = vmatmul.mubr.bf16.gmra.mrb[0].mxu0 %v383
    %v1370 = vpop.f32.mrb[0].mxu0
    %v1371 = vadd.f32 %v202, %v1370
    %v1372 = vpop.f32.mrb[0].mxu0
    %v1373 = vadd.f32 %v206, %v1372
    %v1374 = vpop.f32.mrb[0].mxu0
    %v1375 = vadd.f32 %v202, %v1374
    %v1376 = vpop.f32.mrb[0].mxu0
    %v1377 = vadd.f32 %v206, %v1376
    %1378 = vmatprep.mubr.bf16.mxu0 0
    %1379 = vmatmul.mubr.bf16.gmra.mrb[0].mxu0 %v384
    %v1380 = vpop.f32.mrb[0].mxu0
    %v1381 = vadd.f32 %v202, %v1380
    %v1382 = vpop.f32.mrb[0].mxu0
    %v1383 = vadd.f32 %v206, %v1382
    %v1384 = vpop.f32.mrb[0].mxu0
    %v1385 = vadd.f32 %v202, %v1384
    %v1386 = vpop.f32.mrb[0].mxu0
    %v1387 = vadd.f32 %v206, %v1386
    %1388 = vmatprep.mubr.bf16.mxu0 0
    %1389 = vmatmul.mubr.bf16.gmra.mrb[0].mxu0 %v385
    %v1390 = vpop.f32.mrb[0].mxu0
    %v1391 = vadd.f32 %v202, %v1390
    %v1392 = vpop.f32.mrb[0].mxu0
    %v1393 = vadd.f32 %v206, %v1392
    %v1394 = vpop.f32.mrb[0].mxu0
    %v1395 = vadd.f32 %v202, %v1394
    %v1396 = vpop.f32.mrb[0].mxu0
    %v1397 = vadd.f32 %v206, %v1396
    %1398 = vmatprep.mubr.bf16.mxu0 0
    %1399 = vmatmul.mubr.bf16.gmra.mrb[0].mxu0 %v386
    %v1400 = vpop.f32.mrb[0].mxu0
    %v1401 = vadd.f32 %v202, %v1400
    %v1402 = vpop.f32.mrb[0].mxu0
    %v1403 = vadd.f32 %v206, %v1402
    %v1404 = vpop.f32.mrb[0].mxu0
    %v1405 = vadd.f32 %v202, %v1404
    %v1406 = vpop.f32.mrb[0].mxu0
    %v1407 = vadd.f32 %v206, %v1406
    %1408 = vmatprep.mubr.bf16.mxu0 0
    %1409 = vmatmul.mubr.bf16.gmra.mrb[0].mxu0 %v387
    %v1410 = vpop.f32.mrb[0].mxu0
    %v1411 = vadd.f32 %v202, %v1410
    %v1412 = vpop.f32.mrb[0].mxu0
    %v1413 = vadd.f32 %v206, %v1412
    %v1414 = vpop.f32.mrb[0].mxu0
    %v1415 = vadd.f32 %v202, %v1414
    %v1416 = vpop.f32.mrb[0].mxu0
    %v1417 = vadd.f32 %v206, %v1416
    %1418 = vmatprep.mubr.bf16.mxu0 0
    %1419 = vmatmul.mubr.bf16.gmra.mrb[0].mxu0 %v388
    %v1420 = vpop.f32.mrb[0].mxu0
    %v1421 = vadd.f32 %v202, %v1420
    %v1422 = vpop.f32.mrb[0].mxu0
    %v1423 = vadd.f32 %v206, %v1422
    %v1424 = vpop.f32.mrb[0].mxu0
    %v1425 = vadd.f32 %v202, %v1424
    %v1426 = vpop.f32.mrb[0].mxu0
    %v1427 = vadd.f32 %v206, %v1426
    %1428 = vmatprep.mubr.bf16.mxu0 0
    %1429 = vmatmul.mubr.bf16.gmra.mrb[0].mxu0 %v389
    %v1430 = vpop.f32.mrb[0].mxu0
    %v1431 = vadd.f32 %v202, %v1430
    %v1432 = vpop.f32.mrb[0].mxu0
    %v1433 = vadd.f32 %v206, %v1432
    %v1434 = vpop.f32.mrb[0].mxu0
    %v1435 = vadd.f32 %v202, %v1434
    %v1436 = vpop.f32.mrb[0].mxu0
    %v1437 = vadd.f32 %v206, %v1436
    %1438 = vmatprep.mubr.bf16.mxu0 0
    %1439 = vmatmul.mubr.bf16.gmra.mrb[0].mxu0 %v390
    %v1440 = vpop.f32.mrb[0].mxu0
    %v1441 = vadd.f32 %v202, %v1440
    %v1442 = vpop.f32.mrb[0].mxu0
    %v1443 = vadd.f32 %v206, %v1442
    %v1444 = vpop.f32.mrb[0].mxu0
    %v1445 = vadd.f32 %v202, %v1444
    %v1446 = vpop.f32.mrb[0].mxu0
    %v1447 = vadd.f32 %v206, %v1446
    %1448 = vdwg.mxu0
    %1449 = vmatprep.subr.bf16.mxu0 %v620
    %1450 = vmatpush1.bf16.msra.mxu0 %v619
    %1451 = vmatprep.subr.bf16.mxu0 %v628
    %1452 = vmatpush1.bf16.msra.mxu0 %v627
    %1453 = vmatprep.subr.bf16.mxu0 %v636
    %1454 = vmatpush1.bf16.msra.mxu0 %v635
    %1455 = vmatprep.subr.bf16.mxu0 %v644
    %1456 = vmatpush1.bf16.msra.mxu0 %v643
    %1457 = vmatprep.subr.bf16.mxu0 %v652
    %1458 = vmatpush1.bf16.msra.mxu0 %v651
    %1459 = vmatprep.subr.bf16.mxu0 %v660
    %1460 = vmatpush1.bf16.msra.mxu0 %v659
    %1461 = vmatprep.subr.bf16.mxu0 %v668
    %1462 = vmatpush1.bf16.msra.mxu0 %v667
    %1463 = vmatprep.subr.bf16.mxu0 %v676
    %1464 = vmatpush1.bf16.msra.mxu0 %v675
    %1465 = vmatprep.subr.bf16.mxu0 0
    %1466 = vmatpush1.bf16.msra.mxu0 0
    %1467 = vmatprep.subr.bf16.mxu0 0
    %1468 = vmatpush1.bf16.msra.mxu0 0
    %1469 = vmatprep.subr.bf16.mxu0 0
    %1470 = vmatpush1.bf16.msra.mxu0 0
    %1471 = vmatprep.subr.bf16.mxu0 0
    %1472 = vmatpush1.bf16.msra.mxu0 0
    %1473 = vmatprep.subr.bf16.mxu0 0
    %1474 = vmatpush1.bf16.msra.mxu0 0
    %1475 = vmatprep.subr.bf16.mxu0 0
    %1476 = vmatpush1.bf16.msra.mxu0 0
    %1477 = vmatprep.subr.bf16.mxu0 0
    %1478 = vmatpush1.bf16.msra.mxu0 0
    %1479 = vmatprep.subr.bf16.mxu0 0
    %1480 = vmatpush1.bf16.msra.mxu0 0
    %1481 = vmatprep.mubr.bf16.mxu0 0
    %1482 = vmatmul.mubr.bf16.gmra.mrb[0].mxu0 %v359
    %v1483 = vpop.f32.mrb[0].mxu0
    %v1484 = vadd.f32 %v210, %v1483
    %v1485 = vpop.f32.mrb[0].mxu0
    %v1486 = vadd.f32 %v214, %v1485
    %v1487 = vpop.f32.mrb[0].mxu0
    %v1488 = vadd.f32 %v210, %v1487
    %v1489 = vpop.f32.mrb[0].mxu0
    %v1490 = vadd.f32 %v214, %v1489
    %1491 = vmatprep.mubr.bf16.mxu0 0
    %1492 = vmatmul.mubr.bf16.gmra.mrb[0].mxu0 %v360
    %v1493 = vpop.f32.mrb[0].mxu0
    %v1494 = vadd.f32 %v210, %v1493
    %v1495 = vpop.f32.mrb[0].mxu0
    %v1496 = vadd.f32 %v214, %v1495
    %v1497 = vpop.f32.mrb[0].mxu0
    %v1498 = vadd.f32 %v210, %v1497
    %v1499 = vpop.f32.mrb[0].mxu0
    %v1500 = vadd.f32 %v214, %v1499
    %1501 = vmatprep.mubr.bf16.mxu0 0
    %1502 = vmatmul.mubr.bf16.gmra.mrb[0].mxu0 %v361
    %v1503 = vpop.f32.mrb[0].mxu0
    %v1504 = vadd.f32 %v210, %v1503
    %v1505 = vpop.f32.mrb[0].mxu0
    %v1506 = vadd.f32 %v214, %v1505
    %v1507 = vpop.f32.mrb[0].mxu0
    %v1508 = vadd.f32 %v210, %v1507
    %v1509 = vpop.f32.mrb[0].mxu0
    %v1510 = vadd.f32 %v214, %v1509
    %1511 = vmatprep.mubr.bf16.mxu0 0
    %1512 = vmatmul.mubr.bf16.gmra.mrb[0].mxu0 %v362
    %v1513 = vpop.f32.mrb[0].mxu0
    %v1514 = vadd.f32 %v210, %v1513
    %v1515 = vpop.f32.mrb[0].mxu0
    %v1516 = vadd.f32 %v214, %v1515
    %v1517 = vpop.f32.mrb[0].mxu0
    %v1518 = vadd.f32 %v210, %v1517
    %v1519 = vpop.f32.mrb[0].mxu0
    %v1520 = vadd.f32 %v214, %v1519
    %1521 = vmatprep.mubr.bf16.mxu0 0
    %1522 = vmatmul.mubr.bf16.gmra.mrb[0].mxu0 %v363
    %v1523 = vpop.f32.mrb[0].mxu0
    %v1524 = vadd.f32 %v210, %v1523
    %v1525 = vpop.f32.mrb[0].mxu0
    %v1526 = vadd.f32 %v214, %v1525
    %v1527 = vpop.f32.mrb[0].mxu0
    %v1528 = vadd.f32 %v210, %v1527
    %v1529 = vpop.f32.mrb[0].mxu0
    %v1530 = vadd.f32 %v214, %v1529
    %1531 = vmatprep.mubr.bf16.mxu0 0
    %1532 = vmatmul.mubr.bf16.gmra.mrb[0].mxu0 %v364
    %v1533 = vpop.f32.mrb[0].mxu0
    %v1534 = vadd.f32 %v210, %v1533
    %v1535 = vpop.f32.mrb[0].mxu0
    %v1536 = vadd.f32 %v214, %v1535
    %v1537 = vpop.f32.mrb[0].mxu0
    %v1538 = vadd.f32 %v210, %v1537
    %v1539 = vpop.f32.mrb[0].mxu0
    %v1540 = vadd.f32 %v214, %v1539
    %1541 = vmatprep.mubr.bf16.mxu0 0
    %1542 = vmatmul.mubr.bf16.gmra.mrb[0].mxu0 %v365
    %v1543 = vpop.f32.mrb[0].mxu0
    %v1544 = vadd.f32 %v210, %v1543
    %v1545 = vpop.f32.mrb[0].mxu0
    %v1546 = vadd.f32 %v214, %v1545
    %v1547 = vpop.f32.mrb[0].mxu0
    %v1548 = vadd.f32 %v210, %v1547
    %v1549 = vpop.f32.mrb[0].mxu0
    %v1550 = vadd.f32 %v214, %v1549
    %1551 = vmatprep.mubr.bf16.mxu0 0
    %1552 = vmatmul.mubr.bf16.gmra.mrb[0].mxu0 %v366
    %v1553 = vpop.f32.mrb[0].mxu0
    %v1554 = vadd.f32 %v210, %v1553
    %v1555 = vpop.f32.mrb[0].mxu0
    %v1556 = vadd.f32 %v214, %v1555
    %v1557 = vpop.f32.mrb[0].mxu0
    %v1558 = vadd.f32 %v210, %v1557
    %v1559 = vpop.f32.mrb[0].mxu0
    %v1560 = vadd.f32 %v214, %v1559
    %1561 = vmatprep.mubr.bf16.mxu0 0
    %1562 = vmatmul.mubr.bf16.gmra.mrb[0].mxu0 %v367
    %v1563 = vpop.f32.mrb[0].mxu0
    %v1564 = vadd.f32 %v210, %v1563
    %v1565 = vpop.f32.mrb[0].mxu0
    %v1566 = vadd.f32 %v214, %v1565
    %v1567 = vpop.f32.mrb[0].mxu0
    %v1568 = vadd.f32 %v210, %v1567
    %v1569 = vpop.f32.mrb[0].mxu0
    %v1570 = vadd.f32 %v214, %v1569
    %1571 = vmatprep.mubr.bf16.mxu0 0
    %1572 = vmatmul.mubr.bf16.gmra.mrb[0].mxu0 %v368
    %v1573 = vpop.f32.mrb[0].mxu0
    %v1574 = vadd.f32 %v210, %v1573
    %v1575 = vpop.f32.mrb[0].mxu0
    %v1576 = vadd.f32 %v214, %v1575
    %v1577 = vpop.f32.mrb[0].mxu0
    %v1578 = vadd.f32 %v210, %v1577
    %v1579 = vpop.f32.mrb[0].mxu0
    %v1580 = vadd.f32 %v214, %v1579
    %1581 = vmatprep.mubr.bf16.mxu0 0
    %1582 = vmatmul.mubr.bf16.gmra.mrb[0].mxu0 %v369
    %v1583 = vpop.f32.mrb[0].mxu0
    %v1584 = vadd.f32 %v210, %v1583
    %v1585 = vpop.f32.mrb[0].mxu0
    %v1586 = vadd.f32 %v214, %v1585
    %v1587 = vpop.f32.mrb[0].mxu0
    %v1588 = vadd.f32 %v210, %v1587
    %v1589 = vpop.f32.mrb[0].mxu0
    %v1590 = vadd.f32 %v214, %v1589
    %1591 = vmatprep.mubr.bf16.mxu0 0
    %1592 = vmatmul.mubr.bf16.gmra.mrb[0].mxu0 %v370
    %v1593 = vpop.f32.mrb[0].mxu0
    %v1594 = vadd.f32 %v210, %v1593
    %v1595 = vpop.f32.mrb[0].mxu0
    %v1596 = vadd.f32 %v214, %v1595
    %v1597 = vpop.f32.mrb[0].mxu0
    %v1598 = vadd.f32 %v210, %v1597
    %v1599 = vpop.f32.mrb[0].mxu0
    %v1600 = vadd.f32 %v214, %v1599
    %1601 = vmatprep.mubr.bf16.mxu0 0
    %1602 = vmatmul.mubr.bf16.gmra.mrb[0].mxu0 %v371
    %v1603 = vpop.f32.mrb[0].mxu0
    %v1604 = vadd.f32 %v210, %v1603
    %v1605 = vpop.f32.mrb[0].mxu0
    %v1606 = vadd.f32 %v214, %v1605
    %v1607 = vpop.f32.mrb[0].mxu0
    %v1608 = vadd.f32 %v210, %v1607
    %v1609 = vpop.f32.mrb[0].mxu0
    %v1610 = vadd.f32 %v214, %v1609
    %1611 = vmatprep.mubr.bf16.mxu0 0
    %1612 = vmatmul.mubr.bf16.gmra.mrb[0].mxu0 %v372
    %v1613 = vpop.f32.mrb[0].mxu0
    %v1614 = vadd.f32 %v210, %v1613
    %v1615 = vpop.f32.mrb[0].mxu0
    %v1616 = vadd.f32 %v214, %v1615
    %v1617 = vpop.f32.mrb[0].mxu0
    %v1618 = vadd.f32 %v210, %v1617
    %v1619 = vpop.f32.mrb[0].mxu0
    %v1620 = vadd.f32 %v214, %v1619
    %1621 = vmatprep.mubr.bf16.mxu0 0
    %1622 = vmatmul.mubr.bf16.gmra.mrb[0].mxu0 %v373
    %v1623 = vpop.f32.mrb[0].mxu0
    %v1624 = vadd.f32 %v210, %v1623
    %v1625 = vpop.f32.mrb[0].mxu0
    %v1626 = vadd.f32 %v214, %v1625
    %v1627 = vpop.f32.mrb[0].mxu0
    %v1628 = vadd.f32 %v210, %v1627
    %v1629 = vpop.f32.mrb[0].mxu0
    %v1630 = vadd.f32 %v214, %v1629
    %1631 = vmatprep.mubr.bf16.mxu0 0
    %1632 = vmatmul.mubr.bf16.gmra.mrb[0].mxu0 %v374
    %v1633 = vpop.f32.mrb[0].mxu0
    %v1634 = vadd.f32 %v210, %v1633
    %v1635 = vpop.f32.mrb[0].mxu0
    %v1636 = vadd.f32 %v214, %v1635
    %v1637 = vpop.f32.mrb[0].mxu0
    %v1638 = vadd.f32 %v210, %v1637
    %v1639 = vpop.f32.mrb[0].mxu0
    %v1640 = vadd.f32 %v214, %v1639
    %1641 = vmatprep.mubr.bf16.mxu0 0
    %1642 = vmatmul.mubr.bf16.gmra.mrb[0].mxu0 %v375
    %v1643 = vpop.f32.mrb[0].mxu0
    %v1644 = vadd.f32 %v210, %v1643
    %v1645 = vpop.f32.mrb[0].mxu0
    %v1646 = vadd.f32 %v214, %v1645
    %v1647 = vpop.f32.mrb[0].mxu0
    %v1648 = vadd.f32 %v210, %v1647
    %v1649 = vpop.f32.mrb[0].mxu0
    %v1650 = vadd.f32 %v214, %v1649
    %1651 = vmatprep.mubr.bf16.mxu0 0
    %1652 = vmatmul.mubr.bf16.gmra.mrb[0].mxu0 %v376
    %v1653 = vpop.f32.mrb[0].mxu0
    %v1654 = vadd.f32 %v210, %v1653
    %v1655 = vpop.f32.mrb[0].mxu0
    %v1656 = vadd.f32 %v214, %v1655
    %v1657 = vpop.f32.mrb[0].mxu0
    %v1658 = vadd.f32 %v210, %v1657
    %v1659 = vpop.f32.mrb[0].mxu0
    %v1660 = vadd.f32 %v214, %v1659
    %1661 = vmatprep.mubr.bf16.mxu0 0
    %1662 = vmatmul.mubr.bf16.gmra.mrb[0].mxu0 %v377
    %v1663 = vpop.f32.mrb[0].mxu0
    %v1664 = vadd.f32 %v210, %v1663
    %v1665 = vpop.f32.mrb[0].mxu0
    %v1666 = vadd.f32 %v214, %v1665
    %v1667 = vpop.f32.mrb[0].mxu0
    %v1668 = vadd.f32 %v210, %v1667
    %v1669 = vpop.f32.mrb[0].mxu0
    %v1670 = vadd.f32 %v214, %v1669
    %1671 = vmatprep.mubr.bf16.mxu0 0
    %1672 = vmatmul.mubr.bf16.gmra.mrb[0].mxu0 %v378
    %v1673 = vpop.f32.mrb[0].mxu0
    %v1674 = vadd.f32 %v210, %v1673
    %v1675 = vpop.f32.mrb[0].mxu0
    %v1676 = vadd.f32 %v214, %v1675
    %v1677 = vpop.f32.mrb[0].mxu0
    %v1678 = vadd.f32 %v210, %v1677
    %v1679 = vpop.f32.mrb[0].mxu0
    %v1680 = vadd.f32 %v214, %v1679
    %1681 = vmatprep.mubr.bf16.mxu0 0
    %1682 = vmatmul.mubr.bf16.gmra.mrb[0].mxu0 %v379
    %v1683 = vpop.f32.mrb[0].mxu0
    %v1684 = vadd.f32 %v210, %v1683
    %v1685 = vpop.f32.mrb[0].mxu0
    %v1686 = vadd.f32 %v214, %v1685
    %v1687 = vpop.f32.mrb[0].mxu0
    %v1688 = vadd.f32 %v210, %v1687
    %v1689 = vpop.f32.mrb[0].mxu0
    %v1690 = vadd.f32 %v214, %v1689
    %1691 = vmatprep.mubr.bf16.mxu0 0
    %1692 = vmatmul.mubr.bf16.gmra.mrb[0].mxu0 %v380
    %v1693 = vpop.f32.mrb[0].mxu0
    %v1694 = vadd.f32 %v210, %v1693
    %v1695 = vpop.f32.mrb[0].mxu0
    %v1696 = vadd.f32 %v214, %v1695
    %v1697 = vpop.f32.mrb[0].mxu0
    %v1698 = vadd.f32 %v210, %v1697
    %v1699 = vpop.f32.mrb[0].mxu0
    %v1700 = vadd.f32 %v214, %v1699
    %1701 = vmatprep.mubr.bf16.mxu0 0
    %1702 = vmatmul.mubr.bf16.gmra.mrb[0].mxu0 %v381
    %v1703 = vpop.f32.mrb[0].mxu0
    %v1704 = vadd.f32 %v210, %v1703
    %v1705 = vpop.f32.mrb[0].mxu0
    %v1706 = vadd.f32 %v214, %v1705
    %v1707 = vpop.f32.mrb[0].mxu0
    %v1708 = vadd.f32 %v210, %v1707
    %v1709 = vpop.f32.mrb[0].mxu0
    %v1710 = vadd.f32 %v214, %v1709
    %1711 = vmatprep.mubr.bf16.mxu0 0
    %1712 = vmatmul.mubr.bf16.gmra.mrb[0].mxu0 %v382
    %v1713 = vpop.f32.mrb[0].mxu0
    %v1714 = vadd.f32 %v210, %v1713
    %v1715 = vpop.f32.mrb[0].mxu0
    %v1716 = vadd.f32 %v214, %v1715
    %v1717 = vpop.f32.mrb[0].mxu0
    %v1718 = vadd.f32 %v210, %v1717
    %v1719 = vpop.f32.mrb[0].mxu0
    %v1720 = vadd.f32 %v214, %v1719
    %1721 = vmatprep.mubr.bf16.mxu0 0
    %1722 = vmatmul.mubr.bf16.gmra.mrb[0].mxu0 %v383
    %v1723 = vpop.f32.mrb[0].mxu0
    %v1724 = vadd.f32 %v210, %v1723
    %v1725 = vpop.f32.mrb[0].mxu0
    %v1726 = vadd.f32 %v214, %v1725
    %v1727 = vpop.f32.mrb[0].mxu0
    %v1728 = vadd.f32 %v210, %v1727
    %v1729 = vpop.f32.mrb[0].mxu0
    %v1730 = vadd.f32 %v214, %v1729
    %1731 = vmatprep.mubr.bf16.mxu0 0
    %1732 = vmatmul.mubr.bf16.gmra.mrb[0].mxu0 %v384
    %v1733 = vpop.f32.mrb[0].mxu0
    %v1734 = vadd.f32 %v210, %v1733
    %v1735 = vpop.f32.mrb[0].mxu0
    %v1736 = vadd.f32 %v214, %v1735
    %v1737 = vpop.f32.mrb[0].mxu0
    %v1738 = vadd.f32 %v210, %v1737
    %v1739 = vpop.f32.mrb[0].mxu0
    %v1740 = vadd.f32 %v214, %v1739
    %1741 = vmatprep.mubr.bf16.mxu0 0
    %1742 = vmatmul.mubr.bf16.gmra.mrb[0].mxu0 %v385
    %v1743 = vpop.f32.mrb[0].mxu0
    %v1744 = vadd.f32 %v210, %v1743
    %v1745 = vpop.f32.mrb[0].mxu0
    %v1746 = vadd.f32 %v214, %v1745
    %v1747 = vpop.f32.mrb[0].mxu0
    %v1748 = vadd.f32 %v210, %v1747
    %v1749 = vpop.f32.mrb[0].mxu0
    %v1750 = vadd.f32 %v214, %v1749
    %1751 = vmatprep.mubr.bf16.mxu0 0
    %1752 = vmatmul.mubr.bf16.gmra.mrb[0].mxu0 %v386
    %v1753 = vpop.f32.mrb[0].mxu0
    %v1754 = vadd.f32 %v210, %v1753
    %v1755 = vpop.f32.mrb[0].mxu0
    %v1756 = vadd.f32 %v214, %v1755
    %v1757 = vpop.f32.mrb[0].mxu0
    %v1758 = vadd.f32 %v210, %v1757
    %v1759 = vpop.f32.mrb[0].mxu0
    %v1760 = vadd.f32 %v214, %v1759
    %1761 = vmatprep.mubr.bf16.mxu0 0
    %1762 = vmatmul.mubr.bf16.gmra.mrb[0].mxu0 %v387
    %v1763 = vpop.f32.mrb[0].mxu0
    %v1764 = vadd.f32 %v210, %v1763
    %v1765 = vpop.f32.mrb[0].mxu0
    %v1766 = vadd.f32 %v214, %v1765
    %v1767 = vpop.f32.mrb[0].mxu0
    %v1768 = vadd.f32 %v210, %v1767
    %v1769 = vpop.f32.mrb[0].mxu0
    %v1770 = vadd.f32 %v214, %v1769
    %1771 = vmatprep.mubr.bf16.mxu0 0
    %1772 = vmatmul.mubr.bf16.gmra.mrb[0].mxu0 %v388
    %v1773 = vpop.f32.mrb[0].mxu0
    %v1774 = vadd.f32 %v210, %v1773
    %v1775 = vpop.f32.mrb[0].mxu0
    %v1776 = vadd.f32 %v214, %v1775
    %v1777 = vpop.f32.mrb[0].mxu0
    %v1778 = vadd.f32 %v210, %v1777
    %v1779 = vpop.f32.mrb[0].mxu0
    %v1780 = vadd.f32 %v214, %v1779
    %1781 = vmatprep.mubr.bf16.mxu0 0
    %1782 = vmatmul.mubr.bf16.gmra.mrb[0].mxu0 %v389
    %v1783 = vpop.f32.mrb[0].mxu0
    %v1784 = vadd.f32 %v210, %v1783
    %v1785 = vpop.f32.mrb[0].mxu0
    %v1786 = vadd.f32 %v214, %v1785
    %v1787 = vpop.f32.mrb[0].mxu0
    %v1788 = vadd.f32 %v210, %v1787
    %v1789 = vpop.f32.mrb[0].mxu0
    %v1790 = vadd.f32 %v214, %v1789
    %1791 = vmatprep.mubr.bf16.mxu0 0
    %1792 = vmatmul.mubr.bf16.gmra.mrb[0].mxu0 %v390
    %v1793 = vpop.f32.mrb[0].mxu0
    %v1794 = vadd.f32 %v210, %v1793
    %v1795 = vpop.f32.mrb[0].mxu0
    %v1796 = vadd.f32 %v214, %v1795
    %v1797 = vpop.f32.mrb[0].mxu0
    %v1798 = vadd.f32 %v210, %v1797
    %v1799 = vpop.f32.mrb[0].mxu0
    %v1800 = vadd.f32 %v214, %v1799
    %1801 = vdwg.mxu0
    %1802 = vmatprep.subr.bf16.mxu0 %v622
    %1803 = vmatpush1.bf16.msra.mxu0 %v621
    %1804 = vmatprep.subr.bf16.mxu0 %v630
    %1805 = vmatpush1.bf16.msra.mxu0 %v629
    %1806 = vmatprep.subr.bf16.mxu0 %v638
    %1807 = vmatpush1.bf16.msra.mxu0 %v637
    %1808 = vmatprep.subr.bf16.mxu0 %v646
    %1809 = vmatpush1.bf16.msra.mxu0 %v645
    %1810 = vmatprep.subr.bf16.mxu0 %v654
    %1811 = vmatpush1.bf16.msra.mxu0 %v653
    %1812 = vmatprep.subr.bf16.mxu0 %v662
    %1813 = vmatpush1.bf16.msra.mxu0 %v661
    %1814 = vmatprep.subr.bf16.mxu0 %v670
    %1815 = vmatpush1.bf16.msra.mxu0 %v669
    %1816 = vmatprep.subr.bf16.mxu0 %v678
    %1817 = vmatpush1.bf16.msra.mxu0 %v677
    %1818 = vmatprep.subr.bf16.mxu0 0
    %1819 = vmatpush1.bf16.msra.mxu0 0
    %1820 = vmatprep.subr.bf16.mxu0 0
    %1821 = vmatpush1.bf16.msra.mxu0 0
    %1822 = vmatprep.subr.bf16.mxu0 0
    %1823 = vmatpush1.bf16.msra.mxu0 0
    %1824 = vmatprep.subr.bf16.mxu0 0
    %1825 = vmatpush1.bf16.msra.mxu0 0
    %1826 = vmatprep.subr.bf16.mxu0 0
    %1827 = vmatpush1.bf16.msra.mxu0 0
    %1828 = vmatprep.subr.bf16.mxu0 0
    %1829 = vmatpush1.bf16.msra.mxu0 0
    %1830 = vmatprep.subr.bf16.mxu0 0
    %1831 = vmatpush1.bf16.msra.mxu0 0
    %1832 = vmatprep.subr.bf16.mxu0 0
    %1833 = vmatpush1.bf16.msra.mxu0 0
    %1834 = vmatprep.mubr.bf16.mxu0 0
    %1835 = vmatmul.mubr.bf16.gmra.mrb[0].mxu0 %v359
    %v1836 = vpop.f32.mrb[0].mxu0
    %v1837 = vadd.f32 %v218, %v1836
    %v1838 = vpop.f32.mrb[0].mxu0
    %v1839 = vadd.f32 %v222, %v1838
    %v1840 = vpop.f32.mrb[0].mxu0
    %v1841 = vadd.f32 %v218, %v1840
    %v1842 = vpop.f32.mrb[0].mxu0
    %v1843 = vadd.f32 %v222, %v1842
    %1844 = vmatprep.mubr.bf16.mxu0 0
    %1845 = vmatmul.mubr.bf16.gmra.mrb[0].mxu0 %v360
    %v1846 = vpop.f32.mrb[0].mxu0
    %v1847 = vadd.f32 %v218, %v1846
    %v1848 = vpop.f32.mrb[0].mxu0
    %v1849 = vadd.f32 %v222, %v1848
    %v1850 = vpop.f32.mrb[0].mxu0
    %v1851 = vadd.f32 %v218, %v1850
    %v1852 = vpop.f32.mrb[0].mxu0
    %v1853 = vadd.f32 %v222, %v1852
    %1854 = vmatprep.mubr.bf16.mxu0 0
    %1855 = vmatmul.mubr.bf16.gmra.mrb[0].mxu0 %v361
    %v1856 = vpop.f32.mrb[0].mxu0
    %v1857 = vadd.f32 %v218, %v1856
    %v1858 = vpop.f32.mrb[0].mxu0
    %v1859 = vadd.f32 %v222, %v1858
    %v1860 = vpop.f32.mrb[0].mxu0
    %v1861 = vadd.f32 %v218, %v1860
    %v1862 = vpop.f32.mrb[0].mxu0
    %v1863 = vadd.f32 %v222, %v1862
    %1864 = vmatprep.mubr.bf16.mxu0 0
    %1865 = vmatmul.mubr.bf16.gmra.mrb[0].mxu0 %v362
    %v1866 = vpop.f32.mrb[0].mxu0
    %v1867 = vadd.f32 %v218, %v1866
    %v1868 = vpop.f32.mrb[0].mxu0
    %v1869 = vadd.f32 %v222, %v1868
    %v1870 = vpop.f32.mrb[0].mxu0
    %v1871 = vadd.f32 %v218, %v1870
    %v1872 = vpop.f32.mrb[0].mxu0
    %v1873 = vadd.f32 %v222, %v1872
    %1874 = vmatprep.mubr.bf16.mxu0 0
    %1875 = vmatmul.mubr.bf16.gmra.mrb[0].mxu0 %v363
    %v1876 = vpop.f32.mrb[0].mxu0
    %v1877 = vadd.f32 %v218, %v1876
    %v1878 = vpop.f32.mrb[0].mxu0
    %v1879 = vadd.f32 %v222, %v1878
    %v1880 = vpop.f32.mrb[0].mxu0
    %v1881 = vadd.f32 %v218, %v1880
    %v1882 = vpop.f32.mrb[0].mxu0
    %v1883 = vadd.f32 %v222, %v1882
    %1884 = vmatprep.mubr.bf16.mxu0 0
    %1885 = vmatmul.mubr.bf16.gmra.mrb[0].mxu0 %v364
    %v1886 = vpop.f32.mrb[0].mxu0
    %v1887 = vadd.f32 %v218, %v1886
    %v1888 = vpop.f32.mrb[0].mxu0
    %v1889 = vadd.f32 %v222, %v1888
    %v1890 = vpop.f32.mrb[0].mxu0
    %v1891 = vadd.f32 %v218, %v1890
    %v1892 = vpop.f32.mrb[0].mxu0
    %v1893 = vadd.f32 %v222, %v1892
    %1894 = vmatprep.mubr.bf16.mxu0 0
    %1895 = vmatmul.mubr.bf16.gmra.mrb[0].mxu0 %v365
    %v1896 = vpop.f32.mrb[0].mxu0
    %v1897 = vadd.f32 %v218, %v1896
    %v1898 = vpop.f32.mrb[0].mxu0
    %v1899 = vadd.f32 %v222, %v1898
    %v1900 = vpop.f32.mrb[0].mxu0
    %v1901 = vadd.f32 %v218, %v1900
    %v1902 = vpop.f32.mrb[0].mxu0
    %v1903 = vadd.f32 %v222, %v1902
    %1904 = vmatprep.mubr.bf16.mxu0 0
    %1905 = vmatmul.mubr.bf16.gmra.mrb[0].mxu0 %v366
    %v1906 = vpop.f32.mrb[0].mxu0
    %v1907 = vadd.f32 %v218, %v1906
    %v1908 = vpop.f32.mrb[0].mxu0
    %v1909 = vadd.f32 %v222, %v1908
    %v1910 = vpop.f32.mrb[0].mxu0
    %v1911 = vadd.f32 %v218, %v1910
    %v1912 = vpop.f32.mrb[0].mxu0
    %v1913 = vadd.f32 %v222, %v1912
    %1914 = vmatprep.mubr.bf16.mxu0 0
    %1915 = vmatmul.mubr.bf16.gmra.mrb[0].mxu0 %v367
    %v1916 = vpop.f32.mrb[0].mxu0
    %v1917 = vadd.f32 %v218, %v1916
    %v1918 = vpop.f32.mrb[0].mxu0
    %v1919 = vadd.f32 %v222, %v1918
    %v1920 = vpop.f32.mrb[0].mxu0
    %v1921 = vadd.f32 %v218, %v1920
    %v1922 = vpop.f32.mrb[0].mxu0
    %v1923 = vadd.f32 %v222, %v1922
    %1924 = vmatprep.mubr.bf16.mxu0 0
    %1925 = vmatmul.mubr.bf16.gmra.mrb[0].mxu0 %v368
    %v1926 = vpop.f32.mrb[0].mxu0
    %v1927 = vadd.f32 %v218, %v1926
    %v1928 = vpop.f32.mrb[0].mxu0
    %v1929 = vadd.f32 %v222, %v1928
    %v1930 = vpop.f32.mrb[0].mxu0
    %v1931 = vadd.f32 %v218, %v1930
    %v1932 = vpop.f32.mrb[0].mxu0
    %v1933 = vadd.f32 %v222, %v1932
    %1934 = vmatprep.mubr.bf16.mxu0 0
    %1935 = vmatmul.mubr.bf16.gmra.mrb[0].mxu0 %v369
    %v1936 = vpop.f32.mrb[0].mxu0
    %v1937 = vadd.f32 %v218, %v1936
    %v1938 = vpop.f32.mrb[0].mxu0
    %v1939 = vadd.f32 %v222, %v1938
    %v1940 = vpop.f32.mrb[0].mxu0
    %v1941 = vadd.f32 %v218, %v1940
    %v1942 = vpop.f32.mrb[0].mxu0
    %v1943 = vadd.f32 %v222, %v1942
    %1944 = vmatprep.mubr.bf16.mxu0 0
    %1945 = vmatmul.mubr.bf16.gmra.mrb[0].mxu0 %v370
    %v1946 = vpop.f32.mrb[0].mxu0
    %v1947 = vadd.f32 %v218, %v1946
    %v1948 = vpop.f32.mrb[0].mxu0
    %v1949 = vadd.f32 %v222, %v1948
    %v1950 = vpop.f32.mrb[0].mxu0
    %v1951 = vadd.f32 %v218, %v1950
    %v1952 = vpop.f32.mrb[0].mxu0
    %v1953 = vadd.f32 %v222, %v1952
    %1954 = vmatprep.mubr.bf16.mxu0 0
    %1955 = vmatmul.mubr.bf16.gmra.mrb[0].mxu0 %v371
    %v1956 = vpop.f32.mrb[0].mxu0
    %v1957 = vadd.f32 %v218, %v1956
    %v1958 = vpop.f32.mrb[0].mxu0
    %v1959 = vadd.f32 %v222, %v1958
    %v1960 = vpop.f32.mrb[0].mxu0
    %v1961 = vadd.f32 %v218, %v1960
    %v1962 = vpop.f32.mrb[0].mxu0
    %v1963 = vadd.f32 %v222, %v1962
    %1964 = vmatprep.mubr.bf16.mxu0 0
    %1965 = vmatmul.mubr.bf16.gmra.mrb[0].mxu0 %v372
    %v1966 = vpop.f32.mrb[0].mxu0
    %v1967 = vadd.f32 %v218, %v1966
    %v1968 = vpop.f32.mrb[0].mxu0
    %v1969 = vadd.f32 %v222, %v1968
    %v1970 = vpop.f32.mrb[0].mxu0
    %v1971 = vadd.f32 %v218, %v1970
    %v1972 = vpop.f32.mrb[0].mxu0
    %v1973 = vadd.f32 %v222, %v1972
    %1974 = vmatprep.mubr.bf16.mxu0 0
    %1975 = vmatmul.mubr.bf16.gmra.mrb[0].mxu0 %v373
    %v1976 = vpop.f32.mrb[0].mxu0
    %v1977 = vadd.f32 %v218, %v1976
    %v1978 = vpop.f32.mrb[0].mxu0
    %v1979 = vadd.f32 %v222, %v1978
    %v1980 = vpop.f32.mrb[0].mxu0
    %v1981 = vadd.f32 %v218, %v1980
    %v1982 = vpop.f32.mrb[0].mxu0
    %v1983 = vadd.f32 %v222, %v1982
    %1984 = vmatprep.mubr.bf16.mxu0 0
    %1985 = vmatmul.mubr.bf16.gmra.mrb[0].mxu0 %v374
    %v1986 = vpop.f32.mrb[0].mxu0
    %v1987 = vadd.f32 %v218, %v1986
    %v1988 = vpop.f32.mrb[0].mxu0
    %v1989 = vadd.f32 %v222, %v1988
    %v1990 = vpop.f32.mrb[0].mxu0
    %v1991 = vadd.f32 %v218, %v1990
    %v1992 = vpop.f32.mrb[0].mxu0
    %v1993 = vadd.f32 %v222, %v1992
    %1994 = vmatprep.mubr.bf16.mxu0 0
    %1995 = vmatmul.mubr.bf16.gmra.mrb[0].mxu0 %v375
    %v1996 = vpop.f32.mrb[0].mxu0
    %v1997 = vadd.f32 %v218, %v1996
    %v1998 = vpop.f32.mrb[0].mxu0
    %v1999 = vadd.f32 %v222, %v1998
    %v2000 = vpop.f32.mrb[0].mxu0
    %v2001 = vadd.f32 %v218, %v2000
    %v2002 = vpop.f32.mrb[0].mxu0
    %v2003 = vadd.f32 %v222, %v2002
    %2004 = vmatprep.mubr.bf16.mxu0 0
    %2005 = vmatmul.mubr.bf16.gmra.mrb[0].mxu0 %v376
    %v2006 = vpop.f32.mrb[0].mxu0
    %v2007 = vadd.f32 %v218, %v2006
    %v2008 = vpop.f32.mrb[0].mxu0
    %v2009 = vadd.f32 %v222, %v2008
    %v2010 = vpop.f32.mrb[0].mxu0
    %v2011 = vadd.f32 %v218, %v2010
    %v2012 = vpop.f32.mrb[0].mxu0
    %v2013 = vadd.f32 %v222, %v2012
    %2014 = vmatprep.mubr.bf16.mxu0 0
    %2015 = vmatmul.mubr.bf16.gmra.mrb[0].mxu0 %v377
    %v2016 = vpop.f32.mrb[0].mxu0
    %v2017 = vadd.f32 %v218, %v2016
    %v2018 = vpop.f32.mrb[0].mxu0
    %v2019 = vadd.f32 %v222, %v2018
    %v2020 = vpop.f32.mrb[0].mxu0
    %v2021 = vadd.f32 %v218, %v2020
    %v2022 = vpop.f32.mrb[0].mxu0
    %v2023 = vadd.f32 %v222, %v2022
    %2024 = vmatprep.mubr.bf16.mxu0 0
    %2025 = vmatmul.mubr.bf16.gmra.mrb[0].mxu0 %v378
    %v2026 = vpop.f32.mrb[0].mxu0
    %v2027 = vadd.f32 %v218, %v2026
    %v2028 = vpop.f32.mrb[0].mxu0
    %v2029 = vadd.f32 %v222, %v2028
    %v2030 = vpop.f32.mrb[0].mxu0
    %v2031 = vadd.f32 %v218, %v2030
    %v2032 = vpop.f32.mrb[0].mxu0
    %v2033 = vadd.f32 %v222, %v2032
    %2034 = vmatprep.mubr.bf16.mxu0 0
    %2035 = vmatmul.mubr.bf16.gmra.mrb[0].mxu0 %v379
    %v2036 = vpop.f32.mrb[0].mxu0
    %v2037 = vadd.f32 %v218, %v2036
    %v2038 = vpop.f32.mrb[0].mxu0
    %v2039 = vadd.f32 %v222, %v2038
    %v2040 = vpop.f32.mrb[0].mxu0
    %v2041 = vadd.f32 %v218, %v2040
    %v2042 = vpop.f32.mrb[0].mxu0
    %v2043 = vadd.f32 %v222, %v2042
    %2044 = vmatprep.mubr.bf16.mxu0 0
    %2045 = vmatmul.mubr.bf16.gmra.mrb[0].mxu0 %v380
    %v2046 = vpop.f32.mrb[0].mxu0
    %v2047 = vadd.f32 %v218, %v2046
    %v2048 = vpop.f32.mrb[0].mxu0
    %v2049 = vadd.f32 %v222, %v2048
    %v2050 = vpop.f32.mrb[0].mxu0
    %v2051 = vadd.f32 %v218, %v2050
    %v2052 = vpop.f32.mrb[0].mxu0
    %v2053 = vadd.f32 %v222, %v2052
    %2054 = vmatprep.mubr.bf16.mxu0 0
    %2055 = vmatmul.mubr.bf16.gmra.mrb[0].mxu0 %v381
    %v2056 = vpop.f32.mrb[0].mxu0
    %v2057 = vadd.f32 %v218, %v2056
    %v2058 = vpop.f32.mrb[0].mxu0
    %v2059 = vadd.f32 %v222, %v2058
    %v2060 = vpop.f32.mrb[0].mxu0
    %v2061 = vadd.f32 %v218, %v2060
    %v2062 = vpop.f32.mrb[0].mxu0
    %v2063 = vadd.f32 %v222, %v2062
    %2064 = vmatprep.mubr.bf16.mxu0 0
    %2065 = vmatmul.mubr.bf16.gmra.mrb[0].mxu0 %v382
    %v2066 = vpop.f32.mrb[0].mxu0
    %v2067 = vadd.f32 %v218, %v2066
    %v2068 = vpop.f32.mrb[0].mxu0
    %v2069 = vadd.f32 %v222, %v2068
    %v2070 = vpop.f32.mrb[0].mxu0
    %v2071 = vadd.f32 %v218, %v2070
    %v2072 = vpop.f32.mrb[0].mxu0
    %v2073 = vadd.f32 %v222, %v2072
    %2074 = vmatprep.mubr.bf16.mxu0 0
    %2075 = vmatmul.mubr.bf16.gmra.mrb[0].mxu0 %v383
    %v2076 = vpop.f32.mrb[0].mxu0
    %v2077 = vadd.f32 %v218, %v2076
    %v2078 = vpop.f32.mrb[0].mxu0
    %v2079 = vadd.f32 %v222, %v2078
    %v2080 = vpop.f32.mrb[0].mxu0
    %v2081 = vadd.f32 %v218, %v2080
    %v2082 = vpop.f32.mrb[0].mxu0
    %v2083 = vadd.f32 %v222, %v2082
    %2084 = vmatprep.mubr.bf16.mxu0 0
    %2085 = vmatmul.mubr.bf16.gmra.mrb[0].mxu0 %v384
    %v2086 = vpop.f32.mrb[0].mxu0
    %v2087 = vadd.f32 %v218, %v2086
    %v2088 = vpop.f32.mrb[0].mxu0
    %v2089 = vadd.f32 %v222, %v2088
    %v2090 = vpop.f32.mrb[0].mxu0
    %v2091 = vadd.f32 %v218, %v2090
    %v2092 = vpop.f32.mrb[0].mxu0
    %v2093 = vadd.f32 %v222, %v2092
    %2094 = vmatprep.mubr.bf16.mxu0 0
    %2095 = vmatmul.mubr.bf16.gmra.mrb[0].mxu0 %v385
    %v2096 = vpop.f32.mrb[0].mxu0
    %v2097 = vadd.f32 %v218, %v2096
    %v2098 = vpop.f32.mrb[0].mxu0
    %v2099 = vadd.f32 %v222, %v2098
    %v2100 = vpop.f32.mrb[0].mxu0
    %v2101 = vadd.f32 %v218, %v2100
    %v2102 = vpop.f32.mrb[0].mxu0
    %v2103 = vadd.f32 %v222, %v2102
    %2104 = vmatprep.mubr.bf16.mxu0 0
    %2105 = vmatmul.mubr.bf16.gmra.mrb[0].mxu0 %v386
    %v2106 = vpop.f32.mrb[0].mxu0
    %v2107 = vadd.f32 %v218, %v2106
    %v2108 = vpop.f32.mrb[0].mxu0
    %v2109 = vadd.f32 %v222, %v2108
    %v2110 = vpop.f32.mrb[0].mxu0
    %v2111 = vadd.f32 %v218, %v2110
    %v2112 = vpop.f32.mrb[0].mxu0
    %v2113 = vadd.f32 %v222, %v2112
    %2114 = vmatprep.mubr.bf16.mxu0 0
    %2115 = vmatmul.mubr.bf16.gmra.mrb[0].mxu0 %v387
    %v2116 = vpop.f32.mrb[0].mxu0
    %v2117 = vadd.f32 %v218, %v2116
    %v2118 = vpop.f32.mrb[0].mxu0
    %v2119 = vadd.f32 %v222, %v2118
    %v2120 = vpop.f32.mrb[0].mxu0
    %v2121 = vadd.f32 %v218, %v2120
    %v2122 = vpop.f32.mrb[0].mxu0
    %v2123 = vadd.f32 %v222, %v2122
    %2124 = vmatprep.mubr.bf16.mxu0 0
    %2125 = vmatmul.mubr.bf16.gmra.mrb[0].mxu0 %v388
    %v2126 = vpop.f32.mrb[0].mxu0
    %v2127 = vadd.f32 %v218, %v2126
    %v2128 = vpop.f32.mrb[0].mxu0
    %v2129 = vadd.f32 %v222, %v2128
    %v2130 = vpop.f32.mrb[0].mxu0
    %v2131 = vadd.f32 %v218, %v2130
    %v2132 = vpop.f32.mrb[0].mxu0
    %v2133 = vadd.f32 %v222, %v2132
    %2134 = vmatprep.mubr.bf16.mxu0 0
    %2135 = vmatmul.mubr.bf16.gmra.mrb[0].mxu0 %v389
    %v2136 = vpop.f32.mrb[0].mxu0
    %v2137 = vadd.f32 %v218, %v2136
    %v2138 = vpop.f32.mrb[0].mxu0
    %v2139 = vadd.f32 %v222, %v2138
    %v2140 = vpop.f32.mrb[0].mxu0
    %v2141 = vadd.f32 %v218, %v2140
    %v2142 = vpop.f32.mrb[0].mxu0
    %v2143 = vadd.f32 %v222, %v2142
    %2144 = vmatprep.mubr.bf16.mxu0 0
    %2145 = vmatmul.mubr.bf16.gmra.mrb[0].mxu0 %v390
    %v2146 = vpop.f32.mrb[0].mxu0
    %v2147 = vadd.f32 %v218, %v2146
    %v2148 = vpop.f32.mrb[0].mxu0
    %v2149 = vadd.f32 %v222, %v2148
    %v2150 = vpop.f32.mrb[0].mxu0
    %v2151 = vadd.f32 %v218, %v2150
    %v2152 = vpop.f32.mrb[0].mxu0
    %v2153 = vadd.f32 %v222, %v2152
    %2154 = vdwg.mxu0
    %v2155 = vmax.f32 %v778, 0.0
    %v2156 = vmax.f32 %v780, 0.0
    %v2157 = vmax.f32 %v1131, 0.0
    %v2158 = vmax.f32 %v1133, 0.0
    %v2159 = vmax.f32 %v1484, 0.0
    %v2160 = vmax.f32 %v1486, 0.0
    %v2161 = vmax.f32 %v1837, 0.0
    %v2162 = vmax.f32 %v1839, 0.0
    %v2163 = vmax.f32 %v782, 0.0
    %v2164 = vmax.f32 %v784, 0.0
    %v2165 = vmax.f32 %v1135, 0.0
    %v2166 = vmax.f32 %v1137, 0.0
    %v2167 = vmax.f32 %v1488, 0.0
    %v2168 = vmax.f32 %v1490, 0.0
    %v2169 = vmax.f32 %v1841, 0.0
    %v2170 = vmax.f32 %v1843, 0.0
    %v2171 = vmax.f32 %v788, 0.0
    %v2172 = vmax.f32 %v790, 0.0
    %v2173 = vmax.f32 %v1141, 0.0
    %v2174 = vmax.f32 %v1143, 0.0
    %v2175 = vmax.f32 %v1494, 0.0
    %v2176 = vmax.f32 %v1496, 0.0
    %v2177 = vmax.f32 %v1847, 0.0
    %v2178 = vmax.f32 %v1849, 0.0
    %v2179 = vmax.f32 %v792, 0.0
    %v2180 = vmax.f32 %v794, 0.0
    %v2181 = vmax.f32 %v1145, 0.0
    %v2182 = vmax.f32 %v1147, 0.0
    %v2183 = vmax.f32 %v1498, 0.0
    %v2184 = vmax.f32 %v1500, 0.0
    %v2185 = vmax.f32 %v1851, 0.0
    %v2186 = vmax.f32 %v1853, 0.0
    %v2187 = vmax.f32 %v798, 0.0
    %v2188 = vmax.f32 %v800, 0.0
    %v2189 = vmax.f32 %v1151, 0.0
    %v2190 = vmax.f32 %v1153, 0.0
    %v2191 = vmax.f32 %v1504, 0.0
    %v2192 = vmax.f32 %v1506, 0.0
    %v2193 = vmax.f32 %v1857, 0.0
    %v2194 = vmax.f32 %v1859, 0.0
    %v2195 = vmax.f32 %v802, 0.0
    %v2196 = vmax.f32 %v804, 0.0
    %v2197 = vmax.f32 %v1155, 0.0
    %v2198 = vmax.f32 %v1157, 0.0
    %v2199 = vmax.f32 %v1508, 0.0
    %v2200 = vmax.f32 %v1510, 0.0
    %v2201 = vmax.f32 %v1861, 0.0
    %v2202 = vmax.f32 %v1863, 0.0
    %v2203 = vmax.f32 %v808, 0.0
    %v2204 = vmax.f32 %v810, 0.0
    %v2205 = vmax.f32 %v1161, 0.0
    %v2206 = vmax.f32 %v1163, 0.0
    %v2207 = vmax.f32 %v1514, 0.0
    %v2208 = vmax.f32 %v1516, 0.0
    %v2209 = vmax.f32 %v1867, 0.0
    %v2210 = vmax.f32 %v1869, 0.0
    %v2211 = vmax.f32 %v812, 0.0
    %v2212 = vmax.f32 %v814, 0.0
    %v2213 = vmax.f32 %v1165, 0.0
    %v2214 = vmax.f32 %v1167, 0.0
    %v2215 = vmax.f32 %v1518, 0.0
    %v2216 = vmax.f32 %v1520, 0.0
    %v2217 = vmax.f32 %v1871, 0.0
    %v2218 = vmax.f32 %v1873, 0.0
    %v2219 = vmax.f32 %v818, 0.0
    %v2220 = vmax.f32 %v820, 0.0
    %v2221 = vmax.f32 %v1171, 0.0
    %v2222 = vmax.f32 %v1173, 0.0
    %v2223 = vmax.f32 %v1524, 0.0
    %v2224 = vmax.f32 %v1526, 0.0
    %v2225 = vmax.f32 %v1877, 0.0
    %v2226 = vmax.f32 %v1879, 0.0
    %v2227 = vmax.f32 %v822, 0.0
    %v2228 = vmax.f32 %v824, 0.0
    %v2229 = vmax.f32 %v1175, 0.0
    %v2230 = vmax.f32 %v1177, 0.0
    %v2231 = vmax.f32 %v1528, 0.0
    %v2232 = vmax.f32 %v1530, 0.0
    %v2233 = vmax.f32 %v1881, 0.0
    %v2234 = vmax.f32 %v1883, 0.0
    %v2235 = vmax.f32 %v828, 0.0
    %v2236 = vmax.f32 %v830, 0.0
    %v2237 = vmax.f32 %v1181, 0.0
    %v2238 = vmax.f32 %v1183, 0.0
    %v2239 = vmax.f32 %v1534, 0.0
    %v2240 = vmax.f32 %v1536, 0.0
    %v2241 = vmax.f32 %v1887, 0.0
    %v2242 = vmax.f32 %v1889, 0.0
    %v2243 = vmax.f32 %v832, 0.0
    %v2244 = vmax.f32 %v834, 0.0
    %v2245 = vmax.f32 %v1185, 0.0
    %v2246 = vmax.f32 %v1187, 0.0
    %v2247 = vmax.f32 %v1538, 0.0
    %v2248 = vmax.f32 %v1540, 0.0
    %v2249 = vmax.f32 %v1891, 0.0
    %v2250 = vmax.f32 %v1893, 0.0
    %v2251 = vmax.f32 %v838, 0.0
    %v2252 = vmax.f32 %v840, 0.0
    %v2253 = vmax.f32 %v1191, 0.0
    %v2254 = vmax.f32 %v1193, 0.0
    %v2255 = vmax.f32 %v1544, 0.0
    %v2256 = vmax.f32 %v1546, 0.0
    %v2257 = vmax.f32 %v1897, 0.0
    %v2258 = vmax.f32 %v1899, 0.0
    %v2259 = vmax.f32 %v842, 0.0
    %v2260 = vmax.f32 %v844, 0.0
    %v2261 = vmax.f32 %v1195, 0.0
    %v2262 = vmax.f32 %v1197, 0.0
    %v2263 = vmax.f32 %v1548, 0.0
    %v2264 = vmax.f32 %v1550, 0.0
    %v2265 = vmax.f32 %v1901, 0.0
    %v2266 = vmax.f32 %v1903, 0.0
    %v2267 = vmax.f32 %v848, 0.0
    %v2268 = vmax.f32 %v850, 0.0
    %v2269 = vmax.f32 %v1201, 0.0
    %v2270 = vmax.f32 %v1203, 0.0
    %v2271 = vmax.f32 %v1554, 0.0
    %v2272 = vmax.f32 %v1556, 0.0
    %v2273 = vmax.f32 %v1907, 0.0
    %v2274 = vmax.f32 %v1909, 0.0
    %v2275 = vmax.f32 %v852, 0.0
    %v2276 = vmax.f32 %v854, 0.0
    %v2277 = vmax.f32 %v1205, 0.0
    %v2278 = vmax.f32 %v1207, 0.0
    %v2279 = vmax.f32 %v1558, 0.0
    %v2280 = vmax.f32 %v1560, 0.0
    %v2281 = vmax.f32 %v1911, 0.0
    %v2282 = vmax.f32 %v1913, 0.0
    %v2283 = vmax.f32 %v858, 0.0
    %v2284 = vmax.f32 %v860, 0.0
    %v2285 = vmax.f32 %v1211, 0.0
    %v2286 = vmax.f32 %v1213, 0.0
    %v2287 = vmax.f32 %v1564, 0.0
    %v2288 = vmax.f32 %v1566, 0.0
    %v2289 = vmax.f32 %v1917, 0.0
    %v2290 = vmax.f32 %v1919, 0.0
    %v2291 = vmax.f32 %v862, 0.0
    %v2292 = vmax.f32 %v864, 0.0
    %v2293 = vmax.f32 %v1215, 0.0
    %v2294 = vmax.f32 %v1217, 0.0
    %v2295 = vmax.f32 %v1568, 0.0
    %v2296 = vmax.f32 %v1570, 0.0
    %v2297 = vmax.f32 %v1921, 0.0
    %v2298 = vmax.f32 %v1923, 0.0
    %v2299 = vmax.f32 %v868, 0.0
    %v2300 = vmax.f32 %v870, 0.0
    %v2301 = vmax.f32 %v1221, 0.0
    %v2302 = vmax.f32 %v1223, 0.0
    %v2303 = vmax.f32 %v1574, 0.0
    %v2304 = vmax.f32 %v1576, 0.0
    %v2305 = vmax.f32 %v1927, 0.0
    %v2306 = vmax.f32 %v1929, 0.0
    %v2307 = vmax.f32 %v872, 0.0
    %v2308 = vmax.f32 %v874, 0.0
    %v2309 = vmax.f32 %v1225, 0.0
    %v2310 = vmax.f32 %v1227, 0.0
    %v2311 = vmax.f32 %v1578, 0.0
    %v2312 = vmax.f32 %v1580, 0.0
    %v2313 = vmax.f32 %v1931, 0.0
    %v2314 = vmax.f32 %v1933, 0.0
    %v2315 = vmax.f32 %v878, 0.0
    %v2316 = vmax.f32 %v880, 0.0
    %v2317 = vmax.f32 %v1231, 0.0
    %v2318 = vmax.f32 %v1233, 0.0
    %v2319 = vmax.f32 %v1584, 0.0
    %v2320 = vmax.f32 %v1586, 0.0
    %v2321 = vmax.f32 %v1937, 0.0
    %v2322 = vmax.f32 %v1939, 0.0
    %v2323 = vmax.f32 %v882, 0.0
    %v2324 = vmax.f32 %v884, 0.0
    %v2325 = vmax.f32 %v1235, 0.0
    %v2326 = vmax.f32 %v1237, 0.0
    %v2327 = vmax.f32 %v1588, 0.0
    %v2328 = vmax.f32 %v1590, 0.0
    %v2329 = vmax.f32 %v1941, 0.0
    %v2330 = vmax.f32 %v1943, 0.0
    %v2331 = vmax.f32 %v888, 0.0
    %v2332 = vmax.f32 %v890, 0.0
    %v2333 = vmax.f32 %v1241, 0.0
    %v2334 = vmax.f32 %v1243, 0.0
    %v2335 = vmax.f32 %v1594, 0.0
    %v2336 = vmax.f32 %v1596, 0.0
    %v2337 = vmax.f32 %v1947, 0.0
    %v2338 = vmax.f32 %v1949, 0.0
    %v2339 = vmax.f32 %v892, 0.0
    %v2340 = vmax.f32 %v894, 0.0
    %v2341 = vmax.f32 %v1245, 0.0
    %v2342 = vmax.f32 %v1247, 0.0
    %v2343 = vmax.f32 %v1598, 0.0
    %v2344 = vmax.f32 %v1600, 0.0
    %v2345 = vmax.f32 %v1951, 0.0
    %v2346 = vmax.f32 %v1953, 0.0
    %v2347 = vmax.f32 %v898, 0.0
    %v2348 = vmax.f32 %v900, 0.0
    %v2349 = vmax.f32 %v1251, 0.0
    %v2350 = vmax.f32 %v1253, 0.0
    %v2351 = vmax.f32 %v1604, 0.0
    %v2352 = vmax.f32 %v1606, 0.0
    %v2353 = vmax.f32 %v1957, 0.0
    %v2354 = vmax.f32 %v1959, 0.0
    %v2355 = vmax.f32 %v902, 0.0
    %v2356 = vmax.f32 %v904, 0.0
    %v2357 = vmax.f32 %v1255, 0.0
    %v2358 = vmax.f32 %v1257, 0.0
    %v2359 = vmax.f32 %v1608, 0.0
    %v2360 = vmax.f32 %v1610, 0.0
    %v2361 = vmax.f32 %v1961, 0.0
    %v2362 = vmax.f32 %v1963, 0.0
    %v2363 = vmax.f32 %v908, 0.0
    %v2364 = vmax.f32 %v910, 0.0
    %v2365 = vmax.f32 %v1261, 0.0
    %v2366 = vmax.f32 %v1263, 0.0
    %v2367 = vmax.f32 %v1614, 0.0
    %v2368 = vmax.f32 %v1616, 0.0
    %v2369 = vmax.f32 %v1967, 0.0
    %v2370 = vmax.f32 %v1969, 0.0
    %v2371 = vmax.f32 %v912, 0.0
    %v2372 = vmax.f32 %v914, 0.0
    %v2373 = vmax.f32 %v1265, 0.0
    %v2374 = vmax.f32 %v1267, 0.0
    %v2375 = vmax.f32 %v1618, 0.0
    %v2376 = vmax.f32 %v1620, 0.0
    %v2377 = vmax.f32 %v1971, 0.0
    %v2378 = vmax.f32 %v1973, 0.0
    %v2379 = vmax.f32 %v918, 0.0
    %v2380 = vmax.f32 %v920, 0.0
    %v2381 = vmax.f32 %v1271, 0.0
    %v2382 = vmax.f32 %v1273, 0.0
    %v2383 = vmax.f32 %v1624, 0.0
    %v2384 = vmax.f32 %v1626, 0.0
    %v2385 = vmax.f32 %v1977, 0.0
    %v2386 = vmax.f32 %v1979, 0.0
    %v2387 = vmax.f32 %v922, 0.0
    %v2388 = vmax.f32 %v924, 0.0
    %v2389 = vmax.f32 %v1275, 0.0
    %v2390 = vmax.f32 %v1277, 0.0
    %v2391 = vmax.f32 %v1628, 0.0
    %v2392 = vmax.f32 %v1630, 0.0
    %v2393 = vmax.f32 %v1981, 0.0
    %v2394 = vmax.f32 %v1983, 0.0
    %v2395 = vmax.f32 %v928, 0.0
    %v2396 = vmax.f32 %v930, 0.0
    %v2397 = vmax.f32 %v1281, 0.0
    %v2398 = vmax.f32 %v1283, 0.0
    %v2399 = vmax.f32 %v1634, 0.0
    %v2400 = vmax.f32 %v1636, 0.0
    %v2401 = vmax.f32 %v1987, 0.0
    %v2402 = vmax.f32 %v1989, 0.0
    %v2403 = vmax.f32 %v932, 0.0
    %v2404 = vmax.f32 %v934, 0.0
    %v2405 = vmax.f32 %v1285, 0.0
    %v2406 = vmax.f32 %v1287, 0.0
    %v2407 = vmax.f32 %v1638, 0.0
    %v2408 = vmax.f32 %v1640, 0.0
    %v2409 = vmax.f32 %v1991, 0.0
    %v2410 = vmax.f32 %v1993, 0.0
    %v2411 = vmax.f32 %v938, 0.0
    %v2412 = vmax.f32 %v940, 0.0
    %v2413 = vmax.f32 %v1291, 0.0
    %v2414 = vmax.f32 %v1293, 0.0
    %v2415 = vmax.f32 %v1644, 0.0
    %v2416 = vmax.f32 %v1646, 0.0
    %v2417 = vmax.f32 %v1997, 0.0
    %v2418 = vmax.f32 %v1999, 0.0
    %v2419 = vmax.f32 %v942, 0.0
    %v2420 = vmax.f32 %v944, 0.0
    %v2421 = vmax.f32 %v1295, 0.0
    %v2422 = vmax.f32 %v1297, 0.0
    %v2423 = vmax.f32 %v1648, 0.0
    %v2424 = vmax.f32 %v1650, 0.0
    %v2425 = vmax.f32 %v2001, 0.0
    %v2426 = vmax.f32 %v2003, 0.0
    %v2427 = vmax.f32 %v948, 0.0
    %v2428 = vmax.f32 %v950, 0.0
    %v2429 = vmax.f32 %v1301, 0.0
    %v2430 = vmax.f32 %v1303, 0.0
    %v2431 = vmax.f32 %v1654, 0.0
    %v2432 = vmax.f32 %v1656, 0.0
    %v2433 = vmax.f32 %v2007, 0.0
    %v2434 = vmax.f32 %v2009, 0.0
    %v2435 = vmax.f32 %v952, 0.0
    %v2436 = vmax.f32 %v954, 0.0
    %v2437 = vmax.f32 %v1305, 0.0
    %v2438 = vmax.f32 %v1307, 0.0
    %v2439 = vmax.f32 %v1658, 0.0
    %v2440 = vmax.f32 %v1660, 0.0
    %v2441 = vmax.f32 %v2011, 0.0
    %v2442 = vmax.f32 %v2013, 0.0
    %v2443 = vmax.f32 %v958, 0.0
    %v2444 = vmax.f32 %v960, 0.0
    %v2445 = vmax.f32 %v1311, 0.0
    %v2446 = vmax.f32 %v1313, 0.0
    %v2447 = vmax.f32 %v1664, 0.0
    %v2448 = vmax.f32 %v1666, 0.0
    %v2449 = vmax.f32 %v2017, 0.0
    %v2450 = vmax.f32 %v2019, 0.0
    %v2451 = vmax.f32 %v962, 0.0
    %v2452 = vmax.f32 %v964, 0.0
    %v2453 = vmax.f32 %v1315, 0.0
    %v2454 = vmax.f32 %v1317, 0.0
    %v2455 = vmax.f32 %v1668, 0.0
    %v2456 = vmax.f32 %v1670, 0.0
    %v2457 = vmax.f32 %v2021, 0.0
    %v2458 = vmax.f32 %v2023, 0.0
    %v2459 = vmax.f32 %v968, 0.0
    %v2460 = vmax.f32 %v970, 0.0
    %v2461 = vmax.f32 %v1321, 0.0
    %v2462 = vmax.f32 %v1323, 0.0
    %v2463 = vmax.f32 %v1674, 0.0
    %v2464 = vmax.f32 %v1676, 0.0
    %v2465 = vmax.f32 %v2027, 0.0
    %v2466 = vmax.f32 %v2029, 0.0
    %v2467 = vmax.f32 %v972, 0.0
    %v2468 = vmax.f32 %v974, 0.0
    %v2469 = vmax.f32 %v1325, 0.0
    %v2470 = vmax.f32 %v1327, 0.0
    %v2471 = vmax.f32 %v1678, 0.0
    %v2472 = vmax.f32 %v1680, 0.0
    %v2473 = vmax.f32 %v2031, 0.0
    %v2474 = vmax.f32 %v2033, 0.0
    %v2475 = vmax.f32 %v978, 0.0
    %v2476 = vmax.f32 %v980, 0.0
    %v2477 = vmax.f32 %v1331, 0.0
    %v2478 = vmax.f32 %v1333, 0.0
    %v2479 = vmax.f32 %v1684, 0.0
    %v2480 = vmax.f32 %v1686, 0.0
    %v2481 = vmax.f32 %v2037, 0.0
    %v2482 = vmax.f32 %v2039, 0.0
    %v2483 = vmax.f32 %v982, 0.0
    %v2484 = vmax.f32 %v984, 0.0
    %v2485 = vmax.f32 %v1335, 0.0
    %v2486 = vmax.f32 %v1337, 0.0
    %v2487 = vmax.f32 %v1688, 0.0
    %v2488 = vmax.f32 %v1690, 0.0
    %v2489 = vmax.f32 %v2041, 0.0
    %v2490 = vmax.f32 %v2043, 0.0
    %v2491 = vmax.f32 %v988, 0.0
    %v2492 = vmax.f32 %v990, 0.0
    %v2493 = vmax.f32 %v1341, 0.0
    %v2494 = vmax.f32 %v1343, 0.0
    %v2495 = vmax.f32 %v1694, 0.0
    %v2496 = vmax.f32 %v1696, 0.0
    %v2497 = vmax.f32 %v2047, 0.0
    %v2498 = vmax.f32 %v2049, 0.0
    %v2499 = vmax.f32 %v992, 0.0
    %v2500 = vmax.f32 %v994, 0.0
    %v2501 = vmax.f32 %v1345, 0.0
    %v2502 = vmax.f32 %v1347, 0.0
    %v2503 = vmax.f32 %v1698, 0.0
    %v2504 = vmax.f32 %v1700, 0.0
    %v2505 = vmax.f32 %v2051, 0.0
    %v2506 = vmax.f32 %v2053, 0.0
    %v2507 = vmax.f32 %v998, 0.0
    %v2508 = vmax.f32 %v1000, 0.0
    %v2509 = vmax.f32 %v1351, 0.0
    %v2510 = vmax.f32 %v1353, 0.0
    %v2511 = vmax.f32 %v1704, 0.0
    %v2512 = vmax.f32 %v1706, 0.0
    %v2513 = vmax.f32 %v2057, 0.0
    %v2514 = vmax.f32 %v2059, 0.0
    %v2515 = vmax.f32 %v1002, 0.0
    %v2516 = vmax.f32 %v1004, 0.0
    %v2517 = vmax.f32 %v1355, 0.0
    %v2518 = vmax.f32 %v1357, 0.0
    %v2519 = vmax.f32 %v1708, 0.0
    %v2520 = vmax.f32 %v1710, 0.0
    %v2521 = vmax.f32 %v2061, 0.0
    %v2522 = vmax.f32 %v2063, 0.0
    %v2523 = vmax.f32 %v1008, 0.0
    %v2524 = vmax.f32 %v1010, 0.0
    %v2525 = vmax.f32 %v1361, 0.0
    %v2526 = vmax.f32 %v1363, 0.0
    %v2527 = vmax.f32 %v1714, 0.0
    %v2528 = vmax.f32 %v1716, 0.0
    %v2529 = vmax.f32 %v2067, 0.0
    %v2530 = vmax.f32 %v2069, 0.0
    %v2531 = vmax.f32 %v1012, 0.0
    %v2532 = vmax.f32 %v1014, 0.0
    %v2533 = vmax.f32 %v1365, 0.0
    %v2534 = vmax.f32 %v1367, 0.0
    %v2535 = vmax.f32 %v1718, 0.0
    %v2536 = vmax.f32 %v1720, 0.0
    %v2537 = vmax.f32 %v2071, 0.0
    %v2538 = vmax.f32 %v2073, 0.0
    %v2539 = vmax.f32 %v1018, 0.0
    %v2540 = vmax.f32 %v1020, 0.0
    %v2541 = vmax.f32 %v1371, 0.0
    %v2542 = vmax.f32 %v1373, 0.0
    %v2543 = vmax.f32 %v1724, 0.0
    %v2544 = vmax.f32 %v1726, 0.0
    %v2545 = vmax.f32 %v2077, 0.0
    %v2546 = vmax.f32 %v2079, 0.0
    %v2547 = vmax.f32 %v1022, 0.0
    %v2548 = vmax.f32 %v1024, 0.0
    %v2549 = vmax.f32 %v1375, 0.0
    %v2550 = vmax.f32 %v1377, 0.0
    %v2551 = vmax.f32 %v1728, 0.0
    %v2552 = vmax.f32 %v1730, 0.0
    %v2553 = vmax.f32 %v2081, 0.0
    %v2554 = vmax.f32 %v2083, 0.0
    %v2555 = vmax.f32 %v1028, 0.0
    %v2556 = vmax.f32 %v1030, 0.0
    %v2557 = vmax.f32 %v1381, 0.0
    %v2558 = vmax.f32 %v1383, 0.0
    %v2559 = vmax.f32 %v1734, 0.0
    %v2560 = vmax.f32 %v1736, 0.0
    %v2561 = vmax.f32 %v2087, 0.0
    %v2562 = vmax.f32 %v2089, 0.0
    %v2563 = vmax.f32 %v1032, 0.0
    %v2564 = vmax.f32 %v1034, 0.0
    %v2565 = vmax.f32 %v1385, 0.0
    %v2566 = vmax.f32 %v1387, 0.0
    %v2567 = vmax.f32 %v1738, 0.0
    %v2568 = vmax.f32 %v1740, 0.0
    %v2569 = vmax.f32 %v2091, 0.0
    %v2570 = vmax.f32 %v2093, 0.0
    %v2571 = vmax.f32 %v1038, 0.0
    %v2572 = vmax.f32 %v1040, 0.0
    %v2573 = vmax.f32 %v1391, 0.0
    %v2574 = vmax.f32 %v1393, 0.0
    %v2575 = vmax.f32 %v1744, 0.0
    %v2576 = vmax.f32 %v1746, 0.0
    %v2577 = vmax.f32 %v2097, 0.0
    %v2578 = vmax.f32 %v2099, 0.0
    %v2579 = vmax.f32 %v1042, 0.0
    %v2580 = vmax.f32 %v1044, 0.0
    %v2581 = vmax.f32 %v1395, 0.0
    %v2582 = vmax.f32 %v1397, 0.0
    %v2583 = vmax.f32 %v1748, 0.0
    %v2584 = vmax.f32 %v1750, 0.0
    %v2585 = vmax.f32 %v2101, 0.0
    %v2586 = vmax.f32 %v2103, 0.0
    %v2587 = vmax.f32 %v1048, 0.0
    %v2588 = vmax.f32 %v1050, 0.0
    %v2589 = vmax.f32 %v1401, 0.0
    %v2590 = vmax.f32 %v1403, 0.0
    %v2591 = vmax.f32 %v1754, 0.0
    %v2592 = vmax.f32 %v1756, 0.0
    %v2593 = vmax.f32 %v2107, 0.0
    %v2594 = vmax.f32 %v2109, 0.0
    %v2595 = vmax.f32 %v1052, 0.0
    %v2596 = vmax.f32 %v1054, 0.0
    %v2597 = vmax.f32 %v1405, 0.0
    %v2598 = vmax.f32 %v1407, 0.0
    %v2599 = vmax.f32 %v1758, 0.0
    %v2600 = vmax.f32 %v1760, 0.0
    %v2601 = vmax.f32 %v2111, 0.0
    %v2602 = vmax.f32 %v2113, 0.0
    %v2603 = vmax.f32 %v1058, 0.0
    %v2604 = vmax.f32 %v1060, 0.0
    %v2605 = vmax.f32 %v1411, 0.0
    %v2606 = vmax.f32 %v1413, 0.0
    %v2607 = vmax.f32 %v1764, 0.0
    %v2608 = vmax.f32 %v1766, 0.0
    %v2609 = vmax.f32 %v2117, 0.0
    %v2610 = vmax.f32 %v2119, 0.0
    %v2611 = vmax.f32 %v1062, 0.0
    %v2612 = vmax.f32 %v1064, 0.0
    %v2613 = vmax.f32 %v1415, 0.0
    %v2614 = vmax.f32 %v1417, 0.0
    %v2615 = vmax.f32 %v1768, 0.0
    %v2616 = vmax.f32 %v1770, 0.0
    %v2617 = vmax.f32 %v2121, 0.0
    %v2618 = vmax.f32 %v2123, 0.0
    %v2619 = vmax.f32 %v1068, 0.0
    %v2620 = vmax.f32 %v1070, 0.0
    %v2621 = vmax.f32 %v1421, 0.0
    %v2622 = vmax.f32 %v1423, 0.0
    %v2623 = vmax.f32 %v1774, 0.0
    %v2624 = vmax.f32 %v1776, 0.0
    %v2625 = vmax.f32 %v2127, 0.0
    %v2626 = vmax.f32 %v2129, 0.0
    %v2627 = vmax.f32 %v1072, 0.0
    %v2628 = vmax.f32 %v1074, 0.0
    %v2629 = vmax.f32 %v1425, 0.0
    %v2630 = vmax.f32 %v1427, 0.0
    %v2631 = vmax.f32 %v1778, 0.0
    %v2632 = vmax.f32 %v1780, 0.0
    %v2633 = vmax.f32 %v2131, 0.0
    %v2634 = vmax.f32 %v2133, 0.0
    %v2635 = vmax.f32 %v1078, 0.0
    %v2636 = vmax.f32 %v1080, 0.0
    %v2637 = vmax.f32 %v1431, 0.0
    %v2638 = vmax.f32 %v1433, 0.0
    %v2639 = vmax.f32 %v1784, 0.0
    %v2640 = vmax.f32 %v1786, 0.0
    %v2641 = vmax.f32 %v2137, 0.0
    %v2642 = vmax.f32 %v2139, 0.0
    %v2643 = vmax.f32 %v1082, 0.0
    %v2644 = vmax.f32 %v1084, 0.0
    %v2645 = vmax.f32 %v1435, 0.0
    %v2646 = vmax.f32 %v1437, 0.0
    %v2647 = vmax.f32 %v1788, 0.0
    %v2648 = vmax.f32 %v1790, 0.0
    %v2649 = vmax.f32 %v2141, 0.0
    %v2650 = vmax.f32 %v2143, 0.0
    %v2651 = vmax.f32 %v1088, 0.0
    %v2652 = vmax.f32 %v1090, 0.0
    %v2653 = vmax.f32 %v1441, 0.0
    %v2654 = vmax.f32 %v1443, 0.0
    %v2655 = vmax.f32 %v1794, 0.0
    %v2656 = vmax.f32 %v1796, 0.0
    %v2657 = vmax.f32 %v2147, 0.0
    %v2658 = vmax.f32 %v2149, 0.0
    %v2659 = vmax.f32 %v1092, 0.0
    %v2660 = vmax.f32 %v1094, 0.0
    %v2661 = vmax.f32 %v1445, 0.0
    %v2662 = vmax.f32 %v1447, 0.0
    %v2663 = vmax.f32 %v1798, 0.0
    %v2664 = vmax.f32 %v1800, 0.0
    %v2665 = vmax.f32 %v2151, 0.0
    %v2666 = vmax.f32 %v2153, 0.0
    %v2667 = vpack.c.bf16 %v2163, %v2155
    %v2668 = vpack.c.bf16 %v2164, %v2156
    %v2669 = vpack.c.bf16 %v2165, %v2157
    %v2670 = vpack.c.bf16 %v2166, %v2158
    %v2671 = vpack.c.bf16 %v2167, %v2159
    %v2672 = vpack.c.bf16 %v2168, %v2160
    %v2673 = vpack.c.bf16 %v2169, %v2161
    %v2674 = vpack.c.bf16 %v2170, %v2162
    %v2675 = vpack.c.bf16 %v2179, %v2171
    %v2676 = vpack.c.bf16 %v2180, %v2172
    %v2677 = vpack.c.bf16 %v2181, %v2173
    %v2678 = vpack.c.bf16 %v2182, %v2174
    %v2679 = vpack.c.bf16 %v2183, %v2175
    %v2680 = vpack.c.bf16 %v2184, %v2176
    %v2681 = vpack.c.bf16 %v2185, %v2177
    %v2682 = vpack.c.bf16 %v2186, %v2178
    %v2683 = vpack.c.bf16 %v2195, %v2187
    %v2684 = vpack.c.bf16 %v2196, %v2188
    %v2685 = vpack.c.bf16 %v2197, %v2189
    %v2686 = vpack.c.bf16 %v2198, %v2190
    %v2687 = vpack.c.bf16 %v2199, %v2191
    %v2688 = vpack.c.bf16 %v2200, %v2192
    %v2689 = vpack.c.bf16 %v2201, %v2193
    %v2690 = vpack.c.bf16 %v2202, %v2194
    %v2691 = vpack.c.bf16 %v2211, %v2203
    %v2692 = vpack.c.bf16 %v2212, %v2204
    %v2693 = vpack.c.bf16 %v2213, %v2205
    %v2694 = vpack.c.bf16 %v2214, %v2206
    %v2695 = vpack.c.bf16 %v2215, %v2207
    %v2696 = vpack.c.bf16 %v2216, %v2208
    %v2697 = vpack.c.bf16 %v2217, %v2209
    %v2698 = vpack.c.bf16 %v2218, %v2210
    %v2699 = vpack.c.bf16 %v2227, %v2219
    %v2700 = vpack.c.bf16 %v2228, %v2220
    %v2701 = vpack.c.bf16 %v2229, %v2221
    %v2702 = vpack.c.bf16 %v2230, %v2222
    %v2703 = vpack.c.bf16 %v2231, %v2223
    %v2704 = vpack.c.bf16 %v2232, %v2224
    %v2705 = vpack.c.bf16 %v2233, %v2225
    %v2706 = vpack.c.bf16 %v2234, %v2226
    %v2707 = vpack.c.bf16 %v2243, %v2235
    %v2708 = vpack.c.bf16 %v2244, %v2236
    %v2709 = vpack.c.bf16 %v2245, %v2237
    %v2710 = vpack.c.bf16 %v2246, %v2238
    %v2711 = vpack.c.bf16 %v2247, %v2239
    %v2712 = vpack.c.bf16 %v2248, %v2240
    %v2713 = vpack.c.bf16 %v2249, %v2241
    %v2714 = vpack.c.bf16 %v2250, %v2242
    %v2715 = vpack.c.bf16 %v2259, %v2251
    %v2716 = vpack.c.bf16 %v2260, %v2252
    %v2717 = vpack.c.bf16 %v2261, %v2253
    %v2718 = vpack.c.bf16 %v2262, %v2254
    %v2719 = vpack.c.bf16 %v2263, %v2255
    %v2720 = vpack.c.bf16 %v2264, %v2256
    %v2721 = vpack.c.bf16 %v2265, %v2257
    %v2722 = vpack.c.bf16 %v2266, %v2258
    %v2723 = vpack.c.bf16 %v2275, %v2267
    %v2724 = vpack.c.bf16 %v2276, %v2268
    %v2725 = vpack.c.bf16 %v2277, %v2269
    %v2726 = vpack.c.bf16 %v2278, %v2270
    %v2727 = vpack.c.bf16 %v2279, %v2271
    %v2728 = vpack.c.bf16 %v2280, %v2272
    %v2729 = vpack.c.bf16 %v2281, %v2273
    %v2730 = vpack.c.bf16 %v2282, %v2274
    %v2731 = vpack.c.bf16 %v2291, %v2283
    %v2732 = vpack.c.bf16 %v2292, %v2284
    %v2733 = vpack.c.bf16 %v2293, %v2285
    %v2734 = vpack.c.bf16 %v2294, %v2286
    %v2735 = vpack.c.bf16 %v2295, %v2287
    %v2736 = vpack.c.bf16 %v2296, %v2288
    %v2737 = vpack.c.bf16 %v2297, %v2289
    %v2738 = vpack.c.bf16 %v2298, %v2290
    %v2739 = vpack.c.bf16 %v2307, %v2299
    %v2740 = vpack.c.bf16 %v2308, %v2300
    %v2741 = vpack.c.bf16 %v2309, %v2301
    %v2742 = vpack.c.bf16 %v2310, %v2302
    %v2743 = vpack.c.bf16 %v2311, %v2303
    %v2744 = vpack.c.bf16 %v2312, %v2304
    %v2745 = vpack.c.bf16 %v2313, %v2305
    %v2746 = vpack.c.bf16 %v2314, %v2306
    %v2747 = vpack.c.bf16 %v2323, %v2315
    %v2748 = vpack.c.bf16 %v2324, %v2316
    %v2749 = vpack.c.bf16 %v2325, %v2317
    %v2750 = vpack.c.bf16 %v2326, %v2318
    %v2751 = vpack.c.bf16 %v2327, %v2319
    %v2752 = vpack.c.bf16 %v2328, %v2320
    %v2753 = vpack.c.bf16 %v2329, %v2321
    %v2754 = vpack.c.bf16 %v2330, %v2322
    %v2755 = vpack.c.bf16 %v2339, %v2331
    %v2756 = vpack.c.bf16 %v2340, %v2332
    %v2757 = vpack.c.bf16 %v2341, %v2333
    %v2758 = vpack.c.bf16 %v2342, %v2334
    %v2759 = vpack.c.bf16 %v2343, %v2335
    %v2760 = vpack.c.bf16 %v2344, %v2336
    %v2761 = vpack.c.bf16 %v2345, %v2337
    %v2762 = vpack.c.bf16 %v2346, %v2338
    %v2763 = vpack.c.bf16 %v2355, %v2347
    %v2764 = vpack.c.bf16 %v2356, %v2348
    %v2765 = vpack.c.bf16 %v2357, %v2349
    %v2766 = vpack.c.bf16 %v2358, %v2350
    %v2767 = vpack.c.bf16 %v2359, %v2351
    %v2768 = vpack.c.bf16 %v2360, %v2352
    %v2769 = vpack.c.bf16 %v2361, %v2353
    %v2770 = vpack.c.bf16 %v2362, %v2354
    %v2771 = vpack.c.bf16 %v2371, %v2363
    %v2772 = vpack.c.bf16 %v2372, %v2364
    %v2773 = vpack.c.bf16 %v2373, %v2365
    %v2774 = vpack.c.bf16 %v2374, %v2366
    %v2775 = vpack.c.bf16 %v2375, %v2367
    %v2776 = vpack.c.bf16 %v2376, %v2368
    %v2777 = vpack.c.bf16 %v2377, %v2369
    %v2778 = vpack.c.bf16 %v2378, %v2370
    %v2779 = vpack.c.bf16 %v2387, %v2379
    %v2780 = vpack.c.bf16 %v2388, %v2380
    %v2781 = vpack.c.bf16 %v2389, %v2381
    %v2782 = vpack.c.bf16 %v2390, %v2382
    %v2783 = vpack.c.bf16 %v2391, %v2383
    %v2784 = vpack.c.bf16 %v2392, %v2384
    %v2785 = vpack.c.bf16 %v2393, %v2385
    %v2786 = vpack.c.bf16 %v2394, %v2386
    %v2787 = vpack.c.bf16 %v2403, %v2395
    %v2788 = vpack.c.bf16 %v2404, %v2396
    %v2789 = vpack.c.bf16 %v2405, %v2397
    %v2790 = vpack.c.bf16 %v2406, %v2398
    %v2791 = vpack.c.bf16 %v2407, %v2399
    %v2792 = vpack.c.bf16 %v2408, %v2400
    %v2793 = vpack.c.bf16 %v2409, %v2401
    %v2794 = vpack.c.bf16 %v2410, %v2402
    %v2795 = vpack.c.bf16 %v2419, %v2411
    %v2796 = vpack.c.bf16 %v2420, %v2412
    %v2797 = vpack.c.bf16 %v2421, %v2413
    %v2798 = vpack.c.bf16 %v2422, %v2414
    %v2799 = vpack.c.bf16 %v2423, %v2415
    %v2800 = vpack.c.bf16 %v2424, %v2416
    %v2801 = vpack.c.bf16 %v2425, %v2417
    %v2802 = vpack.c.bf16 %v2426, %v2418
    %v2803 = vpack.c.bf16 %v2435, %v2427
    %v2804 = vpack.c.bf16 %v2436, %v2428
    %v2805 = vpack.c.bf16 %v2437, %v2429
    %v2806 = vpack.c.bf16 %v2438, %v2430
    %v2807 = vpack.c.bf16 %v2439, %v2431
    %v2808 = vpack.c.bf16 %v2440, %v2432
    %v2809 = vpack.c.bf16 %v2441, %v2433
    %v2810 = vpack.c.bf16 %v2442, %v2434
    %v2811 = vpack.c.bf16 %v2451, %v2443
    %v2812 = vpack.c.bf16 %v2452, %v2444
    %v2813 = vpack.c.bf16 %v2453, %v2445
    %v2814 = vpack.c.bf16 %v2454, %v2446
    %v2815 = vpack.c.bf16 %v2455, %v2447
    %v2816 = vpack.c.bf16 %v2456, %v2448
    %v2817 = vpack.c.bf16 %v2457, %v2449
    %v2818 = vpack.c.bf16 %v2458, %v2450
    %v2819 = vpack.c.bf16 %v2467, %v2459
    %v2820 = vpack.c.bf16 %v2468, %v2460
    %v2821 = vpack.c.bf16 %v2469, %v2461
    %v2822 = vpack.c.bf16 %v2470, %v2462
    %v2823 = vpack.c.bf16 %v2471, %v2463
    %v2824 = vpack.c.bf16 %v2472, %v2464
    %v2825 = vpack.c.bf16 %v2473, %v2465
    %v2826 = vpack.c.bf16 %v2474, %v2466
    %v2827 = vpack.c.bf16 %v2483, %v2475
    %v2828 = vpack.c.bf16 %v2484, %v2476
    %v2829 = vpack.c.bf16 %v2485, %v2477
    %v2830 = vpack.c.bf16 %v2486, %v2478
    %v2831 = vpack.c.bf16 %v2487, %v2479
    %v2832 = vpack.c.bf16 %v2488, %v2480
    %v2833 = vpack.c.bf16 %v2489, %v2481
    %v2834 = vpack.c.bf16 %v2490, %v2482
    %v2835 = vpack.c.bf16 %v2499, %v2491
    %v2836 = vpack.c.bf16 %v2500, %v2492
    %v2837 = vpack.c.bf16 %v2501, %v2493
    %v2838 = vpack.c.bf16 %v2502, %v2494
    %v2839 = vpack.c.bf16 %v2503, %v2495
    %v2840 = vpack.c.bf16 %v2504, %v2496
    %v2841 = vpack.c.bf16 %v2505, %v2497
    %v2842 = vpack.c.bf16 %v2506, %v2498
    %v2843 = vpack.c.bf16 %v2515, %v2507
    %v2844 = vpack.c.bf16 %v2516, %v2508
    %v2845 = vpack.c.bf16 %v2517, %v2509
    %v2846 = vpack.c.bf16 %v2518, %v2510
    %v2847 = vpack.c.bf16 %v2519, %v2511
    %v2848 = vpack.c.bf16 %v2520, %v2512
    %v2849 = vpack.c.bf16 %v2521, %v2513
    %v2850 = vpack.c.bf16 %v2522, %v2514
    %v2851 = vpack.c.bf16 %v2531, %v2523
    %v2852 = vpack.c.bf16 %v2532, %v2524
    %v2853 = vpack.c.bf16 %v2533, %v2525
    %v2854 = vpack.c.bf16 %v2534, %v2526
    %v2855 = vpack.c.bf16 %v2535, %v2527
    %v2856 = vpack.c.bf16 %v2536, %v2528
    %v2857 = vpack.c.bf16 %v2537, %v2529
    %v2858 = vpack.c.bf16 %v2538, %v2530
    %v2859 = vpack.c.bf16 %v2547, %v2539
    %v2860 = vpack.c.bf16 %v2548, %v2540
    %v2861 = vpack.c.bf16 %v2549, %v2541
    %v2862 = vpack.c.bf16 %v2550, %v2542
    %v2863 = vpack.c.bf16 %v2551, %v2543
    %v2864 = vpack.c.bf16 %v2552, %v2544
    %v2865 = vpack.c.bf16 %v2553, %v2545
    %v2866 = vpack.c.bf16 %v2554, %v2546
    %v2867 = vpack.c.bf16 %v2563, %v2555
    %v2868 = vpack.c.bf16 %v2564, %v2556
    %v2869 = vpack.c.bf16 %v2565, %v2557
    %v2870 = vpack.c.bf16 %v2566, %v2558
    %v2871 = vpack.c.bf16 %v2567, %v2559
    %v2872 = vpack.c.bf16 %v2568, %v2560
    %v2873 = vpack.c.bf16 %v2569, %v2561
    %v2874 = vpack.c.bf16 %v2570, %v2562
    %v2875 = vpack.c.bf16 %v2579, %v2571
    %v2876 = vpack.c.bf16 %v2580, %v2572
    %v2877 = vpack.c.bf16 %v2581, %v2573
    %v2878 = vpack.c.bf16 %v2582, %v2574
    %v2879 = vpack.c.bf16 %v2583, %v2575
    %v2880 = vpack.c.bf16 %v2584, %v2576
    %v2881 = vpack.c.bf16 %v2585, %v2577
    %v2882 = vpack.c.bf16 %v2586, %v2578
    %v2883 = vpack.c.bf16 %v2595, %v2587
    %v2884 = vpack.c.bf16 %v2596, %v2588
    %v2885 = vpack.c.bf16 %v2597, %v2589
    %v2886 = vpack.c.bf16 %v2598, %v2590
    %v2887 = vpack.c.bf16 %v2599, %v2591
    %v2888 = vpack.c.bf16 %v2600, %v2592
    %v2889 = vpack.c.bf16 %v2601, %v2593
    %v2890 = vpack.c.bf16 %v2602, %v2594
    %v2891 = vpack.c.bf16 %v2611, %v2603
    %v2892 = vpack.c.bf16 %v2612, %v2604
    %v2893 = vpack.c.bf16 %v2613, %v2605
    %v2894 = vpack.c.bf16 %v2614, %v2606
    %v2895 = vpack.c.bf16 %v2615, %v2607
    %v2896 = vpack.c.bf16 %v2616, %v2608
    %v2897 = vpack.c.bf16 %v2617, %v2609
    %v2898 = vpack.c.bf16 %v2618, %v2610
    %v2899 = vpack.c.bf16 %v2627, %v2619
    %v2900 = vpack.c.bf16 %v2628, %v2620
    %v2901 = vpack.c.bf16 %v2629, %v2621
    %v2902 = vpack.c.bf16 %v2630, %v2622
    %v2903 = vpack.c.bf16 %v2631, %v2623
    %v2904 = vpack.c.bf16 %v2632, %v2624
    %v2905 = vpack.c.bf16 %v2633, %v2625
    %v2906 = vpack.c.bf16 %v2634, %v2626
    %v2907 = vpack.c.bf16 %v2643, %v2635
    %v2908 = vpack.c.bf16 %v2644, %v2636
    %v2909 = vpack.c.bf16 %v2645, %v2637
    %v2910 = vpack.c.bf16 %v2646, %v2638
    %v2911 = vpack.c.bf16 %v2647, %v2639
    %v2912 = vpack.c.bf16 %v2648, %v2640
    %v2913 = vpack.c.bf16 %v2649, %v2641
    %v2914 = vpack.c.bf16 %v2650, %v2642
    %v2915 = vpack.c.bf16 %v2659, %v2651
    %v2916 = vpack.c.bf16 %v2660, %v2652
    %v2917 = vpack.c.bf16 %v2661, %v2653
    %v2918 = vpack.c.bf16 %v2662, %v2654
    %v2919 = vpack.c.bf16 %v2663, %v2655
    %v2920 = vpack.c.bf16 %v2664, %v2656
    %v2921 = vpack.c.bf16 %v2665, %v2657
    %v2922 = vpack.c.bf16 %v2666, %v2658
    %v2923 = vld [vmem:[#allocation4] sm:$0xff]
    %v2924 = vld [vmem:[#allocation4 + $0x8] sm:$0xff]
    %v2925 = vld [vmem:[#allocation4 + $0x10] sm:$0xff]
    %v2926 = vld [vmem:[#allocation4 + $0x18] sm:$0xff]
    %v2927 = vld [vmem:[#allocation4 + $0x20] sm:$0xff]
    %v2928 = vld [vmem:[#allocation4 + $0x28] sm:$0xff]
    %v2929 = vld [vmem:[#allocation4 + $0x30] sm:$0xff]
    %v2930 = vld [vmem:[#allocation4 + $0x38] sm:$0xff]
    %v2931 = vld [vmem:[#allocation4 + $0x40] sm:$0xff]
    %v2932 = vld [vmem:[#allocation4 + $0x48] sm:$0xff]
    %v2933 = vld [vmem:[#allocation4 + $0x50] sm:$0xff]
    %v2934 = vld [vmem:[#allocation4 + $0x58] sm:$0xff]
    %v2935 = vld [vmem:[#allocation4 + $0x60] sm:$0xff]
    %v2936 = vld [vmem:[#allocation4 + $0x68] sm:$0xff]
    %v2937 = vld [vmem:[#allocation4 + $0x70] sm:$0xff]
    %v2938 = vld [vmem:[#allocation4 + $0x78] sm:$0xff]
    %v2939 = vld [vmem:[#allocation4 + $0x80] sm:$0xff]
    %v2940 = vld [vmem:[#allocation4 + $0x88] sm:$0xff]
    %v2941 = vld [vmem:[#allocation4 + $0x90] sm:$0xff]
    %v2942 = vld [vmem:[#allocation4 + $0x98] sm:$0xff]
    %v2943 = vld [vmem:[#allocation4 + $0xa0] sm:$0xff]
    %v2944 = vld [vmem:[#allocation4 + $0xa8] sm:$0xff]
    %v2945 = vld [vmem:[#allocation4 + $0xb0] sm:$0xff]
    %v2946 = vld [vmem:[#allocation4 + $0xb8] sm:$0xff]
    %v2947 = vld [vmem:[#allocation4 + $0xc0] sm:$0xff]
    %v2948 = vld [vmem:[#allocation4 + $0xc8] sm:$0xff]
    %v2949 = vld [vmem:[#allocation4 + $0xd0] sm:$0xff]
    %v2950 = vld [vmem:[#allocation4 + $0xd8] sm:$0xff]
    %v2951 = vld [vmem:[#allocation4 + $0xe0] sm:$0xff]
    %v2952 = vld [vmem:[#allocation4 + $0xe8] sm:$0xff]
    %v2953 = vld [vmem:[#allocation4 + $0xf0] sm:$0xff]
    %v2954 = vld [vmem:[#allocation4 + $0xf8] sm:$0xff]
    %v2955 = vld [vmem:[#allocation4 + $0x100] sm:$0xff]
    %v2956 = vld [vmem:[#allocation4 + $0x108] sm:$0xff]
    %v2957 = vld [vmem:[#allocation4 + $0x110] sm:$0xff]
    %v2958 = vld [vmem:[#allocation4 + $0x118] sm:$0xff]
    %v2959 = vld [vmem:[#allocation4 + $0x120] sm:$0xff]
    %v2960 = vld [vmem:[#allocation4 + $0x128] sm:$0xff]
    %v2961 = vld [vmem:[#allocation4 + $0x130] sm:$0xff]
    %v2962 = vld [vmem:[#allocation4 + $0x138] sm:$0xff]
    %v2963 = vld [vmem:[#allocation4 + $0x140] sm:$0xff]
    %v2964 = vld [vmem:[#allocation4 + $0x148] sm:$0xff]
    %v2965 = vld [vmem:[#allocation4 + $0x150] sm:$0xff]
    %v2966 = vld [vmem:[#allocation4 + $0x158] sm:$0xff]
    %v2967 = vld [vmem:[#allocation4 + $0x160] sm:$0xff]
    %v2968 = vld [vmem:[#allocation4 + $0x168] sm:$0xff]
    %v2969 = vld [vmem:[#allocation4 + $0x170] sm:$0xff]
    %v2970 = vld [vmem:[#allocation4 + $0x178] sm:$0xff]
    %v2971 = vld [vmem:[#allocation4 + $0x180] sm:$0xff]
    %v2972 = vld [vmem:[#allocation4 + $0x188] sm:$0xff]
    %v2973 = vld [vmem:[#allocation4 + $0x190] sm:$0xff]
    %v2974 = vld [vmem:[#allocation4 + $0x198] sm:$0xff]
    %v2975 = vld [vmem:[#allocation4 + $0x1a0] sm:$0xff]
    %v2976 = vld [vmem:[#allocation4 + $0x1a8] sm:$0xff]
    %v2977 = vld [vmem:[#allocation4 + $0x1b0] sm:$0xff]
    %v2978 = vld [vmem:[#allocation4 + $0x1b8] sm:$0xff]
    %v2979 = vld [vmem:[#allocation4 + $0x1c0] sm:$0xff]
    %v2980 = vld [vmem:[#allocation4 + $0x1c8] sm:$0xff]
    %v2981 = vld [vmem:[#allocation4 + $0x1d0] sm:$0xff]
    %v2982 = vld [vmem:[#allocation4 + $0x1d8] sm:$0xff]
    %v2983 = vld [vmem:[#allocation4 + $0x1e0] sm:$0xff]
    %v2984 = vld [vmem:[#allocation4 + $0x1e8] sm:$0xff]
    %v2985 = vld [vmem:[#allocation4 + $0x1f0] sm:$0xff]
    %v2986 = vld [vmem:[#allocation4 + $0x1f8] sm:$0xff]
    %v2987 = vld [vmem:[#allocation4 + $0x200] sm:$0xff]
    %v2988 = vld [vmem:[#allocation4 + $0x208] sm:$0xff]
    %v2989 = vld [vmem:[#allocation4 + $0x210] sm:$0xff]
    %v2990 = vld [vmem:[#allocation4 + $0x218] sm:$0xff]
    %v2991 = vld [vmem:[#allocation4 + $0x220] sm:$0xff]
    %v2992 = vld [vmem:[#allocation4 + $0x228] sm:$0xff]
    %v2993 = vld [vmem:[#allocation4 + $0x230] sm:$0xff]
    %v2994 = vld [vmem:[#allocation4 + $0x238] sm:$0xff]
    %v2995 = vld [vmem:[#allocation4 + $0x240] sm:$0xff]
    %v2996 = vld [vmem:[#allocation4 + $0x248] sm:$0xff]
    %v2997 = vld [vmem:[#allocation4 + $0x250] sm:$0xff]
    %v2998 = vld [vmem:[#allocation4 + $0x258] sm:$0xff]
    %v2999 = vld [vmem:[#allocation4 + $0x260] sm:$0xff]
    %v3000 = vld [vmem:[#allocation4 + $0x268] sm:$0xff]
    %v3001 = vld [vmem:[#allocation4 + $0x270] sm:$0xff]
    %v3002 = vld [vmem:[#allocation4 + $0x278] sm:$0xff]
    %v3003 = vld [vmem:[#allocation4 + $0x280] sm:$0xff]
    %v3004 = vld [vmem:[#allocation4 + $0x288] sm:$0xff]
    %v3005 = vld [vmem:[#allocation4 + $0x290] sm:$0xff]
    %v3006 = vld [vmem:[#allocation4 + $0x298] sm:$0xff]
    %v3007 = vld [vmem:[#allocation4 + $0x2a0] sm:$0xff]
    %v3008 = vld [vmem:[#allocation4 + $0x2a8] sm:$0xff]
    %v3009 = vld [vmem:[#allocation4 + $0x2b0] sm:$0xff]
    %v3010 = vld [vmem:[#allocation4 + $0x2b8] sm:$0xff]
    %v3011 = vld [vmem:[#allocation4 + $0x2c0] sm:$0xff]
    %v3012 = vld [vmem:[#allocation4 + $0x2c8] sm:$0xff]
    %v3013 = vld [vmem:[#allocation4 + $0x2d0] sm:$0xff]
    %v3014 = vld [vmem:[#allocation4 + $0x2d8] sm:$0xff]
    %v3015 = vld [vmem:[#allocation4 + $0x2e0] sm:$0xff]
    %v3016 = vld [vmem:[#allocation4 + $0x2e8] sm:$0xff]
    %v3017 = vld [vmem:[#allocation4 + $0x2f0] sm:$0xff]
    %v3018 = vld [vmem:[#allocation4 + $0x2f8] sm:$0xff]
    %v3019 = vld [vmem:[#allocation4 + $0x300] sm:$0xff]
    %v3020 = vld [vmem:[#allocation4 + $0x308] sm:$0xff]
    %v3021 = vld [vmem:[#allocation4 + $0x310] sm:$0xff]
    %v3022 = vld [vmem:[#allocation4 + $0x318] sm:$0xff]
    %v3023 = vld [vmem:[#allocation4 + $0x320] sm:$0xff]
    %v3024 = vld [vmem:[#allocation4 + $0x328] sm:$0xff]
    %v3025 = vld [vmem:[#allocation4 + $0x330] sm:$0xff]
    %v3026 = vld [vmem:[#allocation4 + $0x338] sm:$0xff]
    %v3027 = vld [vmem:[#allocation4 + $0x340] sm:$0xff]
    %v3028 = vld [vmem:[#allocation4 + $0x348] sm:$0xff]
    %v3029 = vld [vmem:[#allocation4 + $0x350] sm:$0xff]
    %v3030 = vld [vmem:[#allocation4 + $0x358] sm:$0xff]
    %v3031 = vld [vmem:[#allocation4 + $0x360] sm:$0xff]
    %v3032 = vld [vmem:[#allocation4 + $0x368] sm:$0xff]
    %v3033 = vld [vmem:[#allocation4 + $0x370] sm:$0xff]
    %v3034 = vld [vmem:[#allocation4 + $0x378] sm:$0xff]
    %v3035 = vld [vmem:[#allocation4 + $0x380] sm:$0xff]
    %v3036 = vld [vmem:[#allocation4 + $0x388] sm:$0xff]
    %v3037 = vld [vmem:[#allocation4 + $0x390] sm:$0xff]
    %v3038 = vld [vmem:[#allocation4 + $0x398] sm:$0xff]
    %v3039 = vld [vmem:[#allocation4 + $0x3a0] sm:$0xff]
    %v3040 = vld [vmem:[#allocation4 + $0x3a8] sm:$0xff]
    %v3041 = vld [vmem:[#allocation4 + $0x3b0] sm:$0xff]
    %v3042 = vld [vmem:[#allocation4 + $0x3b8] sm:$0xff]
    %v3043 = vld [vmem:[#allocation4 + $0x3c0] sm:$0xff]
    %v3044 = vld [vmem:[#allocation4 + $0x3c8] sm:$0xff]
    %v3045 = vld [vmem:[#allocation4 + $0x3d0] sm:$0xff]
    %v3046 = vld [vmem:[#allocation4 + $0x3d8] sm:$0xff]
    %v3047 = vld [vmem:[#allocation4 + $0x3e0] sm:$0xff]
    %v3048 = vld [vmem:[#allocation4 + $0x3e8] sm:$0xff]
    %v3049 = vld [vmem:[#allocation4 + $0x3f0] sm:$0xff]
    %v3050 = vld [vmem:[#allocation4 + $0x3f8] sm:$0xff]
    %v3051 = vld [vmem:[#allocation4 + $0x400] sm:$0xff]
    %v3052 = vld [vmem:[#allocation4 + $0x408] sm:$0xff]
    %v3053 = vld [vmem:[#allocation4 + $0x410] sm:$0xff]
    %v3054 = vld [vmem:[#allocation4 + $0x418] sm:$0xff]
    %v3055 = vld [vmem:[#allocation4 + $0x420] sm:$0xff]
    %v3056 = vld [vmem:[#allocation4 + $0x428] sm:$0xff]
    %v3057 = vld [vmem:[#allocation4 + $0x430] sm:$0xff]
    %v3058 = vld [vmem:[#allocation4 + $0x438] sm:$0xff]
    %v3059 = vld [vmem:[#allocation4 + $0x440] sm:$0xff]
    %v3060 = vld [vmem:[#allocation4 + $0x448] sm:$0xff]
    %v3061 = vld [vmem:[#allocation4 + $0x450] sm:$0xff]
    %v3062 = vld [vmem:[#allocation4 + $0x458] sm:$0xff]
    %v3063 = vld [vmem:[#allocation4 + $0x460] sm:$0xff]
    %v3064 = vld [vmem:[#allocation4 + $0x468] sm:$0xff]
    %v3065 = vld [vmem:[#allocation4 + $0x470] sm:$0xff]
    %v3066 = vld [vmem:[#allocation4 + $0x478] sm:$0xff]
    %v3067 = vld [vmem:[#allocation4 + $0x480] sm:$0xff]
    %v3068 = vld [vmem:[#allocation4 + $0x488] sm:$0xff]
    %v3069 = vld [vmem:[#allocation4 + $0x490] sm:$0xff]
    %v3070 = vld [vmem:[#allocation4 + $0x498] sm:$0xff]
    %v3071 = vld [vmem:[#allocation4 + $0x4a0] sm:$0xff]
    %v3072 = vld [vmem:[#allocation4 + $0x4a8] sm:$0xff]
    %v3073 = vld [vmem:[#allocation4 + $0x4b0] sm:$0xff]
    %v3074 = vld [vmem:[#allocation4 + $0x4b8] sm:$0xff]
    %v3075 = vld [vmem:[#allocation4 + $0x4c0] sm:$0xff]
    %v3076 = vld [vmem:[#allocation4 + $0x4c8] sm:$0xff]
    %v3077 = vld [vmem:[#allocation4 + $0x4d0] sm:$0xff]
    %v3078 = vld [vmem:[#allocation4 + $0x4d8] sm:$0xff]
    %v3079 = vld [vmem:[#allocation4 + $0x4e0] sm:$0xff]
    %v3080 = vld [vmem:[#allocation4 + $0x4e8] sm:$0xff]
    %v3081 = vld [vmem:[#allocation4 + $0x4f0] sm:$0xff]
    %v3082 = vld [vmem:[#allocation4 + $0x4f8] sm:$0xff]
    %v3083 = vld [vmem:[#allocation4 + $0x500] sm:$0xff]
    %v3084 = vld [vmem:[#allocation4 + $0x508] sm:$0xff]
    %v3085 = vld [vmem:[#allocation4 + $0x510] sm:$0xff]
    %v3086 = vld [vmem:[#allocation4 + $0x518] sm:$0xff]
    %v3087 = vld [vmem:[#allocation4 + $0x520] sm:$0xff]
    %v3088 = vld [vmem:[#allocation4 + $0x528] sm:$0xff]
    %v3089 = vld [vmem:[#allocation4 + $0x530] sm:$0xff]
    %v3090 = vld [vmem:[#allocation4 + $0x538] sm:$0xff]
    %v3091 = vld [vmem:[#allocation4 + $0x540] sm:$0xff]
    %v3092 = vld [vmem:[#allocation4 + $0x548] sm:$0xff]
    %v3093 = vld [vmem:[#allocation4 + $0x550] sm:$0xff]
    %v3094 = vld [vmem:[#allocation4 + $0x558] sm:$0xff]
    %v3095 = vld [vmem:[#allocation4 + $0x560] sm:$0xff]
    %v3096 = vld [vmem:[#allocation4 + $0x568] sm:$0xff]
    %v3097 = vld [vmem:[#allocation4 + $0x570] sm:$0xff]
    %v3098 = vld [vmem:[#allocation4 + $0x578] sm:$0xff]
    %v3099 = vld [vmem:[#allocation4 + $0x580] sm:$0xff]
    %v3100 = vld [vmem:[#allocation4 + $0x588] sm:$0xff]
    %v3101 = vld [vmem:[#allocation4 + $0x590] sm:$0xff]
    %v3102 = vld [vmem:[#allocation4 + $0x598] sm:$0xff]
    %v3103 = vld [vmem:[#allocation4 + $0x5a0] sm:$0xff]
    %v3104 = vld [vmem:[#allocation4 + $0x5a8] sm:$0xff]
    %v3105 = vld [vmem:[#allocation4 + $0x5b0] sm:$0xff]
    %v3106 = vld [vmem:[#allocation4 + $0x5b8] sm:$0xff]
    %v3107 = vld [vmem:[#allocation4 + $0x5c0] sm:$0xff]
    %v3108 = vld [vmem:[#allocation4 + $0x5c8] sm:$0xff]
    %v3109 = vld [vmem:[#allocation4 + $0x5d0] sm:$0xff]
    %v3110 = vld [vmem:[#allocation4 + $0x5d8] sm:$0xff]
    %v3111 = vld [vmem:[#allocation4 + $0x5e0] sm:$0xff]
    %v3112 = vld [vmem:[#allocation4 + $0x5e8] sm:$0xff]
    %v3113 = vld [vmem:[#allocation4 + $0x5f0] sm:$0xff]
    %v3114 = vld [vmem:[#allocation4 + $0x5f8] sm:$0xff]
    %v3115 = vld [vmem:[#allocation4 + $0x600] sm:$0xff]
    %v3116 = vld [vmem:[#allocation4 + $0x608] sm:$0xff]
    %v3117 = vld [vmem:[#allocation4 + $0x610] sm:$0xff]
    %v3118 = vld [vmem:[#allocation4 + $0x618] sm:$0xff]
    %v3119 = vld [vmem:[#allocation4 + $0x620] sm:$0xff]
    %v3120 = vld [vmem:[#allocation4 + $0x628] sm:$0xff]
    %v3121 = vld [vmem:[#allocation4 + $0x630] sm:$0xff]
    %v3122 = vld [vmem:[#allocation4 + $0x638] sm:$0xff]
    %v3123 = vld [vmem:[#allocation4 + $0x640] sm:$0xff]
    %v3124 = vld [vmem:[#allocation4 + $0x648] sm:$0xff]
    %v3125 = vld [vmem:[#allocation4 + $0x650] sm:$0xff]
    %v3126 = vld [vmem:[#allocation4 + $0x658] sm:$0xff]
    %v3127 = vld [vmem:[#allocation4 + $0x660] sm:$0xff]
    %v3128 = vld [vmem:[#allocation4 + $0x668] sm:$0xff]
    %v3129 = vld [vmem:[#allocation4 + $0x670] sm:$0xff]
    %v3130 = vld [vmem:[#allocation4 + $0x678] sm:$0xff]
    %v3131 = vld [vmem:[#allocation4 + $0x680] sm:$0xff]
    %v3132 = vld [vmem:[#allocation4 + $0x688] sm:$0xff]
    %v3133 = vld [vmem:[#allocation4 + $0x690] sm:$0xff]
    %v3134 = vld [vmem:[#allocation4 + $0x698] sm:$0xff]
    %v3135 = vld [vmem:[#allocation4 + $0x6a0] sm:$0xff]
    %v3136 = vld [vmem:[#allocation4 + $0x6a8] sm:$0xff]
    %v3137 = vld [vmem:[#allocation4 + $0x6b0] sm:$0xff]
    %v3138 = vld [vmem:[#allocation4 + $0x6b8] sm:$0xff]
    %v3139 = vld [vmem:[#allocation4 + $0x6c0] sm:$0xff]
    %v3140 = vld [vmem:[#allocation4 + $0x6c8] sm:$0xff]
    %v3141 = vld [vmem:[#allocation4 + $0x6d0] sm:$0xff]
    %v3142 = vld [vmem:[#allocation4 + $0x6d8] sm:$0xff]
    %v3143 = vld [vmem:[#allocation4 + $0x6e0] sm:$0xff]
    %v3144 = vld [vmem:[#allocation4 + $0x6e8] sm:$0xff]
    %v3145 = vld [vmem:[#allocation4 + $0x6f0] sm:$0xff]
    %v3146 = vld [vmem:[#allocation4 + $0x6f8] sm:$0xff]
    %v3147 = vld [vmem:[#allocation4 + $0x700] sm:$0xff]
    %v3148 = vld [vmem:[#allocation4 + $0x708] sm:$0xff]
    %v3149 = vld [vmem:[#allocation4 + $0x710] sm:$0xff]
    %v3150 = vld [vmem:[#allocation4 + $0x718] sm:$0xff]
    %v3151 = vld [vmem:[#allocation4 + $0x720] sm:$0xff]
    %v3152 = vld [vmem:[#allocation4 + $0x728] sm:$0xff]
    %v3153 = vld [vmem:[#allocation4 + $0x730] sm:$0xff]
    %v3154 = vld [vmem:[#allocation4 + $0x738] sm:$0xff]
    %v3155 = vld [vmem:[#allocation4 + $0x740] sm:$0xff]
    %v3156 = vld [vmem:[#allocation4 + $0x748] sm:$0xff]
    %v3157 = vld [vmem:[#allocation4 + $0x750] sm:$0xff]
    %v3158 = vld [vmem:[#allocation4 + $0x758] sm:$0xff]
    %v3159 = vld [vmem:[#allocation4 + $0x760] sm:$0xff]
    %v3160 = vld [vmem:[#allocation4 + $0x768] sm:$0xff]
    %v3161 = vld [vmem:[#allocation4 + $0x770] sm:$0xff]
    %v3162 = vld [vmem:[#allocation4 + $0x778] sm:$0xff]
    %v3163 = vld [vmem:[#allocation4 + $0x780] sm:$0xff]
    %v3164 = vld [vmem:[#allocation4 + $0x788] sm:$0xff]
    %v3165 = vld [vmem:[#allocation4 + $0x790] sm:$0xff]
    %v3166 = vld [vmem:[#allocation4 + $0x798] sm:$0xff]
    %v3167 = vld [vmem:[#allocation4 + $0x7a0] sm:$0xff]
    %v3168 = vld [vmem:[#allocation4 + $0x7a8] sm:$0xff]
    %v3169 = vld [vmem:[#allocation4 + $0x7b0] sm:$0xff]
    %v3170 = vld [vmem:[#allocation4 + $0x7b8] sm:$0xff]
    %v3171 = vld [vmem:[#allocation4 + $0x7c0] sm:$0xff]
    %v3172 = vld [vmem:[#allocation4 + $0x7c8] sm:$0xff]
    %v3173 = vld [vmem:[#allocation4 + $0x7d0] sm:$0xff]
    %v3174 = vld [vmem:[#allocation4 + $0x7d8] sm:$0xff]
    %v3175 = vld [vmem:[#allocation4 + $0x7e0] sm:$0xff]
    %v3176 = vld [vmem:[#allocation4 + $0x7e8] sm:$0xff]
    %v3177 = vld [vmem:[#allocation4 + $0x7f0] sm:$0xff]
    %v3178 = vld [vmem:[#allocation4 + $0x7f8] sm:$0xff]
    %v3179 = vld [vmem:[%s4] sm:$0xf]
    %v3181 = vlaneseq
    %v3182 = vshrl.u32 %v3181, 7
    %v3183 = vsub.s32 0, %v3182
    %v3184 = vrot.slane %v3179, %v3183
    %v3185 = vlaneseq
    %v3186 = vshrl.u32 %v3185, 7
    %v3187 = vsub.s32 1, %v3186
    %v3188 = vrot.slane %v3179, %v3187
    %v3189 = vlaneseq
    %v3190 = vshrl.u32 %v3189, 7
    %v3191 = vsub.s32 2, %v3190
    %v3192 = vrot.slane %v3179, %v3191
    %v3193 = vlaneseq
    %v3194 = vshrl.u32 %v3193, 7
    %v3195 = vsub.s32 3, %v3194
    %v3196 = vrot.slane %v3179, %v3195
    %v3457 = vunpack.c.l.b16 %v2923
    %v3458 = vunpack.c.h.b16 %v2923
    %v3459 = vunpack.c.l.b16 %v2924
    %v3460 = vunpack.c.h.b16 %v2924
    %v3461 = vunpack.c.l.b16 %v2925
    %v3462 = vunpack.c.h.b16 %v2925
    %v3463 = vunpack.c.l.b16 %v2926
    %v3464 = vunpack.c.h.b16 %v2926
    %v3465 = vunpack.c.l.b16 %v2927
    %v3466 = vunpack.c.h.b16 %v2927
    %v3467 = vunpack.c.l.b16 %v2928
    %v3468 = vunpack.c.h.b16 %v2928
    %v3469 = vunpack.c.l.b16 %v2929
    %v3470 = vunpack.c.h.b16 %v2929
    %v3471 = vunpack.c.l.b16 %v2930
    %v3472 = vunpack.c.h.b16 %v2930
    %v3473 = vunpack.c.l.b16 %v2931
    %v3474 = vunpack.c.h.b16 %v2931
    %v3475 = vunpack.c.l.b16 %v2932
    %v3476 = vunpack.c.h.b16 %v2932
    %v3477 = vunpack.c.l.b16 %v2933
    %v3478 = vunpack.c.h.b16 %v2933
    %v3479 = vunpack.c.l.b16 %v2934
    %v3480 = vunpack.c.h.b16 %v2934
    %v3481 = vunpack.c.l.b16 %v2935
    %v3482 = vunpack.c.h.b16 %v2935
    %v3483 = vunpack.c.l.b16 %v2936
    %v3484 = vunpack.c.h.b16 %v2936
    %v3485 = vunpack.c.l.b16 %v2937
    %v3486 = vunpack.c.h.b16 %v2937
    %v3487 = vunpack.c.l.b16 %v2938
    %v3488 = vunpack.c.h.b16 %v2938
    %v3489 = vunpack.c.l.b16 %v2939
    %v3490 = vunpack.c.h.b16 %v2939
    %v3491 = vunpack.c.l.b16 %v2940
    %v3492 = vunpack.c.h.b16 %v2940
    %v3493 = vunpack.c.l.b16 %v2941
    %v3494 = vunpack.c.h.b16 %v2941
    %v3495 = vunpack.c.l.b16 %v2942
    %v3496 = vunpack.c.h.b16 %v2942
    %v3497 = vunpack.c.l.b16 %v2943
    %v3498 = vunpack.c.h.b16 %v2943
    %v3499 = vunpack.c.l.b16 %v2944
    %v3500 = vunpack.c.h.b16 %v2944
    %v3501 = vunpack.c.l.b16 %v2945
    %v3502 = vunpack.c.h.b16 %v2945
    %v3503 = vunpack.c.l.b16 %v2946
    %v3504 = vunpack.c.h.b16 %v2946
    %v3505 = vunpack.c.l.b16 %v2947
    %v3506 = vunpack.c.h.b16 %v2947
    %v3507 = vunpack.c.l.b16 %v2948
    %v3508 = vunpack.c.h.b16 %v2948
    %v3509 = vunpack.c.l.b16 %v2949
    %v3510 = vunpack.c.h.b16 %v2949
    %v3511 = vunpack.c.l.b16 %v2950
    %v3512 = vunpack.c.h.b16 %v2950
    %v3513 = vunpack.c.l.b16 %v2951
    %v3514 = vunpack.c.h.b16 %v2951
    %v3515 = vunpack.c.l.b16 %v2952
    %v3516 = vunpack.c.h.b16 %v2952
    %v3517 = vunpack.c.l.b16 %v2953
    %v3518 = vunpack.c.h.b16 %v2953
    %v3519 = vunpack.c.l.b16 %v2954
    %v3520 = vunpack.c.h.b16 %v2954
    %v3521 = vunpack.c.l.b16 %v2955
    %v3522 = vunpack.c.h.b16 %v2955
    %v3523 = vunpack.c.l.b16 %v2956
    %v3524 = vunpack.c.h.b16 %v2956
    %v3525 = vunpack.c.l.b16 %v2957
    %v3526 = vunpack.c.h.b16 %v2957
    %v3527 = vunpack.c.l.b16 %v2958
    %v3528 = vunpack.c.h.b16 %v2958
    %v3529 = vunpack.c.l.b16 %v2959
    %v3530 = vunpack.c.h.b16 %v2959
    %v3531 = vunpack.c.l.b16 %v2960
    %v3532 = vunpack.c.h.b16 %v2960
    %v3533 = vunpack.c.l.b16 %v2961
    %v3534 = vunpack.c.h.b16 %v2961
    %v3535 = vunpack.c.l.b16 %v2962
    %v3536 = vunpack.c.h.b16 %v2962
    %v3537 = vunpack.c.l.b16 %v2963
    %v3538 = vunpack.c.h.b16 %v2963
    %v3539 = vunpack.c.l.b16 %v2964
    %v3540 = vunpack.c.h.b16 %v2964
    %v3541 = vunpack.c.l.b16 %v2965
    %v3542 = vunpack.c.h.b16 %v2965
    %v3543 = vunpack.c.l.b16 %v2966
    %v3544 = vunpack.c.h.b16 %v2966
    %v3545 = vunpack.c.l.b16 %v2967
    %v3546 = vunpack.c.h.b16 %v2967
    %v3547 = vunpack.c.l.b16 %v2968
    %v3548 = vunpack.c.h.b16 %v2968
    %v3549 = vunpack.c.l.b16 %v2969
    %v3550 = vunpack.c.h.b16 %v2969
    %v3551 = vunpack.c.l.b16 %v2970
    %v3552 = vunpack.c.h.b16 %v2970
    %v3553 = vunpack.c.l.b16 %v2971
    %v3554 = vunpack.c.h.b16 %v2971
    %v3555 = vunpack.c.l.b16 %v2972
    %v3556 = vunpack.c.h.b16 %v2972
    %v3557 = vunpack.c.l.b16 %v2973
    %v3558 = vunpack.c.h.b16 %v2973
    %v3559 = vunpack.c.l.b16 %v2974
    %v3560 = vunpack.c.h.b16 %v2974
    %v3561 = vunpack.c.l.b16 %v2975
    %v3562 = vunpack.c.h.b16 %v2975
    %v3563 = vunpack.c.l.b16 %v2976
    %v3564 = vunpack.c.h.b16 %v2976
    %v3565 = vunpack.c.l.b16 %v2977
    %v3566 = vunpack.c.h.b16 %v2977
    %v3567 = vunpack.c.l.b16 %v2978
    %v3568 = vunpack.c.h.b16 %v2978
    %v3569 = vunpack.c.l.b16 %v2979
    %v3570 = vunpack.c.h.b16 %v2979
    %v3571 = vunpack.c.l.b16 %v2980
    %v3572 = vunpack.c.h.b16 %v2980
    %v3573 = vunpack.c.l.b16 %v2981
    %v3574 = vunpack.c.h.b16 %v2981
    %v3575 = vunpack.c.l.b16 %v2982
    %v3576 = vunpack.c.h.b16 %v2982
    %v3577 = vunpack.c.l.b16 %v2983
    %v3578 = vunpack.c.h.b16 %v2983
    %v3579 = vunpack.c.l.b16 %v2984
    %v3580 = vunpack.c.h.b16 %v2984
    %v3581 = vunpack.c.l.b16 %v2985
    %v3582 = vunpack.c.h.b16 %v2985
    %v3583 = vunpack.c.l.b16 %v2986
    %v3584 = vunpack.c.h.b16 %v2986
    %v3585 = vunpack.c.l.b16 %v2987
    %v3586 = vunpack.c.h.b16 %v2987
    %v3587 = vunpack.c.l.b16 %v2988
    %v3588 = vunpack.c.h.b16 %v2988
    %v3589 = vunpack.c.l.b16 %v2989
    %v3590 = vunpack.c.h.b16 %v2989
    %v3591 = vunpack.c.l.b16 %v2990
    %v3592 = vunpack.c.h.b16 %v2990
    %v3593 = vunpack.c.l.b16 %v2991
    %v3594 = vunpack.c.h.b16 %v2991
    %v3595 = vunpack.c.l.b16 %v2992
    %v3596 = vunpack.c.h.b16 %v2992
    %v3597 = vunpack.c.l.b16 %v2993
    %v3598 = vunpack.c.h.b16 %v2993
    %v3599 = vunpack.c.l.b16 %v2994
    %v3600 = vunpack.c.h.b16 %v2994
    %v3601 = vunpack.c.l.b16 %v2995
    %v3602 = vunpack.c.h.b16 %v2995
    %v3603 = vunpack.c.l.b16 %v2996
    %v3604 = vunpack.c.h.b16 %v2996
    %v3605 = vunpack.c.l.b16 %v2997
    %v3606 = vunpack.c.h.b16 %v2997
    %v3607 = vunpack.c.l.b16 %v2998
    %v3608 = vunpack.c.h.b16 %v2998
    %v3609 = vunpack.c.l.b16 %v2999
    %v3610 = vunpack.c.h.b16 %v2999
    %v3611 = vunpack.c.l.b16 %v3000
    %v3612 = vunpack.c.h.b16 %v3000
    %v3613 = vunpack.c.l.b16 %v3001
    %v3614 = vunpack.c.h.b16 %v3001
    %v3615 = vunpack.c.l.b16 %v3002
    %v3616 = vunpack.c.h.b16 %v3002
    %v3617 = vunpack.c.l.b16 %v3003
    %v3618 = vunpack.c.h.b16 %v3003
    %v3619 = vunpack.c.l.b16 %v3004
    %v3620 = vunpack.c.h.b16 %v3004
    %v3621 = vunpack.c.l.b16 %v3005
    %v3622 = vunpack.c.h.b16 %v3005
    %v3623 = vunpack.c.l.b16 %v3006
    %v3624 = vunpack.c.h.b16 %v3006
    %v3625 = vunpack.c.l.b16 %v3007
    %v3626 = vunpack.c.h.b16 %v3007
    %v3627 = vunpack.c.l.b16 %v3008
    %v3628 = vunpack.c.h.b16 %v3008
    %v3629 = vunpack.c.l.b16 %v3009
    %v3630 = vunpack.c.h.b16 %v3009
    %v3631 = vunpack.c.l.b16 %v3010
    %v3632 = vunpack.c.h.b16 %v3010
    %v3633 = vunpack.c.l.b16 %v3011
    %v3634 = vunpack.c.h.b16 %v3011
    %v3635 = vunpack.c.l.b16 %v3012
    %v3636 = vunpack.c.h.b16 %v3012
    %v3637 = vunpack.c.l.b16 %v3013
    %v3638 = vunpack.c.h.b16 %v3013
    %v3639 = vunpack.c.l.b16 %v3014
    %v3640 = vunpack.c.h.b16 %v3014
    %v3641 = vunpack.c.l.b16 %v3015
    %v3642 = vunpack.c.h.b16 %v3015
    %v3643 = vunpack.c.l.b16 %v3016
    %v3644 = vunpack.c.h.b16 %v3016
    %v3645 = vunpack.c.l.b16 %v3017
    %v3646 = vunpack.c.h.b16 %v3017
    %v3647 = vunpack.c.l.b16 %v3018
    %v3648 = vunpack.c.h.b16 %v3018
    %v3649 = vunpack.c.l.b16 %v3019
    %v3650 = vunpack.c.h.b16 %v3019
    %v3651 = vunpack.c.l.b16 %v3020
    %v3652 = vunpack.c.h.b16 %v3020
    %v3653 = vunpack.c.l.b16 %v3021
    %v3654 = vunpack.c.h.b16 %v3021
    %v3655 = vunpack.c.l.b16 %v3022
    %v3656 = vunpack.c.h.b16 %v3022
    %v3657 = vunpack.c.l.b16 %v3023
    %v3658 = vunpack.c.h.b16 %v3023
    %v3659 = vunpack.c.l.b16 %v3024
    %v3660 = vunpack.c.h.b16 %v3024
    %v3661 = vunpack.c.l.b16 %v3025
    %v3662 = vunpack.c.h.b16 %v3025
    %v3663 = vunpack.c.l.b16 %v3026
    %v3664 = vunpack.c.h.b16 %v3026
    %v3665 = vunpack.c.l.b16 %v3027
    %v3666 = vunpack.c.h.b16 %v3027
    %v3667 = vunpack.c.l.b16 %v3028
    %v3668 = vunpack.c.h.b16 %v3028
    %v3669 = vunpack.c.l.b16 %v3029
    %v3670 = vunpack.c.h.b16 %v3029
    %v3671 = vunpack.c.l.b16 %v3030
    %v3672 = vunpack.c.h.b16 %v3030
    %v3673 = vunpack.c.l.b16 %v3031
    %v3674 = vunpack.c.h.b16 %v3031
    %v3675 = vunpack.c.l.b16 %v3032
    %v3676 = vunpack.c.h.b16 %v3032
    %v3677 = vunpack.c.l.b16 %v3033
    %v3678 = vunpack.c.h.b16 %v3033
    %v3679 = vunpack.c.l.b16 %v3034
    %v3680 = vunpack.c.h.b16 %v3034
    %v3681 = vunpack.c.l.b16 %v3035
    %v3682 = vunpack.c.h.b16 %v3035
    %v3683 = vunpack.c.l.b16 %v3036
    %v3684 = vunpack.c.h.b16 %v3036
    %v3685 = vunpack.c.l.b16 %v3037
    %v3686 = vunpack.c.h.b16 %v3037
    %v3687 = vunpack.c.l.b16 %v3038
    %v3688 = vunpack.c.h.b16 %v3038
    %v3689 = vunpack.c.l.b16 %v3039
    %v3690 = vunpack.c.h.b16 %v3039
    %v3691 = vunpack.c.l.b16 %v3040
    %v3692 = vunpack.c.h.b16 %v3040
    %v3693 = vunpack.c.l.b16 %v3041
    %v3694 = vunpack.c.h.b16 %v3041
    %v3695 = vunpack.c.l.b16 %v3042
    %v3696 = vunpack.c.h.b16 %v3042
    %v3697 = vunpack.c.l.b16 %v3043
    %v3698 = vunpack.c.h.b16 %v3043
    %v3699 = vunpack.c.l.b16 %v3044
    %v3700 = vunpack.c.h.b16 %v3044
    %v3701 = vunpack.c.l.b16 %v3045
    %v3702 = vunpack.c.h.b16 %v3045
    %v3703 = vunpack.c.l.b16 %v3046
    %v3704 = vunpack.c.h.b16 %v3046
    %v3705 = vunpack.c.l.b16 %v3047
    %v3706 = vunpack.c.h.b16 %v3047
    %v3707 = vunpack.c.l.b16 %v3048
    %v3708 = vunpack.c.h.b16 %v3048
    %v3709 = vunpack.c.l.b16 %v3049
    %v3710 = vunpack.c.h.b16 %v3049
    %v3711 = vunpack.c.l.b16 %v3050
    %v3712 = vunpack.c.h.b16 %v3050
    %v3713 = vunpack.c.l.b16 %v3051
    %v3714 = vunpack.c.h.b16 %v3051
    %v3715 = vunpack.c.l.b16 %v3052
    %v3716 = vunpack.c.h.b16 %v3052
    %v3717 = vunpack.c.l.b16 %v3053
    %v3718 = vunpack.c.h.b16 %v3053
    %v3719 = vunpack.c.l.b16 %v3054
    %v3720 = vunpack.c.h.b16 %v3054
    %v3721 = vunpack.c.l.b16 %v3055
    %v3722 = vunpack.c.h.b16 %v3055
    %v3723 = vunpack.c.l.b16 %v3056
    %v3724 = vunpack.c.h.b16 %v3056
    %v3725 = vunpack.c.l.b16 %v3057
    %v3726 = vunpack.c.h.b16 %v3057
    %v3727 = vunpack.c.l.b16 %v3058
    %v3728 = vunpack.c.h.b16 %v3058
    %v3729 = vunpack.c.l.b16 %v3059
    %v3730 = vunpack.c.h.b16 %v3059
    %v3731 = vunpack.c.l.b16 %v3060
    %v3732 = vunpack.c.h.b16 %v3060
    %v3733 = vunpack.c.l.b16 %v3061
    %v3734 = vunpack.c.h.b16 %v3061
    %v3735 = vunpack.c.l.b16 %v3062
    %v3736 = vunpack.c.h.b16 %v3062
    %v3737 = vunpack.c.l.b16 %v3063
    %v3738 = vunpack.c.h.b16 %v3063
    %v3739 = vunpack.c.l.b16 %v3064
    %v3740 = vunpack.c.h.b16 %v3064
    %v3741 = vunpack.c.l.b16 %v3065
    %v3742 = vunpack.c.h.b16 %v3065
    %v3743 = vunpack.c.l.b16 %v3066
    %v3744 = vunpack.c.h.b16 %v3066
    %v3745 = vunpack.c.l.b16 %v3067
    %v3746 = vunpack.c.h.b16 %v3067
    %v3747 = vunpack.c.l.b16 %v3068
    %v3748 = vunpack.c.h.b16 %v3068
    %v3749 = vunpack.c.l.b16 %v3069
    %v3750 = vunpack.c.h.b16 %v3069
    %v3751 = vunpack.c.l.b16 %v3070
    %v3752 = vunpack.c.h.b16 %v3070
    %v3753 = vunpack.c.l.b16 %v3071
    %v3754 = vunpack.c.h.b16 %v3071
    %v3755 = vunpack.c.l.b16 %v3072
    %v3756 = vunpack.c.h.b16 %v3072
    %v3757 = vunpack.c.l.b16 %v3073
    %v3758 = vunpack.c.h.b16 %v3073
    %v3759 = vunpack.c.l.b16 %v3074
    %v3760 = vunpack.c.h.b16 %v3074
    %v3761 = vunpack.c.l.b16 %v3075
    %v3762 = vunpack.c.h.b16 %v3075
    %v3763 = vunpack.c.l.b16 %v3076
    %v3764 = vunpack.c.h.b16 %v3076
    %v3765 = vunpack.c.l.b16 %v3077
    %v3766 = vunpack.c.h.b16 %v3077
    %v3767 = vunpack.c.l.b16 %v3078
    %v3768 = vunpack.c.h.b16 %v3078
    %v3769 = vunpack.c.l.b16 %v3079
    %v3770 = vunpack.c.h.b16 %v3079
    %v3771 = vunpack.c.l.b16 %v3080
    %v3772 = vunpack.c.h.b16 %v3080
    %v3773 = vunpack.c.l.b16 %v3081
    %v3774 = vunpack.c.h.b16 %v3081
    %v3775 = vunpack.c.l.b16 %v3082
    %v3776 = vunpack.c.h.b16 %v3082
    %v3777 = vunpack.c.l.b16 %v3083
    %v3778 = vunpack.c.h.b16 %v3083
    %v3779 = vunpack.c.l.b16 %v3084
    %v3780 = vunpack.c.h.b16 %v3084
    %v3781 = vunpack.c.l.b16 %v3085
    %v3782 = vunpack.c.h.b16 %v3085
    %v3783 = vunpack.c.l.b16 %v3086
    %v3784 = vunpack.c.h.b16 %v3086
    %v3785 = vunpack.c.l.b16 %v3087
    %v3786 = vunpack.c.h.b16 %v3087
    %v3787 = vunpack.c.l.b16 %v3088
    %v3788 = vunpack.c.h.b16 %v3088
    %v3789 = vunpack.c.l.b16 %v3089
    %v3790 = vunpack.c.h.b16 %v3089
    %v3791 = vunpack.c.l.b16 %v3090
    %v3792 = vunpack.c.h.b16 %v3090
    %v3793 = vunpack.c.l.b16 %v3091
    %v3794 = vunpack.c.h.b16 %v3091
    %v3795 = vunpack.c.l.b16 %v3092
    %v3796 = vunpack.c.h.b16 %v3092
    %v3797 = vunpack.c.l.b16 %v3093
    %v3798 = vunpack.c.h.b16 %v3093
    %v3799 = vunpack.c.l.b16 %v3094
    %v3800 = vunpack.c.h.b16 %v3094
    %v3801 = vunpack.c.l.b16 %v3095
    %v3802 = vunpack.c.h.b16 %v3095
    %v3803 = vunpack.c.l.b16 %v3096
    %v3804 = vunpack.c.h.b16 %v3096
    %v3805 = vunpack.c.l.b16 %v3097
    %v3806 = vunpack.c.h.b16 %v3097
    %v3807 = vunpack.c.l.b16 %v3098
    %v3808 = vunpack.c.h.b16 %v3098
    %v3809 = vunpack.c.l.b16 %v3099
    %v3810 = vunpack.c.h.b16 %v3099
    %v3811 = vunpack.c.l.b16 %v3100
    %v3812 = vunpack.c.h.b16 %v3100
    %v3813 = vunpack.c.l.b16 %v3101
    %v3814 = vunpack.c.h.b16 %v3101
    %v3815 = vunpack.c.l.b16 %v3102
    %v3816 = vunpack.c.h.b16 %v3102
    %v3817 = vunpack.c.l.b16 %v3103
    %v3818 = vunpack.c.h.b16 %v3103
    %v3819 = vunpack.c.l.b16 %v3104
    %v3820 = vunpack.c.h.b16 %v3104
    %v3821 = vunpack.c.l.b16 %v3105
    %v3822 = vunpack.c.h.b16 %v3105
    %v3823 = vunpack.c.l.b16 %v3106
    %v3824 = vunpack.c.h.b16 %v3106
    %v3825 = vunpack.c.l.b16 %v3107
    %v3826 = vunpack.c.h.b16 %v3107
    %v3827 = vunpack.c.l.b16 %v3108
    %v3828 = vunpack.c.h.b16 %v3108
    %v3829 = vunpack.c.l.b16 %v3109
    %v3830 = vunpack.c.h.b16 %v3109
    %v3831 = vunpack.c.l.b16 %v3110
    %v3832 = vunpack.c.h.b16 %v3110
    %v3833 = vunpack.c.l.b16 %v3111
    %v3834 = vunpack.c.h.b16 %v3111
    %v3835 = vunpack.c.l.b16 %v3112
    %v3836 = vunpack.c.h.b16 %v3112
    %v3837 = vunpack.c.l.b16 %v3113
    %v3838 = vunpack.c.h.b16 %v3113
    %v3839 = vunpack.c.l.b16 %v3114
    %v3840 = vunpack.c.h.b16 %v3114
    %v3841 = vunpack.c.l.b16 %v3115
    %v3842 = vunpack.c.h.b16 %v3115
    %v3843 = vunpack.c.l.b16 %v3116
    %v3844 = vunpack.c.h.b16 %v3116
    %v3845 = vunpack.c.l.b16 %v3117
    %v3846 = vunpack.c.h.b16 %v3117
    %v3847 = vunpack.c.l.b16 %v3118
    %v3848 = vunpack.c.h.b16 %v3118
    %v3849 = vunpack.c.l.b16 %v3119
    %v3850 = vunpack.c.h.b16 %v3119
    %v3851 = vunpack.c.l.b16 %v3120
    %v3852 = vunpack.c.h.b16 %v3120
    %v3853 = vunpack.c.l.b16 %v3121
    %v3854 = vunpack.c.h.b16 %v3121
    %v3855 = vunpack.c.l.b16 %v3122
    %v3856 = vunpack.c.h.b16 %v3122
    %v3857 = vunpack.c.l.b16 %v3123
    %v3858 = vunpack.c.h.b16 %v3123
    %v3859 = vunpack.c.l.b16 %v3124
    %v3860 = vunpack.c.h.b16 %v3124
    %v3861 = vunpack.c.l.b16 %v3125
    %v3862 = vunpack.c.h.b16 %v3125
    %v3863 = vunpack.c.l.b16 %v3126
    %v3864 = vunpack.c.h.b16 %v3126
    %v3865 = vunpack.c.l.b16 %v3127
    %v3866 = vunpack.c.h.b16 %v3127
    %v3867 = vunpack.c.l.b16 %v3128
    %v3868 = vunpack.c.h.b16 %v3128
    %v3869 = vunpack.c.l.b16 %v3129
    %v3870 = vunpack.c.h.b16 %v3129
    %v3871 = vunpack.c.l.b16 %v3130
    %v3872 = vunpack.c.h.b16 %v3130
    %v3873 = vunpack.c.l.b16 %v3131
    %v3874 = vunpack.c.h.b16 %v3131
    %v3875 = vunpack.c.l.b16 %v3132
    %v3876 = vunpack.c.h.b16 %v3132
    %v3877 = vunpack.c.l.b16 %v3133
    %v3878 = vunpack.c.h.b16 %v3133
    %v3879 = vunpack.c.l.b16 %v3134
    %v3880 = vunpack.c.h.b16 %v3134
    %v3881 = vunpack.c.l.b16 %v3135
    %v3882 = vunpack.c.h.b16 %v3135
    %v3883 = vunpack.c.l.b16 %v3136
    %v3884 = vunpack.c.h.b16 %v3136
    %v3885 = vunpack.c.l.b16 %v3137
    %v3886 = vunpack.c.h.b16 %v3137
    %v3887 = vunpack.c.l.b16 %v3138
    %v3888 = vunpack.c.h.b16 %v3138
    %v3889 = vunpack.c.l.b16 %v3139
    %v3890 = vunpack.c.h.b16 %v3139
    %v3891 = vunpack.c.l.b16 %v3140
    %v3892 = vunpack.c.h.b16 %v3140
    %v3893 = vunpack.c.l.b16 %v3141
    %v3894 = vunpack.c.h.b16 %v3141
    %v3895 = vunpack.c.l.b16 %v3142
    %v3896 = vunpack.c.h.b16 %v3142
    %v3897 = vunpack.c.l.b16 %v3143
    %v3898 = vunpack.c.h.b16 %v3143
    %v3899 = vunpack.c.l.b16 %v3144
    %v3900 = vunpack.c.h.b16 %v3144
    %v3901 = vunpack.c.l.b16 %v3145
    %v3902 = vunpack.c.h.b16 %v3145
    %v3903 = vunpack.c.l.b16 %v3146
    %v3904 = vunpack.c.h.b16 %v3146
    %v3905 = vunpack.c.l.b16 %v3147
    %v3906 = vunpack.c.h.b16 %v3147
    %v3907 = vunpack.c.l.b16 %v3148
    %v3908 = vunpack.c.h.b16 %v3148
    %v3909 = vunpack.c.l.b16 %v3149
    %v3910 = vunpack.c.h.b16 %v3149
    %v3911 = vunpack.c.l.b16 %v3150
    %v3912 = vunpack.c.h.b16 %v3150
    %v3913 = vunpack.c.l.b16 %v3151
    %v3914 = vunpack.c.h.b16 %v3151
    %v3915 = vunpack.c.l.b16 %v3152
    %v3916 = vunpack.c.h.b16 %v3152
    %v3917 = vunpack.c.l.b16 %v3153
    %v3918 = vunpack.c.h.b16 %v3153
    %v3919 = vunpack.c.l.b16 %v3154
    %v3920 = vunpack.c.h.b16 %v3154
    %v3921 = vunpack.c.l.b16 %v3155
    %v3922 = vunpack.c.h.b16 %v3155
    %v3923 = vunpack.c.l.b16 %v3156
    %v3924 = vunpack.c.h.b16 %v3156
    %v3925 = vunpack.c.l.b16 %v3157
    %v3926 = vunpack.c.h.b16 %v3157
    %v3927 = vunpack.c.l.b16 %v3158
    %v3928 = vunpack.c.h.b16 %v3158
    %v3929 = vunpack.c.l.b16 %v3159
    %v3930 = vunpack.c.h.b16 %v3159
    %v3931 = vunpack.c.l.b16 %v3160
    %v3932 = vunpack.c.h.b16 %v3160
    %v3933 = vunpack.c.l.b16 %v3161
    %v3934 = vunpack.c.h.b16 %v3161
    %v3935 = vunpack.c.l.b16 %v3162
    %v3936 = vunpack.c.h.b16 %v3162
    %v3937 = vunpack.c.l.b16 %v3163
    %v3938 = vunpack.c.h.b16 %v3163
    %v3939 = vunpack.c.l.b16 %v3164
    %v3940 = vunpack.c.h.b16 %v3164
    %v3941 = vunpack.c.l.b16 %v3165
    %v3942 = vunpack.c.h.b16 %v3165
    %v3943 = vunpack.c.l.b16 %v3166
    %v3944 = vunpack.c.h.b16 %v3166
    %v3945 = vunpack.c.l.b16 %v3167
    %v3946 = vunpack.c.h.b16 %v3167
    %v3947 = vunpack.c.l.b16 %v3168
    %v3948 = vunpack.c.h.b16 %v3168
    %v3949 = vunpack.c.l.b16 %v3169
    %v3950 = vunpack.c.h.b16 %v3169
    %v3951 = vunpack.c.l.b16 %v3170
    %v3952 = vunpack.c.h.b16 %v3170
    %v3953 = vunpack.c.l.b16 %v3171
    %v3954 = vunpack.c.h.b16 %v3171
    %v3955 = vunpack.c.l.b16 %v3172
    %v3956 = vunpack.c.h.b16 %v3172
    %v3957 = vunpack.c.l.b16 %v3173
    %v3958 = vunpack.c.h.b16 %v3173
    %v3959 = vunpack.c.l.b16 %v3174
    %v3960 = vunpack.c.h.b16 %v3174
    %v3961 = vunpack.c.l.b16 %v3175
    %v3962 = vunpack.c.h.b16 %v3175
    %v3963 = vunpack.c.l.b16 %v3176
    %v3964 = vunpack.c.h.b16 %v3176
    %v3965 = vunpack.c.l.b16 %v3177
    %v3966 = vunpack.c.h.b16 %v3177
    %v3967 = vunpack.c.l.b16 %v3178
    %v3968 = vunpack.c.h.b16 %v3178
    %v3969 = vpack.c.b16 %v3461, %v3457
    %v3970 = vpack.c.b16 %v3462, %v3458
    %v3971 = vpack.c.b16 %v3463, %v3459
    %v3972 = vpack.c.b16 %v3464, %v3460
    %v3973 = vpack.c.b16 %v3469, %v3465
    %v3974 = vpack.c.b16 %v3470, %v3466
    %v3975 = vpack.c.b16 %v3471, %v3467
    %v3976 = vpack.c.b16 %v3472, %v3468
    %v3977 = vpack.c.b16 %v3477, %v3473
    %v3978 = vpack.c.b16 %v3478, %v3474
    %v3979 = vpack.c.b16 %v3479, %v3475
    %v3980 = vpack.c.b16 %v3480, %v3476
    %v3981 = vpack.c.b16 %v3485, %v3481
    %v3982 = vpack.c.b16 %v3486, %v3482
    %v3983 = vpack.c.b16 %v3487, %v3483
    %v3984 = vpack.c.b16 %v3488, %v3484
    %v3985 = vpack.c.b16 %v3493, %v3489
    %v3986 = vpack.c.b16 %v3494, %v3490
    %v3987 = vpack.c.b16 %v3495, %v3491
    %v3988 = vpack.c.b16 %v3496, %v3492
    %v3989 = vpack.c.b16 %v3501, %v3497
    %v3990 = vpack.c.b16 %v3502, %v3498
    %v3991 = vpack.c.b16 %v3503, %v3499
    %v3992 = vpack.c.b16 %v3504, %v3500
    %v3993 = vpack.c.b16 %v3509, %v3505
    %v3994 = vpack.c.b16 %v3510, %v3506
    %v3995 = vpack.c.b16 %v3511, %v3507
    %v3996 = vpack.c.b16 %v3512, %v3508
    %v3997 = vpack.c.b16 %v3517, %v3513
    %v3998 = vpack.c.b16 %v3518, %v3514
    %v3999 = vpack.c.b16 %v3519, %v3515
    %v4000 = vpack.c.b16 %v3520, %v3516
    %v4001 = vpack.c.b16 %v3525, %v3521
    %v4002 = vpack.c.b16 %v3526, %v3522
    %v4003 = vpack.c.b16 %v3527, %v3523
    %v4004 = vpack.c.b16 %v3528, %v3524
    %v4005 = vpack.c.b16 %v3533, %v3529
    %v4006 = vpack.c.b16 %v3534, %v3530
    %v4007 = vpack.c.b16 %v3535, %v3531
    %v4008 = vpack.c.b16 %v3536, %v3532
    %v4009 = vpack.c.b16 %v3541, %v3537
    %v4010 = vpack.c.b16 %v3542, %v3538
    %v4011 = vpack.c.b16 %v3543, %v3539
    %v4012 = vpack.c.b16 %v3544, %v3540
    %v4013 = vpack.c.b16 %v3549, %v3545
    %v4014 = vpack.c.b16 %v3550, %v3546
    %v4015 = vpack.c.b16 %v3551, %v3547
    %v4016 = vpack.c.b16 %v3552, %v3548
    %v4017 = vpack.c.b16 %v3557, %v3553
    %v4018 = vpack.c.b16 %v3558, %v3554
    %v4019 = vpack.c.b16 %v3559, %v3555
    %v4020 = vpack.c.b16 %v3560, %v3556
    %v4021 = vpack.c.b16 %v3565, %v3561
    %v4022 = vpack.c.b16 %v3566, %v3562
    %v4023 = vpack.c.b16 %v3567, %v3563
    %v4024 = vpack.c.b16 %v3568, %v3564
    %v4025 = vpack.c.b16 %v3573, %v3569
    %v4026 = vpack.c.b16 %v3574, %v3570
    %v4027 = vpack.c.b16 %v3575, %v3571
    %v4028 = vpack.c.b16 %v3576, %v3572
    %v4029 = vpack.c.b16 %v3581, %v3577
    %v4030 = vpack.c.b16 %v3582, %v3578
    %v4031 = vpack.c.b16 %v3583, %v3579
    %v4032 = vpack.c.b16 %v3584, %v3580
    %v4033 = vpack.c.b16 %v3589, %v3585
    %v4034 = vpack.c.b16 %v3590, %v3586
    %v4035 = vpack.c.b16 %v3591, %v3587
    %v4036 = vpack.c.b16 %v3592, %v3588
    %v4037 = vpack.c.b16 %v3597, %v3593
    %v4038 = vpack.c.b16 %v3598, %v3594
    %v4039 = vpack.c.b16 %v3599, %v3595
    %v4040 = vpack.c.b16 %v3600, %v3596
    %v4041 = vpack.c.b16 %v3605, %v3601
    %v4042 = vpack.c.b16 %v3606, %v3602
    %v4043 = vpack.c.b16 %v3607, %v3603
    %v4044 = vpack.c.b16 %v3608, %v3604
    %v4045 = vpack.c.b16 %v3613, %v3609
    %v4046 = vpack.c.b16 %v3614, %v3610
    %v4047 = vpack.c.b16 %v3615, %v3611
    %v4048 = vpack.c.b16 %v3616, %v3612
    %v4049 = vpack.c.b16 %v3621, %v3617
    %v4050 = vpack.c.b16 %v3622, %v3618
    %v4051 = vpack.c.b16 %v3623, %v3619
    %v4052 = vpack.c.b16 %v3624, %v3620
    %v4053 = vpack.c.b16 %v3629, %v3625
    %v4054 = vpack.c.b16 %v3630, %v3626
    %v4055 = vpack.c.b16 %v3631, %v3627
    %v4056 = vpack.c.b16 %v3632, %v3628
    %v4057 = vpack.c.b16 %v3637, %v3633
    %v4058 = vpack.c.b16 %v3638, %v3634
    %v4059 = vpack.c.b16 %v3639, %v3635
    %v4060 = vpack.c.b16 %v3640, %v3636
    %v4061 = vpack.c.b16 %v3645, %v3641
    %v4062 = vpack.c.b16 %v3646, %v3642
    %v4063 = vpack.c.b16 %v3647, %v3643
    %v4064 = vpack.c.b16 %v3648, %v3644
    %v4065 = vpack.c.b16 %v3653, %v3649
    %v4066 = vpack.c.b16 %v3654, %v3650
    %v4067 = vpack.c.b16 %v3655, %v3651
    %v4068 = vpack.c.b16 %v3656, %v3652
    %v4069 = vpack.c.b16 %v3661, %v3657
    %v4070 = vpack.c.b16 %v3662, %v3658
    %v4071 = vpack.c.b16 %v3663, %v3659
    %v4072 = vpack.c.b16 %v3664, %v3660
    %v4073 = vpack.c.b16 %v3669, %v3665
    %v4074 = vpack.c.b16 %v3670, %v3666
    %v4075 = vpack.c.b16 %v3671, %v3667
    %v4076 = vpack.c.b16 %v3672, %v3668
    %v4077 = vpack.c.b16 %v3677, %v3673
    %v4078 = vpack.c.b16 %v3678, %v3674
    %v4079 = vpack.c.b16 %v3679, %v3675
    %v4080 = vpack.c.b16 %v3680, %v3676
    %v4081 = vpack.c.b16 %v3685, %v3681
    %v4082 = vpack.c.b16 %v3686, %v3682
    %v4083 = vpack.c.b16 %v3687, %v3683
    %v4084 = vpack.c.b16 %v3688, %v3684
    %v4085 = vpack.c.b16 %v3693, %v3689
    %v4086 = vpack.c.b16 %v3694, %v3690
    %v4087 = vpack.c.b16 %v3695, %v3691
    %v4088 = vpack.c.b16 %v3696, %v3692
    %v4089 = vpack.c.b16 %v3701, %v3697
    %v4090 = vpack.c.b16 %v3702, %v3698
    %v4091 = vpack.c.b16 %v3703, %v3699
    %v4092 = vpack.c.b16 %v3704, %v3700
    %v4093 = vpack.c.b16 %v3709, %v3705
    %v4094 = vpack.c.b16 %v3710, %v3706
    %v4095 = vpack.c.b16 %v3711, %v3707
    %v4096 = vpack.c.b16 %v3712, %v3708
    %v4097 = vpack.c.b16 %v3717, %v3713
    %v4098 = vpack.c.b16 %v3718, %v3714
    %v4099 = vpack.c.b16 %v3719, %v3715
    %v4100 = vpack.c.b16 %v3720, %v3716
    %v4101 = vpack.c.b16 %v3725, %v3721
    %v4102 = vpack.c.b16 %v3726, %v3722
    %v4103 = vpack.c.b16 %v3727, %v3723
    %v4104 = vpack.c.b16 %v3728, %v3724
    %v4105 = vpack.c.b16 %v3733, %v3729
    %v4106 = vpack.c.b16 %v3734, %v3730
    %v4107 = vpack.c.b16 %v3735, %v3731
    %v4108 = vpack.c.b16 %v3736, %v3732
    %v4109 = vpack.c.b16 %v3741, %v3737
    %v4110 = vpack.c.b16 %v3742, %v3738
    %v4111 = vpack.c.b16 %v3743, %v3739
    %v4112 = vpack.c.b16 %v3744, %v3740
    %v4113 = vpack.c.b16 %v3749, %v3745
    %v4114 = vpack.c.b16 %v3750, %v3746
    %v4115 = vpack.c.b16 %v3751, %v3747
    %v4116 = vpack.c.b16 %v3752, %v3748
    %v4117 = vpack.c.b16 %v3757, %v3753
    %v4118 = vpack.c.b16 %v3758, %v3754
    %v4119 = vpack.c.b16 %v3759, %v3755
    %v4120 = vpack.c.b16 %v3760, %v3756
    %v4121 = vpack.c.b16 %v3765, %v3761
    %v4122 = vpack.c.b16 %v3766, %v3762
    %v4123 = vpack.c.b16 %v3767, %v3763
    %v4124 = vpack.c.b16 %v3768, %v3764
    %v4125 = vpack.c.b16 %v3773, %v3769
    %v4126 = vpack.c.b16 %v3774, %v3770
    %v4127 = vpack.c.b16 %v3775, %v3771
    %v4128 = vpack.c.b16 %v3776, %v3772
    %v4129 = vpack.c.b16 %v3781, %v3777
    %v4130 = vpack.c.b16 %v3782, %v3778
    %v4131 = vpack.c.b16 %v3783, %v3779
    %v4132 = vpack.c.b16 %v3784, %v3780
    %v4133 = vpack.c.b16 %v3789, %v3785
    %v4134 = vpack.c.b16 %v3790, %v3786
    %v4135 = vpack.c.b16 %v3791, %v3787
    %v4136 = vpack.c.b16 %v3792, %v3788
    %v4137 = vpack.c.b16 %v3797, %v3793
    %v4138 = vpack.c.b16 %v3798, %v3794
    %v4139 = vpack.c.b16 %v3799, %v3795
    %v4140 = vpack.c.b16 %v3800, %v3796
    %v4141 = vpack.c.b16 %v3805, %v3801
    %v4142 = vpack.c.b16 %v3806, %v3802
    %v4143 = vpack.c.b16 %v3807, %v3803
    %v4144 = vpack.c.b16 %v3808, %v3804
    %v4145 = vpack.c.b16 %v3813, %v3809
    %v4146 = vpack.c.b16 %v3814, %v3810
    %v4147 = vpack.c.b16 %v3815, %v3811
    %v4148 = vpack.c.b16 %v3816, %v3812
    %v4149 = vpack.c.b16 %v3821, %v3817
    %v4150 = vpack.c.b16 %v3822, %v3818
    %v4151 = vpack.c.b16 %v3823, %v3819
    %v4152 = vpack.c.b16 %v3824, %v3820
    %v4153 = vpack.c.b16 %v3829, %v3825
    %v4154 = vpack.c.b16 %v3830, %v3826
    %v4155 = vpack.c.b16 %v3831, %v3827
    %v4156 = vpack.c.b16 %v3832, %v3828
    %v4157 = vpack.c.b16 %v3837, %v3833
    %v4158 = vpack.c.b16 %v3838, %v3834
    %v4159 = vpack.c.b16 %v3839, %v3835
    %v4160 = vpack.c.b16 %v3840, %v3836
    %v4161 = vpack.c.b16 %v3845, %v3841
    %v4162 = vpack.c.b16 %v3846, %v3842
    %v4163 = vpack.c.b16 %v3847, %v3843
    %v4164 = vpack.c.b16 %v3848, %v3844
    %v4165 = vpack.c.b16 %v3853, %v3849
    %v4166 = vpack.c.b16 %v3854, %v3850
    %v4167 = vpack.c.b16 %v3855, %v3851
    %v4168 = vpack.c.b16 %v3856, %v3852
    %v4169 = vpack.c.b16 %v3861, %v3857
    %v4170 = vpack.c.b16 %v3862, %v3858
    %v4171 = vpack.c.b16 %v3863, %v3859
    %v4172 = vpack.c.b16 %v3864, %v3860
    %v4173 = vpack.c.b16 %v3869, %v3865
    %v4174 = vpack.c.b16 %v3870, %v3866
    %v4175 = vpack.c.b16 %v3871, %v3867
    %v4176 = vpack.c.b16 %v3872, %v3868
    %v4177 = vpack.c.b16 %v3877, %v3873
    %v4178 = vpack.c.b16 %v3878, %v3874
    %v4179 = vpack.c.b16 %v3879, %v3875
    %v4180 = vpack.c.b16 %v3880, %v3876
    %v4181 = vpack.c.b16 %v3885, %v3881
    %v4182 = vpack.c.b16 %v3886, %v3882
    %v4183 = vpack.c.b16 %v3887, %v3883
    %v4184 = vpack.c.b16 %v3888, %v3884
    %v4185 = vpack.c.b16 %v3893, %v3889
    %v4186 = vpack.c.b16 %v3894, %v3890
    %v4187 = vpack.c.b16 %v3895, %v3891
    %v4188 = vpack.c.b16 %v3896, %v3892
    %v4189 = vpack.c.b16 %v3901, %v3897
    %v4190 = vpack.c.b16 %v3902, %v3898
    %v4191 = vpack.c.b16 %v3903, %v3899
    %v4192 = vpack.c.b16 %v3904, %v3900
    %v4193 = vpack.c.b16 %v3909, %v3905
    %v4194 = vpack.c.b16 %v3910, %v3906
    %v4195 = vpack.c.b16 %v3911, %v3907
    %v4196 = vpack.c.b16 %v3912, %v3908
    %v4197 = vpack.c.b16 %v3917, %v3913
    %v4198 = vpack.c.b16 %v3918, %v3914
    %v4199 = vpack.c.b16 %v3919, %v3915
    %v4200 = vpack.c.b16 %v3920, %v3916
    %v4201 = vpack.c.b16 %v3925, %v3921
    %v4202 = vpack.c.b16 %v3926, %v3922
    %v4203 = vpack.c.b16 %v3927, %v3923
    %v4204 = vpack.c.b16 %v3928, %v3924
    %v4205 = vpack.c.b16 %v3933, %v3929
    %v4206 = vpack.c.b16 %v3934, %v3930
    %v4207 = vpack.c.b16 %v3935, %v3931
    %v4208 = vpack.c.b16 %v3936, %v3932
    %v4209 = vpack.c.b16 %v3941, %v3937
    %v4210 = vpack.c.b16 %v3942, %v3938
    %v4211 = vpack.c.b16 %v3943, %v3939
    %v4212 = vpack.c.b16 %v3944, %v3940
    %v4213 = vpack.c.b16 %v3949, %v3945
    %v4214 = vpack.c.b16 %v3950, %v3946
    %v4215 = vpack.c.b16 %v3951, %v3947
    %v4216 = vpack.c.b16 %v3952, %v3948
    %v4217 = vpack.c.b16 %v3957, %v3953
    %v4218 = vpack.c.b16 %v3958, %v3954
    %v4219 = vpack.c.b16 %v3959, %v3955
    %v4220 = vpack.c.b16 %v3960, %v3956
    %v4221 = vpack.c.b16 %v3965, %v3961
    %v4222 = vpack.c.b16 %v3966, %v3962
    %v4223 = vpack.c.b16 %v3967, %v3963
    %v4224 = vpack.c.b16 %v3968, %v3964
    %4481 = vmatprep.subr.bf16.mxu0 %v3970
    %4482 = vmatpush1.bf16.msra.mxu0 %v3969
    %4483 = vmatprep.subr.bf16.mxu0 %v3974
    %4484 = vmatpush1.bf16.msra.mxu0 %v3973
    %4485 = vmatprep.subr.bf16.mxu0 %v3978
    %4486 = vmatpush1.bf16.msra.mxu0 %v3977
    %4487 = vmatprep.subr.bf16.mxu0 %v3982
    %4488 = vmatpush1.bf16.msra.mxu0 %v3981
    %4489 = vmatprep.subr.bf16.mxu0 %v3986
    %4490 = vmatpush1.bf16.msra.mxu0 %v3985
    %4491 = vmatprep.subr.bf16.mxu0 %v3990
    %4492 = vmatpush1.bf16.msra.mxu0 %v3989
    %4493 = vmatprep.subr.bf16.mxu0 %v3994
    %4494 = vmatpush1.bf16.msra.mxu0 %v3993
    %4495 = vmatprep.subr.bf16.mxu0 %v3998
    %4496 = vmatpush1.bf16.msra.mxu0 %v3997
    %4497 = vmatprep.subr.bf16.mxu0 %v4002
    %4498 = vmatpush1.bf16.msra.mxu0 %v4001
    %4499 = vmatprep.subr.bf16.mxu0 %v4006
    %4500 = vmatpush1.bf16.msra.mxu0 %v4005
    %4501 = vmatprep.subr.bf16.mxu0 %v4010
    %4502 = vmatpush1.bf16.msra.mxu0 %v4009
    %4503 = vmatprep.subr.bf16.mxu0 %v4014
    %4504 = vmatpush1.bf16.msra.mxu0 %v4013
    %4505 = vmatprep.subr.bf16.mxu0 %v4018
    %4506 = vmatpush1.bf16.msra.mxu0 %v4017
    %4507 = vmatprep.subr.bf16.mxu0 %v4022
    %4508 = vmatpush1.bf16.msra.mxu0 %v4021
    %4509 = vmatprep.subr.bf16.mxu0 %v4026
    %4510 = vmatpush1.bf16.msra.mxu0 %v4025
    %4511 = vmatprep.subr.bf16.mxu0 %v4030
    %4512 = vmatpush1.bf16.msra.mxu0 %v4029
    %4513 = vmatprep.mubr.bf16.mxu0 %v2668
    %4514 = vmatmul.mubr.bf16.gmra.mrb[0].mxu0 %v2667
    %v4515 = vpop.f32.mrb[0].mxu0
    %v4516 = vadd.f32 %v3184, %v4515
    %v4517 = vpop.f32.mrb[0].mxu0
    %v4518 = vadd.f32 %v3188, %v4517
    %v4519 = vpop.f32.mrb[0].mxu0
    %v4520 = vadd.f32 %v3184, %v4519
    %v4521 = vpop.f32.mrb[0].mxu0
    %v4522 = vadd.f32 %v3188, %v4521
    %4523 = vmatprep.mubr.bf16.mxu0 %v2676
    %4524 = vmatmul.mubr.bf16.gmra.mrb[0].mxu0 %v2675
    %v4525 = vpop.f32.mrb[0].mxu0
    %v4526 = vadd.f32 %v3184, %v4525
    %v4527 = vpop.f32.mrb[0].mxu0
    %v4528 = vadd.f32 %v3188, %v4527
    %v4529 = vpop.f32.mrb[0].mxu0
    %v4530 = vadd.f32 %v3184, %v4529
    %v4531 = vpop.f32.mrb[0].mxu0
    %v4532 = vadd.f32 %v3188, %v4531
    %4533 = vmatprep.mubr.bf16.mxu0 %v2684
    %4534 = vmatmul.mubr.bf16.gmra.mrb[0].mxu0 %v2683
    %v4535 = vpop.f32.mrb[0].mxu0
    %v4536 = vadd.f32 %v3184, %v4535
    %v4537 = vpop.f32.mrb[0].mxu0
    %v4538 = vadd.f32 %v3188, %v4537
    %v4539 = vpop.f32.mrb[0].mxu0
    %v4540 = vadd.f32 %v3184, %v4539
    %v4541 = vpop.f32.mrb[0].mxu0
    %v4542 = vadd.f32 %v3188, %v4541
    %4543 = vmatprep.mubr.bf16.mxu0 %v2692
    %4544 = vmatmul.mubr.bf16.gmra.mrb[0].mxu0 %v2691
    %v4545 = vpop.f32.mrb[0].mxu0
    %v4546 = vadd.f32 %v3184, %v4545
    %v4547 = vpop.f32.mrb[0].mxu0
    %v4548 = vadd.f32 %v3188, %v4547
    %v4549 = vpop.f32.mrb[0].mxu0
    %v4550 = vadd.f32 %v3184, %v4549
    %v4551 = vpop.f32.mrb[0].mxu0
    %v4552 = vadd.f32 %v3188, %v4551
    %4553 = vmatprep.mubr.bf16.mxu0 %v2700
    %4554 = vmatmul.mubr.bf16.gmra.mrb[0].mxu0 %v2699
    %v4555 = vpop.f32.mrb[0].mxu0
    %v4556 = vadd.f32 %v3184, %v4555
    %v4557 = vpop.f32.mrb[0].mxu0
    %v4558 = vadd.f32 %v3188, %v4557
    %v4559 = vpop.f32.mrb[0].mxu0
    %v4560 = vadd.f32 %v3184, %v4559
    %v4561 = vpop.f32.mrb[0].mxu0
    %v4562 = vadd.f32 %v3188, %v4561
    %4563 = vmatprep.mubr.bf16.mxu0 %v2708
    %4564 = vmatmul.mubr.bf16.gmra.mrb[0].mxu0 %v2707
    %v4565 = vpop.f32.mrb[0].mxu0
    %v4566 = vadd.f32 %v3184, %v4565
    %v4567 = vpop.f32.mrb[0].mxu0
    %v4568 = vadd.f32 %v3188, %v4567
    %v4569 = vpop.f32.mrb[0].mxu0
    %v4570 = vadd.f32 %v3184, %v4569
    %v4571 = vpop.f32.mrb[0].mxu0
    %v4572 = vadd.f32 %v3188, %v4571
    %4573 = vmatprep.mubr.bf16.mxu0 %v2716
    %4574 = vmatmul.mubr.bf16.gmra.mrb[0].mxu0 %v2715
    %v4575 = vpop.f32.mrb[0].mxu0
    %v4576 = vadd.f32 %v3184, %v4575
    %v4577 = vpop.f32.mrb[0].mxu0
    %v4578 = vadd.f32 %v3188, %v4577
    %v4579 = vpop.f32.mrb[0].mxu0
    %v4580 = vadd.f32 %v3184, %v4579
    %v4581 = vpop.f32.mrb[0].mxu0
    %v4582 = vadd.f32 %v3188, %v4581
    %4583 = vmatprep.mubr.bf16.mxu0 %v2724
    %4584 = vmatmul.mubr.bf16.gmra.mrb[0].mxu0 %v2723
    %v4585 = vpop.f32.mrb[0].mxu0
    %v4586 = vadd.f32 %v3184, %v4585
    %v4587 = vpop.f32.mrb[0].mxu0
    %v4588 = vadd.f32 %v3188, %v4587
    %v4589 = vpop.f32.mrb[0].mxu0
    %v4590 = vadd.f32 %v3184, %v4589
    %v4591 = vpop.f32.mrb[0].mxu0
    %v4592 = vadd.f32 %v3188, %v4591
    %4593 = vmatprep.mubr.bf16.mxu0 %v2732
    %4594 = vmatmul.mubr.bf16.gmra.mrb[0].mxu0 %v2731
    %v4595 = vpop.f32.mrb[0].mxu0
    %v4596 = vadd.f32 %v3184, %v4595
    %v4597 = vpop.f32.mrb[0].mxu0
    %v4598 = vadd.f32 %v3188, %v4597
    %v4599 = vpop.f32.mrb[0].mxu0
    %v4600 = vadd.f32 %v3184, %v4599
    %v4601 = vpop.f32.mrb[0].mxu0
    %v4602 = vadd.f32 %v3188, %v4601
    %4603 = vmatprep.mubr.bf16.mxu0 %v2740
    %4604 = vmatmul.mubr.bf16.gmra.mrb[0].mxu0 %v2739
    %v4605 = vpop.f32.mrb[0].mxu0
    %v4606 = vadd.f32 %v3184, %v4605
    %v4607 = vpop.f32.mrb[0].mxu0
    %v4608 = vadd.f32 %v3188, %v4607
    %v4609 = vpop.f32.mrb[0].mxu0
    %v4610 = vadd.f32 %v3184, %v4609
    %v4611 = vpop.f32.mrb[0].mxu0
    %v4612 = vadd.f32 %v3188, %v4611
    %4613 = vmatprep.mubr.bf16.mxu0 %v2748
    %4614 = vmatmul.mubr.bf16.gmra.mrb[0].mxu0 %v2747
    %v4615 = vpop.f32.mrb[0].mxu0
    %v4616 = vadd.f32 %v3184, %v4615
    %v4617 = vpop.f32.mrb[0].mxu0
    %v4618 = vadd.f32 %v3188, %v4617
    %v4619 = vpop.f32.mrb[0].mxu0
    %v4620 = vadd.f32 %v3184, %v4619
    %v4621 = vpop.f32.mrb[0].mxu0
    %v4622 = vadd.f32 %v3188, %v4621
    %4623 = vmatprep.mubr.bf16.mxu0 %v2756
    %4624 = vmatmul.mubr.bf16.gmra.mrb[0].mxu0 %v2755
    %v4625 = vpop.f32.mrb[0].mxu0
    %v4626 = vadd.f32 %v3184, %v4625
    %v4627 = vpop.f32.mrb[0].mxu0
    %v4628 = vadd.f32 %v3188, %v4627
    %v4629 = vpop.f32.mrb[0].mxu0
    %v4630 = vadd.f32 %v3184, %v4629
    %v4631 = vpop.f32.mrb[0].mxu0
    %v4632 = vadd.f32 %v3188, %v4631
    %4633 = vmatprep.mubr.bf16.mxu0 %v2764
    %4634 = vmatmul.mubr.bf16.gmra.mrb[0].mxu0 %v2763
    %v4635 = vpop.f32.mrb[0].mxu0
    %v4636 = vadd.f32 %v3184, %v4635
    %v4637 = vpop.f32.mrb[0].mxu0
    %v4638 = vadd.f32 %v3188, %v4637
    %v4639 = vpop.f32.mrb[0].mxu0
    %v4640 = vadd.f32 %v3184, %v4639
    %v4641 = vpop.f32.mrb[0].mxu0
    %v4642 = vadd.f32 %v3188, %v4641
    %4643 = vmatprep.mubr.bf16.mxu0 %v2772
    %4644 = vmatmul.mubr.bf16.gmra.mrb[0].mxu0 %v2771
    %v4645 = vpop.f32.mrb[0].mxu0
    %v4646 = vadd.f32 %v3184, %v4645
    %v4647 = vpop.f32.mrb[0].mxu0
    %v4648 = vadd.f32 %v3188, %v4647
    %v4649 = vpop.f32.mrb[0].mxu0
    %v4650 = vadd.f32 %v3184, %v4649
    %v4651 = vpop.f32.mrb[0].mxu0
    %v4652 = vadd.f32 %v3188, %v4651
    %4653 = vmatprep.mubr.bf16.mxu0 %v2780
    %4654 = vmatmul.mubr.bf16.gmra.mrb[0].mxu0 %v2779
    %v4655 = vpop.f32.mrb[0].mxu0
    %v4656 = vadd.f32 %v3184, %v4655
    %v4657 = vpop.f32.mrb[0].mxu0
    %v4658 = vadd.f32 %v3188, %v4657
    %v4659 = vpop.f32.mrb[0].mxu0
    %v4660 = vadd.f32 %v3184, %v4659
    %v4661 = vpop.f32.mrb[0].mxu0
    %v4662 = vadd.f32 %v3188, %v4661
    %4663 = vmatprep.mubr.bf16.mxu0 %v2788
    %4664 = vmatmul.mubr.bf16.gmra.mrb[0].mxu0 %v2787
    %v4665 = vpop.f32.mrb[0].mxu0
    %v4666 = vadd.f32 %v3184, %v4665
    %v4667 = vpop.f32.mrb[0].mxu0
    %v4668 = vadd.f32 %v3188, %v4667
    %v4669 = vpop.f32.mrb[0].mxu0
    %v4670 = vadd.f32 %v3184, %v4669
    %v4671 = vpop.f32.mrb[0].mxu0
    %v4672 = vadd.f32 %v3188, %v4671
    %4673 = vmatprep.mubr.bf16.mxu0 %v2796
    %4674 = vmatmul.mubr.bf16.gmra.mrb[0].mxu0 %v2795
    %v4675 = vpop.f32.mrb[0].mxu0
    %v4676 = vadd.f32 %v3184, %v4675
    %v4677 = vpop.f32.mrb[0].mxu0
    %v4678 = vadd.f32 %v3188, %v4677
    %v4679 = vpop.f32.mrb[0].mxu0
    %v4680 = vadd.f32 %v3184, %v4679
    %v4681 = vpop.f32.mrb[0].mxu0
    %v4682 = vadd.f32 %v3188, %v4681
    %4683 = vmatprep.mubr.bf16.mxu0 %v2804
    %4684 = vmatmul.mubr.bf16.gmra.mrb[0].mxu0 %v2803
    %v4685 = vpop.f32.mrb[0].mxu0
    %v4686 = vadd.f32 %v3184, %v4685
    %v4687 = vpop.f32.mrb[0].mxu0
    %v4688 = vadd.f32 %v3188, %v4687
    %v4689 = vpop.f32.mrb[0].mxu0
    %v4690 = vadd.f32 %v3184, %v4689
    %v4691 = vpop.f32.mrb[0].mxu0
    %v4692 = vadd.f32 %v3188, %v4691
    %4693 = vmatprep.mubr.bf16.mxu0 %v2812
    %4694 = vmatmul.mubr.bf16.gmra.mrb[0].mxu0 %v2811
    %v4695 = vpop.f32.mrb[0].mxu0
    %v4696 = vadd.f32 %v3184, %v4695
    %v4697 = vpop.f32.mrb[0].mxu0
    %v4698 = vadd.f32 %v3188, %v4697
    %v4699 = vpop.f32.mrb[0].mxu0
    %v4700 = vadd.f32 %v3184, %v4699
    %v4701 = vpop.f32.mrb[0].mxu0
    %v4702 = vadd.f32 %v3188, %v4701
    %4703 = vmatprep.mubr.bf16.mxu0 %v2820
    %4704 = vmatmul.mubr.bf16.gmra.mrb[0].mxu0 %v2819
    %v4705 = vpop.f32.mrb[0].mxu0
    %v4706 = vadd.f32 %v3184, %v4705
    %v4707 = vpop.f32.mrb[0].mxu0
    %v4708 = vadd.f32 %v3188, %v4707
    %v4709 = vpop.f32.mrb[0].mxu0
    %v4710 = vadd.f32 %v3184, %v4709
    %v4711 = vpop.f32.mrb[0].mxu0
    %v4712 = vadd.f32 %v3188, %v4711
    %4713 = vmatprep.mubr.bf16.mxu0 %v2828
    %4714 = vmatmul.mubr.bf16.gmra.mrb[0].mxu0 %v2827
    %v4715 = vpop.f32.mrb[0].mxu0
    %v4716 = vadd.f32 %v3184, %v4715
    %v4717 = vpop.f32.mrb[0].mxu0
    %v4718 = vadd.f32 %v3188, %v4717
    %v4719 = vpop.f32.mrb[0].mxu0
    %v4720 = vadd.f32 %v3184, %v4719
    %v4721 = vpop.f32.mrb[0].mxu0
    %v4722 = vadd.f32 %v3188, %v4721
    %4723 = vmatprep.mubr.bf16.mxu0 %v2836
    %4724 = vmatmul.mubr.bf16.gmra.mrb[0].mxu0 %v2835
    %v4725 = vpop.f32.mrb[0].mxu0
    %v4726 = vadd.f32 %v3184, %v4725
    %v4727 = vpop.f32.mrb[0].mxu0
    %v4728 = vadd.f32 %v3188, %v4727
    %v4729 = vpop.f32.mrb[0].mxu0
    %v4730 = vadd.f32 %v3184, %v4729
    %v4731 = vpop.f32.mrb[0].mxu0
    %v4732 = vadd.f32 %v3188, %v4731
    %4733 = vmatprep.mubr.bf16.mxu0 %v2844
    %4734 = vmatmul.mubr.bf16.gmra.mrb[0].mxu0 %v2843
    %v4735 = vpop.f32.mrb[0].mxu0
    %v4736 = vadd.f32 %v3184, %v4735
    %v4737 = vpop.f32.mrb[0].mxu0
    %v4738 = vadd.f32 %v3188, %v4737
    %v4739 = vpop.f32.mrb[0].mxu0
    %v4740 = vadd.f32 %v3184, %v4739
    %v4741 = vpop.f32.mrb[0].mxu0
    %v4742 = vadd.f32 %v3188, %v4741
    %4743 = vmatprep.mubr.bf16.mxu0 %v2852
    %4744 = vmatmul.mubr.bf16.gmra.mrb[0].mxu0 %v2851
    %v4745 = vpop.f32.mrb[0].mxu0
    %v4746 = vadd.f32 %v3184, %v4745
    %v4747 = vpop.f32.mrb[0].mxu0
    %v4748 = vadd.f32 %v3188, %v4747
    %v4749 = vpop.f32.mrb[0].mxu0
    %v4750 = vadd.f32 %v3184, %v4749
    %v4751 = vpop.f32.mrb[0].mxu0
    %v4752 = vadd.f32 %v3188, %v4751
    %4753 = vmatprep.mubr.bf16.mxu0 %v2860
    %4754 = vmatmul.mubr.bf16.gmra.mrb[0].mxu0 %v2859
    %v4755 = vpop.f32.mrb[0].mxu0
    %v4756 = vadd.f32 %v3184, %v4755
    %v4757 = vpop.f32.mrb[0].mxu0
    %v4758 = vadd.f32 %v3188, %v4757
    %v4759 = vpop.f32.mrb[0].mxu0
    %v4760 = vadd.f32 %v3184, %v4759
    %v4761 = vpop.f32.mrb[0].mxu0
    %v4762 = vadd.f32 %v3188, %v4761
    %4763 = vmatprep.mubr.bf16.mxu0 %v2868
    %4764 = vmatmul.mubr.bf16.gmra.mrb[0].mxu0 %v2867
    %v4765 = vpop.f32.mrb[0].mxu0
    %v4766 = vadd.f32 %v3184, %v4765
    %v4767 = vpop.f32.mrb[0].mxu0
    %v4768 = vadd.f32 %v3188, %v4767
    %v4769 = vpop.f32.mrb[0].mxu0
    %v4770 = vadd.f32 %v3184, %v4769
    %v4771 = vpop.f32.mrb[0].mxu0
    %v4772 = vadd.f32 %v3188, %v4771
    %4773 = vmatprep.mubr.bf16.mxu0 %v2876
    %4774 = vmatmul.mubr.bf16.gmra.mrb[0].mxu0 %v2875
    %v4775 = vpop.f32.mrb[0].mxu0
    %v4776 = vadd.f32 %v3184, %v4775
    %v4777 = vpop.f32.mrb[0].mxu0
    %v4778 = vadd.f32 %v3188, %v4777
    %v4779 = vpop.f32.mrb[0].mxu0
    %v4780 = vadd.f32 %v3184, %v4779
    %v4781 = vpop.f32.mrb[0].mxu0
    %v4782 = vadd.f32 %v3188, %v4781
    %4783 = vmatprep.mubr.bf16.mxu0 %v2884
    %4784 = vmatmul.mubr.bf16.gmra.mrb[0].mxu0 %v2883
    %v4785 = vpop.f32.mrb[0].mxu0
    %v4786 = vadd.f32 %v3184, %v4785
    %v4787 = vpop.f32.mrb[0].mxu0
    %v4788 = vadd.f32 %v3188, %v4787
    %v4789 = vpop.f32.mrb[0].mxu0
    %v4790 = vadd.f32 %v3184, %v4789
    %v4791 = vpop.f32.mrb[0].mxu0
    %v4792 = vadd.f32 %v3188, %v4791
    %4793 = vmatprep.mubr.bf16.mxu0 %v2892
    %4794 = vmatmul.mubr.bf16.gmra.mrb[0].mxu0 %v2891
    %v4795 = vpop.f32.mrb[0].mxu0
    %v4796 = vadd.f32 %v3184, %v4795
    %v4797 = vpop.f32.mrb[0].mxu0
    %v4798 = vadd.f32 %v3188, %v4797
    %v4799 = vpop.f32.mrb[0].mxu0
    %v4800 = vadd.f32 %v3184, %v4799
    %v4801 = vpop.f32.mrb[0].mxu0
    %v4802 = vadd.f32 %v3188, %v4801
    %4803 = vmatprep.mubr.bf16.mxu0 %v2900
    %4804 = vmatmul.mubr.bf16.gmra.mrb[0].mxu0 %v2899
    %v4805 = vpop.f32.mrb[0].mxu0
    %v4806 = vadd.f32 %v3184, %v4805
    %v4807 = vpop.f32.mrb[0].mxu0
    %v4808 = vadd.f32 %v3188, %v4807
    %v4809 = vpop.f32.mrb[0].mxu0
    %v4810 = vadd.f32 %v3184, %v4809
    %v4811 = vpop.f32.mrb[0].mxu0
    %v4812 = vadd.f32 %v3188, %v4811
    %4813 = vmatprep.mubr.bf16.mxu0 %v2908
    %4814 = vmatmul.mubr.bf16.gmra.mrb[0].mxu0 %v2907
    %v4815 = vpop.f32.mrb[0].mxu0
    %v4816 = vadd.f32 %v3184, %v4815
    %v4817 = vpop.f32.mrb[0].mxu0
    %v4818 = vadd.f32 %v3188, %v4817
    %v4819 = vpop.f32.mrb[0].mxu0
    %v4820 = vadd.f32 %v3184, %v4819
    %v4821 = vpop.f32.mrb[0].mxu0
    %v4822 = vadd.f32 %v3188, %v4821
    %4823 = vmatprep.mubr.bf16.mxu0 %v2916
    %4824 = vmatmul.mubr.bf16.gmra.mrb[0].mxu0 %v2915
    %v4825 = vpop.f32.mrb[0].mxu0
    %v4826 = vadd.f32 %v3184, %v4825
    %v4827 = vpop.f32.mrb[0].mxu0
    %v4828 = vadd.f32 %v3188, %v4827
    %v4829 = vpop.f32.mrb[0].mxu0
    %v4830 = vadd.f32 %v3184, %v4829
    %v4831 = vpop.f32.mrb[0].mxu0
    %v4832 = vadd.f32 %v3188, %v4831
    %4833 = vdwg.mxu0
    %4834 = vmatprep.subr.bf16.mxu0 %v4034
    %4835 = vmatpush1.bf16.msra.mxu0 %v4033
    %4836 = vmatprep.subr.bf16.mxu0 %v4038
    %4837 = vmatpush1.bf16.msra.mxu0 %v4037
    %4838 = vmatprep.subr.bf16.mxu0 %v4042
    %4839 = vmatpush1.bf16.msra.mxu0 %v4041
    %4840 = vmatprep.subr.bf16.mxu0 %v4046
    %4841 = vmatpush1.bf16.msra.mxu0 %v4045
    %4842 = vmatprep.subr.bf16.mxu0 %v4050
    %4843 = vmatpush1.bf16.msra.mxu0 %v4049
    %4844 = vmatprep.subr.bf16.mxu0 %v4054
    %4845 = vmatpush1.bf16.msra.mxu0 %v4053
    %4846 = vmatprep.subr.bf16.mxu0 %v4058
    %4847 = vmatpush1.bf16.msra.mxu0 %v4057
    %4848 = vmatprep.subr.bf16.mxu0 %v4062
    %4849 = vmatpush1.bf16.msra.mxu0 %v4061
    %4850 = vmatprep.subr.bf16.mxu0 %v4066
    %4851 = vmatpush1.bf16.msra.mxu0 %v4065
    %4852 = vmatprep.subr.bf16.mxu0 %v4070
    %4853 = vmatpush1.bf16.msra.mxu0 %v4069
    %4854 = vmatprep.subr.bf16.mxu0 %v4074
    %4855 = vmatpush1.bf16.msra.mxu0 %v4073
    %4856 = vmatprep.subr.bf16.mxu0 %v4078
    %4857 = vmatpush1.bf16.msra.mxu0 %v4077
    %4858 = vmatprep.subr.bf16.mxu0 %v4082
    %4859 = vmatpush1.bf16.msra.mxu0 %v4081
    %4860 = vmatprep.subr.bf16.mxu0 %v4086
    %4861 = vmatpush1.bf16.msra.mxu0 %v4085
    %4862 = vmatprep.subr.bf16.mxu0 %v4090
    %4863 = vmatpush1.bf16.msra.mxu0 %v4089
    %4864 = vmatprep.subr.bf16.mxu0 %v4094
    %4865 = vmatpush1.bf16.msra.mxu0 %v4093
    %4866 = vmatprep.mubr.bf16.mxu0 %v2670
    %4867 = vmatmul.mubr.bf16.gmra.mrb[0].mxu0 %v2669
    %v4868 = vpop.f32.mrb[0].mxu0
    %v4869 = vadd.f32 %v4516, %v4868
    %v4870 = vpop.f32.mrb[0].mxu0
    %v4871 = vadd.f32 %v4518, %v4870
    %v4872 = vpop.f32.mrb[0].mxu0
    %v4873 = vadd.f32 %v4520, %v4872
    %v4874 = vpop.f32.mrb[0].mxu0
    %v4875 = vadd.f32 %v4522, %v4874
    %4876 = vmatprep.mubr.bf16.mxu0 %v2678
    %4877 = vmatmul.mubr.bf16.gmra.mrb[0].mxu0 %v2677
    %v4878 = vpop.f32.mrb[0].mxu0
    %v4879 = vadd.f32 %v4526, %v4878
    %v4880 = vpop.f32.mrb[0].mxu0
    %v4881 = vadd.f32 %v4528, %v4880
    %v4882 = vpop.f32.mrb[0].mxu0
    %v4883 = vadd.f32 %v4530, %v4882
    %v4884 = vpop.f32.mrb[0].mxu0
    %v4885 = vadd.f32 %v4532, %v4884
    %4886 = vmatprep.mubr.bf16.mxu0 %v2686
    %4887 = vmatmul.mubr.bf16.gmra.mrb[0].mxu0 %v2685
    %v4888 = vpop.f32.mrb[0].mxu0
    %v4889 = vadd.f32 %v4536, %v4888
    %v4890 = vpop.f32.mrb[0].mxu0
    %v4891 = vadd.f32 %v4538, %v4890
    %v4892 = vpop.f32.mrb[0].mxu0
    %v4893 = vadd.f32 %v4540, %v4892
    %v4894 = vpop.f32.mrb[0].mxu0
    %v4895 = vadd.f32 %v4542, %v4894
    %4896 = vmatprep.mubr.bf16.mxu0 %v2694
    %4897 = vmatmul.mubr.bf16.gmra.mrb[0].mxu0 %v2693
    %v4898 = vpop.f32.mrb[0].mxu0
    %v4899 = vadd.f32 %v4546, %v4898
    %v4900 = vpop.f32.mrb[0].mxu0
    %v4901 = vadd.f32 %v4548, %v4900
    %v4902 = vpop.f32.mrb[0].mxu0
    %v4903 = vadd.f32 %v4550, %v4902
    %v4904 = vpop.f32.mrb[0].mxu0
    %v4905 = vadd.f32 %v4552, %v4904
    %4906 = vmatprep.mubr.bf16.mxu0 %v2702
    %4907 = vmatmul.mubr.bf16.gmra.mrb[0].mxu0 %v2701
    %v4908 = vpop.f32.mrb[0].mxu0
    %v4909 = vadd.f32 %v4556, %v4908
    %v4910 = vpop.f32.mrb[0].mxu0
    %v4911 = vadd.f32 %v4558, %v4910
    %v4912 = vpop.f32.mrb[0].mxu0
    %v4913 = vadd.f32 %v4560, %v4912
    %v4914 = vpop.f32.mrb[0].mxu0
    %v4915 = vadd.f32 %v4562, %v4914
    %4916 = vmatprep.mubr.bf16.mxu0 %v2710
    %4917 = vmatmul.mubr.bf16.gmra.mrb[0].mxu0 %v2709
    %v4918 = vpop.f32.mrb[0].mxu0
    %v4919 = vadd.f32 %v4566, %v4918
    %v4920 = vpop.f32.mrb[0].mxu0
    %v4921 = vadd.f32 %v4568, %v4920
    %v4922 = vpop.f32.mrb[0].mxu0
    %v4923 = vadd.f32 %v4570, %v4922
    %v4924 = vpop.f32.mrb[0].mxu0
    %v4925 = vadd.f32 %v4572, %v4924
    %4926 = vmatprep.mubr.bf16.mxu0 %v2718
    %4927 = vmatmul.mubr.bf16.gmra.mrb[0].mxu0 %v2717
    %v4928 = vpop.f32.mrb[0].mxu0
    %v4929 = vadd.f32 %v4576, %v4928
    %v4930 = vpop.f32.mrb[0].mxu0
    %v4931 = vadd.f32 %v4578, %v4930
    %v4932 = vpop.f32.mrb[0].mxu0
    %v4933 = vadd.f32 %v4580, %v4932
    %v4934 = vpop.f32.mrb[0].mxu0
    %v4935 = vadd.f32 %v4582, %v4934
    %4936 = vmatprep.mubr.bf16.mxu0 %v2726
    %4937 = vmatmul.mubr.bf16.gmra.mrb[0].mxu0 %v2725
    %v4938 = vpop.f32.mrb[0].mxu0
    %v4939 = vadd.f32 %v4586, %v4938
    %v4940 = vpop.f32.mrb[0].mxu0
    %v4941 = vadd.f32 %v4588, %v4940
    %v4942 = vpop.f32.mrb[0].mxu0
    %v4943 = vadd.f32 %v4590, %v4942
    %v4944 = vpop.f32.mrb[0].mxu0
    %v4945 = vadd.f32 %v4592, %v4944
    %4946 = vmatprep.mubr.bf16.mxu0 %v2734
    %4947 = vmatmul.mubr.bf16.gmra.mrb[0].mxu0 %v2733
    %v4948 = vpop.f32.mrb[0].mxu0
    %v4949 = vadd.f32 %v4596, %v4948
    %v4950 = vpop.f32.mrb[0].mxu0
    %v4951 = vadd.f32 %v4598, %v4950
    %v4952 = vpop.f32.mrb[0].mxu0
    %v4953 = vadd.f32 %v4600, %v4952
    %v4954 = vpop.f32.mrb[0].mxu0
    %v4955 = vadd.f32 %v4602, %v4954
    %4956 = vmatprep.mubr.bf16.mxu0 %v2742
    %4957 = vmatmul.mubr.bf16.gmra.mrb[0].mxu0 %v2741
    %v4958 = vpop.f32.mrb[0].mxu0
    %v4959 = vadd.f32 %v4606, %v4958
    %v4960 = vpop.f32.mrb[0].mxu0
    %v4961 = vadd.f32 %v4608, %v4960
    %v4962 = vpop.f32.mrb[0].mxu0
    %v4963 = vadd.f32 %v4610, %v4962
    %v4964 = vpop.f32.mrb[0].mxu0
    %v4965 = vadd.f32 %v4612, %v4964
    %4966 = vmatprep.mubr.bf16.mxu0 %v2750
    %4967 = vmatmul.mubr.bf16.gmra.mrb[0].mxu0 %v2749
    %v4968 = vpop.f32.mrb[0].mxu0
    %v4969 = vadd.f32 %v4616, %v4968
    %v4970 = vpop.f32.mrb[0].mxu0
    %v4971 = vadd.f32 %v4618, %v4970
    %v4972 = vpop.f32.mrb[0].mxu0
    %v4973 = vadd.f32 %v4620, %v4972
    %v4974 = vpop.f32.mrb[0].mxu0
    %v4975 = vadd.f32 %v4622, %v4974
    %4976 = vmatprep.mubr.bf16.mxu0 %v2758
    %4977 = vmatmul.mubr.bf16.gmra.mrb[0].mxu0 %v2757
    %v4978 = vpop.f32.mrb[0].mxu0
    %v4979 = vadd.f32 %v4626, %v4978
    %v4980 = vpop.f32.mrb[0].mxu0
    %v4981 = vadd.f32 %v4628, %v4980
    %v4982 = vpop.f32.mrb[0].mxu0
    %v4983 = vadd.f32 %v4630, %v4982
    %v4984 = vpop.f32.mrb[0].mxu0
    %v4985 = vadd.f32 %v4632, %v4984
    %4986 = vmatprep.mubr.bf16.mxu0 %v2766
    %4987 = vmatmul.mubr.bf16.gmra.mrb[0].mxu0 %v2765
    %v4988 = vpop.f32.mrb[0].mxu0
    %v4989 = vadd.f32 %v4636, %v4988
    %v4990 = vpop.f32.mrb[0].mxu0
    %v4991 = vadd.f32 %v4638, %v4990
    %v4992 = vpop.f32.mrb[0].mxu0
    %v4993 = vadd.f32 %v4640, %v4992
    %v4994 = vpop.f32.mrb[0].mxu0
    %v4995 = vadd.f32 %v4642, %v4994
    %4996 = vmatprep.mubr.bf16.mxu0 %v2774
    %4997 = vmatmul.mubr.bf16.gmra.mrb[0].mxu0 %v2773
    %v4998 = vpop.f32.mrb[0].mxu0
    %v4999 = vadd.f32 %v4646, %v4998
    %v5000 = vpop.f32.mrb[0].mxu0
    %v5001 = vadd.f32 %v4648, %v5000
    %v5002 = vpop.f32.mrb[0].mxu0
    %v5003 = vadd.f32 %v4650, %v5002
    %v5004 = vpop.f32.mrb[0].mxu0
    %v5005 = vadd.f32 %v4652, %v5004
    %5006 = vmatprep.mubr.bf16.mxu0 %v2782
    %5007 = vmatmul.mubr.bf16.gmra.mrb[0].mxu0 %v2781
    %v5008 = vpop.f32.mrb[0].mxu0
    %v5009 = vadd.f32 %v4656, %v5008
    %v5010 = vpop.f32.mrb[0].mxu0
    %v5011 = vadd.f32 %v4658, %v5010
    %v5012 = vpop.f32.mrb[0].mxu0
    %v5013 = vadd.f32 %v4660, %v5012
    %v5014 = vpop.f32.mrb[0].mxu0
    %v5015 = vadd.f32 %v4662, %v5014
    %5016 = vmatprep.mubr.bf16.mxu0 %v2790
    %5017 = vmatmul.mubr.bf16.gmra.mrb[0].mxu0 %v2789
    %v5018 = vpop.f32.mrb[0].mxu0
    %v5019 = vadd.f32 %v4666, %v5018
    %v5020 = vpop.f32.mrb[0].mxu0
    %v5021 = vadd.f32 %v4668, %v5020
    %v5022 = vpop.f32.mrb[0].mxu0
    %v5023 = vadd.f32 %v4670, %v5022
    %v5024 = vpop.f32.mrb[0].mxu0
    %v5025 = vadd.f32 %v4672, %v5024
    %5026 = vmatprep.mubr.bf16.mxu0 %v2798
    %5027 = vmatmul.mubr.bf16.gmra.mrb[0].mxu0 %v2797
    %v5028 = vpop.f32.mrb[0].mxu0
    %v5029 = vadd.f32 %v4676, %v5028
    %v5030 = vpop.f32.mrb[0].mxu0
    %v5031 = vadd.f32 %v4678, %v5030
    %v5032 = vpop.f32.mrb[0].mxu0
    %v5033 = vadd.f32 %v4680, %v5032
    %v5034 = vpop.f32.mrb[0].mxu0
    %v5035 = vadd.f32 %v4682, %v5034
    %5036 = vmatprep.mubr.bf16.mxu0 %v2806
    %5037 = vmatmul.mubr.bf16.gmra.mrb[0].mxu0 %v2805
    %v5038 = vpop.f32.mrb[0].mxu0
    %v5039 = vadd.f32 %v4686, %v5038
    %v5040 = vpop.f32.mrb[0].mxu0
    %v5041 = vadd.f32 %v4688, %v5040
    %v5042 = vpop.f32.mrb[0].mxu0
    %v5043 = vadd.f32 %v4690, %v5042
    %v5044 = vpop.f32.mrb[0].mxu0
    %v5045 = vadd.f32 %v4692, %v5044
    %5046 = vmatprep.mubr.bf16.mxu0 %v2814
    %5047 = vmatmul.mubr.bf16.gmra.mrb[0].mxu0 %v2813
    %v5048 = vpop.f32.mrb[0].mxu0
    %v5049 = vadd.f32 %v4696, %v5048
    %v5050 = vpop.f32.mrb[0].mxu0
    %v5051 = vadd.f32 %v4698, %v5050
    %v5052 = vpop.f32.mrb[0].mxu0
    %v5053 = vadd.f32 %v4700, %v5052
    %v5054 = vpop.f32.mrb[0].mxu0
    %v5055 = vadd.f32 %v4702, %v5054
    %5056 = vmatprep.mubr.bf16.mxu0 %v2822
    %5057 = vmatmul.mubr.bf16.gmra.mrb[0].mxu0 %v2821
    %v5058 = vpop.f32.mrb[0].mxu0
    %v5059 = vadd.f32 %v4706, %v5058
    %v5060 = vpop.f32.mrb[0].mxu0
    %v5061 = vadd.f32 %v4708, %v5060
    %v5062 = vpop.f32.mrb[0].mxu0
    %v5063 = vadd.f32 %v4710, %v5062
    %v5064 = vpop.f32.mrb[0].mxu0
    %v5065 = vadd.f32 %v4712, %v5064
    %5066 = vmatprep.mubr.bf16.mxu0 %v2830
    %5067 = vmatmul.mubr.bf16.gmra.mrb[0].mxu0 %v2829
    %v5068 = vpop.f32.mrb[0].mxu0
    %v5069 = vadd.f32 %v4716, %v5068
    %v5070 = vpop.f32.mrb[0].mxu0
    %v5071 = vadd.f32 %v4718, %v5070
    %v5072 = vpop.f32.mrb[0].mxu0
    %v5073 = vadd.f32 %v4720, %v5072
    %v5074 = vpop.f32.mrb[0].mxu0
    %v5075 = vadd.f32 %v4722, %v5074
    %5076 = vmatprep.mubr.bf16.mxu0 %v2838
    %5077 = vmatmul.mubr.bf16.gmra.mrb[0].mxu0 %v2837
    %v5078 = vpop.f32.mrb[0].mxu0
    %v5079 = vadd.f32 %v4726, %v5078
    %v5080 = vpop.f32.mrb[0].mxu0
    %v5081 = vadd.f32 %v4728, %v5080
    %v5082 = vpop.f32.mrb[0].mxu0
    %v5083 = vadd.f32 %v4730, %v5082
    %v5084 = vpop.f32.mrb[0].mxu0
    %v5085 = vadd.f32 %v4732, %v5084
    %5086 = vmatprep.mubr.bf16.mxu0 %v2846
    %5087 = vmatmul.mubr.bf16.gmra.mrb[0].mxu0 %v2845
    %v5088 = vpop.f32.mrb[0].mxu0
    %v5089 = vadd.f32 %v4736, %v5088
    %v5090 = vpop.f32.mrb[0].mxu0
    %v5091 = vadd.f32 %v4738, %v5090
    %v5092 = vpop.f32.mrb[0].mxu0
    %v5093 = vadd.f32 %v4740, %v5092
    %v5094 = vpop.f32.mrb[0].mxu0
    %v5095 = vadd.f32 %v4742, %v5094
    %5096 = vmatprep.mubr.bf16.mxu0 %v2854
    %5097 = vmatmul.mubr.bf16.gmra.mrb[0].mxu0 %v2853
    %v5098 = vpop.f32.mrb[0].mxu0
    %v5099 = vadd.f32 %v4746, %v5098
    %v5100 = vpop.f32.mrb[0].mxu0
    %v5101 = vadd.f32 %v4748, %v5100
    %v5102 = vpop.f32.mrb[0].mxu0
    %v5103 = vadd.f32 %v4750, %v5102
    %v5104 = vpop.f32.mrb[0].mxu0
    %v5105 = vadd.f32 %v4752, %v5104
    %5106 = vmatprep.mubr.bf16.mxu0 %v2862
    %5107 = vmatmul.mubr.bf16.gmra.mrb[0].mxu0 %v2861
    %v5108 = vpop.f32.mrb[0].mxu0
    %v5109 = vadd.f32 %v4756, %v5108
    %v5110 = vpop.f32.mrb[0].mxu0
    %v5111 = vadd.f32 %v4758, %v5110
    %v5112 = vpop.f32.mrb[0].mxu0
    %v5113 = vadd.f32 %v4760, %v5112
    %v5114 = vpop.f32.mrb[0].mxu0
    %v5115 = vadd.f32 %v4762, %v5114
    %5116 = vmatprep.mubr.bf16.mxu0 %v2870
    %5117 = vmatmul.mubr.bf16.gmra.mrb[0].mxu0 %v2869
    %v5118 = vpop.f32.mrb[0].mxu0
    %v5119 = vadd.f32 %v4766, %v5118
    %v5120 = vpop.f32.mrb[0].mxu0
    %v5121 = vadd.f32 %v4768, %v5120
    %v5122 = vpop.f32.mrb[0].mxu0
    %v5123 = vadd.f32 %v4770, %v5122
    %v5124 = vpop.f32.mrb[0].mxu0
    %v5125 = vadd.f32 %v4772, %v5124
    %5126 = vmatprep.mubr.bf16.mxu0 %v2878
    %5127 = vmatmul.mubr.bf16.gmra.mrb[0].mxu0 %v2877
    %v5128 = vpop.f32.mrb[0].mxu0
    %v5129 = vadd.f32 %v4776, %v5128
    %v5130 = vpop.f32.mrb[0].mxu0
    %v5131 = vadd.f32 %v4778, %v5130
    %v5132 = vpop.f32.mrb[0].mxu0
    %v5133 = vadd.f32 %v4780, %v5132
    %v5134 = vpop.f32.mrb[0].mxu0
    %v5135 = vadd.f32 %v4782, %v5134
    %5136 = vmatprep.mubr.bf16.mxu0 %v2886
    %5137 = vmatmul.mubr.bf16.gmra.mrb[0].mxu0 %v2885
    %v5138 = vpop.f32.mrb[0].mxu0
    %v5139 = vadd.f32 %v4786, %v5138
    %v5140 = vpop.f32.mrb[0].mxu0
    %v5141 = vadd.f32 %v4788, %v5140
    %v5142 = vpop.f32.mrb[0].mxu0
    %v5143 = vadd.f32 %v4790, %v5142
    %v5144 = vpop.f32.mrb[0].mxu0
    %v5145 = vadd.f32 %v4792, %v5144
    %5146 = vmatprep.mubr.bf16.mxu0 %v2894
    %5147 = vmatmul.mubr.bf16.gmra.mrb[0].mxu0 %v2893
    %v5148 = vpop.f32.mrb[0].mxu0
    %v5149 = vadd.f32 %v4796, %v5148
    %v5150 = vpop.f32.mrb[0].mxu0
    %v5151 = vadd.f32 %v4798, %v5150
    %v5152 = vpop.f32.mrb[0].mxu0
    %v5153 = vadd.f32 %v4800, %v5152
    %v5154 = vpop.f32.mrb[0].mxu0
    %v5155 = vadd.f32 %v4802, %v5154
    %5156 = vmatprep.mubr.bf16.mxu0 %v2902
    %5157 = vmatmul.mubr.bf16.gmra.mrb[0].mxu0 %v2901
    %v5158 = vpop.f32.mrb[0].mxu0
    %v5159 = vadd.f32 %v4806, %v5158
    %v5160 = vpop.f32.mrb[0].mxu0
    %v5161 = vadd.f32 %v4808, %v5160
    %v5162 = vpop.f32.mrb[0].mxu0
    %v5163 = vadd.f32 %v4810, %v5162
    %v5164 = vpop.f32.mrb[0].mxu0
    %v5165 = vadd.f32 %v4812, %v5164
    %5166 = vmatprep.mubr.bf16.mxu0 %v2910
    %5167 = vmatmul.mubr.bf16.gmra.mrb[0].mxu0 %v2909
    %v5168 = vpop.f32.mrb[0].mxu0
    %v5169 = vadd.f32 %v4816, %v5168
    %v5170 = vpop.f32.mrb[0].mxu0
    %v5171 = vadd.f32 %v4818, %v5170
    %v5172 = vpop.f32.mrb[0].mxu0
    %v5173 = vadd.f32 %v4820, %v5172
    %v5174 = vpop.f32.mrb[0].mxu0
    %v5175 = vadd.f32 %v4822, %v5174
    %5176 = vmatprep.mubr.bf16.mxu0 %v2918
    %5177 = vmatmul.mubr.bf16.gmra.mrb[0].mxu0 %v2917
    %v5178 = vpop.f32.mrb[0].mxu0
    %v5179 = vadd.f32 %v4826, %v5178
    %v5180 = vpop.f32.mrb[0].mxu0
    %v5181 = vadd.f32 %v4828, %v5180
    %v5182 = vpop.f32.mrb[0].mxu0
    %v5183 = vadd.f32 %v4830, %v5182
    %v5184 = vpop.f32.mrb[0].mxu0
    %v5185 = vadd.f32 %v4832, %v5184
    %5186 = vdwg.mxu0
    %5187 = vmatprep.subr.bf16.mxu0 %v4098
    %5188 = vmatpush1.bf16.msra.mxu0 %v4097
    %5189 = vmatprep.subr.bf16.mxu0 %v4102
    %5190 = vmatpush1.bf16.msra.mxu0 %v4101
    %5191 = vmatprep.subr.bf16.mxu0 %v4106
    %5192 = vmatpush1.bf16.msra.mxu0 %v4105
    %5193 = vmatprep.subr.bf16.mxu0 %v4110
    %5194 = vmatpush1.bf16.msra.mxu0 %v4109
    %5195 = vmatprep.subr.bf16.mxu0 %v4114
    %5196 = vmatpush1.bf16.msra.mxu0 %v4113
    %5197 = vmatprep.subr.bf16.mxu0 %v4118
    %5198 = vmatpush1.bf16.msra.mxu0 %v4117
    %5199 = vmatprep.subr.bf16.mxu0 %v4122
    %5200 = vmatpush1.bf16.msra.mxu0 %v4121
    %5201 = vmatprep.subr.bf16.mxu0 %v4126
    %5202 = vmatpush1.bf16.msra.mxu0 %v4125
    %5203 = vmatprep.subr.bf16.mxu0 %v4130
    %5204 = vmatpush1.bf16.msra.mxu0 %v4129
    %5205 = vmatprep.subr.bf16.mxu0 %v4134
    %5206 = vmatpush1.bf16.msra.mxu0 %v4133
    %5207 = vmatprep.subr.bf16.mxu0 %v4138
    %5208 = vmatpush1.bf16.msra.mxu0 %v4137
    %5209 = vmatprep.subr.bf16.mxu0 %v4142
    %5210 = vmatpush1.bf16.msra.mxu0 %v4141
    %5211 = vmatprep.subr.bf16.mxu0 %v4146
    %5212 = vmatpush1.bf16.msra.mxu0 %v4145
    %5213 = vmatprep.subr.bf16.mxu0 %v4150
    %5214 = vmatpush1.bf16.msra.mxu0 %v4149
    %5215 = vmatprep.subr.bf16.mxu0 %v4154
    %5216 = vmatpush1.bf16.msra.mxu0 %v4153
    %5217 = vmatprep.subr.bf16.mxu0 %v4158
    %5218 = vmatpush1.bf16.msra.mxu0 %v4157
    %5219 = vmatprep.mubr.bf16.mxu0 %v2672
    %5220 = vmatmul.mubr.bf16.gmra.mrb[0].mxu0 %v2671
    %v5221 = vpop.f32.mrb[0].mxu0
    %v5222 = vadd.f32 %v4869, %v5221
    %v5223 = vpop.f32.mrb[0].mxu0
    %v5224 = vadd.f32 %v4871, %v5223
    %v5225 = vpop.f32.mrb[0].mxu0
    %v5226 = vadd.f32 %v4873, %v5225
    %v5227 = vpop.f32.mrb[0].mxu0
    %v5228 = vadd.f32 %v4875, %v5227
    %5229 = vmatprep.mubr.bf16.mxu0 %v2680
    %5230 = vmatmul.mubr.bf16.gmra.mrb[0].mxu0 %v2679
    %v5231 = vpop.f32.mrb[0].mxu0
    %v5232 = vadd.f32 %v4879, %v5231
    %v5233 = vpop.f32.mrb[0].mxu0
    %v5234 = vadd.f32 %v4881, %v5233
    %v5235 = vpop.f32.mrb[0].mxu0
    %v5236 = vadd.f32 %v4883, %v5235
    %v5237 = vpop.f32.mrb[0].mxu0
    %v5238 = vadd.f32 %v4885, %v5237
    %5239 = vmatprep.mubr.bf16.mxu0 %v2688
    %5240 = vmatmul.mubr.bf16.gmra.mrb[0].mxu0 %v2687
    %v5241 = vpop.f32.mrb[0].mxu0
    %v5242 = vadd.f32 %v4889, %v5241
    %v5243 = vpop.f32.mrb[0].mxu0
    %v5244 = vadd.f32 %v4891, %v5243
    %v5245 = vpop.f32.mrb[0].mxu0
    %v5246 = vadd.f32 %v4893, %v5245
    %v5247 = vpop.f32.mrb[0].mxu0
    %v5248 = vadd.f32 %v4895, %v5247
    %5249 = vmatprep.mubr.bf16.mxu0 %v2696
    %5250 = vmatmul.mubr.bf16.gmra.mrb[0].mxu0 %v2695
    %v5251 = vpop.f32.mrb[0].mxu0
    %v5252 = vadd.f32 %v4899, %v5251
    %v5253 = vpop.f32.mrb[0].mxu0
    %v5254 = vadd.f32 %v4901, %v5253
    %v5255 = vpop.f32.mrb[0].mxu0
    %v5256 = vadd.f32 %v4903, %v5255
    %v5257 = vpop.f32.mrb[0].mxu0
    %v5258 = vadd.f32 %v4905, %v5257
    %5259 = vmatprep.mubr.bf16.mxu0 %v2704
    %5260 = vmatmul.mubr.bf16.gmra.mrb[0].mxu0 %v2703
    %v5261 = vpop.f32.mrb[0].mxu0
    %v5262 = vadd.f32 %v4909, %v5261
    %v5263 = vpop.f32.mrb[0].mxu0
    %v5264 = vadd.f32 %v4911, %v5263
    %v5265 = vpop.f32.mrb[0].mxu0
    %v5266 = vadd.f32 %v4913, %v5265
    %v5267 = vpop.f32.mrb[0].mxu0
    %v5268 = vadd.f32 %v4915, %v5267
    %5269 = vmatprep.mubr.bf16.mxu0 %v2712
    %5270 = vmatmul.mubr.bf16.gmra.mrb[0].mxu0 %v2711
    %v5271 = vpop.f32.mrb[0].mxu0
    %v5272 = vadd.f32 %v4919, %v5271
    %v5273 = vpop.f32.mrb[0].mxu0
    %v5274 = vadd.f32 %v4921, %v5273
    %v5275 = vpop.f32.mrb[0].mxu0
    %v5276 = vadd.f32 %v4923, %v5275
    %v5277 = vpop.f32.mrb[0].mxu0
    %v5278 = vadd.f32 %v4925, %v5277
    %5279 = vmatprep.mubr.bf16.mxu0 %v2720
    %5280 = vmatmul.mubr.bf16.gmra.mrb[0].mxu0 %v2719
    %v5281 = vpop.f32.mrb[0].mxu0
    %v5282 = vadd.f32 %v4929, %v5281
    %v5283 = vpop.f32.mrb[0].mxu0
    %v5284 = vadd.f32 %v4931, %v5283
    %v5285 = vpop.f32.mrb[0].mxu0
    %v5286 = vadd.f32 %v4933, %v5285
    %v5287 = vpop.f32.mrb[0].mxu0
    %v5288 = vadd.f32 %v4935, %v5287
    %5289 = vmatprep.mubr.bf16.mxu0 %v2728
    %5290 = vmatmul.mubr.bf16.gmra.mrb[0].mxu0 %v2727
    %v5291 = vpop.f32.mrb[0].mxu0
    %v5292 = vadd.f32 %v4939, %v5291
    %v5293 = vpop.f32.mrb[0].mxu0
    %v5294 = vadd.f32 %v4941, %v5293
    %v5295 = vpop.f32.mrb[0].mxu0
    %v5296 = vadd.f32 %v4943, %v5295
    %v5297 = vpop.f32.mrb[0].mxu0
    %v5298 = vadd.f32 %v4945, %v5297
    %5299 = vmatprep.mubr.bf16.mxu0 %v2736
    %5300 = vmatmul.mubr.bf16.gmra.mrb[0].mxu0 %v2735
    %v5301 = vpop.f32.mrb[0].mxu0
    %v5302 = vadd.f32 %v4949, %v5301
    %v5303 = vpop.f32.mrb[0].mxu0
    %v5304 = vadd.f32 %v4951, %v5303
    %v5305 = vpop.f32.mrb[0].mxu0
    %v5306 = vadd.f32 %v4953, %v5305
    %v5307 = vpop.f32.mrb[0].mxu0
    %v5308 = vadd.f32 %v4955, %v5307
    %5309 = vmatprep.mubr.bf16.mxu0 %v2744
    %5310 = vmatmul.mubr.bf16.gmra.mrb[0].mxu0 %v2743
    %v5311 = vpop.f32.mrb[0].mxu0
    %v5312 = vadd.f32 %v4959, %v5311
    %v5313 = vpop.f32.mrb[0].mxu0
    %v5314 = vadd.f32 %v4961, %v5313
    %v5315 = vpop.f32.mrb[0].mxu0
    %v5316 = vadd.f32 %v4963, %v5315
    %v5317 = vpop.f32.mrb[0].mxu0
    %v5318 = vadd.f32 %v4965, %v5317
    %5319 = vmatprep.mubr.bf16.mxu0 %v2752
    %5320 = vmatmul.mubr.bf16.gmra.mrb[0].mxu0 %v2751
    %v5321 = vpop.f32.mrb[0].mxu0
    %v5322 = vadd.f32 %v4969, %v5321
    %v5323 = vpop.f32.mrb[0].mxu0
    %v5324 = vadd.f32 %v4971, %v5323
    %v5325 = vpop.f32.mrb[0].mxu0
    %v5326 = vadd.f32 %v4973, %v5325
    %v5327 = vpop.f32.mrb[0].mxu0
    %v5328 = vadd.f32 %v4975, %v5327
    %5329 = vmatprep.mubr.bf16.mxu0 %v2760
    %5330 = vmatmul.mubr.bf16.gmra.mrb[0].mxu0 %v2759
    %v5331 = vpop.f32.mrb[0].mxu0
    %v5332 = vadd.f32 %v4979, %v5331
    %v5333 = vpop.f32.mrb[0].mxu0
    %v5334 = vadd.f32 %v4981, %v5333
    %v5335 = vpop.f32.mrb[0].mxu0
    %v5336 = vadd.f32 %v4983, %v5335
    %v5337 = vpop.f32.mrb[0].mxu0
    %v5338 = vadd.f32 %v4985, %v5337
    %5339 = vmatprep.mubr.bf16.mxu0 %v2768
    %5340 = vmatmul.mubr.bf16.gmra.mrb[0].mxu0 %v2767
    %v5341 = vpop.f32.mrb[0].mxu0
    %v5342 = vadd.f32 %v4989, %v5341
    %v5343 = vpop.f32.mrb[0].mxu0
    %v5344 = vadd.f32 %v4991, %v5343
    %v5345 = vpop.f32.mrb[0].mxu0
    %v5346 = vadd.f32 %v4993, %v5345
    %v5347 = vpop.f32.mrb[0].mxu0
    %v5348 = vadd.f32 %v4995, %v5347
    %5349 = vmatprep.mubr.bf16.mxu0 %v2776
    %5350 = vmatmul.mubr.bf16.gmra.mrb[0].mxu0 %v2775
    %v5351 = vpop.f32.mrb[0].mxu0
    %v5352 = vadd.f32 %v4999, %v5351
    %v5353 = vpop.f32.mrb[0].mxu0
    %v5354 = vadd.f32 %v5001, %v5353
    %v5355 = vpop.f32.mrb[0].mxu0
    %v5356 = vadd.f32 %v5003, %v5355
    %v5357 = vpop.f32.mrb[0].mxu0
    %v5358 = vadd.f32 %v5005, %v5357
    %5359 = vmatprep.mubr.bf16.mxu0 %v2784
    %5360 = vmatmul.mubr.bf16.gmra.mrb[0].mxu0 %v2783
    %v5361 = vpop.f32.mrb[0].mxu0
    %v5362 = vadd.f32 %v5009, %v5361
    %v5363 = vpop.f32.mrb[0].mxu0
    %v5364 = vadd.f32 %v5011, %v5363
    %v5365 = vpop.f32.mrb[0].mxu0
    %v5366 = vadd.f32 %v5013, %v5365
    %v5367 = vpop.f32.mrb[0].mxu0
    %v5368 = vadd.f32 %v5015, %v5367
    %5369 = vmatprep.mubr.bf16.mxu0 %v2792
    %5370 = vmatmul.mubr.bf16.gmra.mrb[0].mxu0 %v2791
    %v5371 = vpop.f32.mrb[0].mxu0
    %v5372 = vadd.f32 %v5019, %v5371
    %v5373 = vpop.f32.mrb[0].mxu0
    %v5374 = vadd.f32 %v5021, %v5373
    %v5375 = vpop.f32.mrb[0].mxu0
    %v5376 = vadd.f32 %v5023, %v5375
    %v5377 = vpop.f32.mrb[0].mxu0
    %v5378 = vadd.f32 %v5025, %v5377
    %5379 = vmatprep.mubr.bf16.mxu0 %v2800
    %5380 = vmatmul.mubr.bf16.gmra.mrb[0].mxu0 %v2799
    %v5381 = vpop.f32.mrb[0].mxu0
    %v5382 = vadd.f32 %v5029, %v5381
    %v5383 = vpop.f32.mrb[0].mxu0
    %v5384 = vadd.f32 %v5031, %v5383
    %v5385 = vpop.f32.mrb[0].mxu0
    %v5386 = vadd.f32 %v5033, %v5385
    %v5387 = vpop.f32.mrb[0].mxu0
    %v5388 = vadd.f32 %v5035, %v5387
    %5389 = vmatprep.mubr.bf16.mxu0 %v2808
    %5390 = vmatmul.mubr.bf16.gmra.mrb[0].mxu0 %v2807
    %v5391 = vpop.f32.mrb[0].mxu0
    %v5392 = vadd.f32 %v5039, %v5391
    %v5393 = vpop.f32.mrb[0].mxu0
    %v5394 = vadd.f32 %v5041, %v5393
    %v5395 = vpop.f32.mrb[0].mxu0
    %v5396 = vadd.f32 %v5043, %v5395
    %v5397 = vpop.f32.mrb[0].mxu0
    %v5398 = vadd.f32 %v5045, %v5397
    %5399 = vmatprep.mubr.bf16.mxu0 %v2816
    %5400 = vmatmul.mubr.bf16.gmra.mrb[0].mxu0 %v2815
    %v5401 = vpop.f32.mrb[0].mxu0
    %v5402 = vadd.f32 %v5049, %v5401
    %v5403 = vpop.f32.mrb[0].mxu0
    %v5404 = vadd.f32 %v5051, %v5403
    %v5405 = vpop.f32.mrb[0].mxu0
    %v5406 = vadd.f32 %v5053, %v5405
    %v5407 = vpop.f32.mrb[0].mxu0
    %v5408 = vadd.f32 %v5055, %v5407
    %5409 = vmatprep.mubr.bf16.mxu0 %v2824
    %5410 = vmatmul.mubr.bf16.gmra.mrb[0].mxu0 %v2823
    %v5411 = vpop.f32.mrb[0].mxu0
    %v5412 = vadd.f32 %v5059, %v5411
    %v5413 = vpop.f32.mrb[0].mxu0
    %v5414 = vadd.f32 %v5061, %v5413
    %v5415 = vpop.f32.mrb[0].mxu0
    %v5416 = vadd.f32 %v5063, %v5415
    %v5417 = vpop.f32.mrb[0].mxu0
    %v5418 = vadd.f32 %v5065, %v5417
    %5419 = vmatprep.mubr.bf16.mxu0 %v2832
    %5420 = vmatmul.mubr.bf16.gmra.mrb[0].mxu0 %v2831
    %v5421 = vpop.f32.mrb[0].mxu0
    %v5422 = vadd.f32 %v5069, %v5421
    %v5423 = vpop.f32.mrb[0].mxu0
    %v5424 = vadd.f32 %v5071, %v5423
    %v5425 = vpop.f32.mrb[0].mxu0
    %v5426 = vadd.f32 %v5073, %v5425
    %v5427 = vpop.f32.mrb[0].mxu0
    %v5428 = vadd.f32 %v5075, %v5427
    %5429 = vmatprep.mubr.bf16.mxu0 %v2840
    %5430 = vmatmul.mubr.bf16.gmra.mrb[0].mxu0 %v2839
    %v5431 = vpop.f32.mrb[0].mxu0
    %v5432 = vadd.f32 %v5079, %v5431
    %v5433 = vpop.f32.mrb[0].mxu0
    %v5434 = vadd.f32 %v5081, %v5433
    %v5435 = vpop.f32.mrb[0].mxu0
    %v5436 = vadd.f32 %v5083, %v5435
    %v5437 = vpop.f32.mrb[0].mxu0
    %v5438 = vadd.f32 %v5085, %v5437
    %5439 = vmatprep.mubr.bf16.mxu0 %v2848
    %5440 = vmatmul.mubr.bf16.gmra.mrb[0].mxu0 %v2847
    %v5441 = vpop.f32.mrb[0].mxu0
    %v5442 = vadd.f32 %v5089, %v5441
    %v5443 = vpop.f32.mrb[0].mxu0
    %v5444 = vadd.f32 %v5091, %v5443
    %v5445 = vpop.f32.mrb[0].mxu0
    %v5446 = vadd.f32 %v5093, %v5445
    %v5447 = vpop.f32.mrb[0].mxu0
    %v5448 = vadd.f32 %v5095, %v5447
    %5449 = vmatprep.mubr.bf16.mxu0 %v2856
    %5450 = vmatmul.mubr.bf16.gmra.mrb[0].mxu0 %v2855
    %v5451 = vpop.f32.mrb[0].mxu0
    %v5452 = vadd.f32 %v5099, %v5451
    %v5453 = vpop.f32.mrb[0].mxu0
    %v5454 = vadd.f32 %v5101, %v5453
    %v5455 = vpop.f32.mrb[0].mxu0
    %v5456 = vadd.f32 %v5103, %v5455
    %v5457 = vpop.f32.mrb[0].mxu0
    %v5458 = vadd.f32 %v5105, %v5457
    %5459 = vmatprep.mubr.bf16.mxu0 %v2864
    %5460 = vmatmul.mubr.bf16.gmra.mrb[0].mxu0 %v2863
    %v5461 = vpop.f32.mrb[0].mxu0
    %v5462 = vadd.f32 %v5109, %v5461
    %v5463 = vpop.f32.mrb[0].mxu0
    %v5464 = vadd.f32 %v5111, %v5463
    %v5465 = vpop.f32.mrb[0].mxu0
    %v5466 = vadd.f32 %v5113, %v5465
    %v5467 = vpop.f32.mrb[0].mxu0
    %v5468 = vadd.f32 %v5115, %v5467
    %5469 = vmatprep.mubr.bf16.mxu0 %v2872
    %5470 = vmatmul.mubr.bf16.gmra.mrb[0].mxu0 %v2871
    %v5471 = vpop.f32.mrb[0].mxu0
    %v5472 = vadd.f32 %v5119, %v5471
    %v5473 = vpop.f32.mrb[0].mxu0
    %v5474 = vadd.f32 %v5121, %v5473
    %v5475 = vpop.f32.mrb[0].mxu0
    %v5476 = vadd.f32 %v5123, %v5475
    %v5477 = vpop.f32.mrb[0].mxu0
    %v5478 = vadd.f32 %v5125, %v5477
    %5479 = vmatprep.mubr.bf16.mxu0 %v2880
    %5480 = vmatmul.mubr.bf16.gmra.mrb[0].mxu0 %v2879
    %v5481 = vpop.f32.mrb[0].mxu0
    %v5482 = vadd.f32 %v5129, %v5481
    %v5483 = vpop.f32.mrb[0].mxu0
    %v5484 = vadd.f32 %v5131, %v5483
    %v5485 = vpop.f32.mrb[0].mxu0
    %v5486 = vadd.f32 %v5133, %v5485
    %v5487 = vpop.f32.mrb[0].mxu0
    %v5488 = vadd.f32 %v5135, %v5487
    %5489 = vmatprep.mubr.bf16.mxu0 %v2888
    %5490 = vmatmul.mubr.bf16.gmra.mrb[0].mxu0 %v2887
    %v5491 = vpop.f32.mrb[0].mxu0
    %v5492 = vadd.f32 %v5139, %v5491
    %v5493 = vpop.f32.mrb[0].mxu0
    %v5494 = vadd.f32 %v5141, %v5493
    %v5495 = vpop.f32.mrb[0].mxu0
    %v5496 = vadd.f32 %v5143, %v5495
    %v5497 = vpop.f32.mrb[0].mxu0
    %v5498 = vadd.f32 %v5145, %v5497
    %5499 = vmatprep.mubr.bf16.mxu0 %v2896
    %5500 = vmatmul.mubr.bf16.gmra.mrb[0].mxu0 %v2895
    %v5501 = vpop.f32.mrb[0].mxu0
    %v5502 = vadd.f32 %v5149, %v5501
    %v5503 = vpop.f32.mrb[0].mxu0
    %v5504 = vadd.f32 %v5151, %v5503
    %v5505 = vpop.f32.mrb[0].mxu0
    %v5506 = vadd.f32 %v5153, %v5505
    %v5507 = vpop.f32.mrb[0].mxu0
    %v5508 = vadd.f32 %v5155, %v5507
    %5509 = vmatprep.mubr.bf16.mxu0 %v2904
    %5510 = vmatmul.mubr.bf16.gmra.mrb[0].mxu0 %v2903
    %v5511 = vpop.f32.mrb[0].mxu0
    %v5512 = vadd.f32 %v5159, %v5511
    %v5513 = vpop.f32.mrb[0].mxu0
    %v5514 = vadd.f32 %v5161, %v5513
    %v5515 = vpop.f32.mrb[0].mxu0
    %v5516 = vadd.f32 %v5163, %v5515
    %v5517 = vpop.f32.mrb[0].mxu0
    %v5518 = vadd.f32 %v5165, %v5517
    %5519 = vmatprep.mubr.bf16.mxu0 %v2912
    %5520 = vmatmul.mubr.bf16.gmra.mrb[0].mxu0 %v2911
    %v5521 = vpop.f32.mrb[0].mxu0
    %v5522 = vadd.f32 %v5169, %v5521
    %v5523 = vpop.f32.mrb[0].mxu0
    %v5524 = vadd.f32 %v5171, %v5523
    %v5525 = vpop.f32.mrb[0].mxu0
    %v5526 = vadd.f32 %v5173, %v5525
    %v5527 = vpop.f32.mrb[0].mxu0
    %v5528 = vadd.f32 %v5175, %v5527
    %5529 = vmatprep.mubr.bf16.mxu0 %v2920
    %5530 = vmatmul.mubr.bf16.gmra.mrb[0].mxu0 %v2919
    %v5531 = vpop.f32.mrb[0].mxu0
    %v5532 = vadd.f32 %v5179, %v5531
    %v5533 = vpop.f32.mrb[0].mxu0
    %v5534 = vadd.f32 %v5181, %v5533
    %v5535 = vpop.f32.mrb[0].mxu0
    %v5536 = vadd.f32 %v5183, %v5535
    %v5537 = vpop.f32.mrb[0].mxu0
    %v5538 = vadd.f32 %v5185, %v5537
    %5539 = vdwg.mxu0
    %5540 = vmatprep.subr.bf16.mxu0 %v4162
    %5541 = vmatpush1.bf16.msra.mxu0 %v4161
    %5542 = vmatprep.subr.bf16.mxu0 %v4166
    %5543 = vmatpush1.bf16.msra.mxu0 %v4165
    %5544 = vmatprep.subr.bf16.mxu0 %v4170
    %5545 = vmatpush1.bf16.msra.mxu0 %v4169
    %5546 = vmatprep.subr.bf16.mxu0 %v4174
    %5547 = vmatpush1.bf16.msra.mxu0 %v4173
    %5548 = vmatprep.subr.bf16.mxu0 %v4178
    %5549 = vmatpush1.bf16.msra.mxu0 %v4177
    %5550 = vmatprep.subr.bf16.mxu0 %v4182
    %5551 = vmatpush1.bf16.msra.mxu0 %v4181
    %5552 = vmatprep.subr.bf16.mxu0 %v4186
    %5553 = vmatpush1.bf16.msra.mxu0 %v4185
    %5554 = vmatprep.subr.bf16.mxu0 %v4190
    %5555 = vmatpush1.bf16.msra.mxu0 %v4189
    %5556 = vmatprep.subr.bf16.mxu0 %v4194
    %5557 = vmatpush1.bf16.msra.mxu0 %v4193
    %5558 = vmatprep.subr.bf16.mxu0 %v4198
    %5559 = vmatpush1.bf16.msra.mxu0 %v4197
    %5560 = vmatprep.subr.bf16.mxu0 %v4202
    %5561 = vmatpush1.bf16.msra.mxu0 %v4201
    %5562 = vmatprep.subr.bf16.mxu0 %v4206
    %5563 = vmatpush1.bf16.msra.mxu0 %v4205
    %5564 = vmatprep.subr.bf16.mxu0 %v4210
    %5565 = vmatpush1.bf16.msra.mxu0 %v4209
    %5566 = vmatprep.subr.bf16.mxu0 %v4214
    %5567 = vmatpush1.bf16.msra.mxu0 %v4213
    %5568 = vmatprep.subr.bf16.mxu0 %v4218
    %5569 = vmatpush1.bf16.msra.mxu0 %v4217
    %5570 = vmatprep.subr.bf16.mxu0 %v4222
    %5571 = vmatpush1.bf16.msra.mxu0 %v4221
    %5572 = vmatprep.mubr.bf16.mxu0 %v2674
    %5573 = vmatmul.mubr.bf16.gmra.mrb[0].mxu0 %v2673
    %v5574 = vpop.f32.mrb[0].mxu0
    %v5575 = vadd.f32 %v5222, %v5574
    %v5576 = vpop.f32.mrb[0].mxu0
    %v5577 = vadd.f32 %v5224, %v5576
    %v5578 = vpop.f32.mrb[0].mxu0
    %v5579 = vadd.f32 %v5226, %v5578
    %v5580 = vpop.f32.mrb[0].mxu0
    %v5581 = vadd.f32 %v5228, %v5580
    %5582 = vmatprep.mubr.bf16.mxu0 %v2682
    %5583 = vmatmul.mubr.bf16.gmra.mrb[0].mxu0 %v2681
    %v5584 = vpop.f32.mrb[0].mxu0
    %v5585 = vadd.f32 %v5232, %v5584
    %v5586 = vpop.f32.mrb[0].mxu0
    %v5587 = vadd.f32 %v5234, %v5586
    %v5588 = vpop.f32.mrb[0].mxu0
    %v5589 = vadd.f32 %v5236, %v5588
    %v5590 = vpop.f32.mrb[0].mxu0
    %v5591 = vadd.f32 %v5238, %v5590
    %5592 = vmatprep.mubr.bf16.mxu0 %v2690
    %5593 = vmatmul.mubr.bf16.gmra.mrb[0].mxu0 %v2689
    %v5594 = vpop.f32.mrb[0].mxu0
    %v5595 = vadd.f32 %v5242, %v5594
    %v5596 = vpop.f32.mrb[0].mxu0
    %v5597 = vadd.f32 %v5244, %v5596
    %v5598 = vpop.f32.mrb[0].mxu0
    %v5599 = vadd.f32 %v5246, %v5598
    %v5600 = vpop.f32.mrb[0].mxu0
    %v5601 = vadd.f32 %v5248, %v5600
    %5602 = vmatprep.mubr.bf16.mxu0 %v2698
    %5603 = vmatmul.mubr.bf16.gmra.mrb[0].mxu0 %v2697
    %v5604 = vpop.f32.mrb[0].mxu0
    %v5605 = vadd.f32 %v5252, %v5604
    %v5606 = vpop.f32.mrb[0].mxu0
    %v5607 = vadd.f32 %v5254, %v5606
    %v5608 = vpop.f32.mrb[0].mxu0
    %v5609 = vadd.f32 %v5256, %v5608
    %v5610 = vpop.f32.mrb[0].mxu0
    %v5611 = vadd.f32 %v5258, %v5610
    %5612 = vmatprep.mubr.bf16.mxu0 %v2706
    %5613 = vmatmul.mubr.bf16.gmra.mrb[0].mxu0 %v2705
    %v5614 = vpop.f32.mrb[0].mxu0
    %v5615 = vadd.f32 %v5262, %v5614
    %v5616 = vpop.f32.mrb[0].mxu0
    %v5617 = vadd.f32 %v5264, %v5616
    %v5618 = vpop.f32.mrb[0].mxu0
    %v5619 = vadd.f32 %v5266, %v5618
    %v5620 = vpop.f32.mrb[0].mxu0
    %v5621 = vadd.f32 %v5268, %v5620
    %5622 = vmatprep.mubr.bf16.mxu0 %v2714
    %5623 = vmatmul.mubr.bf16.gmra.mrb[0].mxu0 %v2713
    %v5624 = vpop.f32.mrb[0].mxu0
    %v5625 = vadd.f32 %v5272, %v5624
    %v5626 = vpop.f32.mrb[0].mxu0
    %v5627 = vadd.f32 %v5274, %v5626
    %v5628 = vpop.f32.mrb[0].mxu0
    %v5629 = vadd.f32 %v5276, %v5628
    %v5630 = vpop.f32.mrb[0].mxu0
    %v5631 = vadd.f32 %v5278, %v5630
    %5632 = vmatprep.mubr.bf16.mxu0 %v2722
    %5633 = vmatmul.mubr.bf16.gmra.mrb[0].mxu0 %v2721
    %v5634 = vpop.f32.mrb[0].mxu0
    %v5635 = vadd.f32 %v5282, %v5634
    %v5636 = vpop.f32.mrb[0].mxu0
    %v5637 = vadd.f32 %v5284, %v5636
    %v5638 = vpop.f32.mrb[0].mxu0
    %v5639 = vadd.f32 %v5286, %v5638
    %v5640 = vpop.f32.mrb[0].mxu0
    %v5641 = vadd.f32 %v5288, %v5640
    %5642 = vmatprep.mubr.bf16.mxu0 %v2730
    %5643 = vmatmul.mubr.bf16.gmra.mrb[0].mxu0 %v2729
    %v5644 = vpop.f32.mrb[0].mxu0
    %v5645 = vadd.f32 %v5292, %v5644
    %v5646 = vpop.f32.mrb[0].mxu0
    %v5647 = vadd.f32 %v5294, %v5646
    %v5648 = vpop.f32.mrb[0].mxu0
    %v5649 = vadd.f32 %v5296, %v5648
    %v5650 = vpop.f32.mrb[0].mxu0
    %v5651 = vadd.f32 %v5298, %v5650
    %5652 = vmatprep.mubr.bf16.mxu0 %v2738
    %5653 = vmatmul.mubr.bf16.gmra.mrb[0].mxu0 %v2737
    %v5654 = vpop.f32.mrb[0].mxu0
    %v5655 = vadd.f32 %v5302, %v5654
    %v5656 = vpop.f32.mrb[0].mxu0
    %v5657 = vadd.f32 %v5304, %v5656
    %v5658 = vpop.f32.mrb[0].mxu0
    %v5659 = vadd.f32 %v5306, %v5658
    %v5660 = vpop.f32.mrb[0].mxu0
    %v5661 = vadd.f32 %v5308, %v5660
    %5662 = vmatprep.mubr.bf16.mxu0 %v2746
    %5663 = vmatmul.mubr.bf16.gmra.mrb[0].mxu0 %v2745
    %v5664 = vpop.f32.mrb[0].mxu0
    %v5665 = vadd.f32 %v5312, %v5664
    %v5666 = vpop.f32.mrb[0].mxu0
    %v5667 = vadd.f32 %v5314, %v5666
    %v5668 = vpop.f32.mrb[0].mxu0
    %v5669 = vadd.f32 %v5316, %v5668
    %v5670 = vpop.f32.mrb[0].mxu0
    %v5671 = vadd.f32 %v5318, %v5670
    %5672 = vmatprep.mubr.bf16.mxu0 %v2754
    %5673 = vmatmul.mubr.bf16.gmra.mrb[0].mxu0 %v2753
    %v5674 = vpop.f32.mrb[0].mxu0
    %v5675 = vadd.f32 %v5322, %v5674
    %v5676 = vpop.f32.mrb[0].mxu0
    %v5677 = vadd.f32 %v5324, %v5676
    %v5678 = vpop.f32.mrb[0].mxu0
    %v5679 = vadd.f32 %v5326, %v5678
    %v5680 = vpop.f32.mrb[0].mxu0
    %v5681 = vadd.f32 %v5328, %v5680
    %5682 = vmatprep.mubr.bf16.mxu0 %v2762
    %5683 = vmatmul.mubr.bf16.gmra.mrb[0].mxu0 %v2761
    %v5684 = vpop.f32.mrb[0].mxu0
    %v5685 = vadd.f32 %v5332, %v5684
    %v5686 = vpop.f32.mrb[0].mxu0
    %v5687 = vadd.f32 %v5334, %v5686
    %v5688 = vpop.f32.mrb[0].mxu0
    %v5689 = vadd.f32 %v5336, %v5688
    %v5690 = vpop.f32.mrb[0].mxu0
    %v5691 = vadd.f32 %v5338, %v5690
    %5692 = vmatprep.mubr.bf16.mxu0 %v2770
    %5693 = vmatmul.mubr.bf16.gmra.mrb[0].mxu0 %v2769
    %v5694 = vpop.f32.mrb[0].mxu0
    %v5695 = vadd.f32 %v5342, %v5694
    %v5696 = vpop.f32.mrb[0].mxu0
    %v5697 = vadd.f32 %v5344, %v5696
    %v5698 = vpop.f32.mrb[0].mxu0
    %v5699 = vadd.f32 %v5346, %v5698
    %v5700 = vpop.f32.mrb[0].mxu0
    %v5701 = vadd.f32 %v5348, %v5700
    %5702 = vmatprep.mubr.bf16.mxu0 %v2778
    %5703 = vmatmul.mubr.bf16.gmra.mrb[0].mxu0 %v2777
    %v5704 = vpop.f32.mrb[0].mxu0
    %v5705 = vadd.f32 %v5352, %v5704
    %v5706 = vpop.f32.mrb[0].mxu0
    %v5707 = vadd.f32 %v5354, %v5706
    %v5708 = vpop.f32.mrb[0].mxu0
    %v5709 = vadd.f32 %v5356, %v5708
    %v5710 = vpop.f32.mrb[0].mxu0
    %v5711 = vadd.f32 %v5358, %v5710
    %5712 = vmatprep.mubr.bf16.mxu0 %v2786
    %5713 = vmatmul.mubr.bf16.gmra.mrb[0].mxu0 %v2785
    %v5714 = vpop.f32.mrb[0].mxu0
    %v5715 = vadd.f32 %v5362, %v5714
    %v5716 = vpop.f32.mrb[0].mxu0
    %v5717 = vadd.f32 %v5364, %v5716
    %v5718 = vpop.f32.mrb[0].mxu0
    %v5719 = vadd.f32 %v5366, %v5718
    %v5720 = vpop.f32.mrb[0].mxu0
    %v5721 = vadd.f32 %v5368, %v5720
    %5722 = vmatprep.mubr.bf16.mxu0 %v2794
    %5723 = vmatmul.mubr.bf16.gmra.mrb[0].mxu0 %v2793
    %v5724 = vpop.f32.mrb[0].mxu0
    %v5725 = vadd.f32 %v5372, %v5724
    %v5726 = vpop.f32.mrb[0].mxu0
    %v5727 = vadd.f32 %v5374, %v5726
    %v5728 = vpop.f32.mrb[0].mxu0
    %v5729 = vadd.f32 %v5376, %v5728
    %v5730 = vpop.f32.mrb[0].mxu0
    %v5731 = vadd.f32 %v5378, %v5730
    %5732 = vmatprep.mubr.bf16.mxu0 %v2802
    %5733 = vmatmul.mubr.bf16.gmra.mrb[0].mxu0 %v2801
    %v5734 = vpop.f32.mrb[0].mxu0
    %v5735 = vadd.f32 %v5382, %v5734
    %v5736 = vpop.f32.mrb[0].mxu0
    %v5737 = vadd.f32 %v5384, %v5736
    %v5738 = vpop.f32.mrb[0].mxu0
    %v5739 = vadd.f32 %v5386, %v5738
    %v5740 = vpop.f32.mrb[0].mxu0
    %v5741 = vadd.f32 %v5388, %v5740
    %5742 = vmatprep.mubr.bf16.mxu0 %v2810
    %5743 = vmatmul.mubr.bf16.gmra.mrb[0].mxu0 %v2809
    %v5744 = vpop.f32.mrb[0].mxu0
    %v5745 = vadd.f32 %v5392, %v5744
    %v5746 = vpop.f32.mrb[0].mxu0
    %v5747 = vadd.f32 %v5394, %v5746
    %v5748 = vpop.f32.mrb[0].mxu0
    %v5749 = vadd.f32 %v5396, %v5748
    %v5750 = vpop.f32.mrb[0].mxu0
    %v5751 = vadd.f32 %v5398, %v5750
    %5752 = vmatprep.mubr.bf16.mxu0 %v2818
    %5753 = vmatmul.mubr.bf16.gmra.mrb[0].mxu0 %v2817
    %v5754 = vpop.f32.mrb[0].mxu0
    %v5755 = vadd.f32 %v5402, %v5754
    %v5756 = vpop.f32.mrb[0].mxu0
    %v5757 = vadd.f32 %v5404, %v5756
    %v5758 = vpop.f32.mrb[0].mxu0
    %v5759 = vadd.f32 %v5406, %v5758
    %v5760 = vpop.f32.mrb[0].mxu0
    %v5761 = vadd.f32 %v5408, %v5760
    %5762 = vmatprep.mubr.bf16.mxu0 %v2826
    %5763 = vmatmul.mubr.bf16.gmra.mrb[0].mxu0 %v2825
    %v5764 = vpop.f32.mrb[0].mxu0
    %v5765 = vadd.f32 %v5412, %v5764
    %v5766 = vpop.f32.mrb[0].mxu0
    %v5767 = vadd.f32 %v5414, %v5766
    %v5768 = vpop.f32.mrb[0].mxu0
    %v5769 = vadd.f32 %v5416, %v5768
    %v5770 = vpop.f32.mrb[0].mxu0
    %v5771 = vadd.f32 %v5418, %v5770
    %5772 = vmatprep.mubr.bf16.mxu0 %v2834
    %5773 = vmatmul.mubr.bf16.gmra.mrb[0].mxu0 %v2833
    %v5774 = vpop.f32.mrb[0].mxu0
    %v5775 = vadd.f32 %v5422, %v5774
    %v5776 = vpop.f32.mrb[0].mxu0
    %v5777 = vadd.f32 %v5424, %v5776
    %v5778 = vpop.f32.mrb[0].mxu0
    %v5779 = vadd.f32 %v5426, %v5778
    %v5780 = vpop.f32.mrb[0].mxu0
    %v5781 = vadd.f32 %v5428, %v5780
    %5782 = vmatprep.mubr.bf16.mxu0 %v2842
    %5783 = vmatmul.mubr.bf16.gmra.mrb[0].mxu0 %v2841
    %v5784 = vpop.f32.mrb[0].mxu0
    %v5785 = vadd.f32 %v5432, %v5784
    %v5786 = vpop.f32.mrb[0].mxu0
    %v5787 = vadd.f32 %v5434, %v5786
    %v5788 = vpop.f32.mrb[0].mxu0
    %v5789 = vadd.f32 %v5436, %v5788
    %v5790 = vpop.f32.mrb[0].mxu0
    %v5791 = vadd.f32 %v5438, %v5790
    %5792 = vmatprep.mubr.bf16.mxu0 %v2850
    %5793 = vmatmul.mubr.bf16.gmra.mrb[0].mxu0 %v2849
    %v5794 = vpop.f32.mrb[0].mxu0
    %v5795 = vadd.f32 %v5442, %v5794
    %v5796 = vpop.f32.mrb[0].mxu0
    %v5797 = vadd.f32 %v5444, %v5796
    %v5798 = vpop.f32.mrb[0].mxu0
    %v5799 = vadd.f32 %v5446, %v5798
    %v5800 = vpop.f32.mrb[0].mxu0
    %v5801 = vadd.f32 %v5448, %v5800
    %5802 = vmatprep.mubr.bf16.mxu0 %v2858
    %5803 = vmatmul.mubr.bf16.gmra.mrb[0].mxu0 %v2857
    %v5804 = vpop.f32.mrb[0].mxu0
    %v5805 = vadd.f32 %v5452, %v5804
    %v5806 = vpop.f32.mrb[0].mxu0
    %v5807 = vadd.f32 %v5454, %v5806
    %v5808 = vpop.f32.mrb[0].mxu0
    %v5809 = vadd.f32 %v5456, %v5808
    %v5810 = vpop.f32.mrb[0].mxu0
    %v5811 = vadd.f32 %v5458, %v5810
    %5812 = vmatprep.mubr.bf16.mxu0 %v2866
    %5813 = vmatmul.mubr.bf16.gmra.mrb[0].mxu0 %v2865
    %v5814 = vpop.f32.mrb[0].mxu0
    %v5815 = vadd.f32 %v5462, %v5814
    %v5816 = vpop.f32.mrb[0].mxu0
    %v5817 = vadd.f32 %v5464, %v5816
    %v5818 = vpop.f32.mrb[0].mxu0
    %v5819 = vadd.f32 %v5466, %v5818
    %v5820 = vpop.f32.mrb[0].mxu0
    %v5821 = vadd.f32 %v5468, %v5820
    %5822 = vmatprep.mubr.bf16.mxu0 %v2874
    %5823 = vmatmul.mubr.bf16.gmra.mrb[0].mxu0 %v2873
    %v5824 = vpop.f32.mrb[0].mxu0
    %v5825 = vadd.f32 %v5472, %v5824
    %v5826 = vpop.f32.mrb[0].mxu0
    %v5827 = vadd.f32 %v5474, %v5826
    %v5828 = vpop.f32.mrb[0].mxu0
    %v5829 = vadd.f32 %v5476, %v5828
    %v5830 = vpop.f32.mrb[0].mxu0
    %v5831 = vadd.f32 %v5478, %v5830
    %5832 = vmatprep.mubr.bf16.mxu0 %v2882
    %5833 = vmatmul.mubr.bf16.gmra.mrb[0].mxu0 %v2881
    %v5834 = vpop.f32.mrb[0].mxu0
    %v5835 = vadd.f32 %v5482, %v5834
    %v5836 = vpop.f32.mrb[0].mxu0
    %v5837 = vadd.f32 %v5484, %v5836
    %v5838 = vpop.f32.mrb[0].mxu0
    %v5839 = vadd.f32 %v5486, %v5838
    %v5840 = vpop.f32.mrb[0].mxu0
    %v5841 = vadd.f32 %v5488, %v5840
    %5842 = vmatprep.mubr.bf16.mxu0 %v2890
    %5843 = vmatmul.mubr.bf16.gmra.mrb[0].mxu0 %v2889
    %v5844 = vpop.f32.mrb[0].mxu0
    %v5845 = vadd.f32 %v5492, %v5844
    %v5846 = vpop.f32.mrb[0].mxu0
    %v5847 = vadd.f32 %v5494, %v5846
    %v5848 = vpop.f32.mrb[0].mxu0
    %v5849 = vadd.f32 %v5496, %v5848
    %v5850 = vpop.f32.mrb[0].mxu0
    %v5851 = vadd.f32 %v5498, %v5850
    %5852 = vmatprep.mubr.bf16.mxu0 %v2898
    %5853 = vmatmul.mubr.bf16.gmra.mrb[0].mxu0 %v2897
    %v5854 = vpop.f32.mrb[0].mxu0
    %v5855 = vadd.f32 %v5502, %v5854
    %v5856 = vpop.f32.mrb[0].mxu0
    %v5857 = vadd.f32 %v5504, %v5856
    %v5858 = vpop.f32.mrb[0].mxu0
    %v5859 = vadd.f32 %v5506, %v5858
    %v5860 = vpop.f32.mrb[0].mxu0
    %v5861 = vadd.f32 %v5508, %v5860
    %5862 = vmatprep.mubr.bf16.mxu0 %v2906
    %5863 = vmatmul.mubr.bf16.gmra.mrb[0].mxu0 %v2905
    %v5864 = vpop.f32.mrb[0].mxu0
    %v5865 = vadd.f32 %v5512, %v5864
    %v5866 = vpop.f32.mrb[0].mxu0
    %v5867 = vadd.f32 %v5514, %v5866
    %v5868 = vpop.f32.mrb[0].mxu0
    %v5869 = vadd.f32 %v5516, %v5868
    %v5870 = vpop.f32.mrb[0].mxu0
    %v5871 = vadd.f32 %v5518, %v5870
    %5872 = vmatprep.mubr.bf16.mxu0 %v2914
    %5873 = vmatmul.mubr.bf16.gmra.mrb[0].mxu0 %v2913
    %v5874 = vpop.f32.mrb[0].mxu0
    %v5875 = vadd.f32 %v5522, %v5874
    %v5876 = vpop.f32.mrb[0].mxu0
    %v5877 = vadd.f32 %v5524, %v5876
    %v5878 = vpop.f32.mrb[0].mxu0
    %v5879 = vadd.f32 %v5526, %v5878
    %v5880 = vpop.f32.mrb[0].mxu0
    %v5881 = vadd.f32 %v5528, %v5880
    %5882 = vmatprep.mubr.bf16.mxu0 %v2922
    %5883 = vmatmul.mubr.bf16.gmra.mrb[0].mxu0 %v2921
    %v5884 = vpop.f32.mrb[0].mxu0
    %v5885 = vadd.f32 %v5532, %v5884
    %v5886 = vpop.f32.mrb[0].mxu0
    %v5887 = vadd.f32 %v5534, %v5886
    %v5888 = vpop.f32.mrb[0].mxu0
    %v5889 = vadd.f32 %v5536, %v5888
    %v5890 = vpop.f32.mrb[0].mxu0
    %v5891 = vadd.f32 %v5538, %v5890
    %5892 = vdwg.mxu0
    %5893 = vmatprep.subr.bf16.mxu0 %v3972
    %5894 = vmatpush1.bf16.msra.mxu0 %v3971
    %5895 = vmatprep.subr.bf16.mxu0 %v3976
    %5896 = vmatpush1.bf16.msra.mxu0 %v3975
    %5897 = vmatprep.subr.bf16.mxu0 %v3980
    %5898 = vmatpush1.bf16.msra.mxu0 %v3979
    %5899 = vmatprep.subr.bf16.mxu0 %v3984
    %5900 = vmatpush1.bf16.msra.mxu0 %v3983
    %5901 = vmatprep.subr.bf16.mxu0 %v3988
    %5902 = vmatpush1.bf16.msra.mxu0 %v3987
    %5903 = vmatprep.subr.bf16.mxu0 %v3992
    %5904 = vmatpush1.bf16.msra.mxu0 %v3991
    %5905 = vmatprep.subr.bf16.mxu0 %v3996
    %5906 = vmatpush1.bf16.msra.mxu0 %v3995
    %5907 = vmatprep.subr.bf16.mxu0 %v4000
    %5908 = vmatpush1.bf16.msra.mxu0 %v3999
    %5909 = vmatprep.subr.bf16.mxu0 %v4004
    %5910 = vmatpush1.bf16.msra.mxu0 %v4003
    %5911 = vmatprep.subr.bf16.mxu0 %v4008
    %5912 = vmatpush1.bf16.msra.mxu0 %v4007
    %5913 = vmatprep.subr.bf16.mxu0 %v4012
    %5914 = vmatpush1.bf16.msra.mxu0 %v4011
    %5915 = vmatprep.subr.bf16.mxu0 %v4016
    %5916 = vmatpush1.bf16.msra.mxu0 %v4015
    %5917 = vmatprep.subr.bf16.mxu0 %v4020
    %5918 = vmatpush1.bf16.msra.mxu0 %v4019
    %5919 = vmatprep.subr.bf16.mxu0 %v4024
    %5920 = vmatpush1.bf16.msra.mxu0 %v4023
    %5921 = vmatprep.subr.bf16.mxu0 %v4028
    %5922 = vmatpush1.bf16.msra.mxu0 %v4027
    %5923 = vmatprep.subr.bf16.mxu0 %v4032
    %5924 = vmatpush1.bf16.msra.mxu0 %v4031
    %5925 = vmatprep.mubr.bf16.mxu0 %v2668
    %5926 = vmatmul.mubr.bf16.gmra.mrb[0].mxu0 %v2667
    %v5927 = vpop.f32.mrb[0].mxu0
    %v5928 = vadd.f32 %v3192, %v5927
    %v5929 = vpop.f32.mrb[0].mxu0
    %v5930 = vadd.f32 %v3196, %v5929
    %v5931 = vpop.f32.mrb[0].mxu0
    %v5932 = vadd.f32 %v3192, %v5931
    %v5933 = vpop.f32.mrb[0].mxu0
    %v5934 = vadd.f32 %v3196, %v5933
    %5935 = vmatprep.mubr.bf16.mxu0 %v2676
    %5936 = vmatmul.mubr.bf16.gmra.mrb[0].mxu0 %v2675
    %v5937 = vpop.f32.mrb[0].mxu0
    %v5938 = vadd.f32 %v3192, %v5937
    %v5939 = vpop.f32.mrb[0].mxu0
    %v5940 = vadd.f32 %v3196, %v5939
    %v5941 = vpop.f32.mrb[0].mxu0
    %v5942 = vadd.f32 %v3192, %v5941
    %v5943 = vpop.f32.mrb[0].mxu0
    %v5944 = vadd.f32 %v3196, %v5943
    %5945 = vmatprep.mubr.bf16.mxu0 %v2684
    %5946 = vmatmul.mubr.bf16.gmra.mrb[0].mxu0 %v2683
    %v5947 = vpop.f32.mrb[0].mxu0
    %v5948 = vadd.f32 %v3192, %v5947
    %v5949 = vpop.f32.mrb[0].mxu0
    %v5950 = vadd.f32 %v3196, %v5949
    %v5951 = vpop.f32.mrb[0].mxu0
    %v5952 = vadd.f32 %v3192, %v5951
    %v5953 = vpop.f32.mrb[0].mxu0
    %v5954 = vadd.f32 %v3196, %v5953
    %5955 = vmatprep.mubr.bf16.mxu0 %v2692
    %5956 = vmatmul.mubr.bf16.gmra.mrb[0].mxu0 %v2691
    %v5957 = vpop.f32.mrb[0].mxu0
    %v5958 = vadd.f32 %v3192, %v5957
    %v5959 = vpop.f32.mrb[0].mxu0
    %v5960 = vadd.f32 %v3196, %v5959
    %v5961 = vpop.f32.mrb[0].mxu0
    %v5962 = vadd.f32 %v3192, %v5961
    %v5963 = vpop.f32.mrb[0].mxu0
    %v5964 = vadd.f32 %v3196, %v5963
    %5965 = vmatprep.mubr.bf16.mxu0 %v2700
    %5966 = vmatmul.mubr.bf16.gmra.mrb[0].mxu0 %v2699
    %v5967 = vpop.f32.mrb[0].mxu0
    %v5968 = vadd.f32 %v3192, %v5967
    %v5969 = vpop.f32.mrb[0].mxu0
    %v5970 = vadd.f32 %v3196, %v5969
    %v5971 = vpop.f32.mrb[0].mxu0
    %v5972 = vadd.f32 %v3192, %v5971
    %v5973 = vpop.f32.mrb[0].mxu0
    %v5974 = vadd.f32 %v3196, %v5973
    %5975 = vmatprep.mubr.bf16.mxu0 %v2708
    %5976 = vmatmul.mubr.bf16.gmra.mrb[0].mxu0 %v2707
    %v5977 = vpop.f32.mrb[0].mxu0
    %v5978 = vadd.f32 %v3192, %v5977
    %v5979 = vpop.f32.mrb[0].mxu0
    %v5980 = vadd.f32 %v3196, %v5979
    %v5981 = vpop.f32.mrb[0].mxu0
    %v5982 = vadd.f32 %v3192, %v5981
    %v5983 = vpop.f32.mrb[0].mxu0
    %v5984 = vadd.f32 %v3196, %v5983
    %5985 = vmatprep.mubr.bf16.mxu0 %v2716
    %5986 = vmatmul.mubr.bf16.gmra.mrb[0].mxu0 %v2715
    %v5987 = vpop.f32.mrb[0].mxu0
    %v5988 = vadd.f32 %v3192, %v5987
    %v5989 = vpop.f32.mrb[0].mxu0
    %v5990 = vadd.f32 %v3196, %v5989
    %v5991 = vpop.f32.mrb[0].mxu0
    %v5992 = vadd.f32 %v3192, %v5991
    %v5993 = vpop.f32.mrb[0].mxu0
    %v5994 = vadd.f32 %v3196, %v5993
    %5995 = vmatprep.mubr.bf16.mxu0 %v2724
    %5996 = vmatmul.mubr.bf16.gmra.mrb[0].mxu0 %v2723
    %v5997 = vpop.f32.mrb[0].mxu0
    %v5998 = vadd.f32 %v3192, %v5997
    %v5999 = vpop.f32.mrb[0].mxu0
    %v6000 = vadd.f32 %v3196, %v5999
    %v6001 = vpop.f32.mrb[0].mxu0
    %v6002 = vadd.f32 %v3192, %v6001
    %v6003 = vpop.f32.mrb[0].mxu0
    %v6004 = vadd.f32 %v3196, %v6003
    %6005 = vmatprep.mubr.bf16.mxu0 %v2732
    %6006 = vmatmul.mubr.bf16.gmra.mrb[0].mxu0 %v2731
    %v6007 = vpop.f32.mrb[0].mxu0
    %v6008 = vadd.f32 %v3192, %v6007
    %v6009 = vpop.f32.mrb[0].mxu0
    %v6010 = vadd.f32 %v3196, %v6009
    %v6011 = vpop.f32.mrb[0].mxu0
    %v6012 = vadd.f32 %v3192, %v6011
    %v6013 = vpop.f32.mrb[0].mxu0
    %v6014 = vadd.f32 %v3196, %v6013
    %6015 = vmatprep.mubr.bf16.mxu0 %v2740
    %6016 = vmatmul.mubr.bf16.gmra.mrb[0].mxu0 %v2739
    %v6017 = vpop.f32.mrb[0].mxu0
    %v6018 = vadd.f32 %v3192, %v6017
    %v6019 = vpop.f32.mrb[0].mxu0
    %v6020 = vadd.f32 %v3196, %v6019
    %v6021 = vpop.f32.mrb[0].mxu0
    %v6022 = vadd.f32 %v3192, %v6021
    %v6023 = vpop.f32.mrb[0].mxu0
    %v6024 = vadd.f32 %v3196, %v6023
    %6025 = vmatprep.mubr.bf16.mxu0 %v2748
    %6026 = vmatmul.mubr.bf16.gmra.mrb[0].mxu0 %v2747
    %v6027 = vpop.f32.mrb[0].mxu0
    %v6028 = vadd.f32 %v3192, %v6027
    %v6029 = vpop.f32.mrb[0].mxu0
    %v6030 = vadd.f32 %v3196, %v6029
    %v6031 = vpop.f32.mrb[0].mxu0
    %v6032 = vadd.f32 %v3192, %v6031
    %v6033 = vpop.f32.mrb[0].mxu0
    %v6034 = vadd.f32 %v3196, %v6033
    %6035 = vmatprep.mubr.bf16.mxu0 %v2756
    %6036 = vmatmul.mubr.bf16.gmra.mrb[0].mxu0 %v2755
    %v6037 = vpop.f32.mrb[0].mxu0
    %v6038 = vadd.f32 %v3192, %v6037
    %v6039 = vpop.f32.mrb[0].mxu0
    %v6040 = vadd.f32 %v3196, %v6039
    %v6041 = vpop.f32.mrb[0].mxu0
    %v6042 = vadd.f32 %v3192, %v6041
    %v6043 = vpop.f32.mrb[0].mxu0
    %v6044 = vadd.f32 %v3196, %v6043
    %6045 = vmatprep.mubr.bf16.mxu0 %v2764
    %6046 = vmatmul.mubr.bf16.gmra.mrb[0].mxu0 %v2763
    %v6047 = vpop.f32.mrb[0].mxu0
    %v6048 = vadd.f32 %v3192, %v6047
    %v6049 = vpop.f32.mrb[0].mxu0
    %v6050 = vadd.f32 %v3196, %v6049
    %v6051 = vpop.f32.mrb[0].mxu0
    %v6052 = vadd.f32 %v3192, %v6051
    %v6053 = vpop.f32.mrb[0].mxu0
    %v6054 = vadd.f32 %v3196, %v6053
    %6055 = vmatprep.mubr.bf16.mxu0 %v2772
    %6056 = vmatmul.mubr.bf16.gmra.mrb[0].mxu0 %v2771
    %v6057 = vpop.f32.mrb[0].mxu0
    %v6058 = vadd.f32 %v3192, %v6057
    %v6059 = vpop.f32.mrb[0].mxu0
    %v6060 = vadd.f32 %v3196, %v6059
    %v6061 = vpop.f32.mrb[0].mxu0
    %v6062 = vadd.f32 %v3192, %v6061
    %v6063 = vpop.f32.mrb[0].mxu0
    %v6064 = vadd.f32 %v3196, %v6063
    %6065 = vmatprep.mubr.bf16.mxu0 %v2780
    %6066 = vmatmul.mubr.bf16.gmra.mrb[0].mxu0 %v2779
    %v6067 = vpop.f32.mrb[0].mxu0
    %v6068 = vadd.f32 %v3192, %v6067
    %v6069 = vpop.f32.mrb[0].mxu0
    %v6070 = vadd.f32 %v3196, %v6069
    %v6071 = vpop.f32.mrb[0].mxu0
    %v6072 = vadd.f32 %v3192, %v6071
    %v6073 = vpop.f32.mrb[0].mxu0
    %v6074 = vadd.f32 %v3196, %v6073
    %6075 = vmatprep.mubr.bf16.mxu0 %v2788
    %6076 = vmatmul.mubr.bf16.gmra.mrb[0].mxu0 %v2787
    %v6077 = vpop.f32.mrb[0].mxu0
    %v6078 = vadd.f32 %v3192, %v6077
    %v6079 = vpop.f32.mrb[0].mxu0
    %v6080 = vadd.f32 %v3196, %v6079
    %v6081 = vpop.f32.mrb[0].mxu0
    %v6082 = vadd.f32 %v3192, %v6081
    %v6083 = vpop.f32.mrb[0].mxu0
    %v6084 = vadd.f32 %v3196, %v6083
    %6085 = vmatprep.mubr.bf16.mxu0 %v2796
    %6086 = vmatmul.mubr.bf16.gmra.mrb[0].mxu0 %v2795
    %v6087 = vpop.f32.mrb[0].mxu0
    %v6088 = vadd.f32 %v3192, %v6087
    %v6089 = vpop.f32.mrb[0].mxu0
    %v6090 = vadd.f32 %v3196, %v6089
    %v6091 = vpop.f32.mrb[0].mxu0
    %v6092 = vadd.f32 %v3192, %v6091
    %v6093 = vpop.f32.mrb[0].mxu0
    %v6094 = vadd.f32 %v3196, %v6093
    %6095 = vmatprep.mubr.bf16.mxu0 %v2804
    %6096 = vmatmul.mubr.bf16.gmra.mrb[0].mxu0 %v2803
    %v6097 = vpop.f32.mrb[0].mxu0
    %v6098 = vadd.f32 %v3192, %v6097
    %v6099 = vpop.f32.mrb[0].mxu0
    %v6100 = vadd.f32 %v3196, %v6099
    %v6101 = vpop.f32.mrb[0].mxu0
    %v6102 = vadd.f32 %v3192, %v6101
    %v6103 = vpop.f32.mrb[0].mxu0
    %v6104 = vadd.f32 %v3196, %v6103
    %6105 = vmatprep.mubr.bf16.mxu0 %v2812
    %6106 = vmatmul.mubr.bf16.gmra.mrb[0].mxu0 %v2811
    %v6107 = vpop.f32.mrb[0].mxu0
    %v6108 = vadd.f32 %v3192, %v6107
    %v6109 = vpop.f32.mrb[0].mxu0
    %v6110 = vadd.f32 %v3196, %v6109
    %v6111 = vpop.f32.mrb[0].mxu0
    %v6112 = vadd.f32 %v3192, %v6111
    %v6113 = vpop.f32.mrb[0].mxu0
    %v6114 = vadd.f32 %v3196, %v6113
    %6115 = vmatprep.mubr.bf16.mxu0 %v2820
    %6116 = vmatmul.mubr.bf16.gmra.mrb[0].mxu0 %v2819
    %v6117 = vpop.f32.mrb[0].mxu0
    %v6118 = vadd.f32 %v3192, %v6117
    %v6119 = vpop.f32.mrb[0].mxu0
    %v6120 = vadd.f32 %v3196, %v6119
    %v6121 = vpop.f32.mrb[0].mxu0
    %v6122 = vadd.f32 %v3192, %v6121
    %v6123 = vpop.f32.mrb[0].mxu0
    %v6124 = vadd.f32 %v3196, %v6123
    %6125 = vmatprep.mubr.bf16.mxu0 %v2828
    %6126 = vmatmul.mubr.bf16.gmra.mrb[0].mxu0 %v2827
    %v6127 = vpop.f32.mrb[0].mxu0
    %v6128 = vadd.f32 %v3192, %v6127
    %v6129 = vpop.f32.mrb[0].mxu0
    %v6130 = vadd.f32 %v3196, %v6129
    %v6131 = vpop.f32.mrb[0].mxu0
    %v6132 = vadd.f32 %v3192, %v6131
    %v6133 = vpop.f32.mrb[0].mxu0
    %v6134 = vadd.f32 %v3196, %v6133
    %6135 = vmatprep.mubr.bf16.mxu0 %v2836
    %6136 = vmatmul.mubr.bf16.gmra.mrb[0].mxu0 %v2835
    %v6137 = vpop.f32.mrb[0].mxu0
    %v6138 = vadd.f32 %v3192, %v6137
    %v6139 = vpop.f32.mrb[0].mxu0
    %v6140 = vadd.f32 %v3196, %v6139
    %v6141 = vpop.f32.mrb[0].mxu0
    %v6142 = vadd.f32 %v3192, %v6141
    %v6143 = vpop.f32.mrb[0].mxu0
    %v6144 = vadd.f32 %v3196, %v6143
    %6145 = vmatprep.mubr.bf16.mxu0 %v2844
    %6146 = vmatmul.mubr.bf16.gmra.mrb[0].mxu0 %v2843
    %v6147 = vpop.f32.mrb[0].mxu0
    %v6148 = vadd.f32 %v3192, %v6147
    %v6149 = vpop.f32.mrb[0].mxu0
    %v6150 = vadd.f32 %v3196, %v6149
    %v6151 = vpop.f32.mrb[0].mxu0
    %v6152 = vadd.f32 %v3192, %v6151
    %v6153 = vpop.f32.mrb[0].mxu0
    %v6154 = vadd.f32 %v3196, %v6153
    %6155 = vmatprep.mubr.bf16.mxu0 %v2852
    %6156 = vmatmul.mubr.bf16.gmra.mrb[0].mxu0 %v2851
    %v6157 = vpop.f32.mrb[0].mxu0
    %v6158 = vadd.f32 %v3192, %v6157
    %v6159 = vpop.f32.mrb[0].mxu0
    %v6160 = vadd.f32 %v3196, %v6159
    %v6161 = vpop.f32.mrb[0].mxu0
    %v6162 = vadd.f32 %v3192, %v6161
    %v6163 = vpop.f32.mrb[0].mxu0
    %v6164 = vadd.f32 %v3196, %v6163
    %6165 = vmatprep.mubr.bf16.mxu0 %v2860
    %6166 = vmatmul.mubr.bf16.gmra.mrb[0].mxu0 %v2859
    %v6167 = vpop.f32.mrb[0].mxu0
    %v6168 = vadd.f32 %v3192, %v6167
    %v6169 = vpop.f32.mrb[0].mxu0
    %v6170 = vadd.f32 %v3196, %v6169
    %v6171 = vpop.f32.mrb[0].mxu0
    %v6172 = vadd.f32 %v3192, %v6171
    %v6173 = vpop.f32.mrb[0].mxu0
    %v6174 = vadd.f32 %v3196, %v6173
    %6175 = vmatprep.mubr.bf16.mxu0 %v2868
    %6176 = vmatmul.mubr.bf16.gmra.mrb[0].mxu0 %v2867
    %v6177 = vpop.f32.mrb[0].mxu0
    %v6178 = vadd.f32 %v3192, %v6177
    %v6179 = vpop.f32.mrb[0].mxu0
    %v6180 = vadd.f32 %v3196, %v6179
    %v6181 = vpop.f32.mrb[0].mxu0
    %v6182 = vadd.f32 %v3192, %v6181
    %v6183 = vpop.f32.mrb[0].mxu0
    %v6184 = vadd.f32 %v3196, %v6183
    %6185 = vmatprep.mubr.bf16.mxu0 %v2876
    %6186 = vmatmul.mubr.bf16.gmra.mrb[0].mxu0 %v2875
    %v6187 = vpop.f32.mrb[0].mxu0
    %v6188 = vadd.f32 %v3192, %v6187
    %v6189 = vpop.f32.mrb[0].mxu0
    %v6190 = vadd.f32 %v3196, %v6189
    %v6191 = vpop.f32.mrb[0].mxu0
    %v6192 = vadd.f32 %v3192, %v6191
    %v6193 = vpop.f32.mrb[0].mxu0
    %v6194 = vadd.f32 %v3196, %v6193
    %6195 = vmatprep.mubr.bf16.mxu0 %v2884
    %6196 = vmatmul.mubr.bf16.gmra.mrb[0].mxu0 %v2883
    %v6197 = vpop.f32.mrb[0].mxu0
    %v6198 = vadd.f32 %v3192, %v6197
    %v6199 = vpop.f32.mrb[0].mxu0
    %v6200 = vadd.f32 %v3196, %v6199
    %v6201 = vpop.f32.mrb[0].mxu0
    %v6202 = vadd.f32 %v3192, %v6201
    %v6203 = vpop.f32.mrb[0].mxu0
    %v6204 = vadd.f32 %v3196, %v6203
    %6205 = vmatprep.mubr.bf16.mxu0 %v2892
    %6206 = vmatmul.mubr.bf16.gmra.mrb[0].mxu0 %v2891
    %v6207 = vpop.f32.mrb[0].mxu0
    %v6208 = vadd.f32 %v3192, %v6207
    %v6209 = vpop.f32.mrb[0].mxu0
    %v6210 = vadd.f32 %v3196, %v6209
    %v6211 = vpop.f32.mrb[0].mxu0
    %v6212 = vadd.f32 %v3192, %v6211
    %v6213 = vpop.f32.mrb[0].mxu0
    %v6214 = vadd.f32 %v3196, %v6213
    %6215 = vmatprep.mubr.bf16.mxu0 %v2900
    %6216 = vmatmul.mubr.bf16.gmra.mrb[0].mxu0 %v2899
    %v6217 = vpop.f32.mrb[0].mxu0
    %v6218 = vadd.f32 %v3192, %v6217
    %v6219 = vpop.f32.mrb[0].mxu0
    %v6220 = vadd.f32 %v3196, %v6219
    %v6221 = vpop.f32.mrb[0].mxu0
    %v6222 = vadd.f32 %v3192, %v6221
    %v6223 = vpop.f32.mrb[0].mxu0
    %v6224 = vadd.f32 %v3196, %v6223
    %6225 = vmatprep.mubr.bf16.mxu0 %v2908
    %6226 = vmatmul.mubr.bf16.gmra.mrb[0].mxu0 %v2907
    %v6227 = vpop.f32.mrb[0].mxu0
    %v6228 = vadd.f32 %v3192, %v6227
    %v6229 = vpop.f32.mrb[0].mxu0
    %v6230 = vadd.f32 %v3196, %v6229
    %v6231 = vpop.f32.mrb[0].mxu0
    %v6232 = vadd.f32 %v3192, %v6231
    %v6233 = vpop.f32.mrb[0].mxu0
    %v6234 = vadd.f32 %v3196, %v6233
    %6235 = vmatprep.mubr.bf16.mxu0 %v2916
    %6236 = vmatmul.mubr.bf16.gmra.mrb[0].mxu0 %v2915
    %v6237 = vpop.f32.mrb[0].mxu0
    %v6238 = vadd.f32 %v3192, %v6237
    %v6239 = vpop.f32.mrb[0].mxu0
    %v6240 = vadd.f32 %v3196, %v6239
    %v6241 = vpop.f32.mrb[0].mxu0
    %v6242 = vadd.f32 %v3192, %v6241
    %v6243 = vpop.f32.mrb[0].mxu0
    %v6244 = vadd.f32 %v3196, %v6243
    %6245 = vdwg.mxu0
    %6246 = vmatprep.subr.bf16.mxu0 %v4036
    %6247 = vmatpush1.bf16.msra.mxu0 %v4035
    %6248 = vmatprep.subr.bf16.mxu0 %v4040
    %6249 = vmatpush1.bf16.msra.mxu0 %v4039
    %6250 = vmatprep.subr.bf16.mxu0 %v4044
    %6251 = vmatpush1.bf16.msra.mxu0 %v4043
    %6252 = vmatprep.subr.bf16.mxu0 %v4048
    %6253 = vmatpush1.bf16.msra.mxu0 %v4047
    %6254 = vmatprep.subr.bf16.mxu0 %v4052
    %6255 = vmatpush1.bf16.msra.mxu0 %v4051
    %6256 = vmatprep.subr.bf16.mxu0 %v4056
    %6257 = vmatpush1.bf16.msra.mxu0 %v4055
    %6258 = vmatprep.subr.bf16.mxu0 %v4060
    %6259 = vmatpush1.bf16.msra.mxu0 %v4059
    %6260 = vmatprep.subr.bf16.mxu0 %v4064
    %6261 = vmatpush1.bf16.msra.mxu0 %v4063
    %6262 = vmatprep.subr.bf16.mxu0 %v4068
    %6263 = vmatpush1.bf16.msra.mxu0 %v4067
    %6264 = vmatprep.subr.bf16.mxu0 %v4072
    %6265 = vmatpush1.bf16.msra.mxu0 %v4071
    %6266 = vmatprep.subr.bf16.mxu0 %v4076
    %6267 = vmatpush1.bf16.msra.mxu0 %v4075
    %6268 = vmatprep.subr.bf16.mxu0 %v4080
    %6269 = vmatpush1.bf16.msra.mxu0 %v4079
    %6270 = vmatprep.subr.bf16.mxu0 %v4084
    %6271 = vmatpush1.bf16.msra.mxu0 %v4083
    %6272 = vmatprep.subr.bf16.mxu0 %v4088
    %6273 = vmatpush1.bf16.msra.mxu0 %v4087
    %6274 = vmatprep.subr.bf16.mxu0 %v4092
    %6275 = vmatpush1.bf16.msra.mxu0 %v4091
    %6276 = vmatprep.subr.bf16.mxu0 %v4096
    %6277 = vmatpush1.bf16.msra.mxu0 %v4095
    %6278 = vmatprep.mubr.bf16.mxu0 %v2670
    %6279 = vmatmul.mubr.bf16.gmra.mrb[0].mxu0 %v2669
    %v6280 = vpop.f32.mrb[0].mxu0
    %v6281 = vadd.f32 %v5928, %v6280
    %v6282 = vpop.f32.mrb[0].mxu0
    %v6283 = vadd.f32 %v5930, %v6282
    %v6284 = vpop.f32.mrb[0].mxu0
    %v6285 = vadd.f32 %v5932, %v6284
    %v6286 = vpop.f32.mrb[0].mxu0
    %v6287 = vadd.f32 %v5934, %v6286
    %6288 = vmatprep.mubr.bf16.mxu0 %v2678
    %6289 = vmatmul.mubr.bf16.gmra.mrb[0].mxu0 %v2677
    %v6290 = vpop.f32.mrb[0].mxu0
    %v6291 = vadd.f32 %v5938, %v6290
    %v6292 = vpop.f32.mrb[0].mxu0
    %v6293 = vadd.f32 %v5940, %v6292
    %v6294 = vpop.f32.mrb[0].mxu0
    %v6295 = vadd.f32 %v5942, %v6294
    %v6296 = vpop.f32.mrb[0].mxu0
    %v6297 = vadd.f32 %v5944, %v6296
    %6298 = vmatprep.mubr.bf16.mxu0 %v2686
    %6299 = vmatmul.mubr.bf16.gmra.mrb[0].mxu0 %v2685
    %v6300 = vpop.f32.mrb[0].mxu0
    %v6301 = vadd.f32 %v5948, %v6300
    %v6302 = vpop.f32.mrb[0].mxu0
    %v6303 = vadd.f32 %v5950, %v6302
    %v6304 = vpop.f32.mrb[0].mxu0
    %v6305 = vadd.f32 %v5952, %v6304
    %v6306 = vpop.f32.mrb[0].mxu0
    %v6307 = vadd.f32 %v5954, %v6306
    %6308 = vmatprep.mubr.bf16.mxu0 %v2694
    %6309 = vmatmul.mubr.bf16.gmra.mrb[0].mxu0 %v2693
    %v6310 = vpop.f32.mrb[0].mxu0
    %v6311 = vadd.f32 %v5958, %v6310
    %v6312 = vpop.f32.mrb[0].mxu0
    %v6313 = vadd.f32 %v5960, %v6312
    %v6314 = vpop.f32.mrb[0].mxu0
    %v6315 = vadd.f32 %v5962, %v6314
    %v6316 = vpop.f32.mrb[0].mxu0
    %v6317 = vadd.f32 %v5964, %v6316
    %6318 = vmatprep.mubr.bf16.mxu0 %v2702
    %6319 = vmatmul.mubr.bf16.gmra.mrb[0].mxu0 %v2701
    %v6320 = vpop.f32.mrb[0].mxu0
    %v6321 = vadd.f32 %v5968, %v6320
    %v6322 = vpop.f32.mrb[0].mxu0
    %v6323 = vadd.f32 %v5970, %v6322
    %v6324 = vpop.f32.mrb[0].mxu0
    %v6325 = vadd.f32 %v5972, %v6324
    %v6326 = vpop.f32.mrb[0].mxu0
    %v6327 = vadd.f32 %v5974, %v6326
    %6328 = vmatprep.mubr.bf16.mxu0 %v2710
    %6329 = vmatmul.mubr.bf16.gmra.mrb[0].mxu0 %v2709
    %v6330 = vpop.f32.mrb[0].mxu0
    %v6331 = vadd.f32 %v5978, %v6330
    %v6332 = vpop.f32.mrb[0].mxu0
    %v6333 = vadd.f32 %v5980, %v6332
    %v6334 = vpop.f32.mrb[0].mxu0
    %v6335 = vadd.f32 %v5982, %v6334
    %v6336 = vpop.f32.mrb[0].mxu0
    %v6337 = vadd.f32 %v5984, %v6336
    %6338 = vmatprep.mubr.bf16.mxu0 %v2718
    %6339 = vmatmul.mubr.bf16.gmra.mrb[0].mxu0 %v2717
    %v6340 = vpop.f32.mrb[0].mxu0
    %v6341 = vadd.f32 %v5988, %v6340
    %v6342 = vpop.f32.mrb[0].mxu0
    %v6343 = vadd.f32 %v5990, %v6342
    %v6344 = vpop.f32.mrb[0].mxu0
    %v6345 = vadd.f32 %v5992, %v6344
    %v6346 = vpop.f32.mrb[0].mxu0
    %v6347 = vadd.f32 %v5994, %v6346
    %6348 = vmatprep.mubr.bf16.mxu0 %v2726
    %6349 = vmatmul.mubr.bf16.gmra.mrb[0].mxu0 %v2725
    %v6350 = vpop.f32.mrb[0].mxu0
    %v6351 = vadd.f32 %v5998, %v6350
    %v6352 = vpop.f32.mrb[0].mxu0
    %v6353 = vadd.f32 %v6000, %v6352
    %v6354 = vpop.f32.mrb[0].mxu0
    %v6355 = vadd.f32 %v6002, %v6354
    %v6356 = vpop.f32.mrb[0].mxu0
    %v6357 = vadd.f32 %v6004, %v6356
    %6358 = vmatprep.mubr.bf16.mxu0 %v2734
    %6359 = vmatmul.mubr.bf16.gmra.mrb[0].mxu0 %v2733
    %v6360 = vpop.f32.mrb[0].mxu0
    %v6361 = vadd.f32 %v6008, %v6360
    %v6362 = vpop.f32.mrb[0].mxu0
    %v6363 = vadd.f32 %v6010, %v6362
    %v6364 = vpop.f32.mrb[0].mxu0
    %v6365 = vadd.f32 %v6012, %v6364
    %v6366 = vpop.f32.mrb[0].mxu0
    %v6367 = vadd.f32 %v6014, %v6366
    %6368 = vmatprep.mubr.bf16.mxu0 %v2742
    %6369 = vmatmul.mubr.bf16.gmra.mrb[0].mxu0 %v2741
    %v6370 = vpop.f32.mrb[0].mxu0
    %v6371 = vadd.f32 %v6018, %v6370
    %v6372 = vpop.f32.mrb[0].mxu0
    %v6373 = vadd.f32 %v6020, %v6372
    %v6374 = vpop.f32.mrb[0].mxu0
    %v6375 = vadd.f32 %v6022, %v6374
    %v6376 = vpop.f32.mrb[0].mxu0
    %v6377 = vadd.f32 %v6024, %v6376
    %6378 = vmatprep.mubr.bf16.mxu0 %v2750
    %6379 = vmatmul.mubr.bf16.gmra.mrb[0].mxu0 %v2749
    %v6380 = vpop.f32.mrb[0].mxu0
    %v6381 = vadd.f32 %v6028, %v6380
    %v6382 = vpop.f32.mrb[0].mxu0
    %v6383 = vadd.f32 %v6030, %v6382
    %v6384 = vpop.f32.mrb[0].mxu0
    %v6385 = vadd.f32 %v6032, %v6384
    %v6386 = vpop.f32.mrb[0].mxu0
    %v6387 = vadd.f32 %v6034, %v6386
    %6388 = vmatprep.mubr.bf16.mxu0 %v2758
    %6389 = vmatmul.mubr.bf16.gmra.mrb[0].mxu0 %v2757
    %v6390 = vpop.f32.mrb[0].mxu0
    %v6391 = vadd.f32 %v6038, %v6390
    %v6392 = vpop.f32.mrb[0].mxu0
    %v6393 = vadd.f32 %v6040, %v6392
    %v6394 = vpop.f32.mrb[0].mxu0
    %v6395 = vadd.f32 %v6042, %v6394
    %v6396 = vpop.f32.mrb[0].mxu0
    %v6397 = vadd.f32 %v6044, %v6396
    %6398 = vmatprep.mubr.bf16.mxu0 %v2766
    %6399 = vmatmul.mubr.bf16.gmra.mrb[0].mxu0 %v2765
    %v6400 = vpop.f32.mrb[0].mxu0
    %v6401 = vadd.f32 %v6048, %v6400
    %v6402 = vpop.f32.mrb[0].mxu0
    %v6403 = vadd.f32 %v6050, %v6402
    %v6404 = vpop.f32.mrb[0].mxu0
    %v6405 = vadd.f32 %v6052, %v6404
    %v6406 = vpop.f32.mrb[0].mxu0
    %v6407 = vadd.f32 %v6054, %v6406
    %6408 = vmatprep.mubr.bf16.mxu0 %v2774
    %6409 = vmatmul.mubr.bf16.gmra.mrb[0].mxu0 %v2773
    %v6410 = vpop.f32.mrb[0].mxu0
    %v6411 = vadd.f32 %v6058, %v6410
    %v6412 = vpop.f32.mrb[0].mxu0
    %v6413 = vadd.f32 %v6060, %v6412
    %v6414 = vpop.f32.mrb[0].mxu0
    %v6415 = vadd.f32 %v6062, %v6414
    %v6416 = vpop.f32.mrb[0].mxu0
    %v6417 = vadd.f32 %v6064, %v6416
    %6418 = vmatprep.mubr.bf16.mxu0 %v2782
    %6419 = vmatmul.mubr.bf16.gmra.mrb[0].mxu0 %v2781
    %v6420 = vpop.f32.mrb[0].mxu0
    %v6421 = vadd.f32 %v6068, %v6420
    %v6422 = vpop.f32.mrb[0].mxu0
    %v6423 = vadd.f32 %v6070, %v6422
    %v6424 = vpop.f32.mrb[0].mxu0
    %v6425 = vadd.f32 %v6072, %v6424
    %v6426 = vpop.f32.mrb[0].mxu0
    %v6427 = vadd.f32 %v6074, %v6426
    %6428 = vmatprep.mubr.bf16.mxu0 %v2790
    %6429 = vmatmul.mubr.bf16.gmra.mrb[0].mxu0 %v2789
    %v6430 = vpop.f32.mrb[0].mxu0
    %v6431 = vadd.f32 %v6078, %v6430
    %v6432 = vpop.f32.mrb[0].mxu0
    %v6433 = vadd.f32 %v6080, %v6432
    %v6434 = vpop.f32.mrb[0].mxu0
    %v6435 = vadd.f32 %v6082, %v6434
    %v6436 = vpop.f32.mrb[0].mxu0
    %v6437 = vadd.f32 %v6084, %v6436
    %6438 = vmatprep.mubr.bf16.mxu0 %v2798
    %6439 = vmatmul.mubr.bf16.gmra.mrb[0].mxu0 %v2797
    %v6440 = vpop.f32.mrb[0].mxu0
    %v6441 = vadd.f32 %v6088, %v6440
    %v6442 = vpop.f32.mrb[0].mxu0
    %v6443 = vadd.f32 %v6090, %v6442
    %v6444 = vpop.f32.mrb[0].mxu0
    %v6445 = vadd.f32 %v6092, %v6444
    %v6446 = vpop.f32.mrb[0].mxu0
    %v6447 = vadd.f32 %v6094, %v6446
    %6448 = vmatprep.mubr.bf16.mxu0 %v2806
    %6449 = vmatmul.mubr.bf16.gmra.mrb[0].mxu0 %v2805
    %v6450 = vpop.f32.mrb[0].mxu0
    %v6451 = vadd.f32 %v6098, %v6450
    %v6452 = vpop.f32.mrb[0].mxu0
    %v6453 = vadd.f32 %v6100, %v6452
    %v6454 = vpop.f32.mrb[0].mxu0
    %v6455 = vadd.f32 %v6102, %v6454
    %v6456 = vpop.f32.mrb[0].mxu0
    %v6457 = vadd.f32 %v6104, %v6456
    %6458 = vmatprep.mubr.bf16.mxu0 %v2814
    %6459 = vmatmul.mubr.bf16.gmra.mrb[0].mxu0 %v2813
    %v6460 = vpop.f32.mrb[0].mxu0
    %v6461 = vadd.f32 %v6108, %v6460
    %v6462 = vpop.f32.mrb[0].mxu0
    %v6463 = vadd.f32 %v6110, %v6462
    %v6464 = vpop.f32.mrb[0].mxu0
    %v6465 = vadd.f32 %v6112, %v6464
    %v6466 = vpop.f32.mrb[0].mxu0
    %v6467 = vadd.f32 %v6114, %v6466
    %6468 = vmatprep.mubr.bf16.mxu0 %v2822
    %6469 = vmatmul.mubr.bf16.gmra.mrb[0].mxu0 %v2821
    %v6470 = vpop.f32.mrb[0].mxu0
    %v6471 = vadd.f32 %v6118, %v6470
    %v6472 = vpop.f32.mrb[0].mxu0
    %v6473 = vadd.f32 %v6120, %v6472
    %v6474 = vpop.f32.mrb[0].mxu0
    %v6475 = vadd.f32 %v6122, %v6474
    %v6476 = vpop.f32.mrb[0].mxu0
    %v6477 = vadd.f32 %v6124, %v6476
    %6478 = vmatprep.mubr.bf16.mxu0 %v2830
    %6479 = vmatmul.mubr.bf16.gmra.mrb[0].mxu0 %v2829
    %v6480 = vpop.f32.mrb[0].mxu0
    %v6481 = vadd.f32 %v6128, %v6480
    %v6482 = vpop.f32.mrb[0].mxu0
    %v6483 = vadd.f32 %v6130, %v6482
    %v6484 = vpop.f32.mrb[0].mxu0
    %v6485 = vadd.f32 %v6132, %v6484
    %v6486 = vpop.f32.mrb[0].mxu0
    %v6487 = vadd.f32 %v6134, %v6486
    %6488 = vmatprep.mubr.bf16.mxu0 %v2838
    %6489 = vmatmul.mubr.bf16.gmra.mrb[0].mxu0 %v2837
    %v6490 = vpop.f32.mrb[0].mxu0
    %v6491 = vadd.f32 %v6138, %v6490
    %v6492 = vpop.f32.mrb[0].mxu0
    %v6493 = vadd.f32 %v6140, %v6492
    %v6494 = vpop.f32.mrb[0].mxu0
    %v6495 = vadd.f32 %v6142, %v6494
    %v6496 = vpop.f32.mrb[0].mxu0
    %v6497 = vadd.f32 %v6144, %v6496
    %6498 = vmatprep.mubr.bf16.mxu0 %v2846
    %6499 = vmatmul.mubr.bf16.gmra.mrb[0].mxu0 %v2845
    %v6500 = vpop.f32.mrb[0].mxu0
    %v6501 = vadd.f32 %v6148, %v6500
    %v6502 = vpop.f32.mrb[0].mxu0
    %v6503 = vadd.f32 %v6150, %v6502
    %v6504 = vpop.f32.mrb[0].mxu0
    %v6505 = vadd.f32 %v6152, %v6504
    %v6506 = vpop.f32.mrb[0].mxu0
    %v6507 = vadd.f32 %v6154, %v6506
    %6508 = vmatprep.mubr.bf16.mxu0 %v2854
    %6509 = vmatmul.mubr.bf16.gmra.mrb[0].mxu0 %v2853
    %v6510 = vpop.f32.mrb[0].mxu0
    %v6511 = vadd.f32 %v6158, %v6510
    %v6512 = vpop.f32.mrb[0].mxu0
    %v6513 = vadd.f32 %v6160, %v6512
    %v6514 = vpop.f32.mrb[0].mxu0
    %v6515 = vadd.f32 %v6162, %v6514
    %v6516 = vpop.f32.mrb[0].mxu0
    %v6517 = vadd.f32 %v6164, %v6516
    %6518 = vmatprep.mubr.bf16.mxu0 %v2862
    %6519 = vmatmul.mubr.bf16.gmra.mrb[0].mxu0 %v2861
    %v6520 = vpop.f32.mrb[0].mxu0
    %v6521 = vadd.f32 %v6168, %v6520
    %v6522 = vpop.f32.mrb[0].mxu0
    %v6523 = vadd.f32 %v6170, %v6522
    %v6524 = vpop.f32.mrb[0].mxu0
    %v6525 = vadd.f32 %v6172, %v6524
    %v6526 = vpop.f32.mrb[0].mxu0
    %v6527 = vadd.f32 %v6174, %v6526
    %6528 = vmatprep.mubr.bf16.mxu0 %v2870
    %6529 = vmatmul.mubr.bf16.gmra.mrb[0].mxu0 %v2869
    %v6530 = vpop.f32.mrb[0].mxu0
    %v6531 = vadd.f32 %v6178, %v6530
    %v6532 = vpop.f32.mrb[0].mxu0
    %v6533 = vadd.f32 %v6180, %v6532
    %v6534 = vpop.f32.mrb[0].mxu0
    %v6535 = vadd.f32 %v6182, %v6534
    %v6536 = vpop.f32.mrb[0].mxu0
    %v6537 = vadd.f32 %v6184, %v6536
    %6538 = vmatprep.mubr.bf16.mxu0 %v2878
    %6539 = vmatmul.mubr.bf16.gmra.mrb[0].mxu0 %v2877
    %v6540 = vpop.f32.mrb[0].mxu0
    %v6541 = vadd.f32 %v6188, %v6540
    %v6542 = vpop.f32.mrb[0].mxu0
    %v6543 = vadd.f32 %v6190, %v6542
    %v6544 = vpop.f32.mrb[0].mxu0
    %v6545 = vadd.f32 %v6192, %v6544
    %v6546 = vpop.f32.mrb[0].mxu0
    %v6547 = vadd.f32 %v6194, %v6546
    %6548 = vmatprep.mubr.bf16.mxu0 %v2886
    %6549 = vmatmul.mubr.bf16.gmra.mrb[0].mxu0 %v2885
    %v6550 = vpop.f32.mrb[0].mxu0
    %v6551 = vadd.f32 %v6198, %v6550
    %v6552 = vpop.f32.mrb[0].mxu0
    %v6553 = vadd.f32 %v6200, %v6552
    %v6554 = vpop.f32.mrb[0].mxu0
    %v6555 = vadd.f32 %v6202, %v6554
    %v6556 = vpop.f32.mrb[0].mxu0
    %v6557 = vadd.f32 %v6204, %v6556
    %6558 = vmatprep.mubr.bf16.mxu0 %v2894
    %6559 = vmatmul.mubr.bf16.gmra.mrb[0].mxu0 %v2893
    %v6560 = vpop.f32.mrb[0].mxu0
    %v6561 = vadd.f32 %v6208, %v6560
    %v6562 = vpop.f32.mrb[0].mxu0
    %v6563 = vadd.f32 %v6210, %v6562
    %v6564 = vpop.f32.mrb[0].mxu0
    %v6565 = vadd.f32 %v6212, %v6564
    %v6566 = vpop.f32.mrb[0].mxu0
    %v6567 = vadd.f32 %v6214, %v6566
    %6568 = vmatprep.mubr.bf16.mxu0 %v2902
    %6569 = vmatmul.mubr.bf16.gmra.mrb[0].mxu0 %v2901
    %v6570 = vpop.f32.mrb[0].mxu0
    %v6571 = vadd.f32 %v6218, %v6570
    %v6572 = vpop.f32.mrb[0].mxu0
    %v6573 = vadd.f32 %v6220, %v6572
    %v6574 = vpop.f32.mrb[0].mxu0
    %v6575 = vadd.f32 %v6222, %v6574
    %v6576 = vpop.f32.mrb[0].mxu0
    %v6577 = vadd.f32 %v6224, %v6576
    %6578 = vmatprep.mubr.bf16.mxu0 %v2910
    %6579 = vmatmul.mubr.bf16.gmra.mrb[0].mxu0 %v2909
    %v6580 = vpop.f32.mrb[0].mxu0
    %v6581 = vadd.f32 %v6228, %v6580
    %v6582 = vpop.f32.mrb[0].mxu0
    %v6583 = vadd.f32 %v6230, %v6582
    %v6584 = vpop.f32.mrb[0].mxu0
    %v6585 = vadd.f32 %v6232, %v6584
    %v6586 = vpop.f32.mrb[0].mxu0
    %v6587 = vadd.f32 %v6234, %v6586
    %6588 = vmatprep.mubr.bf16.mxu0 %v2918
    %6589 = vmatmul.mubr.bf16.gmra.mrb[0].mxu0 %v2917
    %v6590 = vpop.f32.mrb[0].mxu0
    %v6591 = vadd.f32 %v6238, %v6590
    %v6592 = vpop.f32.mrb[0].mxu0
    %v6593 = vadd.f32 %v6240, %v6592
    %v6594 = vpop.f32.mrb[0].mxu0
    %v6595 = vadd.f32 %v6242, %v6594
    %v6596 = vpop.f32.mrb[0].mxu0
    %v6597 = vadd.f32 %v6244, %v6596
    %6598 = vdwg.mxu0
    %6599 = vmatprep.subr.bf16.mxu0 %v4100
    %6600 = vmatpush1.bf16.msra.mxu0 %v4099
    %6601 = vmatprep.subr.bf16.mxu0 %v4104
    %6602 = vmatpush1.bf16.msra.mxu0 %v4103
    %6603 = vmatprep.subr.bf16.mxu0 %v4108
    %6604 = vmatpush1.bf16.msra.mxu0 %v4107
    %6605 = vmatprep.subr.bf16.mxu0 %v4112
    %6606 = vmatpush1.bf16.msra.mxu0 %v4111
    %6607 = vmatprep.subr.bf16.mxu0 %v4116
    %6608 = vmatpush1.bf16.msra.mxu0 %v4115
    %6609 = vmatprep.subr.bf16.mxu0 %v4120
    %6610 = vmatpush1.bf16.msra.mxu0 %v4119
    %6611 = vmatprep.subr.bf16.mxu0 %v4124
    %6612 = vmatpush1.bf16.msra.mxu0 %v4123
    %6613 = vmatprep.subr.bf16.mxu0 %v4128
    %6614 = vmatpush1.bf16.msra.mxu0 %v4127
    %6615 = vmatprep.subr.bf16.mxu0 %v4132
    %6616 = vmatpush1.bf16.msra.mxu0 %v4131
    %6617 = vmatprep.subr.bf16.mxu0 %v4136
    %6618 = vmatpush1.bf16.msra.mxu0 %v4135
    %6619 = vmatprep.subr.bf16.mxu0 %v4140
    %6620 = vmatpush1.bf16.msra.mxu0 %v4139
    %6621 = vmatprep.subr.bf16.mxu0 %v4144
    %6622 = vmatpush1.bf16.msra.mxu0 %v4143
    %6623 = vmatprep.subr.bf16.mxu0 %v4148
    %6624 = vmatpush1.bf16.msra.mxu0 %v4147
    %6625 = vmatprep.subr.bf16.mxu0 %v4152
    %6626 = vmatpush1.bf16.msra.mxu0 %v4151
    %6627 = vmatprep.subr.bf16.mxu0 %v4156
    %6628 = vmatpush1.bf16.msra.mxu0 %v4155
    %6629 = vmatprep.subr.bf16.mxu0 %v4160
    %6630 = vmatpush1.bf16.msra.mxu0 %v4159
    %6631 = vmatprep.mubr.bf16.mxu0 %v2672
    %6632 = vmatmul.mubr.bf16.gmra.mrb[0].mxu0 %v2671
    %v6633 = vpop.f32.mrb[0].mxu0
    %v6634 = vadd.f32 %v6281, %v6633
    %v6635 = vpop.f32.mrb[0].mxu0
    %v6636 = vadd.f32 %v6283, %v6635
    %v6637 = vpop.f32.mrb[0].mxu0
    %v6638 = vadd.f32 %v6285, %v6637
    %v6639 = vpop.f32.mrb[0].mxu0
    %v6640 = vadd.f32 %v6287, %v6639
    %6641 = vmatprep.mubr.bf16.mxu0 %v2680
    %6642 = vmatmul.mubr.bf16.gmra.mrb[0].mxu0 %v2679
    %v6643 = vpop.f32.mrb[0].mxu0
    %v6644 = vadd.f32 %v6291, %v6643
    %v6645 = vpop.f32.mrb[0].mxu0
    %v6646 = vadd.f32 %v6293, %v6645
    %v6647 = vpop.f32.mrb[0].mxu0
    %v6648 = vadd.f32 %v6295, %v6647
    %v6649 = vpop.f32.mrb[0].mxu0
    %v6650 = vadd.f32 %v6297, %v6649
    %6651 = vmatprep.mubr.bf16.mxu0 %v2688
    %6652 = vmatmul.mubr.bf16.gmra.mrb[0].mxu0 %v2687
    %v6653 = vpop.f32.mrb[0].mxu0
    %v6654 = vadd.f32 %v6301, %v6653
    %v6655 = vpop.f32.mrb[0].mxu0
    %v6656 = vadd.f32 %v6303, %v6655
    %v6657 = vpop.f32.mrb[0].mxu0
    %v6658 = vadd.f32 %v6305, %v6657
    %v6659 = vpop.f32.mrb[0].mxu0
    %v6660 = vadd.f32 %v6307, %v6659
    %6661 = vmatprep.mubr.bf16.mxu0 %v2696
    %6662 = vmatmul.mubr.bf16.gmra.mrb[0].mxu0 %v2695
    %v6663 = vpop.f32.mrb[0].mxu0
    %v6664 = vadd.f32 %v6311, %v6663
    %v6665 = vpop.f32.mrb[0].mxu0
    %v6666 = vadd.f32 %v6313, %v6665
    %v6667 = vpop.f32.mrb[0].mxu0
    %v6668 = vadd.f32 %v6315, %v6667
    %v6669 = vpop.f32.mrb[0].mxu0
    %v6670 = vadd.f32 %v6317, %v6669
    %6671 = vmatprep.mubr.bf16.mxu0 %v2704
    %6672 = vmatmul.mubr.bf16.gmra.mrb[0].mxu0 %v2703
    %v6673 = vpop.f32.mrb[0].mxu0
    %v6674 = vadd.f32 %v6321, %v6673
    %v6675 = vpop.f32.mrb[0].mxu0
    %v6676 = vadd.f32 %v6323, %v6675
    %v6677 = vpop.f32.mrb[0].mxu0
    %v6678 = vadd.f32 %v6325, %v6677
    %v6679 = vpop.f32.mrb[0].mxu0
    %v6680 = vadd.f32 %v6327, %v6679
    %6681 = vmatprep.mubr.bf16.mxu0 %v2712
    %6682 = vmatmul.mubr.bf16.gmra.mrb[0].mxu0 %v2711
    %v6683 = vpop.f32.mrb[0].mxu0
    %v6684 = vadd.f32 %v6331, %v6683
    %v6685 = vpop.f32.mrb[0].mxu0
    %v6686 = vadd.f32 %v6333, %v6685
    %v6687 = vpop.f32.mrb[0].mxu0
    %v6688 = vadd.f32 %v6335, %v6687
    %v6689 = vpop.f32.mrb[0].mxu0
    %v6690 = vadd.f32 %v6337, %v6689
    %6691 = vmatprep.mubr.bf16.mxu0 %v2720
    %6692 = vmatmul.mubr.bf16.gmra.mrb[0].mxu0 %v2719
    %v6693 = vpop.f32.mrb[0].mxu0
    %v6694 = vadd.f32 %v6341, %v6693
    %v6695 = vpop.f32.mrb[0].mxu0
    %v6696 = vadd.f32 %v6343, %v6695
    %v6697 = vpop.f32.mrb[0].mxu0
    %v6698 = vadd.f32 %v6345, %v6697
    %v6699 = vpop.f32.mrb[0].mxu0
    %v6700 = vadd.f32 %v6347, %v6699
    %6701 = vmatprep.mubr.bf16.mxu0 %v2728
    %6702 = vmatmul.mubr.bf16.gmra.mrb[0].mxu0 %v2727
    %v6703 = vpop.f32.mrb[0].mxu0
    %v6704 = vadd.f32 %v6351, %v6703
    %v6705 = vpop.f32.mrb[0].mxu0
    %v6706 = vadd.f32 %v6353, %v6705
    %v6707 = vpop.f32.mrb[0].mxu0
    %v6708 = vadd.f32 %v6355, %v6707
    %v6709 = vpop.f32.mrb[0].mxu0
    %v6710 = vadd.f32 %v6357, %v6709
    %6711 = vmatprep.mubr.bf16.mxu0 %v2736
    %6712 = vmatmul.mubr.bf16.gmra.mrb[0].mxu0 %v2735
    %v6713 = vpop.f32.mrb[0].mxu0
    %v6714 = vadd.f32 %v6361, %v6713
    %v6715 = vpop.f32.mrb[0].mxu0
    %v6716 = vadd.f32 %v6363, %v6715
    %v6717 = vpop.f32.mrb[0].mxu0
    %v6718 = vadd.f32 %v6365, %v6717
    %v6719 = vpop.f32.mrb[0].mxu0
    %v6720 = vadd.f32 %v6367, %v6719
    %6721 = vmatprep.mubr.bf16.mxu0 %v2744
    %6722 = vmatmul.mubr.bf16.gmra.mrb[0].mxu0 %v2743
    %v6723 = vpop.f32.mrb[0].mxu0
    %v6724 = vadd.f32 %v6371, %v6723
    %v6725 = vpop.f32.mrb[0].mxu0
    %v6726 = vadd.f32 %v6373, %v6725
    %v6727 = vpop.f32.mrb[0].mxu0
    %v6728 = vadd.f32 %v6375, %v6727
    %v6729 = vpop.f32.mrb[0].mxu0
    %v6730 = vadd.f32 %v6377, %v6729
    %6731 = vmatprep.mubr.bf16.mxu0 %v2752
    %6732 = vmatmul.mubr.bf16.gmra.mrb[0].mxu0 %v2751
    %v6733 = vpop.f32.mrb[0].mxu0
    %v6734 = vadd.f32 %v6381, %v6733
    %v6735 = vpop.f32.mrb[0].mxu0
    %v6736 = vadd.f32 %v6383, %v6735
    %v6737 = vpop.f32.mrb[0].mxu0
    %v6738 = vadd.f32 %v6385, %v6737
    %v6739 = vpop.f32.mrb[0].mxu0
    %v6740 = vadd.f32 %v6387, %v6739
    %6741 = vmatprep.mubr.bf16.mxu0 %v2760
    %6742 = vmatmul.mubr.bf16.gmra.mrb[0].mxu0 %v2759
    %v6743 = vpop.f32.mrb[0].mxu0
    %v6744 = vadd.f32 %v6391, %v6743
    %v6745 = vpop.f32.mrb[0].mxu0
    %v6746 = vadd.f32 %v6393, %v6745
    %v6747 = vpop.f32.mrb[0].mxu0
    %v6748 = vadd.f32 %v6395, %v6747
    %v6749 = vpop.f32.mrb[0].mxu0
    %v6750 = vadd.f32 %v6397, %v6749
    %6751 = vmatprep.mubr.bf16.mxu0 %v2768
    %6752 = vmatmul.mubr.bf16.gmra.mrb[0].mxu0 %v2767
    %v6753 = vpop.f32.mrb[0].mxu0
    %v6754 = vadd.f32 %v6401, %v6753
    %v6755 = vpop.f32.mrb[0].mxu0
    %v6756 = vadd.f32 %v6403, %v6755
    %v6757 = vpop.f32.mrb[0].mxu0
    %v6758 = vadd.f32 %v6405, %v6757
    %v6759 = vpop.f32.mrb[0].mxu0
    %v6760 = vadd.f32 %v6407, %v6759
    %6761 = vmatprep.mubr.bf16.mxu0 %v2776
    %6762 = vmatmul.mubr.bf16.gmra.mrb[0].mxu0 %v2775
    %v6763 = vpop.f32.mrb[0].mxu0
    %v6764 = vadd.f32 %v6411, %v6763
    %v6765 = vpop.f32.mrb[0].mxu0
    %v6766 = vadd.f32 %v6413, %v6765
    %v6767 = vpop.f32.mrb[0].mxu0
    %v6768 = vadd.f32 %v6415, %v6767
    %v6769 = vpop.f32.mrb[0].mxu0
    %v6770 = vadd.f32 %v6417, %v6769
    %6771 = vmatprep.mubr.bf16.mxu0 %v2784
    %6772 = vmatmul.mubr.bf16.gmra.mrb[0].mxu0 %v2783
    %v6773 = vpop.f32.mrb[0].mxu0
    %v6774 = vadd.f32 %v6421, %v6773
    %v6775 = vpop.f32.mrb[0].mxu0
    %v6776 = vadd.f32 %v6423, %v6775
    %v6777 = vpop.f32.mrb[0].mxu0
    %v6778 = vadd.f32 %v6425, %v6777
    %v6779 = vpop.f32.mrb[0].mxu0
    %v6780 = vadd.f32 %v6427, %v6779
    %6781 = vmatprep.mubr.bf16.mxu0 %v2792
    %6782 = vmatmul.mubr.bf16.gmra.mrb[0].mxu0 %v2791
    %v6783 = vpop.f32.mrb[0].mxu0
    %v6784 = vadd.f32 %v6431, %v6783
    %v6785 = vpop.f32.mrb[0].mxu0
    %v6786 = vadd.f32 %v6433, %v6785
    %v6787 = vpop.f32.mrb[0].mxu0
    %v6788 = vadd.f32 %v6435, %v6787
    %v6789 = vpop.f32.mrb[0].mxu0
    %v6790 = vadd.f32 %v6437, %v6789
    %6791 = vmatprep.mubr.bf16.mxu0 %v2800
    %6792 = vmatmul.mubr.bf16.gmra.mrb[0].mxu0 %v2799
    %v6793 = vpop.f32.mrb[0].mxu0
    %v6794 = vadd.f32 %v6441, %v6793
    %v6795 = vpop.f32.mrb[0].mxu0
    %v6796 = vadd.f32 %v6443, %v6795
    %v6797 = vpop.f32.mrb[0].mxu0
    %v6798 = vadd.f32 %v6445, %v6797
    %v6799 = vpop.f32.mrb[0].mxu0
    %v6800 = vadd.f32 %v6447, %v6799
    %6801 = vmatprep.mubr.bf16.mxu0 %v2808
    %6802 = vmatmul.mubr.bf16.gmra.mrb[0].mxu0 %v2807
    %v6803 = vpop.f32.mrb[0].mxu0
    %v6804 = vadd.f32 %v6451, %v6803
    %v6805 = vpop.f32.mrb[0].mxu0
    %v6806 = vadd.f32 %v6453, %v6805
    %v6807 = vpop.f32.mrb[0].mxu0
    %v6808 = vadd.f32 %v6455, %v6807
    %v6809 = vpop.f32.mrb[0].mxu0
    %v6810 = vadd.f32 %v6457, %v6809
    %6811 = vmatprep.mubr.bf16.mxu0 %v2816
    %6812 = vmatmul.mubr.bf16.gmra.mrb[0].mxu0 %v2815
    %v6813 = vpop.f32.mrb[0].mxu0
    %v6814 = vadd.f32 %v6461, %v6813
    %v6815 = vpop.f32.mrb[0].mxu0
    %v6816 = vadd.f32 %v6463, %v6815
    %v6817 = vpop.f32.mrb[0].mxu0
    %v6818 = vadd.f32 %v6465, %v6817
    %v6819 = vpop.f32.mrb[0].mxu0
    %v6820 = vadd.f32 %v6467, %v6819
    %6821 = vmatprep.mubr.bf16.mxu0 %v2824
    %6822 = vmatmul.mubr.bf16.gmra.mrb[0].mxu0 %v2823
    %v6823 = vpop.f32.mrb[0].mxu0
    %v6824 = vadd.f32 %v6471, %v6823
    %v6825 = vpop.f32.mrb[0].mxu0
    %v6826 = vadd.f32 %v6473, %v6825
    %v6827 = vpop.f32.mrb[0].mxu0
    %v6828 = vadd.f32 %v6475, %v6827
    %v6829 = vpop.f32.mrb[0].mxu0
    %v6830 = vadd.f32 %v6477, %v6829
    %6831 = vmatprep.mubr.bf16.mxu0 %v2832
    %6832 = vmatmul.mubr.bf16.gmra.mrb[0].mxu0 %v2831
    %v6833 = vpop.f32.mrb[0].mxu0
    %v6834 = vadd.f32 %v6481, %v6833
    %v6835 = vpop.f32.mrb[0].mxu0
    %v6836 = vadd.f32 %v6483, %v6835
    %v6837 = vpop.f32.mrb[0].mxu0
    %v6838 = vadd.f32 %v6485, %v6837
    %v6839 = vpop.f32.mrb[0].mxu0
    %v6840 = vadd.f32 %v6487, %v6839
    %6841 = vmatprep.mubr.bf16.mxu0 %v2840
    %6842 = vmatmul.mubr.bf16.gmra.mrb[0].mxu0 %v2839
    %v6843 = vpop.f32.mrb[0].mxu0
    %v6844 = vadd.f32 %v6491, %v6843
    %v6845 = vpop.f32.mrb[0].mxu0
    %v6846 = vadd.f32 %v6493, %v6845
    %v6847 = vpop.f32.mrb[0].mxu0
    %v6848 = vadd.f32 %v6495, %v6847
    %v6849 = vpop.f32.mrb[0].mxu0
    %v6850 = vadd.f32 %v6497, %v6849
    %6851 = vmatprep.mubr.bf16.mxu0 %v2848
    %6852 = vmatmul.mubr.bf16.gmra.mrb[0].mxu0 %v2847
    %v6853 = vpop.f32.mrb[0].mxu0
    %v6854 = vadd.f32 %v6501, %v6853
    %v6855 = vpop.f32.mrb[0].mxu0
    %v6856 = vadd.f32 %v6503, %v6855
    %v6857 = vpop.f32.mrb[0].mxu0
    %v6858 = vadd.f32 %v6505, %v6857
    %v6859 = vpop.f32.mrb[0].mxu0
    %v6860 = vadd.f32 %v6507, %v6859
    %6861 = vmatprep.mubr.bf16.mxu0 %v2856
    %6862 = vmatmul.mubr.bf16.gmra.mrb[0].mxu0 %v2855
    %v6863 = vpop.f32.mrb[0].mxu0
    %v6864 = vadd.f32 %v6511, %v6863
    %v6865 = vpop.f32.mrb[0].mxu0
    %v6866 = vadd.f32 %v6513, %v6865
    %v6867 = vpop.f32.mrb[0].mxu0
    %v6868 = vadd.f32 %v6515, %v6867
    %v6869 = vpop.f32.mrb[0].mxu0
    %v6870 = vadd.f32 %v6517, %v6869
    %6871 = vmatprep.mubr.bf16.mxu0 %v2864
    %6872 = vmatmul.mubr.bf16.gmra.mrb[0].mxu0 %v2863
    %v6873 = vpop.f32.mrb[0].mxu0
    %v6874 = vadd.f32 %v6521, %v6873
    %v6875 = vpop.f32.mrb[0].mxu0
    %v6876 = vadd.f32 %v6523, %v6875
    %v6877 = vpop.f32.mrb[0].mxu0
    %v6878 = vadd.f32 %v6525, %v6877
    %v6879 = vpop.f32.mrb[0].mxu0
    %v6880 = vadd.f32 %v6527, %v6879
    %6881 = vmatprep.mubr.bf16.mxu0 %v2872
    %6882 = vmatmul.mubr.bf16.gmra.mrb[0].mxu0 %v2871
    %v6883 = vpop.f32.mrb[0].mxu0
    %v6884 = vadd.f32 %v6531, %v6883
    %v6885 = vpop.f32.mrb[0].mxu0
    %v6886 = vadd.f32 %v6533, %v6885
    %v6887 = vpop.f32.mrb[0].mxu0
    %v6888 = vadd.f32 %v6535, %v6887
    %v6889 = vpop.f32.mrb[0].mxu0
    %v6890 = vadd.f32 %v6537, %v6889
    %6891 = vmatprep.mubr.bf16.mxu0 %v2880
    %6892 = vmatmul.mubr.bf16.gmra.mrb[0].mxu0 %v2879
    %v6893 = vpop.f32.mrb[0].mxu0
    %v6894 = vadd.f32 %v6541, %v6893
    %v6895 = vpop.f32.mrb[0].mxu0
    %v6896 = vadd.f32 %v6543, %v6895
    %v6897 = vpop.f32.mrb[0].mxu0
    %v6898 = vadd.f32 %v6545, %v6897
    %v6899 = vpop.f32.mrb[0].mxu0
    %v6900 = vadd.f32 %v6547, %v6899
    %6901 = vmatprep.mubr.bf16.mxu0 %v2888
    %6902 = vmatmul.mubr.bf16.gmra.mrb[0].mxu0 %v2887
    %v6903 = vpop.f32.mrb[0].mxu0
    %v6904 = vadd.f32 %v6551, %v6903
    %v6905 = vpop.f32.mrb[0].mxu0
    %v6906 = vadd.f32 %v6553, %v6905
    %v6907 = vpop.f32.mrb[0].mxu0
    %v6908 = vadd.f32 %v6555, %v6907
    %v6909 = vpop.f32.mrb[0].mxu0
    %v6910 = vadd.f32 %v6557, %v6909
    %6911 = vmatprep.mubr.bf16.mxu0 %v2896
    %6912 = vmatmul.mubr.bf16.gmra.mrb[0].mxu0 %v2895
    %v6913 = vpop.f32.mrb[0].mxu0
    %v6914 = vadd.f32 %v6561, %v6913
    %v6915 = vpop.f32.mrb[0].mxu0
    %v6916 = vadd.f32 %v6563, %v6915
    %v6917 = vpop.f32.mrb[0].mxu0
    %v6918 = vadd.f32 %v6565, %v6917
    %v6919 = vpop.f32.mrb[0].mxu0
    %v6920 = vadd.f32 %v6567, %v6919
    %6921 = vmatprep.mubr.bf16.mxu0 %v2904
    %6922 = vmatmul.mubr.bf16.gmra.mrb[0].mxu0 %v2903
    %v6923 = vpop.f32.mrb[0].mxu0
    %v6924 = vadd.f32 %v6571, %v6923
    %v6925 = vpop.f32.mrb[0].mxu0
    %v6926 = vadd.f32 %v6573, %v6925
    %v6927 = vpop.f32.mrb[0].mxu0
    %v6928 = vadd.f32 %v6575, %v6927
    %v6929 = vpop.f32.mrb[0].mxu0
    %v6930 = vadd.f32 %v6577, %v6929
    %6931 = vmatprep.mubr.bf16.mxu0 %v2912
    %6932 = vmatmul.mubr.bf16.gmra.mrb[0].mxu0 %v2911
    %v6933 = vpop.f32.mrb[0].mxu0
    %v6934 = vadd.f32 %v6581, %v6933
    %v6935 = vpop.f32.mrb[0].mxu0
    %v6936 = vadd.f32 %v6583, %v6935
    %v6937 = vpop.f32.mrb[0].mxu0
    %v6938 = vadd.f32 %v6585, %v6937
    %v6939 = vpop.f32.mrb[0].mxu0
    %v6940 = vadd.f32 %v6587, %v6939
    %6941 = vmatprep.mubr.bf16.mxu0 %v2920
    %6942 = vmatmul.mubr.bf16.gmra.mrb[0].mxu0 %v2919
    %v6943 = vpop.f32.mrb[0].mxu0
    %v6944 = vadd.f32 %v6591, %v6943
    %v6945 = vpop.f32.mrb[0].mxu0
    %v6946 = vadd.f32 %v6593, %v6945
    %v6947 = vpop.f32.mrb[0].mxu0
    %v6948 = vadd.f32 %v6595, %v6947
    %v6949 = vpop.f32.mrb[0].mxu0
    %v6950 = vadd.f32 %v6597, %v6949
    %6951 = vdwg.mxu0
    %6952 = vmatprep.subr.bf16.mxu0 %v4164
    %6953 = vmatpush1.bf16.msra.mxu0 %v4163
    %6954 = vmatprep.subr.bf16.mxu0 %v4168
    %6955 = vmatpush1.bf16.msra.mxu0 %v4167
    %6956 = vmatprep.subr.bf16.mxu0 %v4172
    %6957 = vmatpush1.bf16.msra.mxu0 %v4171
    %6958 = vmatprep.subr.bf16.mxu0 %v4176
    %6959 = vmatpush1.bf16.msra.mxu0 %v4175
    %6960 = vmatprep.subr.bf16.mxu0 %v4180
    %6961 = vmatpush1.bf16.msra.mxu0 %v4179
    %6962 = vmatprep.subr.bf16.mxu0 %v4184
    %6963 = vmatpush1.bf16.msra.mxu0 %v4183
    %6964 = vmatprep.subr.bf16.mxu0 %v4188
    %6965 = vmatpush1.bf16.msra.mxu0 %v4187
    %6966 = vmatprep.subr.bf16.mxu0 %v4192
    %6967 = vmatpush1.bf16.msra.mxu0 %v4191
    %6968 = vmatprep.subr.bf16.mxu0 %v4196
    %6969 = vmatpush1.bf16.msra.mxu0 %v4195
    %6970 = vmatprep.subr.bf16.mxu0 %v4200
    %6971 = vmatpush1.bf16.msra.mxu0 %v4199
    %6972 = vmatprep.subr.bf16.mxu0 %v4204
    %6973 = vmatpush1.bf16.msra.mxu0 %v4203
    %6974 = vmatprep.subr.bf16.mxu0 %v4208
    %6975 = vmatpush1.bf16.msra.mxu0 %v4207
    %6976 = vmatprep.subr.bf16.mxu0 %v4212
    %6977 = vmatpush1.bf16.msra.mxu0 %v4211
    %6978 = vmatprep.subr.bf16.mxu0 %v4216
    %6979 = vmatpush1.bf16.msra.mxu0 %v4215
    %6980 = vmatprep.subr.bf16.mxu0 %v4220
    %6981 = vmatpush1.bf16.msra.mxu0 %v4219
    %6982 = vmatprep.subr.bf16.mxu0 %v4224
    %6983 = vmatpush1.bf16.msra.mxu0 %v4223
    %6984 = vmatprep.mubr.bf16.mxu0 %v2674
    %6985 = vmatmul.mubr.bf16.gmra.mrb[0].mxu0 %v2673
    %v6986 = vpop.f32.mrb[0].mxu0
    %v6987 = vadd.f32 %v6634, %v6986
    %v6988 = vpop.f32.mrb[0].mxu0
    %v6989 = vadd.f32 %v6636, %v6988
    %v6990 = vpop.f32.mrb[0].mxu0
    %v6991 = vadd.f32 %v6638, %v6990
    %v6992 = vpop.f32.mrb[0].mxu0
    %v6993 = vadd.f32 %v6640, %v6992
    %6994 = vmatprep.mubr.bf16.mxu0 %v2682
    %6995 = vmatmul.mubr.bf16.gmra.mrb[0].mxu0 %v2681
    %v6996 = vpop.f32.mrb[0].mxu0
    %v6997 = vadd.f32 %v6644, %v6996
    %v6998 = vpop.f32.mrb[0].mxu0
    %v6999 = vadd.f32 %v6646, %v6998
    %v7000 = vpop.f32.mrb[0].mxu0
    %v7001 = vadd.f32 %v6648, %v7000
    %v7002 = vpop.f32.mrb[0].mxu0
    %v7003 = vadd.f32 %v6650, %v7002
    %7004 = vmatprep.mubr.bf16.mxu0 %v2690
    %7005 = vmatmul.mubr.bf16.gmra.mrb[0].mxu0 %v2689
    %v7006 = vpop.f32.mrb[0].mxu0
    %v7007 = vadd.f32 %v6654, %v7006
    %v7008 = vpop.f32.mrb[0].mxu0
    %v7009 = vadd.f32 %v6656, %v7008
    %v7010 = vpop.f32.mrb[0].mxu0
    %v7011 = vadd.f32 %v6658, %v7010
    %v7012 = vpop.f32.mrb[0].mxu0
    %v7013 = vadd.f32 %v6660, %v7012
    %7014 = vmatprep.mubr.bf16.mxu0 %v2698
    %7015 = vmatmul.mubr.bf16.gmra.mrb[0].mxu0 %v2697
    %v7016 = vpop.f32.mrb[0].mxu0
    %v7017 = vadd.f32 %v6664, %v7016
    %v7018 = vpop.f32.mrb[0].mxu0
    %v7019 = vadd.f32 %v6666, %v7018
    %v7020 = vpop.f32.mrb[0].mxu0
    %v7021 = vadd.f32 %v6668, %v7020
    %v7022 = vpop.f32.mrb[0].mxu0
    %v7023 = vadd.f32 %v6670, %v7022
    %7024 = vmatprep.mubr.bf16.mxu0 %v2706
    %7025 = vmatmul.mubr.bf16.gmra.mrb[0].mxu0 %v2705
    %v7026 = vpop.f32.mrb[0].mxu0
    %v7027 = vadd.f32 %v6674, %v7026
    %v7028 = vpop.f32.mrb[0].mxu0
    %v7029 = vadd.f32 %v6676, %v7028
    %v7030 = vpop.f32.mrb[0].mxu0
    %v7031 = vadd.f32 %v6678, %v7030
    %v7032 = vpop.f32.mrb[0].mxu0
    %v7033 = vadd.f32 %v6680, %v7032
    %7034 = vmatprep.mubr.bf16.mxu0 %v2714
    %7035 = vmatmul.mubr.bf16.gmra.mrb[0].mxu0 %v2713
    %v7036 = vpop.f32.mrb[0].mxu0
    %v7037 = vadd.f32 %v6684, %v7036
    %v7038 = vpop.f32.mrb[0].mxu0
    %v7039 = vadd.f32 %v6686, %v7038
    %v7040 = vpop.f32.mrb[0].mxu0
    %v7041 = vadd.f32 %v6688, %v7040
    %v7042 = vpop.f32.mrb[0].mxu0
    %v7043 = vadd.f32 %v6690, %v7042
    %7044 = vmatprep.mubr.bf16.mxu0 %v2722
    %7045 = vmatmul.mubr.bf16.gmra.mrb[0].mxu0 %v2721
    %v7046 = vpop.f32.mrb[0].mxu0
    %v7047 = vadd.f32 %v6694, %v7046
    %v7048 = vpop.f32.mrb[0].mxu0
    %v7049 = vadd.f32 %v6696, %v7048
    %v7050 = vpop.f32.mrb[0].mxu0
    %v7051 = vadd.f32 %v6698, %v7050
    %v7052 = vpop.f32.mrb[0].mxu0
    %v7053 = vadd.f32 %v6700, %v7052
    %7054 = vmatprep.mubr.bf16.mxu0 %v2730
    %7055 = vmatmul.mubr.bf16.gmra.mrb[0].mxu0 %v2729
    %v7056 = vpop.f32.mrb[0].mxu0
    %v7057 = vadd.f32 %v6704, %v7056
    %v7058 = vpop.f32.mrb[0].mxu0
    %v7059 = vadd.f32 %v6706, %v7058
    %v7060 = vpop.f32.mrb[0].mxu0
    %v7061 = vadd.f32 %v6708, %v7060
    %v7062 = vpop.f32.mrb[0].mxu0
    %v7063 = vadd.f32 %v6710, %v7062
    %7064 = vmatprep.mubr.bf16.mxu0 %v2738
    %7065 = vmatmul.mubr.bf16.gmra.mrb[0].mxu0 %v2737
    %v7066 = vpop.f32.mrb[0].mxu0
    %v7067 = vadd.f32 %v6714, %v7066
    %v7068 = vpop.f32.mrb[0].mxu0
    %v7069 = vadd.f32 %v6716, %v7068
    %v7070 = vpop.f32.mrb[0].mxu0
    %v7071 = vadd.f32 %v6718, %v7070
    %v7072 = vpop.f32.mrb[0].mxu0
    %v7073 = vadd.f32 %v6720, %v7072
    %7074 = vmatprep.mubr.bf16.mxu0 %v2746
    %7075 = vmatmul.mubr.bf16.gmra.mrb[0].mxu0 %v2745
    %v7076 = vpop.f32.mrb[0].mxu0
    %v7077 = vadd.f32 %v6724, %v7076
    %v7078 = vpop.f32.mrb[0].mxu0
    %v7079 = vadd.f32 %v6726, %v7078
    %v7080 = vpop.f32.mrb[0].mxu0
    %v7081 = vadd.f32 %v6728, %v7080
    %v7082 = vpop.f32.mrb[0].mxu0
    %v7083 = vadd.f32 %v6730, %v7082
    %7084 = vmatprep.mubr.bf16.mxu0 %v2754
    %7085 = vmatmul.mubr.bf16.gmra.mrb[0].mxu0 %v2753
    %v7086 = vpop.f32.mrb[0].mxu0
    %v7087 = vadd.f32 %v6734, %v7086
    %v7088 = vpop.f32.mrb[0].mxu0
    %v7089 = vadd.f32 %v6736, %v7088
    %v7090 = vpop.f32.mrb[0].mxu0
    %v7091 = vadd.f32 %v6738, %v7090
    %v7092 = vpop.f32.mrb[0].mxu0
    %v7093 = vadd.f32 %v6740, %v7092
    %7094 = vmatprep.mubr.bf16.mxu0 %v2762
    %7095 = vmatmul.mubr.bf16.gmra.mrb[0].mxu0 %v2761
    %v7096 = vpop.f32.mrb[0].mxu0
    %v7097 = vadd.f32 %v6744, %v7096
    %v7098 = vpop.f32.mrb[0].mxu0
    %v7099 = vadd.f32 %v6746, %v7098
    %v7100 = vpop.f32.mrb[0].mxu0
    %v7101 = vadd.f32 %v6748, %v7100
    %v7102 = vpop.f32.mrb[0].mxu0
    %v7103 = vadd.f32 %v6750, %v7102
    %7104 = vmatprep.mubr.bf16.mxu0 %v2770
    %7105 = vmatmul.mubr.bf16.gmra.mrb[0].mxu0 %v2769
    %v7106 = vpop.f32.mrb[0].mxu0
    %v7107 = vadd.f32 %v6754, %v7106
    %v7108 = vpop.f32.mrb[0].mxu0
    %v7109 = vadd.f32 %v6756, %v7108
    %v7110 = vpop.f32.mrb[0].mxu0
    %v7111 = vadd.f32 %v6758, %v7110
    %v7112 = vpop.f32.mrb[0].mxu0
    %v7113 = vadd.f32 %v6760, %v7112
    %7114 = vmatprep.mubr.bf16.mxu0 %v2778
    %7115 = vmatmul.mubr.bf16.gmra.mrb[0].mxu0 %v2777
    %v7116 = vpop.f32.mrb[0].mxu0
    %v7117 = vadd.f32 %v6764, %v7116
    %v7118 = vpop.f32.mrb[0].mxu0
    %v7119 = vadd.f32 %v6766, %v7118
    %v7120 = vpop.f32.mrb[0].mxu0
    %v7121 = vadd.f32 %v6768, %v7120
    %v7122 = vpop.f32.mrb[0].mxu0
    %v7123 = vadd.f32 %v6770, %v7122
    %7124 = vmatprep.mubr.bf16.mxu0 %v2786
    %7125 = vmatmul.mubr.bf16.gmra.mrb[0].mxu0 %v2785
    %v7126 = vpop.f32.mrb[0].mxu0
    %v7127 = vadd.f32 %v6774, %v7126
    %v7128 = vpop.f32.mrb[0].mxu0
    %v7129 = vadd.f32 %v6776, %v7128
    %v7130 = vpop.f32.mrb[0].mxu0
    %v7131 = vadd.f32 %v6778, %v7130
    %v7132 = vpop.f32.mrb[0].mxu0
    %v7133 = vadd.f32 %v6780, %v7132
    %7134 = vmatprep.mubr.bf16.mxu0 %v2794
    %7135 = vmatmul.mubr.bf16.gmra.mrb[0].mxu0 %v2793
    %v7136 = vpop.f32.mrb[0].mxu0
    %v7137 = vadd.f32 %v6784, %v7136
    %v7138 = vpop.f32.mrb[0].mxu0
    %v7139 = vadd.f32 %v6786, %v7138
    %v7140 = vpop.f32.mrb[0].mxu0
    %v7141 = vadd.f32 %v6788, %v7140
    %v7142 = vpop.f32.mrb[0].mxu0
    %v7143 = vadd.f32 %v6790, %v7142
    %7144 = vmatprep.mubr.bf16.mxu0 %v2802
    %7145 = vmatmul.mubr.bf16.gmra.mrb[0].mxu0 %v2801
    %v7146 = vpop.f32.mrb[0].mxu0
    %v7147 = vadd.f32 %v6794, %v7146
    %v7148 = vpop.f32.mrb[0].mxu0
    %v7149 = vadd.f32 %v6796, %v7148
    %v7150 = vpop.f32.mrb[0].mxu0
    %v7151 = vadd.f32 %v6798, %v7150
    %v7152 = vpop.f32.mrb[0].mxu0
    %v7153 = vadd.f32 %v6800, %v7152
    %7154 = vmatprep.mubr.bf16.mxu0 %v2810
    %7155 = vmatmul.mubr.bf16.gmra.mrb[0].mxu0 %v2809
    %v7156 = vpop.f32.mrb[0].mxu0
    %v7157 = vadd.f32 %v6804, %v7156
    %v7158 = vpop.f32.mrb[0].mxu0
    %v7159 = vadd.f32 %v6806, %v7158
    %v7160 = vpop.f32.mrb[0].mxu0
    %v7161 = vadd.f32 %v6808, %v7160
    %v7162 = vpop.f32.mrb[0].mxu0
    %v7163 = vadd.f32 %v6810, %v7162
    %7164 = vmatprep.mubr.bf16.mxu0 %v2818
    %7165 = vmatmul.mubr.bf16.gmra.mrb[0].mxu0 %v2817
    %v7166 = vpop.f32.mrb[0].mxu0
    %v7167 = vadd.f32 %v6814, %v7166
    %v7168 = vpop.f32.mrb[0].mxu0
    %v7169 = vadd.f32 %v6816, %v7168
    %v7170 = vpop.f32.mrb[0].mxu0
    %v7171 = vadd.f32 %v6818, %v7170
    %v7172 = vpop.f32.mrb[0].mxu0
    %v7173 = vadd.f32 %v6820, %v7172
    %7174 = vmatprep.mubr.bf16.mxu0 %v2826
    %7175 = vmatmul.mubr.bf16.gmra.mrb[0].mxu0 %v2825
    %v7176 = vpop.f32.mrb[0].mxu0
    %v7177 = vadd.f32 %v6824, %v7176
    %v7178 = vpop.f32.mrb[0].mxu0
    %v7179 = vadd.f32 %v6826, %v7178
    %v7180 = vpop.f32.mrb[0].mxu0
    %v7181 = vadd.f32 %v6828, %v7180
    %v7182 = vpop.f32.mrb[0].mxu0
    %v7183 = vadd.f32 %v6830, %v7182
    %7184 = vmatprep.mubr.bf16.mxu0 %v2834
    %7185 = vmatmul.mubr.bf16.gmra.mrb[0].mxu0 %v2833
    %v7186 = vpop.f32.mrb[0].mxu0
    %v7187 = vadd.f32 %v6834, %v7186
    %v7188 = vpop.f32.mrb[0].mxu0
    %v7189 = vadd.f32 %v6836, %v7188
    %v7190 = vpop.f32.mrb[0].mxu0
    %v7191 = vadd.f32 %v6838, %v7190
    %v7192 = vpop.f32.mrb[0].mxu0
    %v7193 = vadd.f32 %v6840, %v7192
    %7194 = vmatprep.mubr.bf16.mxu0 %v2842
    %7195 = vmatmul.mubr.bf16.gmra.mrb[0].mxu0 %v2841
    %v7196 = vpop.f32.mrb[0].mxu0
    %v7197 = vadd.f32 %v6844, %v7196
    %v7198 = vpop.f32.mrb[0].mxu0
    %v7199 = vadd.f32 %v6846, %v7198
    %v7200 = vpop.f32.mrb[0].mxu0
    %v7201 = vadd.f32 %v6848, %v7200
    %v7202 = vpop.f32.mrb[0].mxu0
    %v7203 = vadd.f32 %v6850, %v7202
    %7204 = vmatprep.mubr.bf16.mxu0 %v2850
    %7205 = vmatmul.mubr.bf16.gmra.mrb[0].mxu0 %v2849
    %v7206 = vpop.f32.mrb[0].mxu0
    %v7207 = vadd.f32 %v6854, %v7206
    %v7208 = vpop.f32.mrb[0].mxu0
    %v7209 = vadd.f32 %v6856, %v7208
    %v7210 = vpop.f32.mrb[0].mxu0
    %v7211 = vadd.f32 %v6858, %v7210
    %v7212 = vpop.f32.mrb[0].mxu0
    %v7213 = vadd.f32 %v6860, %v7212
    %7214 = vmatprep.mubr.bf16.mxu0 %v2858
    %7215 = vmatmul.mubr.bf16.gmra.mrb[0].mxu0 %v2857
    %v7216 = vpop.f32.mrb[0].mxu0
    %v7217 = vadd.f32 %v6864, %v7216
    %v7218 = vpop.f32.mrb[0].mxu0
    %v7219 = vadd.f32 %v6866, %v7218
    %v7220 = vpop.f32.mrb[0].mxu0
    %v7221 = vadd.f32 %v6868, %v7220
    %v7222 = vpop.f32.mrb[0].mxu0
    %v7223 = vadd.f32 %v6870, %v7222
    %7224 = vmatprep.mubr.bf16.mxu0 %v2866
    %7225 = vmatmul.mubr.bf16.gmra.mrb[0].mxu0 %v2865
    %v7226 = vpop.f32.mrb[0].mxu0
    %v7227 = vadd.f32 %v6874, %v7226
    %v7228 = vpop.f32.mrb[0].mxu0
    %v7229 = vadd.f32 %v6876, %v7228
    %v7230 = vpop.f32.mrb[0].mxu0
    %v7231 = vadd.f32 %v6878, %v7230
    %v7232 = vpop.f32.mrb[0].mxu0
    %v7233 = vadd.f32 %v6880, %v7232
    %7234 = vmatprep.mubr.bf16.mxu0 %v2874
    %7235 = vmatmul.mubr.bf16.gmra.mrb[0].mxu0 %v2873
    %v7236 = vpop.f32.mrb[0].mxu0
    %v7237 = vadd.f32 %v6884, %v7236
    %v7238 = vpop.f32.mrb[0].mxu0
    %v7239 = vadd.f32 %v6886, %v7238
    %v7240 = vpop.f32.mrb[0].mxu0
    %v7241 = vadd.f32 %v6888, %v7240
    %v7242 = vpop.f32.mrb[0].mxu0
    %v7243 = vadd.f32 %v6890, %v7242
    %7244 = vmatprep.mubr.bf16.mxu0 %v2882
    %7245 = vmatmul.mubr.bf16.gmra.mrb[0].mxu0 %v2881
    %v7246 = vpop.f32.mrb[0].mxu0
    %v7247 = vadd.f32 %v6894, %v7246
    %v7248 = vpop.f32.mrb[0].mxu0
    %v7249 = vadd.f32 %v6896, %v7248
    %v7250 = vpop.f32.mrb[0].mxu0
    %v7251 = vadd.f32 %v6898, %v7250
    %v7252 = vpop.f32.mrb[0].mxu0
    %v7253 = vadd.f32 %v6900, %v7252
    %7254 = vmatprep.mubr.bf16.mxu0 %v2890
    %7255 = vmatmul.mubr.bf16.gmra.mrb[0].mxu0 %v2889
    %v7256 = vpop.f32.mrb[0].mxu0
    %v7257 = vadd.f32 %v6904, %v7256
    %v7258 = vpop.f32.mrb[0].mxu0
    %v7259 = vadd.f32 %v6906, %v7258
    %v7260 = vpop.f32.mrb[0].mxu0
    %v7261 = vadd.f32 %v6908, %v7260
    %v7262 = vpop.f32.mrb[0].mxu0
    %v7263 = vadd.f32 %v6910, %v7262
    %7264 = vmatprep.mubr.bf16.mxu0 %v2898
    %7265 = vmatmul.mubr.bf16.gmra.mrb[0].mxu0 %v2897
    %v7266 = vpop.f32.mrb[0].mxu0
    %v7267 = vadd.f32 %v6914, %v7266
    %v7268 = vpop.f32.mrb[0].mxu0
    %v7269 = vadd.f32 %v6916, %v7268
    %v7270 = vpop.f32.mrb[0].mxu0
    %v7271 = vadd.f32 %v6918, %v7270
    %v7272 = vpop.f32.mrb[0].mxu0
    %v7273 = vadd.f32 %v6920, %v7272
    %7274 = vmatprep.mubr.bf16.mxu0 %v2906
    %7275 = vmatmul.mubr.bf16.gmra.mrb[0].mxu0 %v2905
    %v7276 = vpop.f32.mrb[0].mxu0
    %v7277 = vadd.f32 %v6924, %v7276
    %v7278 = vpop.f32.mrb[0].mxu0
    %v7279 = vadd.f32 %v6926, %v7278
    %v7280 = vpop.f32.mrb[0].mxu0
    %v7281 = vadd.f32 %v6928, %v7280
    %v7282 = vpop.f32.mrb[0].mxu0
    %v7283 = vadd.f32 %v6930, %v7282
    %7284 = vmatprep.mubr.bf16.mxu0 %v2914
    %7285 = vmatmul.mubr.bf16.gmra.mrb[0].mxu0 %v2913
    %v7286 = vpop.f32.mrb[0].mxu0
    %v7287 = vadd.f32 %v6934, %v7286
    %v7288 = vpop.f32.mrb[0].mxu0
    %v7289 = vadd.f32 %v6936, %v7288
    %v7290 = vpop.f32.mrb[0].mxu0
    %v7291 = vadd.f32 %v6938, %v7290
    %v7292 = vpop.f32.mrb[0].mxu0
    %v7293 = vadd.f32 %v6940, %v7292
    %7294 = vmatprep.mubr.bf16.mxu0 %v2922
    %7295 = vmatmul.mubr.bf16.gmra.mrb[0].mxu0 %v2921
    %v7296 = vpop.f32.mrb[0].mxu0
    %v7297 = vadd.f32 %v6944, %v7296
    %v7298 = vpop.f32.mrb[0].mxu0
    %v7299 = vadd.f32 %v6946, %v7298
    %v7300 = vpop.f32.mrb[0].mxu0
    %v7301 = vadd.f32 %v6948, %v7300
    %v7302 = vpop.f32.mrb[0].mxu0
    %v7303 = vadd.f32 %v6950, %v7302
    %7304 = vdwg.mxu0
    %v7305 = vmax.f32 %v5575, 0.0
    %v7306 = vmax.f32 %v5577, 0.0
    %v7307 = vmax.f32 %v6987, 0.0
    %v7308 = vmax.f32 %v6989, 0.0
    %v7309 = vmax.f32 %v5579, 0.0
    %v7310 = vmax.f32 %v5581, 0.0
    %v7311 = vmax.f32 %v6991, 0.0
    %v7312 = vmax.f32 %v6993, 0.0
    %v7313 = vmax.f32 %v5585, 0.0
    %v7314 = vmax.f32 %v5587, 0.0
    %v7315 = vmax.f32 %v6997, 0.0
    %v7316 = vmax.f32 %v6999, 0.0
    %v7317 = vmax.f32 %v5589, 0.0
    %v7318 = vmax.f32 %v5591, 0.0
    %v7319 = vmax.f32 %v7001, 0.0
    %v7320 = vmax.f32 %v7003, 0.0
    %v7321 = vmax.f32 %v5595, 0.0
    %v7322 = vmax.f32 %v5597, 0.0
    %v7323 = vmax.f32 %v7007, 0.0
    %v7324 = vmax.f32 %v7009, 0.0
    %v7325 = vmax.f32 %v5599, 0.0
    %v7326 = vmax.f32 %v5601, 0.0
    %v7327 = vmax.f32 %v7011, 0.0
    %v7328 = vmax.f32 %v7013, 0.0
    %v7329 = vmax.f32 %v5605, 0.0
    %v7330 = vmax.f32 %v5607, 0.0
    %v7331 = vmax.f32 %v7017, 0.0
    %v7332 = vmax.f32 %v7019, 0.0
    %v7333 = vmax.f32 %v5609, 0.0
    %v7334 = vmax.f32 %v5611, 0.0
    %v7335 = vmax.f32 %v7021, 0.0
    %v7336 = vmax.f32 %v7023, 0.0
    %v7337 = vmax.f32 %v5615, 0.0
    %v7338 = vmax.f32 %v5617, 0.0
    %v7339 = vmax.f32 %v7027, 0.0
    %v7340 = vmax.f32 %v7029, 0.0
    %v7341 = vmax.f32 %v5619, 0.0
    %v7342 = vmax.f32 %v5621, 0.0
    %v7343 = vmax.f32 %v7031, 0.0
    %v7344 = vmax.f32 %v7033, 0.0
    %v7345 = vmax.f32 %v5625, 0.0
    %v7346 = vmax.f32 %v5627, 0.0
    %v7347 = vmax.f32 %v7037, 0.0
    %v7348 = vmax.f32 %v7039, 0.0
    %v7349 = vmax.f32 %v5629, 0.0
    %v7350 = vmax.f32 %v5631, 0.0
    %v7351 = vmax.f32 %v7041, 0.0
    %v7352 = vmax.f32 %v7043, 0.0
    %v7353 = vmax.f32 %v5635, 0.0
    %v7354 = vmax.f32 %v5637, 0.0
    %v7355 = vmax.f32 %v7047, 0.0
    %v7356 = vmax.f32 %v7049, 0.0
    %v7357 = vmax.f32 %v5639, 0.0
    %v7358 = vmax.f32 %v5641, 0.0
    %v7359 = vmax.f32 %v7051, 0.0
    %v7360 = vmax.f32 %v7053, 0.0
    %v7361 = vmax.f32 %v5645, 0.0
    %v7362 = vmax.f32 %v5647, 0.0
    %v7363 = vmax.f32 %v7057, 0.0
    %v7364 = vmax.f32 %v7059, 0.0
    %v7365 = vmax.f32 %v5649, 0.0
    %v7366 = vmax.f32 %v5651, 0.0
    %v7367 = vmax.f32 %v7061, 0.0
    %v7368 = vmax.f32 %v7063, 0.0
    %v7369 = vmax.f32 %v5655, 0.0
    %v7370 = vmax.f32 %v5657, 0.0
    %v7371 = vmax.f32 %v7067, 0.0
    %v7372 = vmax.f32 %v7069, 0.0
    %v7373 = vmax.f32 %v5659, 0.0
    %v7374 = vmax.f32 %v5661, 0.0
    %v7375 = vmax.f32 %v7071, 0.0
    %v7376 = vmax.f32 %v7073, 0.0
    %v7377 = vmax.f32 %v5665, 0.0
    %v7378 = vmax.f32 %v5667, 0.0
    %v7379 = vmax.f32 %v7077, 0.0
    %v7380 = vmax.f32 %v7079, 0.0
    %v7381 = vmax.f32 %v5669, 0.0
    %v7382 = vmax.f32 %v5671, 0.0
    %v7383 = vmax.f32 %v7081, 0.0
    %v7384 = vmax.f32 %v7083, 0.0
    %v7385 = vmax.f32 %v5675, 0.0
    %v7386 = vmax.f32 %v5677, 0.0
    %v7387 = vmax.f32 %v7087, 0.0
    %v7388 = vmax.f32 %v7089, 0.0
    %v7389 = vmax.f32 %v5679, 0.0
    %v7390 = vmax.f32 %v5681, 0.0
    %v7391 = vmax.f32 %v7091, 0.0
    %v7392 = vmax.f32 %v7093, 0.0
    %v7393 = vmax.f32 %v5685, 0.0
    %v7394 = vmax.f32 %v5687, 0.0
    %v7395 = vmax.f32 %v7097, 0.0
    %v7396 = vmax.f32 %v7099, 0.0
    %v7397 = vmax.f32 %v5689, 0.0
    %v7398 = vmax.f32 %v5691, 0.0
    %v7399 = vmax.f32 %v7101, 0.0
    %v7400 = vmax.f32 %v7103, 0.0
    %v7401 = vmax.f32 %v5695, 0.0
    %v7402 = vmax.f32 %v5697, 0.0
    %v7403 = vmax.f32 %v7107, 0.0
    %v7404 = vmax.f32 %v7109, 0.0
    %v7405 = vmax.f32 %v5699, 0.0
    %v7406 = vmax.f32 %v5701, 0.0
    %v7407 = vmax.f32 %v7111, 0.0
    %v7408 = vmax.f32 %v7113, 0.0
    %v7409 = vmax.f32 %v5705, 0.0
    %v7410 = vmax.f32 %v5707, 0.0
    %v7411 = vmax.f32 %v7117, 0.0
    %v7412 = vmax.f32 %v7119, 0.0
    %v7413 = vmax.f32 %v5709, 0.0
    %v7414 = vmax.f32 %v5711, 0.0
    %v7415 = vmax.f32 %v7121, 0.0
    %v7416 = vmax.f32 %v7123, 0.0
    %v7417 = vmax.f32 %v5715, 0.0
    %v7418 = vmax.f32 %v5717, 0.0
    %v7419 = vmax.f32 %v7127, 0.0
    %v7420 = vmax.f32 %v7129, 0.0
    %v7421 = vmax.f32 %v5719, 0.0
    %v7422 = vmax.f32 %v5721, 0.0
    %v7423 = vmax.f32 %v7131, 0.0
    %v7424 = vmax.f32 %v7133, 0.0
    %v7425 = vmax.f32 %v5725, 0.0
    %v7426 = vmax.f32 %v5727, 0.0
    %v7427 = vmax.f32 %v7137, 0.0
    %v7428 = vmax.f32 %v7139, 0.0
    %v7429 = vmax.f32 %v5729, 0.0
    %v7430 = vmax.f32 %v5731, 0.0
    %v7431 = vmax.f32 %v7141, 0.0
    %v7432 = vmax.f32 %v7143, 0.0
    %v7433 = vmax.f32 %v5735, 0.0
    %v7434 = vmax.f32 %v5737, 0.0
    %v7435 = vmax.f32 %v7147, 0.0
    %v7436 = vmax.f32 %v7149, 0.0
    %v7437 = vmax.f32 %v5739, 0.0
    %v7438 = vmax.f32 %v5741, 0.0
    %v7439 = vmax.f32 %v7151, 0.0
    %v7440 = vmax.f32 %v7153, 0.0
    %v7441 = vmax.f32 %v5745, 0.0
    %v7442 = vmax.f32 %v5747, 0.0
    %v7443 = vmax.f32 %v7157, 0.0
    %v7444 = vmax.f32 %v7159, 0.0
    %v7445 = vmax.f32 %v5749, 0.0
    %v7446 = vmax.f32 %v5751, 0.0
    %v7447 = vmax.f32 %v7161, 0.0
    %v7448 = vmax.f32 %v7163, 0.0
    %v7449 = vmax.f32 %v5755, 0.0
    %v7450 = vmax.f32 %v5757, 0.0
    %v7451 = vmax.f32 %v7167, 0.0
    %v7452 = vmax.f32 %v7169, 0.0
    %v7453 = vmax.f32 %v5759, 0.0
    %v7454 = vmax.f32 %v5761, 0.0
    %v7455 = vmax.f32 %v7171, 0.0
    %v7456 = vmax.f32 %v7173, 0.0
    %v7457 = vmax.f32 %v5765, 0.0
    %v7458 = vmax.f32 %v5767, 0.0
    %v7459 = vmax.f32 %v7177, 0.0
    %v7460 = vmax.f32 %v7179, 0.0
    %v7461 = vmax.f32 %v5769, 0.0
    %v7462 = vmax.f32 %v5771, 0.0
    %v7463 = vmax.f32 %v7181, 0.0
    %v7464 = vmax.f32 %v7183, 0.0
    %v7465 = vmax.f32 %v5775, 0.0
    %v7466 = vmax.f32 %v5777, 0.0
    %v7467 = vmax.f32 %v7187, 0.0
    %v7468 = vmax.f32 %v7189, 0.0
    %v7469 = vmax.f32 %v5779, 0.0
    %v7470 = vmax.f32 %v5781, 0.0
    %v7471 = vmax.f32 %v7191, 0.0
    %v7472 = vmax.f32 %v7193, 0.0
    %v7473 = vmax.f32 %v5785, 0.0
    %v7474 = vmax.f32 %v5787, 0.0
    %v7475 = vmax.f32 %v7197, 0.0
    %v7476 = vmax.f32 %v7199, 0.0
    %v7477 = vmax.f32 %v5789, 0.0
    %v7478 = vmax.f32 %v5791, 0.0
    %v7479 = vmax.f32 %v7201, 0.0
    %v7480 = vmax.f32 %v7203, 0.0
    %v7481 = vmax.f32 %v5795, 0.0
    %v7482 = vmax.f32 %v5797, 0.0
    %v7483 = vmax.f32 %v7207, 0.0
    %v7484 = vmax.f32 %v7209, 0.0
    %v7485 = vmax.f32 %v5799, 0.0
    %v7486 = vmax.f32 %v5801, 0.0
    %v7487 = vmax.f32 %v7211, 0.0
    %v7488 = vmax.f32 %v7213, 0.0
    %v7489 = vmax.f32 %v5805, 0.0
    %v7490 = vmax.f32 %v5807, 0.0
    %v7491 = vmax.f32 %v7217, 0.0
    %v7492 = vmax.f32 %v7219, 0.0
    %v7493 = vmax.f32 %v5809, 0.0
    %v7494 = vmax.f32 %v5811, 0.0
    %v7495 = vmax.f32 %v7221, 0.0
    %v7496 = vmax.f32 %v7223, 0.0
    %v7497 = vmax.f32 %v5815, 0.0
    %v7498 = vmax.f32 %v5817, 0.0
    %v7499 = vmax.f32 %v7227, 0.0
    %v7500 = vmax.f32 %v7229, 0.0
    %v7501 = vmax.f32 %v5819, 0.0
    %v7502 = vmax.f32 %v5821, 0.0
    %v7503 = vmax.f32 %v7231, 0.0
    %v7504 = vmax.f32 %v7233, 0.0
    %v7505 = vmax.f32 %v5825, 0.0
    %v7506 = vmax.f32 %v5827, 0.0
    %v7507 = vmax.f32 %v7237, 0.0
    %v7508 = vmax.f32 %v7239, 0.0
    %v7509 = vmax.f32 %v5829, 0.0
    %v7510 = vmax.f32 %v5831, 0.0
    %v7511 = vmax.f32 %v7241, 0.0
    %v7512 = vmax.f32 %v7243, 0.0
    %v7513 = vmax.f32 %v5835, 0.0
    %v7514 = vmax.f32 %v5837, 0.0
    %v7515 = vmax.f32 %v7247, 0.0
    %v7516 = vmax.f32 %v7249, 0.0
    %v7517 = vmax.f32 %v5839, 0.0
    %v7518 = vmax.f32 %v5841, 0.0
    %v7519 = vmax.f32 %v7251, 0.0
    %v7520 = vmax.f32 %v7253, 0.0
    %v7521 = vmax.f32 %v5845, 0.0
    %v7522 = vmax.f32 %v5847, 0.0
    %v7523 = vmax.f32 %v7257, 0.0
    %v7524 = vmax.f32 %v7259, 0.0
    %v7525 = vmax.f32 %v5849, 0.0
    %v7526 = vmax.f32 %v5851, 0.0
    %v7527 = vmax.f32 %v7261, 0.0
    %v7528 = vmax.f32 %v7263, 0.0
    %v7529 = vmax.f32 %v5855, 0.0
    %v7530 = vmax.f32 %v5857, 0.0
    %v7531 = vmax.f32 %v7267, 0.0
    %v7532 = vmax.f32 %v7269, 0.0
    %v7533 = vmax.f32 %v5859, 0.0
    %v7534 = vmax.f32 %v5861, 0.0
    %v7535 = vmax.f32 %v7271, 0.0
    %v7536 = vmax.f32 %v7273, 0.0
    %v7537 = vmax.f32 %v5865, 0.0
    %v7538 = vmax.f32 %v5867, 0.0
    %v7539 = vmax.f32 %v7277, 0.0
    %v7540 = vmax.f32 %v7279, 0.0
    %v7541 = vmax.f32 %v5869, 0.0
    %v7542 = vmax.f32 %v5871, 0.0
    %v7543 = vmax.f32 %v7281, 0.0
    %v7544 = vmax.f32 %v7283, 0.0
    %v7545 = vmax.f32 %v5875, 0.0
    %v7546 = vmax.f32 %v5877, 0.0
    %v7547 = vmax.f32 %v7287, 0.0
    %v7548 = vmax.f32 %v7289, 0.0
    %v7549 = vmax.f32 %v5879, 0.0
    %v7550 = vmax.f32 %v5881, 0.0
    %v7551 = vmax.f32 %v7291, 0.0
    %v7552 = vmax.f32 %v7293, 0.0
    %v7553 = vmax.f32 %v5885, 0.0
    %v7554 = vmax.f32 %v5887, 0.0
    %v7555 = vmax.f32 %v7297, 0.0
    %v7556 = vmax.f32 %v7299, 0.0
    %v7557 = vmax.f32 %v5889, 0.0
    %v7558 = vmax.f32 %v5891, 0.0
    %v7559 = vmax.f32 %v7301, 0.0
    %v7560 = vmax.f32 %v7303, 0.0
    %v7561 = vpack.c.bf16 %v7309, %v7305
    %v7562 = vpack.c.bf16 %v7310, %v7306
    %v7563 = vpack.c.bf16 %v7311, %v7307
    %v7564 = vpack.c.bf16 %v7312, %v7308
    %v7565 = vpack.c.bf16 %v7317, %v7313
    %v7566 = vpack.c.bf16 %v7318, %v7314
    %v7567 = vpack.c.bf16 %v7319, %v7315
    %v7568 = vpack.c.bf16 %v7320, %v7316
    %v7569 = vpack.c.bf16 %v7325, %v7321
    %v7570 = vpack.c.bf16 %v7326, %v7322
    %v7571 = vpack.c.bf16 %v7327, %v7323
    %v7572 = vpack.c.bf16 %v7328, %v7324
    %v7573 = vpack.c.bf16 %v7333, %v7329
    %v7574 = vpack.c.bf16 %v7334, %v7330
    %v7575 = vpack.c.bf16 %v7335, %v7331
    %v7576 = vpack.c.bf16 %v7336, %v7332
    %v7577 = vpack.c.bf16 %v7341, %v7337
    %v7578 = vpack.c.bf16 %v7342, %v7338
    %v7579 = vpack.c.bf16 %v7343, %v7339
    %v7580 = vpack.c.bf16 %v7344, %v7340
    %v7581 = vpack.c.bf16 %v7349, %v7345
    %v7582 = vpack.c.bf16 %v7350, %v7346
    %v7583 = vpack.c.bf16 %v7351, %v7347
    %v7584 = vpack.c.bf16 %v7352, %v7348
    %v7585 = vpack.c.bf16 %v7357, %v7353
    %v7586 = vpack.c.bf16 %v7358, %v7354
    %v7587 = vpack.c.bf16 %v7359, %v7355
    %v7588 = vpack.c.bf16 %v7360, %v7356
    %v7589 = vpack.c.bf16 %v7365, %v7361
    %v7590 = vpack.c.bf16 %v7366, %v7362
    %v7591 = vpack.c.bf16 %v7367, %v7363
    %v7592 = vpack.c.bf16 %v7368, %v7364
    %v7593 = vpack.c.bf16 %v7373, %v7369
    %v7594 = vpack.c.bf16 %v7374, %v7370
    %v7595 = vpack.c.bf16 %v7375, %v7371
    %v7596 = vpack.c.bf16 %v7376, %v7372
    %v7597 = vpack.c.bf16 %v7381, %v7377
    %v7598 = vpack.c.bf16 %v7382, %v7378
    %v7599 = vpack.c.bf16 %v7383, %v7379
    %v7600 = vpack.c.bf16 %v7384, %v7380
    %v7601 = vpack.c.bf16 %v7389, %v7385
    %v7602 = vpack.c.bf16 %v7390, %v7386
    %v7603 = vpack.c.bf16 %v7391, %v7387
    %v7604 = vpack.c.bf16 %v7392, %v7388
    %v7605 = vpack.c.bf16 %v7397, %v7393
    %v7606 = vpack.c.bf16 %v7398, %v7394
    %v7607 = vpack.c.bf16 %v7399, %v7395
    %v7608 = vpack.c.bf16 %v7400, %v7396
    %v7609 = vpack.c.bf16 %v7405, %v7401
    %v7610 = vpack.c.bf16 %v7406, %v7402
    %v7611 = vpack.c.bf16 %v7407, %v7403
    %v7612 = vpack.c.bf16 %v7408, %v7404
    %v7613 = vpack.c.bf16 %v7413, %v7409
    %v7614 = vpack.c.bf16 %v7414, %v7410
    %v7615 = vpack.c.bf16 %v7415, %v7411
    %v7616 = vpack.c.bf16 %v7416, %v7412
    %v7617 = vpack.c.bf16 %v7421, %v7417
    %v7618 = vpack.c.bf16 %v7422, %v7418
    %v7619 = vpack.c.bf16 %v7423, %v7419
    %v7620 = vpack.c.bf16 %v7424, %v7420
    %v7621 = vpack.c.bf16 %v7429, %v7425
    %v7622 = vpack.c.bf16 %v7430, %v7426
    %v7623 = vpack.c.bf16 %v7431, %v7427
    %v7624 = vpack.c.bf16 %v7432, %v7428
    %v7625 = vpack.c.bf16 %v7437, %v7433
    %v7626 = vpack.c.bf16 %v7438, %v7434
    %v7627 = vpack.c.bf16 %v7439, %v7435
    %v7628 = vpack.c.bf16 %v7440, %v7436
    %v7629 = vpack.c.bf16 %v7445, %v7441
    %v7630 = vpack.c.bf16 %v7446, %v7442
    %v7631 = vpack.c.bf16 %v7447, %v7443
    %v7632 = vpack.c.bf16 %v7448, %v7444
    %v7633 = vpack.c.bf16 %v7453, %v7449
    %v7634 = vpack.c.bf16 %v7454, %v7450
    %v7635 = vpack.c.bf16 %v7455, %v7451
    %v7636 = vpack.c.bf16 %v7456, %v7452
    %v7637 = vpack.c.bf16 %v7461, %v7457
    %v7638 = vpack.c.bf16 %v7462, %v7458
    %v7639 = vpack.c.bf16 %v7463, %v7459
    %v7640 = vpack.c.bf16 %v7464, %v7460
    %v7641 = vpack.c.bf16 %v7469, %v7465
    %v7642 = vpack.c.bf16 %v7470, %v7466
    %v7643 = vpack.c.bf16 %v7471, %v7467
    %v7644 = vpack.c.bf16 %v7472, %v7468
    %v7645 = vpack.c.bf16 %v7477, %v7473
    %v7646 = vpack.c.bf16 %v7478, %v7474
    %v7647 = vpack.c.bf16 %v7479, %v7475
    %v7648 = vpack.c.bf16 %v7480, %v7476
    %v7649 = vpack.c.bf16 %v7485, %v7481
    %v7650 = vpack.c.bf16 %v7486, %v7482
    %v7651 = vpack.c.bf16 %v7487, %v7483
    %v7652 = vpack.c.bf16 %v7488, %v7484
    %v7653 = vpack.c.bf16 %v7493, %v7489
    %v7654 = vpack.c.bf16 %v7494, %v7490
    %v7655 = vpack.c.bf16 %v7495, %v7491
    %v7656 = vpack.c.bf16 %v7496, %v7492
    %v7657 = vpack.c.bf16 %v7501, %v7497
    %v7658 = vpack.c.bf16 %v7502, %v7498
    %v7659 = vpack.c.bf16 %v7503, %v7499
    %v7660 = vpack.c.bf16 %v7504, %v7500
    %v7661 = vpack.c.bf16 %v7509, %v7505
    %v7662 = vpack.c.bf16 %v7510, %v7506
    %v7663 = vpack.c.bf16 %v7511, %v7507
    %v7664 = vpack.c.bf16 %v7512, %v7508
    %v7665 = vpack.c.bf16 %v7517, %v7513
    %v7666 = vpack.c.bf16 %v7518, %v7514
    %v7667 = vpack.c.bf16 %v7519, %v7515
    %v7668 = vpack.c.bf16 %v7520, %v7516
    %v7669 = vpack.c.bf16 %v7525, %v7521
    %v7670 = vpack.c.bf16 %v7526, %v7522
    %v7671 = vpack.c.bf16 %v7527, %v7523
    %v7672 = vpack.c.bf16 %v7528, %v7524
    %v7673 = vpack.c.bf16 %v7533, %v7529
    %v7674 = vpack.c.bf16 %v7534, %v7530
    %v7675 = vpack.c.bf16 %v7535, %v7531
    %v7676 = vpack.c.bf16 %v7536, %v7532
    %v7677 = vpack.c.bf16 %v7541, %v7537
    %v7678 = vpack.c.bf16 %v7542, %v7538
    %v7679 = vpack.c.bf16 %v7543, %v7539
    %v7680 = vpack.c.bf16 %v7544, %v7540
    %v7681 = vpack.c.bf16 %v7549, %v7545
    %v7682 = vpack.c.bf16 %v7550, %v7546
    %v7683 = vpack.c.bf16 %v7551, %v7547
    %v7684 = vpack.c.bf16 %v7552, %v7548
    %v7685 = vpack.c.bf16 %v7557, %v7553
    %v7686 = vpack.c.bf16 %v7558, %v7554
    %v7687 = vpack.c.bf16 %v7559, %v7555
    %v7688 = vpack.c.bf16 %v7560, %v7556
    %v7689 = vld [vmem:[%s5] sm:$0xf]
    %v7690 = vld [vmem:[%s5 + $0x4] sm:$0xf]
    %v7691 = vld [vmem:[%s5 + $0x8] sm:$0xf]
    %v7692 = vld [vmem:[%s5 + $0xc] sm:$0xf]
    %v7693 = vld [vmem:[%s5 + $0x10] sm:$0xf]
    %v7694 = vld [vmem:[%s5 + $0x14] sm:$0xf]
    %v7695 = vld [vmem:[%s5 + $0x18] sm:$0xf]
    %v7696 = vld [vmem:[%s5 + $0x1c] sm:$0xf]
    %v7697 = vld [vmem:[%s5 + $0x20] sm:$0xf]
    %v7698 = vld [vmem:[%s5 + $0x24] sm:$0xf]
    %v7699 = vld [vmem:[%s5 + $0x28] sm:$0xf]
    %v7700 = vld [vmem:[%s5 + $0x2c] sm:$0xf]
    %v7701 = vld [vmem:[%s5 + $0x30] sm:$0xf]
    %v7702 = vld [vmem:[%s5 + $0x34] sm:$0xf]
    %v7703 = vld [vmem:[%s5 + $0x38] sm:$0xf]
    %v7704 = vld [vmem:[%s5 + $0x3c] sm:$0xf]
    %v7705 = vld [vmem:[%s5 + $0x40] sm:$0xf]
    %v7706 = vld [vmem:[%s5 + $0x44] sm:$0xf]
    %v7707 = vld [vmem:[%s5 + $0x48] sm:$0xf]
    %v7708 = vld [vmem:[%s5 + $0x4c] sm:$0xf]
    %v7709 = vld [vmem:[%s5 + $0x50] sm:$0xf]
    %v7710 = vld [vmem:[%s5 + $0x54] sm:$0xf]
    %v7711 = vld [vmem:[%s5 + $0x58] sm:$0xf]
    %v7712 = vld [vmem:[%s5 + $0x5c] sm:$0xf]
    %v7713 = vld [vmem:[%s5 + $0x60] sm:$0xf]
    %v7714 = vld [vmem:[%s5 + $0x64] sm:$0xf]
    %v7715 = vld [vmem:[%s5 + $0x68] sm:$0xf]
    %v7716 = vld [vmem:[%s5 + $0x6c] sm:$0xf]
    %v7717 = vld [vmem:[%s5 + $0x70] sm:$0xf]
    %v7718 = vld [vmem:[%s5 + $0x74] sm:$0xf]
    %v7719 = vld [vmem:[%s5 + $0x78] sm:$0xf]
    %v7720 = vld [vmem:[%s5 + $0x7c] sm:$0xf]
    %v7721 = vld [vmem:[%s5 + $0x80] sm:$0xf]
    %v7722 = vld [vmem:[%s5 + $0x84] sm:$0xf]
    %v7723 = vld [vmem:[%s5 + $0x88] sm:$0xf]
    %v7724 = vld [vmem:[%s5 + $0x8c] sm:$0xf]
    %v7725 = vld [vmem:[%s5 + $0x90] sm:$0xf]
    %v7726 = vld [vmem:[%s5 + $0x94] sm:$0xf]
    %v7727 = vld [vmem:[%s5 + $0x98] sm:$0xf]
    %v7728 = vld [vmem:[%s5 + $0x9c] sm:$0xf]
    %v7729 = vld [vmem:[%s5 + $0xa0] sm:$0xf]
    %v7730 = vld [vmem:[%s5 + $0xa4] sm:$0xf]
    %v7731 = vld [vmem:[%s5 + $0xa8] sm:$0xf]
    %v7732 = vld [vmem:[%s5 + $0xac] sm:$0xf]
    %v7733 = vld [vmem:[%s5 + $0xb0] sm:$0xf]
    %v7734 = vld [vmem:[%s5 + $0xb4] sm:$0xf]
    %v7735 = vld [vmem:[%s5 + $0xb8] sm:$0xf]
    %v7736 = vld [vmem:[%s5 + $0xbc] sm:$0xf]
    %v7737 = vld [vmem:[%s5 + $0xc0] sm:$0xf]
    %v7738 = vld [vmem:[%s5 + $0xc4] sm:$0xf]
    %v7739 = vld [vmem:[%s5 + $0xc8] sm:$0xf]
    %v7740 = vld [vmem:[%s5 + $0xcc] sm:$0xf]
    %v7741 = vld [vmem:[%s5 + $0xd0] sm:$0xf]
    %v7742 = vld [vmem:[%s5 + $0xd4] sm:$0xf]
    %v7743 = vld [vmem:[%s5 + $0xd8] sm:$0xf]
    %v7744 = vld [vmem:[%s5 + $0xdc] sm:$0xf]
    %v7745 = vld [vmem:[%s5 + $0xe0] sm:$0xf]
    %v7746 = vld [vmem:[%s5 + $0xe4] sm:$0xf]
    %v7747 = vld [vmem:[%s5 + $0xe8] sm:$0xf]
    %v7748 = vld [vmem:[%s5 + $0xec] sm:$0xf]
    %v7749 = vld [vmem:[%s5 + $0xf0] sm:$0xf]
    %v7750 = vld [vmem:[%s5 + $0xf4] sm:$0xf]
    %v7751 = vld [vmem:[%s5 + $0xf8] sm:$0xf]
    %v7752 = vld [vmem:[%s5 + $0xfc] sm:$0xf]
    %v7753 = vld [vmem:[%s6] sm:$0x1]
    %v7755 = vlaneseq
    %v7756 = vshrl.u32 %v7755, 7
    %v7757 = vsub.s32 0, %v7756
    %v7758 = vrot.slane %v7753, %v7757
    %v7824 = vunpack.c.l.b16 %v7689
    %v7825 = vunpack.c.l.b16 %v7690
    %v7826 = vunpack.c.l.b16 %v7691
    %v7827 = vunpack.c.l.b16 %v7692
    %v7828 = vunpack.c.l.b16 %v7693
    %v7829 = vunpack.c.l.b16 %v7694
    %v7830 = vunpack.c.l.b16 %v7695
    %v7831 = vunpack.c.l.b16 %v7696
    %v7832 = vunpack.c.l.b16 %v7697
    %v7833 = vunpack.c.l.b16 %v7698
    %v7834 = vunpack.c.l.b16 %v7699
    %v7835 = vunpack.c.l.b16 %v7700
    %v7836 = vunpack.c.l.b16 %v7701
    %v7837 = vunpack.c.l.b16 %v7702
    %v7838 = vunpack.c.l.b16 %v7703
    %v7839 = vunpack.c.l.b16 %v7704
    %v7840 = vunpack.c.l.b16 %v7705
    %v7841 = vunpack.c.l.b16 %v7706
    %v7842 = vunpack.c.l.b16 %v7707
    %v7843 = vunpack.c.l.b16 %v7708
    %v7844 = vunpack.c.l.b16 %v7709
    %v7845 = vunpack.c.l.b16 %v7710
    %v7846 = vunpack.c.l.b16 %v7711
    %v7847 = vunpack.c.l.b16 %v7712
    %v7848 = vunpack.c.l.b16 %v7713
    %v7849 = vunpack.c.l.b16 %v7714
    %v7850 = vunpack.c.l.b16 %v7715
    %v7851 = vunpack.c.l.b16 %v7716
    %v7852 = vunpack.c.l.b16 %v7717
    %v7853 = vunpack.c.l.b16 %v7718
    %v7854 = vunpack.c.l.b16 %v7719
    %v7855 = vunpack.c.l.b16 %v7720
    %v7856 = vunpack.c.l.b16 %v7721
    %v7857 = vunpack.c.l.b16 %v7722
    %v7858 = vunpack.c.l.b16 %v7723
    %v7859 = vunpack.c.l.b16 %v7724
    %v7860 = vunpack.c.l.b16 %v7725
    %v7861 = vunpack.c.l.b16 %v7726
    %v7862 = vunpack.c.l.b16 %v7727
    %v7863 = vunpack.c.l.b16 %v7728
    %v7864 = vunpack.c.l.b16 %v7729
    %v7865 = vunpack.c.l.b16 %v7730
    %v7866 = vunpack.c.l.b16 %v7731
    %v7867 = vunpack.c.l.b16 %v7732
    %v7868 = vunpack.c.l.b16 %v7733
    %v7869 = vunpack.c.l.b16 %v7734
    %v7870 = vunpack.c.l.b16 %v7735
    %v7871 = vunpack.c.l.b16 %v7736
    %v7872 = vunpack.c.l.b16 %v7737
    %v7873 = vunpack.c.l.b16 %v7738
    %v7874 = vunpack.c.l.b16 %v7739
    %v7875 = vunpack.c.l.b16 %v7740
    %v7876 = vunpack.c.l.b16 %v7741
    %v7877 = vunpack.c.l.b16 %v7742
    %v7878 = vunpack.c.l.b16 %v7743
    %v7879 = vunpack.c.l.b16 %v7744
    %v7880 = vunpack.c.l.b16 %v7745
    %v7881 = vunpack.c.l.b16 %v7746
    %v7882 = vunpack.c.l.b16 %v7747
    %v7883 = vunpack.c.l.b16 %v7748
    %v7884 = vunpack.c.l.b16 %v7749
    %v7885 = vunpack.c.l.b16 %v7750
    %v7886 = vunpack.c.l.b16 %v7751
    %v7887 = vunpack.c.l.b16 %v7752
    %v7888 = vpack.c.b16 %v7825, %v7824
    %v7889 = vpack.c.b16 %v7827, %v7826
    %v7890 = vpack.c.b16 %v7829, %v7828
    %v7891 = vpack.c.b16 %v7831, %v7830
    %v7892 = vpack.c.b16 %v7833, %v7832
    %v7893 = vpack.c.b16 %v7835, %v7834
    %v7894 = vpack.c.b16 %v7837, %v7836
    %v7895 = vpack.c.b16 %v7839, %v7838
    %v7896 = vpack.c.b16 %v7841, %v7840
    %v7897 = vpack.c.b16 %v7843, %v7842
    %v7898 = vpack.c.b16 %v7845, %v7844
    %v7899 = vpack.c.b16 %v7847, %v7846
    %v7900 = vpack.c.b16 %v7849, %v7848
    %v7901 = vpack.c.b16 %v7851, %v7850
    %v7902 = vpack.c.b16 %v7853, %v7852
    %v7903 = vpack.c.b16 %v7855, %v7854
    %v7904 = vpack.c.b16 %v7857, %v7856
    %v7905 = vpack.c.b16 %v7859, %v7858
    %v7906 = vpack.c.b16 %v7861, %v7860
    %v7907 = vpack.c.b16 %v7863, %v7862
    %v7908 = vpack.c.b16 %v7865, %v7864
    %v7909 = vpack.c.b16 %v7867, %v7866
    %v7910 = vpack.c.b16 %v7869, %v7868
    %v7911 = vpack.c.b16 %v7871, %v7870
    %v7912 = vpack.c.b16 %v7873, %v7872
    %v7913 = vpack.c.b16 %v7875, %v7874
    %v7914 = vpack.c.b16 %v7877, %v7876
    %v7915 = vpack.c.b16 %v7879, %v7878
    %v7916 = vpack.c.b16 %v7881, %v7880
    %v7917 = vpack.c.b16 %v7883, %v7882
    %v7918 = vpack.c.b16 %v7885, %v7884
    %v7919 = vpack.c.b16 %v7887, %v7886
    %7952 = vmatprep.subr.bf16.mxu0 0
    %7953 = vmatpush1.bf16.msra.mxu0 %v7888
    %7954 = vmatprep.subr.bf16.mxu0 0
    %7955 = vmatpush1.bf16.msra.mxu0 %v7889
    %7956 = vmatprep.subr.bf16.mxu0 0
    %7957 = vmatpush1.bf16.msra.mxu0 %v7890
    %7958 = vmatprep.subr.bf16.mxu0 0
    %7959 = vmatpush1.bf16.msra.mxu0 %v7891
    %7960 = vmatprep.subr.bf16.mxu0 0
    %7961 = vmatpush1.bf16.msra.mxu0 %v7892
    %7962 = vmatprep.subr.bf16.mxu0 0
    %7963 = vmatpush1.bf16.msra.mxu0 %v7893
    %7964 = vmatprep.subr.bf16.mxu0 0
    %7965 = vmatpush1.bf16.msra.mxu0 %v7894
    %7966 = vmatprep.subr.bf16.mxu0 0
    %7967 = vmatpush1.bf16.msra.mxu0 %v7895
    %7968 = vmatprep.subr.bf16.mxu0 0
    %7969 = vmatpush1.bf16.msra.mxu0 %v7896
    %7970 = vmatprep.subr.bf16.mxu0 0
    %7971 = vmatpush1.bf16.msra.mxu0 %v7897
    %7972 = vmatprep.subr.bf16.mxu0 0
    %7973 = vmatpush1.bf16.msra.mxu0 %v7898
    %7974 = vmatprep.subr.bf16.mxu0 0
    %7975 = vmatpush1.bf16.msra.mxu0 %v7899
    %7976 = vmatprep.subr.bf16.mxu0 0
    %7977 = vmatpush1.bf16.msra.mxu0 %v7900
    %7978 = vmatprep.subr.bf16.mxu0 0
    %7979 = vmatpush1.bf16.msra.mxu0 %v7901
    %7980 = vmatprep.subr.bf16.mxu0 0
    %7981 = vmatpush1.bf16.msra.mxu0 %v7902
    %7982 = vmatprep.subr.bf16.mxu0 0
    %7983 = vmatpush1.bf16.msra.mxu0 %v7903
    %7984 = vmatprep.mubr.bf16.mxu0 %v7562
    %7985 = vmatmul.mubr.bf16.gmra.mrb[0].mxu0 %v7561
    %v7986 = vpop.f32.mrb[0].mxu0
    %v7987 = vadd.f32 %v7758, %v7986
    %v7988 = vpop.f32.mrb[0].mxu0
    %v7989 = vpop.f32.mrb[0].mxu0
    %v7990 = vadd.f32 %v7758, %v7989
    %v7991 = vpop.f32.mrb[0].mxu0
    %7992 = vmatprep.mubr.bf16.mxu0 %v7566
    %7993 = vmatmul.mubr.bf16.gmra.mrb[0].mxu0 %v7565
    %v7994 = vpop.f32.mrb[0].mxu0
    %v7995 = vadd.f32 %v7758, %v7994
    %v7996 = vpop.f32.mrb[0].mxu0
    %v7997 = vpop.f32.mrb[0].mxu0
    %v7998 = vadd.f32 %v7758, %v7997
    %v7999 = vpop.f32.mrb[0].mxu0
    %8000 = vmatprep.mubr.bf16.mxu0 %v7570
    %8001 = vmatmul.mubr.bf16.gmra.mrb[0].mxu0 %v7569
    %v8002 = vpop.f32.mrb[0].mxu0
    %v8003 = vadd.f32 %v7758, %v8002
    %v8004 = vpop.f32.mrb[0].mxu0
    %v8005 = vpop.f32.mrb[0].mxu0
    %v8006 = vadd.f32 %v7758, %v8005
    %v8007 = vpop.f32.mrb[0].mxu0
    %8008 = vmatprep.mubr.bf16.mxu0 %v7574
    %8009 = vmatmul.mubr.bf16.gmra.mrb[0].mxu0 %v7573
    %v8010 = vpop.f32.mrb[0].mxu0
    %v8011 = vadd.f32 %v7758, %v8010
    %v8012 = vpop.f32.mrb[0].mxu0
    %v8013 = vpop.f32.mrb[0].mxu0
    %v8014 = vadd.f32 %v7758, %v8013
    %v8015 = vpop.f32.mrb[0].mxu0
    %8016 = vmatprep.mubr.bf16.mxu0 %v7578
    %8017 = vmatmul.mubr.bf16.gmra.mrb[0].mxu0 %v7577
    %v8018 = vpop.f32.mrb[0].mxu0
    %v8019 = vadd.f32 %v7758, %v8018
    %v8020 = vpop.f32.mrb[0].mxu0
    %v8021 = vpop.f32.mrb[0].mxu0
    %v8022 = vadd.f32 %v7758, %v8021
    %v8023 = vpop.f32.mrb[0].mxu0
    %8024 = vmatprep.mubr.bf16.mxu0 %v7582
    %8025 = vmatmul.mubr.bf16.gmra.mrb[0].mxu0 %v7581
    %v8026 = vpop.f32.mrb[0].mxu0
    %v8027 = vadd.f32 %v7758, %v8026
    %v8028 = vpop.f32.mrb[0].mxu0
    %v8029 = vpop.f32.mrb[0].mxu0
    %v8030 = vadd.f32 %v7758, %v8029
    %v8031 = vpop.f32.mrb[0].mxu0
    %8032 = vmatprep.mubr.bf16.mxu0 %v7586
    %8033 = vmatmul.mubr.bf16.gmra.mrb[0].mxu0 %v7585
    %v8034 = vpop.f32.mrb[0].mxu0
    %v8035 = vadd.f32 %v7758, %v8034
    %v8036 = vpop.f32.mrb[0].mxu0
    %v8037 = vpop.f32.mrb[0].mxu0
    %v8038 = vadd.f32 %v7758, %v8037
    %v8039 = vpop.f32.mrb[0].mxu0
    %8040 = vmatprep.mubr.bf16.mxu0 %v7590
    %8041 = vmatmul.mubr.bf16.gmra.mrb[0].mxu0 %v7589
    %v8042 = vpop.f32.mrb[0].mxu0
    %v8043 = vadd.f32 %v7758, %v8042
    %v8044 = vpop.f32.mrb[0].mxu0
    %v8045 = vpop.f32.mrb[0].mxu0
    %v8046 = vadd.f32 %v7758, %v8045
    %v8047 = vpop.f32.mrb[0].mxu0
    %8048 = vmatprep.mubr.bf16.mxu0 %v7594
    %8049 = vmatmul.mubr.bf16.gmra.mrb[0].mxu0 %v7593
    %v8050 = vpop.f32.mrb[0].mxu0
    %v8051 = vadd.f32 %v7758, %v8050
    %v8052 = vpop.f32.mrb[0].mxu0
    %v8053 = vpop.f32.mrb[0].mxu0
    %v8054 = vadd.f32 %v7758, %v8053
    %v8055 = vpop.f32.mrb[0].mxu0
    %8056 = vmatprep.mubr.bf16.mxu0 %v7598
    %8057 = vmatmul.mubr.bf16.gmra.mrb[0].mxu0 %v7597
    %v8058 = vpop.f32.mrb[0].mxu0
    %v8059 = vadd.f32 %v7758, %v8058
    %v8060 = vpop.f32.mrb[0].mxu0
    %v8061 = vpop.f32.mrb[0].mxu0
    %v8062 = vadd.f32 %v7758, %v8061
    %v8063 = vpop.f32.mrb[0].mxu0
    %8064 = vmatprep.mubr.bf16.mxu0 %v7602
    %8065 = vmatmul.mubr.bf16.gmra.mrb[0].mxu0 %v7601
    %v8066 = vpop.f32.mrb[0].mxu0
    %v8067 = vadd.f32 %v7758, %v8066
    %v8068 = vpop.f32.mrb[0].mxu0
    %v8069 = vpop.f32.mrb[0].mxu0
    %v8070 = vadd.f32 %v7758, %v8069
    %v8071 = vpop.f32.mrb[0].mxu0
    %8072 = vmatprep.mubr.bf16.mxu0 %v7606
    %8073 = vmatmul.mubr.bf16.gmra.mrb[0].mxu0 %v7605
    %v8074 = vpop.f32.mrb[0].mxu0
    %v8075 = vadd.f32 %v7758, %v8074
    %v8076 = vpop.f32.mrb[0].mxu0
    %v8077 = vpop.f32.mrb[0].mxu0
    %v8078 = vadd.f32 %v7758, %v8077
    %v8079 = vpop.f32.mrb[0].mxu0
    %8080 = vmatprep.mubr.bf16.mxu0 %v7610
    %8081 = vmatmul.mubr.bf16.gmra.mrb[0].mxu0 %v7609
    %v8082 = vpop.f32.mrb[0].mxu0
    %v8083 = vadd.f32 %v7758, %v8082
    %v8084 = vpop.f32.mrb[0].mxu0
    %v8085 = vpop.f32.mrb[0].mxu0
    %v8086 = vadd.f32 %v7758, %v8085
    %v8087 = vpop.f32.mrb[0].mxu0
    %8088 = vmatprep.mubr.bf16.mxu0 %v7614
    %8089 = vmatmul.mubr.bf16.gmra.mrb[0].mxu0 %v7613
    %v8090 = vpop.f32.mrb[0].mxu0
    %v8091 = vadd.f32 %v7758, %v8090
    %v8092 = vpop.f32.mrb[0].mxu0
    %v8093 = vpop.f32.mrb[0].mxu0
    %v8094 = vadd.f32 %v7758, %v8093
    %v8095 = vpop.f32.mrb[0].mxu0
    %8096 = vmatprep.mubr.bf16.mxu0 %v7618
    %8097 = vmatmul.mubr.bf16.gmra.mrb[0].mxu0 %v7617
    %v8098 = vpop.f32.mrb[0].mxu0
    %v8099 = vadd.f32 %v7758, %v8098
    %v8100 = vpop.f32.mrb[0].mxu0
    %v8101 = vpop.f32.mrb[0].mxu0
    %v8102 = vadd.f32 %v7758, %v8101
    %v8103 = vpop.f32.mrb[0].mxu0
    %8104 = vmatprep.mubr.bf16.mxu0 %v7622
    %8105 = vmatmul.mubr.bf16.gmra.mrb[0].mxu0 %v7621
    %v8106 = vpop.f32.mrb[0].mxu0
    %v8107 = vadd.f32 %v7758, %v8106
    %v8108 = vpop.f32.mrb[0].mxu0
    %v8109 = vpop.f32.mrb[0].mxu0
    %v8110 = vadd.f32 %v7758, %v8109
    %v8111 = vpop.f32.mrb[0].mxu0
    %8112 = vmatprep.mubr.bf16.mxu0 %v7626
    %8113 = vmatmul.mubr.bf16.gmra.mrb[0].mxu0 %v7625
    %v8114 = vpop.f32.mrb[0].mxu0
    %v8115 = vadd.f32 %v7758, %v8114
    %v8116 = vpop.f32.mrb[0].mxu0
    %v8117 = vpop.f32.mrb[0].mxu0
    %v8118 = vadd.f32 %v7758, %v8117
    %v8119 = vpop.f32.mrb[0].mxu0
    %8120 = vmatprep.mubr.bf16.mxu0 %v7630
    %8121 = vmatmul.mubr.bf16.gmra.mrb[0].mxu0 %v7629
    %v8122 = vpop.f32.mrb[0].mxu0
    %v8123 = vadd.f32 %v7758, %v8122
    %v8124 = vpop.f32.mrb[0].mxu0
    %v8125 = vpop.f32.mrb[0].mxu0
    %v8126 = vadd.f32 %v7758, %v8125
    %v8127 = vpop.f32.mrb[0].mxu0
    %8128 = vmatprep.mubr.bf16.mxu0 %v7634
    %8129 = vmatmul.mubr.bf16.gmra.mrb[0].mxu0 %v7633
    %v8130 = vpop.f32.mrb[0].mxu0
    %v8131 = vadd.f32 %v7758, %v8130
    %v8132 = vpop.f32.mrb[0].mxu0
    %v8133 = vpop.f32.mrb[0].mxu0
    %v8134 = vadd.f32 %v7758, %v8133
    %v8135 = vpop.f32.mrb[0].mxu0
    %8136 = vmatprep.mubr.bf16.mxu0 %v7638
    %8137 = vmatmul.mubr.bf16.gmra.mrb[0].mxu0 %v7637
    %v8138 = vpop.f32.mrb[0].mxu0
    %v8139 = vadd.f32 %v7758, %v8138
    %v8140 = vpop.f32.mrb[0].mxu0
    %v8141 = vpop.f32.mrb[0].mxu0
    %v8142 = vadd.f32 %v7758, %v8141
    %v8143 = vpop.f32.mrb[0].mxu0
    %8144 = vmatprep.mubr.bf16.mxu0 %v7642
    %8145 = vmatmul.mubr.bf16.gmra.mrb[0].mxu0 %v7641
    %v8146 = vpop.f32.mrb[0].mxu0
    %v8147 = vadd.f32 %v7758, %v8146
    %v8148 = vpop.f32.mrb[0].mxu0
    %v8149 = vpop.f32.mrb[0].mxu0
    %v8150 = vadd.f32 %v7758, %v8149
    %v8151 = vpop.f32.mrb[0].mxu0
    %8152 = vmatprep.mubr.bf16.mxu0 %v7646
    %8153 = vmatmul.mubr.bf16.gmra.mrb[0].mxu0 %v7645
    %v8154 = vpop.f32.mrb[0].mxu0
    %v8155 = vadd.f32 %v7758, %v8154
    %v8156 = vpop.f32.mrb[0].mxu0
    %v8157 = vpop.f32.mrb[0].mxu0
    %v8158 = vadd.f32 %v7758, %v8157
    %v8159 = vpop.f32.mrb[0].mxu0
    %8160 = vmatprep.mubr.bf16.mxu0 %v7650
    %8161 = vmatmul.mubr.bf16.gmra.mrb[0].mxu0 %v7649
    %v8162 = vpop.f32.mrb[0].mxu0
    %v8163 = vadd.f32 %v7758, %v8162
    %v8164 = vpop.f32.mrb[0].mxu0
    %v8165 = vpop.f32.mrb[0].mxu0
    %v8166 = vadd.f32 %v7758, %v8165
    %v8167 = vpop.f32.mrb[0].mxu0
    %8168 = vmatprep.mubr.bf16.mxu0 %v7654
    %8169 = vmatmul.mubr.bf16.gmra.mrb[0].mxu0 %v7653
    %v8170 = vpop.f32.mrb[0].mxu0
    %v8171 = vadd.f32 %v7758, %v8170
    %v8172 = vpop.f32.mrb[0].mxu0
    %v8173 = vpop.f32.mrb[0].mxu0
    %v8174 = vadd.f32 %v7758, %v8173
    %v8175 = vpop.f32.mrb[0].mxu0
    %8176 = vmatprep.mubr.bf16.mxu0 %v7658
    %8177 = vmatmul.mubr.bf16.gmra.mrb[0].mxu0 %v7657
    %v8178 = vpop.f32.mrb[0].mxu0
    %v8179 = vadd.f32 %v7758, %v8178
    %v8180 = vpop.f32.mrb[0].mxu0
    %v8181 = vpop.f32.mrb[0].mxu0
    %v8182 = vadd.f32 %v7758, %v8181
    %v8183 = vpop.f32.mrb[0].mxu0
    %8184 = vmatprep.mubr.bf16.mxu0 %v7662
    %8185 = vmatmul.mubr.bf16.gmra.mrb[0].mxu0 %v7661
    %v8186 = vpop.f32.mrb[0].mxu0
    %v8187 = vadd.f32 %v7758, %v8186
    %v8188 = vpop.f32.mrb[0].mxu0
    %v8189 = vpop.f32.mrb[0].mxu0
    %v8190 = vadd.f32 %v7758, %v8189
    %v8191 = vpop.f32.mrb[0].mxu0
    %8192 = vmatprep.mubr.bf16.mxu0 %v7666
    %8193 = vmatmul.mubr.bf16.gmra.mrb[0].mxu0 %v7665
    %v8194 = vpop.f32.mrb[0].mxu0
    %v8195 = vadd.f32 %v7758, %v8194
    %v8196 = vpop.f32.mrb[0].mxu0
    %v8197 = vpop.f32.mrb[0].mxu0
    %v8198 = vadd.f32 %v7758, %v8197
    %v8199 = vpop.f32.mrb[0].mxu0
    %8200 = vmatprep.mubr.bf16.mxu0 %v7670
    %8201 = vmatmul.mubr.bf16.gmra.mrb[0].mxu0 %v7669
    %v8202 = vpop.f32.mrb[0].mxu0
    %v8203 = vadd.f32 %v7758, %v8202
    %v8204 = vpop.f32.mrb[0].mxu0
    %v8205 = vpop.f32.mrb[0].mxu0
    %v8206 = vadd.f32 %v7758, %v8205
    %v8207 = vpop.f32.mrb[0].mxu0
    %8208 = vmatprep.mubr.bf16.mxu0 %v7674
    %8209 = vmatmul.mubr.bf16.gmra.mrb[0].mxu0 %v7673
    %v8210 = vpop.f32.mrb[0].mxu0
    %v8211 = vadd.f32 %v7758, %v8210
    %v8212 = vpop.f32.mrb[0].mxu0
    %v8213 = vpop.f32.mrb[0].mxu0
    %v8214 = vadd.f32 %v7758, %v8213
    %v8215 = vpop.f32.mrb[0].mxu0
    %8216 = vmatprep.mubr.bf16.mxu0 %v7678
    %8217 = vmatmul.mubr.bf16.gmra.mrb[0].mxu0 %v7677
    %v8218 = vpop.f32.mrb[0].mxu0
    %v8219 = vadd.f32 %v7758, %v8218
    %v8220 = vpop.f32.mrb[0].mxu0
    %v8221 = vpop.f32.mrb[0].mxu0
    %v8222 = vadd.f32 %v7758, %v8221
    %v8223 = vpop.f32.mrb[0].mxu0
    %8224 = vmatprep.mubr.bf16.mxu0 %v7682
    %8225 = vmatmul.mubr.bf16.gmra.mrb[0].mxu0 %v7681
    %v8226 = vpop.f32.mrb[0].mxu0
    %v8227 = vadd.f32 %v7758, %v8226
    %v8228 = vpop.f32.mrb[0].mxu0
    %v8229 = vpop.f32.mrb[0].mxu0
    %v8230 = vadd.f32 %v7758, %v8229
    %v8231 = vpop.f32.mrb[0].mxu0
    %8232 = vmatprep.mubr.bf16.mxu0 %v7686
    %8233 = vmatmul.mubr.bf16.gmra.mrb[0].mxu0 %v7685
    %v8234 = vpop.f32.mrb[0].mxu0
    %v8235 = vadd.f32 %v7758, %v8234
    %v8236 = vpop.f32.mrb[0].mxu0
    %v8237 = vpop.f32.mrb[0].mxu0
    %v8238 = vadd.f32 %v7758, %v8237
    %v8239 = vpop.f32.mrb[0].mxu0
    %8240 = vdwg.mxu0
    %8241 = vmatprep.subr.bf16.mxu0 0
    %8242 = vmatpush1.bf16.msra.mxu0 %v7904
    %8243 = vmatprep.subr.bf16.mxu0 0
    %8244 = vmatpush1.bf16.msra.mxu0 %v7905
    %8245 = vmatprep.subr.bf16.mxu0 0
    %8246 = vmatpush1.bf16.msra.mxu0 %v7906
    %8247 = vmatprep.subr.bf16.mxu0 0
    %8248 = vmatpush1.bf16.msra.mxu0 %v7907
    %8249 = vmatprep.subr.bf16.mxu0 0
    %8250 = vmatpush1.bf16.msra.mxu0 %v7908
    %8251 = vmatprep.subr.bf16.mxu0 0
    %8252 = vmatpush1.bf16.msra.mxu0 %v7909
    %8253 = vmatprep.subr.bf16.mxu0 0
    %8254 = vmatpush1.bf16.msra.mxu0 %v7910
    %8255 = vmatprep.subr.bf16.mxu0 0
    %8256 = vmatpush1.bf16.msra.mxu0 %v7911
    %8257 = vmatprep.subr.bf16.mxu0 0
    %8258 = vmatpush1.bf16.msra.mxu0 %v7912
    %8259 = vmatprep.subr.bf16.mxu0 0
    %8260 = vmatpush1.bf16.msra.mxu0 %v7913
    %8261 = vmatprep.subr.bf16.mxu0 0
    %8262 = vmatpush1.bf16.msra.mxu0 %v7914
    %8263 = vmatprep.subr.bf16.mxu0 0
    %8264 = vmatpush1.bf16.msra.mxu0 %v7915
    %8265 = vmatprep.subr.bf16.mxu0 0
    %8266 = vmatpush1.bf16.msra.mxu0 %v7916
    %8267 = vmatprep.subr.bf16.mxu0 0
    %8268 = vmatpush1.bf16.msra.mxu0 %v7917
    %8269 = vmatprep.subr.bf16.mxu0 0
    %8270 = vmatpush1.bf16.msra.mxu0 %v7918
    %8271 = vmatprep.subr.bf16.mxu0 0
    %8272 = vmatpush1.bf16.msra.mxu0 %v7919
    %8273 = vmatprep.mubr.bf16.mxu0 %v7564
    %8274 = vmatmul.mubr.bf16.gmra.mrb[0].mxu0 %v7563
    %v8275 = vpop.f32.mrb[0].mxu0
    %v8276 = vadd.f32 %v7987, %v8275
    %v8277 = vpop.f32.mrb[0].mxu0
    %v8278 = vpop.f32.mrb[0].mxu0
    %v8279 = vadd.f32 %v7990, %v8278
    %v8280 = vpop.f32.mrb[0].mxu0
    %8281 = vmatprep.mubr.bf16.mxu0 %v7568
    %8282 = vmatmul.mubr.bf16.gmra.mrb[0].mxu0 %v7567
    %v8283 = vpop.f32.mrb[0].mxu0
    %v8284 = vadd.f32 %v7995, %v8283
    %v8285 = vpop.f32.mrb[0].mxu0
    %v8286 = vpop.f32.mrb[0].mxu0
    %v8287 = vadd.f32 %v7998, %v8286
    %v8288 = vpop.f32.mrb[0].mxu0
    %8289 = vmatprep.mubr.bf16.mxu0 %v7572
    %8290 = vmatmul.mubr.bf16.gmra.mrb[0].mxu0 %v7571
    %v8291 = vpop.f32.mrb[0].mxu0
    %v8292 = vadd.f32 %v8003, %v8291
    %v8293 = vpop.f32.mrb[0].mxu0
    %v8294 = vpop.f32.mrb[0].mxu0
    %v8295 = vadd.f32 %v8006, %v8294
    %v8296 = vpop.f32.mrb[0].mxu0
    %8297 = vmatprep.mubr.bf16.mxu0 %v7576
    %8298 = vmatmul.mubr.bf16.gmra.mrb[0].mxu0 %v7575
    %v8299 = vpop.f32.mrb[0].mxu0
    %v8300 = vadd.f32 %v8011, %v8299
    %v8301 = vpop.f32.mrb[0].mxu0
    %v8302 = vpop.f32.mrb[0].mxu0
    %v8303 = vadd.f32 %v8014, %v8302
    %v8304 = vpop.f32.mrb[0].mxu0
    %8305 = vmatprep.mubr.bf16.mxu0 %v7580
    %8306 = vmatmul.mubr.bf16.gmra.mrb[0].mxu0 %v7579
    %v8307 = vpop.f32.mrb[0].mxu0
    %v8308 = vadd.f32 %v8019, %v8307
    %v8309 = vpop.f32.mrb[0].mxu0
    %v8310 = vpop.f32.mrb[0].mxu0
    %v8311 = vadd.f32 %v8022, %v8310
    %v8312 = vpop.f32.mrb[0].mxu0
    %8313 = vmatprep.mubr.bf16.mxu0 %v7584
    %8314 = vmatmul.mubr.bf16.gmra.mrb[0].mxu0 %v7583
    %v8315 = vpop.f32.mrb[0].mxu0
    %v8316 = vadd.f32 %v8027, %v8315
    %v8317 = vpop.f32.mrb[0].mxu0
    %v8318 = vpop.f32.mrb[0].mxu0
    %v8319 = vadd.f32 %v8030, %v8318
    %v8320 = vpop.f32.mrb[0].mxu0
    %8321 = vmatprep.mubr.bf16.mxu0 %v7588
    %8322 = vmatmul.mubr.bf16.gmra.mrb[0].mxu0 %v7587
    %v8323 = vpop.f32.mrb[0].mxu0
    %v8324 = vadd.f32 %v8035, %v8323
    %v8325 = vpop.f32.mrb[0].mxu0
    %v8326 = vpop.f32.mrb[0].mxu0
    %v8327 = vadd.f32 %v8038, %v8326
    %v8328 = vpop.f32.mrb[0].mxu0
    %8329 = vmatprep.mubr.bf16.mxu0 %v7592
    %8330 = vmatmul.mubr.bf16.gmra.mrb[0].mxu0 %v7591
    %v8331 = vpop.f32.mrb[0].mxu0
    %v8332 = vadd.f32 %v8043, %v8331
    %v8333 = vpop.f32.mrb[0].mxu0
    %v8334 = vpop.f32.mrb[0].mxu0
    %v8335 = vadd.f32 %v8046, %v8334
    %v8336 = vpop.f32.mrb[0].mxu0
    %8337 = vmatprep.mubr.bf16.mxu0 %v7596
    %8338 = vmatmul.mubr.bf16.gmra.mrb[0].mxu0 %v7595
    %v8339 = vpop.f32.mrb[0].mxu0
    %v8340 = vadd.f32 %v8051, %v8339
    %v8341 = vpop.f32.mrb[0].mxu0
    %v8342 = vpop.f32.mrb[0].mxu0
    %v8343 = vadd.f32 %v8054, %v8342
    %v8344 = vpop.f32.mrb[0].mxu0
    %8345 = vmatprep.mubr.bf16.mxu0 %v7600
    %8346 = vmatmul.mubr.bf16.gmra.mrb[0].mxu0 %v7599
    %v8347 = vpop.f32.mrb[0].mxu0
    %v8348 = vadd.f32 %v8059, %v8347
    %v8349 = vpop.f32.mrb[0].mxu0
    %v8350 = vpop.f32.mrb[0].mxu0
    %v8351 = vadd.f32 %v8062, %v8350
    %v8352 = vpop.f32.mrb[0].mxu0
    %8353 = vmatprep.mubr.bf16.mxu0 %v7604
    %8354 = vmatmul.mubr.bf16.gmra.mrb[0].mxu0 %v7603
    %v8355 = vpop.f32.mrb[0].mxu0
    %v8356 = vadd.f32 %v8067, %v8355
    %v8357 = vpop.f32.mrb[0].mxu0
    %v8358 = vpop.f32.mrb[0].mxu0
    %v8359 = vadd.f32 %v8070, %v8358
    %v8360 = vpop.f32.mrb[0].mxu0
    %8361 = vmatprep.mubr.bf16.mxu0 %v7608
    %8362 = vmatmul.mubr.bf16.gmra.mrb[0].mxu0 %v7607
    %v8363 = vpop.f32.mrb[0].mxu0
    %v8364 = vadd.f32 %v8075, %v8363
    %v8365 = vpop.f32.mrb[0].mxu0
    %v8366 = vpop.f32.mrb[0].mxu0
    %v8367 = vadd.f32 %v8078, %v8366
    %v8368 = vpop.f32.mrb[0].mxu0
    %8369 = vmatprep.mubr.bf16.mxu0 %v7612
    %8370 = vmatmul.mubr.bf16.gmra.mrb[0].mxu0 %v7611
    %v8371 = vpop.f32.mrb[0].mxu0
    %v8372 = vadd.f32 %v8083, %v8371
    %v8373 = vpop.f32.mrb[0].mxu0
    %v8374 = vpop.f32.mrb[0].mxu0
    %v8375 = vadd.f32 %v8086, %v8374
    %v8376 = vpop.f32.mrb[0].mxu0
    %8377 = vmatprep.mubr.bf16.mxu0 %v7616
    %8378 = vmatmul.mubr.bf16.gmra.mrb[0].mxu0 %v7615
    %v8379 = vpop.f32.mrb[0].mxu0
    %v8380 = vadd.f32 %v8091, %v8379
    %v8381 = vpop.f32.mrb[0].mxu0
    %v8382 = vpop.f32.mrb[0].mxu0
    %v8383 = vadd.f32 %v8094, %v8382
    %v8384 = vpop.f32.mrb[0].mxu0
    %8385 = vmatprep.mubr.bf16.mxu0 %v7620
    %8386 = vmatmul.mubr.bf16.gmra.mrb[0].mxu0 %v7619
    %v8387 = vpop.f32.mrb[0].mxu0
    %v8388 = vadd.f32 %v8099, %v8387
    %v8389 = vpop.f32.mrb[0].mxu0
    %v8390 = vpop.f32.mrb[0].mxu0
    %v8391 = vadd.f32 %v8102, %v8390
    %v8392 = vpop.f32.mrb[0].mxu0
    %8393 = vmatprep.mubr.bf16.mxu0 %v7624
    %8394 = vmatmul.mubr.bf16.gmra.mrb[0].mxu0 %v7623
    %v8395 = vpop.f32.mrb[0].mxu0
    %v8396 = vadd.f32 %v8107, %v8395
    %v8397 = vpop.f32.mrb[0].mxu0
    %v8398 = vpop.f32.mrb[0].mxu0
    %v8399 = vadd.f32 %v8110, %v8398
    %v8400 = vpop.f32.mrb[0].mxu0
    %8401 = vmatprep.mubr.bf16.mxu0 %v7628
    %8402 = vmatmul.mubr.bf16.gmra.mrb[0].mxu0 %v7627
    %v8403 = vpop.f32.mrb[0].mxu0
    %v8404 = vadd.f32 %v8115, %v8403
    %v8405 = vpop.f32.mrb[0].mxu0
    %v8406 = vpop.f32.mrb[0].mxu0
    %v8407 = vadd.f32 %v8118, %v8406
    %v8408 = vpop.f32.mrb[0].mxu0
    %8409 = vmatprep.mubr.bf16.mxu0 %v7632
    %8410 = vmatmul.mubr.bf16.gmra.mrb[0].mxu0 %v7631
    %v8411 = vpop.f32.mrb[0].mxu0
    %v8412 = vadd.f32 %v8123, %v8411
    %v8413 = vpop.f32.mrb[0].mxu0
    %v8414 = vpop.f32.mrb[0].mxu0
    %v8415 = vadd.f32 %v8126, %v8414
    %v8416 = vpop.f32.mrb[0].mxu0
    %8417 = vmatprep.mubr.bf16.mxu0 %v7636
    %8418 = vmatmul.mubr.bf16.gmra.mrb[0].mxu0 %v7635
    %v8419 = vpop.f32.mrb[0].mxu0
    %v8420 = vadd.f32 %v8131, %v8419
    %v8421 = vpop.f32.mrb[0].mxu0
    %v8422 = vpop.f32.mrb[0].mxu0
    %v8423 = vadd.f32 %v8134, %v8422
    %v8424 = vpop.f32.mrb[0].mxu0
    %8425 = vmatprep.mubr.bf16.mxu0 %v7640
    %8426 = vmatmul.mubr.bf16.gmra.mrb[0].mxu0 %v7639
    %v8427 = vpop.f32.mrb[0].mxu0
    %v8428 = vadd.f32 %v8139, %v8427
    %v8429 = vpop.f32.mrb[0].mxu0
    %v8430 = vpop.f32.mrb[0].mxu0
    %v8431 = vadd.f32 %v8142, %v8430
    %v8432 = vpop.f32.mrb[0].mxu0
    %8433 = vmatprep.mubr.bf16.mxu0 %v7644
    %8434 = vmatmul.mubr.bf16.gmra.mrb[0].mxu0 %v7643
    %v8435 = vpop.f32.mrb[0].mxu0
    %v8436 = vadd.f32 %v8147, %v8435
    %v8437 = vpop.f32.mrb[0].mxu0
    %v8438 = vpop.f32.mrb[0].mxu0
    %v8439 = vadd.f32 %v8150, %v8438
    %v8440 = vpop.f32.mrb[0].mxu0
    %8441 = vmatprep.mubr.bf16.mxu0 %v7648
    %8442 = vmatmul.mubr.bf16.gmra.mrb[0].mxu0 %v7647
    %v8443 = vpop.f32.mrb[0].mxu0
    %v8444 = vadd.f32 %v8155, %v8443
    %v8445 = vpop.f32.mrb[0].mxu0
    %v8446 = vpop.f32.mrb[0].mxu0
    %v8447 = vadd.f32 %v8158, %v8446
    %v8448 = vpop.f32.mrb[0].mxu0
    %8449 = vmatprep.mubr.bf16.mxu0 %v7652
    %8450 = vmatmul.mubr.bf16.gmra.mrb[0].mxu0 %v7651
    %v8451 = vpop.f32.mrb[0].mxu0
    %v8452 = vadd.f32 %v8163, %v8451
    %v8453 = vpop.f32.mrb[0].mxu0
    %v8454 = vpop.f32.mrb[0].mxu0
    %v8455 = vadd.f32 %v8166, %v8454
    %v8456 = vpop.f32.mrb[0].mxu0
    %8457 = vmatprep.mubr.bf16.mxu0 %v7656
    %8458 = vmatmul.mubr.bf16.gmra.mrb[0].mxu0 %v7655
    %v8459 = vpop.f32.mrb[0].mxu0
    %v8460 = vadd.f32 %v8171, %v8459
    %v8461 = vpop.f32.mrb[0].mxu0
    %v8462 = vpop.f32.mrb[0].mxu0
    %v8463 = vadd.f32 %v8174, %v8462
    %v8464 = vpop.f32.mrb[0].mxu0
    %8465 = vmatprep.mubr.bf16.mxu0 %v7660
    %8466 = vmatmul.mubr.bf16.gmra.mrb[0].mxu0 %v7659
    %v8467 = vpop.f32.mrb[0].mxu0
    %v8468 = vadd.f32 %v8179, %v8467
    %v8469 = vpop.f32.mrb[0].mxu0
    %v8470 = vpop.f32.mrb[0].mxu0
    %v8471 = vadd.f32 %v8182, %v8470
    %v8472 = vpop.f32.mrb[0].mxu0
    %8473 = vmatprep.mubr.bf16.mxu0 %v7664
    %8474 = vmatmul.mubr.bf16.gmra.mrb[0].mxu0 %v7663
    %v8475 = vpop.f32.mrb[0].mxu0
    %v8476 = vadd.f32 %v8187, %v8475
    %v8477 = vpop.f32.mrb[0].mxu0
    %v8478 = vpop.f32.mrb[0].mxu0
    %v8479 = vadd.f32 %v8190, %v8478
    %v8480 = vpop.f32.mrb[0].mxu0
    %8481 = vmatprep.mubr.bf16.mxu0 %v7668
    %8482 = vmatmul.mubr.bf16.gmra.mrb[0].mxu0 %v7667
    %v8483 = vpop.f32.mrb[0].mxu0
    %v8484 = vadd.f32 %v8195, %v8483
    %v8485 = vpop.f32.mrb[0].mxu0
    %v8486 = vpop.f32.mrb[0].mxu0
    %v8487 = vadd.f32 %v8198, %v8486
    %v8488 = vpop.f32.mrb[0].mxu0
    %8489 = vmatprep.mubr.bf16.mxu0 %v7672
    %8490 = vmatmul.mubr.bf16.gmra.mrb[0].mxu0 %v7671
    %v8491 = vpop.f32.mrb[0].mxu0
    %v8492 = vadd.f32 %v8203, %v8491
    %v8493 = vpop.f32.mrb[0].mxu0
    %v8494 = vpop.f32.mrb[0].mxu0
    %v8495 = vadd.f32 %v8206, %v8494
    %v8496 = vpop.f32.mrb[0].mxu0
    %8497 = vmatprep.mubr.bf16.mxu0 %v7676
    %8498 = vmatmul.mubr.bf16.gmra.mrb[0].mxu0 %v7675
    %v8499 = vpop.f32.mrb[0].mxu0
    %v8500 = vadd.f32 %v8211, %v8499
    %v8501 = vpop.f32.mrb[0].mxu0
    %v8502 = vpop.f32.mrb[0].mxu0
    %v8503 = vadd.f32 %v8214, %v8502
    %v8504 = vpop.f32.mrb[0].mxu0
    %8505 = vmatprep.mubr.bf16.mxu0 %v7680
    %8506 = vmatmul.mubr.bf16.gmra.mrb[0].mxu0 %v7679
    %v8507 = vpop.f32.mrb[0].mxu0
    %v8508 = vadd.f32 %v8219, %v8507
    %v8509 = vpop.f32.mrb[0].mxu0
    %v8510 = vpop.f32.mrb[0].mxu0
    %v8511 = vadd.f32 %v8222, %v8510
    %v8512 = vpop.f32.mrb[0].mxu0
    %8513 = vmatprep.mubr.bf16.mxu0 %v7684
    %8514 = vmatmul.mubr.bf16.gmra.mrb[0].mxu0 %v7683
    %v8515 = vpop.f32.mrb[0].mxu0
    %v8516 = vadd.f32 %v8227, %v8515
    %v8517 = vpop.f32.mrb[0].mxu0
    %v8518 = vpop.f32.mrb[0].mxu0
    %v8519 = vadd.f32 %v8230, %v8518
    %v8520 = vpop.f32.mrb[0].mxu0
    %8521 = vmatprep.mubr.bf16.mxu0 %v7688
    %8522 = vmatmul.mubr.bf16.gmra.mrb[0].mxu0 %v7687
    %v8523 = vpop.f32.mrb[0].mxu0
    %v8524 = vadd.f32 %v8235, %v8523
    %v8525 = vpop.f32.mrb[0].mxu0
    %v8526 = vpop.f32.mrb[0].mxu0
    %v8527 = vadd.f32 %v8238, %v8526
    %v8528 = vpop.f32.mrb[0].mxu0
    %8529 = vdwg.mxu0
    %v8530 = vmax.f32 %v8276, 0.0
    %v8531 = vmax.f32 %v8279, 0.0
    %v8532 = vmax.f32 %v8284, 0.0
    %v8533 = vmax.f32 %v8287, 0.0
    %v8534 = vmax.f32 %v8292, 0.0
    %v8535 = vmax.f32 %v8295, 0.0
    %v8536 = vmax.f32 %v8300, 0.0
    %v8537 = vmax.f32 %v8303, 0.0
    %v8538 = vmax.f32 %v8308, 0.0
    %v8539 = vmax.f32 %v8311, 0.0
    %v8540 = vmax.f32 %v8316, 0.0
    %v8541 = vmax.f32 %v8319, 0.0
    %v8542 = vmax.f32 %v8324, 0.0
    %v8543 = vmax.f32 %v8327, 0.0
    %v8544 = vmax.f32 %v8332, 0.0
    %v8545 = vmax.f32 %v8335, 0.0
    %v8546 = vmax.f32 %v8340, 0.0
    %v8547 = vmax.f32 %v8343, 0.0
    %v8548 = vmax.f32 %v8348, 0.0
    %v8549 = vmax.f32 %v8351, 0.0
    %v8550 = vmax.f32 %v8356, 0.0
    %v8551 = vmax.f32 %v8359, 0.0
    %v8552 = vmax.f32 %v8364, 0.0
    %v8553 = vmax.f32 %v8367, 0.0
    %v8554 = vmax.f32 %v8372, 0.0
    %v8555 = vmax.f32 %v8375, 0.0
    %v8556 = vmax.f32 %v8380, 0.0
    %v8557 = vmax.f32 %v8383, 0.0
    %v8558 = vmax.f32 %v8388, 0.0
    %v8559 = vmax.f32 %v8391, 0.0
    %v8560 = vmax.f32 %v8396, 0.0
    %v8561 = vmax.f32 %v8399, 0.0
    %v8562 = vmax.f32 %v8404, 0.0
    %v8563 = vmax.f32 %v8407, 0.0
    %v8564 = vmax.f32 %v8412, 0.0
    %v8565 = vmax.f32 %v8415, 0.0
    %v8566 = vmax.f32 %v8420, 0.0
    %v8567 = vmax.f32 %v8423, 0.0
    %v8568 = vmax.f32 %v8428, 0.0
    %v8569 = vmax.f32 %v8431, 0.0
    %v8570 = vmax.f32 %v8436, 0.0
    %v8571 = vmax.f32 %v8439, 0.0
    %v8572 = vmax.f32 %v8444, 0.0
    %v8573 = vmax.f32 %v8447, 0.0
    %v8574 = vmax.f32 %v8452, 0.0
    %v8575 = vmax.f32 %v8455, 0.0
    %v8576 = vmax.f32 %v8460, 0.0
    %v8577 = vmax.f32 %v8463, 0.0
    %v8578 = vmax.f32 %v8468, 0.0
    %v8579 = vmax.f32 %v8471, 0.0
    %v8580 = vmax.f32 %v8476, 0.0
    %v8581 = vmax.f32 %v8479, 0.0
    %v8582 = vmax.f32 %v8484, 0.0
    %v8583 = vmax.f32 %v8487, 0.0
    %v8584 = vmax.f32 %v8492, 0.0
    %v8585 = vmax.f32 %v8495, 0.0
    %v8586 = vmax.f32 %v8500, 0.0
    %v8587 = vmax.f32 %v8503, 0.0
    %v8588 = vmax.f32 %v8508, 0.0
    %v8589 = vmax.f32 %v8511, 0.0
    %v8590 = vmax.f32 %v8516, 0.0
    %v8591 = vmax.f32 %v8519, 0.0
    %v8592 = vmax.f32 %v8524, 0.0
    %v8593 = vmax.f32 %v8527, 0.0
    %vm8594 = vcmask 523264
    %v8595 = vsel %vm8594, %v8530, 0.0
    %v8596 = vrot.slane %v8595, 4
    %v8597 = vadd.f32 %v8595, %v8596
    %v8598 = vrot.slane %v8597, 2
    %v8599 = vadd.f32 %v8597, %v8598
    %v8600 = vrot.slane %v8599, 1
    %v8601 = vadd.f32 %v8599, %v8600
    %v8602 = vsel %vm8594, %v8531, 0.0
    %v8603 = vrot.slane %v8602, 4
    %v8604 = vadd.f32 %v8602, %v8603
    %v8605 = vrot.slane %v8604, 2
    %v8606 = vadd.f32 %v8604, %v8605
    %v8607 = vrot.slane %v8606, 1
    %v8608 = vadd.f32 %v8606, %v8607
    %v8609 = vsel %vm8594, %v8532, 0.0
    %v8610 = vrot.slane %v8609, 4
    %v8611 = vadd.f32 %v8609, %v8610
    %v8612 = vrot.slane %v8611, 2
    %v8613 = vadd.f32 %v8611, %v8612
    %v8614 = vrot.slane %v8613, 1
    %v8615 = vadd.f32 %v8613, %v8614
    %v8616 = vsel %vm8594, %v8533, 0.0
    %v8617 = vrot.slane %v8616, 4
    %v8618 = vadd.f32 %v8616, %v8617
    %v8619 = vrot.slane %v8618, 2
    %v8620 = vadd.f32 %v8618, %v8619
    %v8621 = vrot.slane %v8620, 1
    %v8622 = vadd.f32 %v8620, %v8621
    %v8623 = vsel %vm8594, %v8534, 0.0
    %v8624 = vrot.slane %v8623, 4
    %v8625 = vadd.f32 %v8623, %v8624
    %v8626 = vrot.slane %v8625, 2
    %v8627 = vadd.f32 %v8625, %v8626
    %v8628 = vrot.slane %v8627, 1
    %v8629 = vadd.f32 %v8627, %v8628
    %v8630 = vsel %vm8594, %v8535, 0.0
    %v8631 = vrot.slane %v8630, 4
    %v8632 = vadd.f32 %v8630, %v8631
    %v8633 = vrot.slane %v8632, 2
    %v8634 = vadd.f32 %v8632, %v8633
    %v8635 = vrot.slane %v8634, 1
    %v8636 = vadd.f32 %v8634, %v8635
    %v8637 = vsel %vm8594, %v8536, 0.0
    %v8638 = vrot.slane %v8637, 4
    %v8639 = vadd.f32 %v8637, %v8638
    %v8640 = vrot.slane %v8639, 2
    %v8641 = vadd.f32 %v8639, %v8640
    %v8642 = vrot.slane %v8641, 1
    %v8643 = vadd.f32 %v8641, %v8642
    %v8644 = vsel %vm8594, %v8537, 0.0
    %v8645 = vrot.slane %v8644, 4
    %v8646 = vadd.f32 %v8644, %v8645
    %v8647 = vrot.slane %v8646, 2
    %v8648 = vadd.f32 %v8646, %v8647
    %v8649 = vrot.slane %v8648, 1
    %v8650 = vadd.f32 %v8648, %v8649
    %v8651 = vsel %vm8594, %v8538, 0.0
    %v8652 = vrot.slane %v8651, 4
    %v8653 = vadd.f32 %v8651, %v8652
    %v8654 = vrot.slane %v8653, 2
    %v8655 = vadd.f32 %v8653, %v8654
    %v8656 = vrot.slane %v8655, 1
    %v8657 = vadd.f32 %v8655, %v8656
    %v8658 = vsel %vm8594, %v8539, 0.0
    %v8659 = vrot.slane %v8658, 4
    %v8660 = vadd.f32 %v8658, %v8659
    %v8661 = vrot.slane %v8660, 2
    %v8662 = vadd.f32 %v8660, %v8661
    %v8663 = vrot.slane %v8662, 1
    %v8664 = vadd.f32 %v8662, %v8663
    %v8665 = vsel %vm8594, %v8540, 0.0
    %v8666 = vrot.slane %v8665, 4
    %v8667 = vadd.f32 %v8665, %v8666
    %v8668 = vrot.slane %v8667, 2
    %v8669 = vadd.f32 %v8667, %v8668
    %v8670 = vrot.slane %v8669, 1
    %v8671 = vadd.f32 %v8669, %v8670
    %v8672 = vsel %vm8594, %v8541, 0.0
    %v8673 = vrot.slane %v8672, 4
    %v8674 = vadd.f32 %v8672, %v8673
    %v8675 = vrot.slane %v8674, 2
    %v8676 = vadd.f32 %v8674, %v8675
    %v8677 = vrot.slane %v8676, 1
    %v8678 = vadd.f32 %v8676, %v8677
    %v8679 = vsel %vm8594, %v8542, 0.0
    %v8680 = vrot.slane %v8679, 4
    %v8681 = vadd.f32 %v8679, %v8680
    %v8682 = vrot.slane %v8681, 2
    %v8683 = vadd.f32 %v8681, %v8682
    %v8684 = vrot.slane %v8683, 1
    %v8685 = vadd.f32 %v8683, %v8684
    %v8686 = vsel %vm8594, %v8543, 0.0
    %v8687 = vrot.slane %v8686, 4
    %v8688 = vadd.f32 %v8686, %v8687
    %v8689 = vrot.slane %v8688, 2
    %v8690 = vadd.f32 %v8688, %v8689
    %v8691 = vrot.slane %v8690, 1
    %v8692 = vadd.f32 %v8690, %v8691
    %v8693 = vsel %vm8594, %v8544, 0.0
    %v8694 = vrot.slane %v8693, 4
    %v8695 = vadd.f32 %v8693, %v8694
    %v8696 = vrot.slane %v8695, 2
    %v8697 = vadd.f32 %v8695, %v8696
    %v8698 = vrot.slane %v8697, 1
    %v8699 = vadd.f32 %v8697, %v8698
    %v8700 = vsel %vm8594, %v8545, 0.0
    %v8701 = vrot.slane %v8700, 4
    %v8702 = vadd.f32 %v8700, %v8701
    %v8703 = vrot.slane %v8702, 2
    %v8704 = vadd.f32 %v8702, %v8703
    %v8705 = vrot.slane %v8704, 1
    %v8706 = vadd.f32 %v8704, %v8705
    %v8707 = vsel %vm8594, %v8546, 0.0
    %v8708 = vrot.slane %v8707, 4
    %v8709 = vadd.f32 %v8707, %v8708
    %v8710 = vrot.slane %v8709, 2
    %v8711 = vadd.f32 %v8709, %v8710
    %v8712 = vrot.slane %v8711, 1
    %v8713 = vadd.f32 %v8711, %v8712
    %v8714 = vsel %vm8594, %v8547, 0.0
    %v8715 = vrot.slane %v8714, 4
    %v8716 = vadd.f32 %v8714, %v8715
    %v8717 = vrot.slane %v8716, 2
    %v8718 = vadd.f32 %v8716, %v8717
    %v8719 = vrot.slane %v8718, 1
    %v8720 = vadd.f32 %v8718, %v8719
    %v8721 = vsel %vm8594, %v8548, 0.0
    %v8722 = vrot.slane %v8721, 4
    %v8723 = vadd.f32 %v8721, %v8722
    %v8724 = vrot.slane %v8723, 2
    %v8725 = vadd.f32 %v8723, %v8724
    %v8726 = vrot.slane %v8725, 1
    %v8727 = vadd.f32 %v8725, %v8726
    %v8728 = vsel %vm8594, %v8549, 0.0
    %v8729 = vrot.slane %v8728, 4
    %v8730 = vadd.f32 %v8728, %v8729
    %v8731 = vrot.slane %v8730, 2
    %v8732 = vadd.f32 %v8730, %v8731
    %v8733 = vrot.slane %v8732, 1
    %v8734 = vadd.f32 %v8732, %v8733
    %v8735 = vsel %vm8594, %v8550, 0.0
    %v8736 = vrot.slane %v8735, 4
    %v8737 = vadd.f32 %v8735, %v8736
    %v8738 = vrot.slane %v8737, 2
    %v8739 = vadd.f32 %v8737, %v8738
    %v8740 = vrot.slane %v8739, 1
    %v8741 = vadd.f32 %v8739, %v8740
    %v8742 = vsel %vm8594, %v8551, 0.0
    %v8743 = vrot.slane %v8742, 4
    %v8744 = vadd.f32 %v8742, %v8743
    %v8745 = vrot.slane %v8744, 2
    %v8746 = vadd.f32 %v8744, %v8745
    %v8747 = vrot.slane %v8746, 1
    %v8748 = vadd.f32 %v8746, %v8747
    %v8749 = vsel %vm8594, %v8552, 0.0
    %v8750 = vrot.slane %v8749, 4
    %v8751 = vadd.f32 %v8749, %v8750
    %v8752 = vrot.slane %v8751, 2
    %v8753 = vadd.f32 %v8751, %v8752
    %v8754 = vrot.slane %v8753, 1
    %v8755 = vadd.f32 %v8753, %v8754
    %v8756 = vsel %vm8594, %v8553, 0.0
    %v8757 = vrot.slane %v8756, 4
    %v8758 = vadd.f32 %v8756, %v8757
    %v8759 = vrot.slane %v8758, 2
    %v8760 = vadd.f32 %v8758, %v8759
    %v8761 = vrot.slane %v8760, 1
    %v8762 = vadd.f32 %v8760, %v8761
    %v8763 = vsel %vm8594, %v8554, 0.0
    %v8764 = vrot.slane %v8763, 4
    %v8765 = vadd.f32 %v8763, %v8764
    %v8766 = vrot.slane %v8765, 2
    %v8767 = vadd.f32 %v8765, %v8766
    %v8768 = vrot.slane %v8767, 1
    %v8769 = vadd.f32 %v8767, %v8768
    %v8770 = vsel %vm8594, %v8555, 0.0
    %v8771 = vrot.slane %v8770, 4
    %v8772 = vadd.f32 %v8770, %v8771
    %v8773 = vrot.slane %v8772, 2
    %v8774 = vadd.f32 %v8772, %v8773
    %v8775 = vrot.slane %v8774, 1
    %v8776 = vadd.f32 %v8774, %v8775
    %v8777 = vsel %vm8594, %v8556, 0.0
    %v8778 = vrot.slane %v8777, 4
    %v8779 = vadd.f32 %v8777, %v8778
    %v8780 = vrot.slane %v8779, 2
    %v8781 = vadd.f32 %v8779, %v8780
    %v8782 = vrot.slane %v8781, 1
    %v8783 = vadd.f32 %v8781, %v8782
    %v8784 = vsel %vm8594, %v8557, 0.0
    %v8785 = vrot.slane %v8784, 4
    %v8786 = vadd.f32 %v8784, %v8785
    %v8787 = vrot.slane %v8786, 2
    %v8788 = vadd.f32 %v8786, %v8787
    %v8789 = vrot.slane %v8788, 1
    %v8790 = vadd.f32 %v8788, %v8789
    %v8791 = vsel %vm8594, %v8558, 0.0
    %v8792 = vrot.slane %v8791, 4
    %v8793 = vadd.f32 %v8791, %v8792
    %v8794 = vrot.slane %v8793, 2
    %v8795 = vadd.f32 %v8793, %v8794
    %v8796 = vrot.slane %v8795, 1
    %v8797 = vadd.f32 %v8795, %v8796
    %v8798 = vsel %vm8594, %v8559, 0.0
    %v8799 = vrot.slane %v8798, 4
    %v8800 = vadd.f32 %v8798, %v8799
    %v8801 = vrot.slane %v8800, 2
    %v8802 = vadd.f32 %v8800, %v8801
    %v8803 = vrot.slane %v8802, 1
    %v8804 = vadd.f32 %v8802, %v8803
    %v8805 = vsel %vm8594, %v8560, 0.0
    %v8806 = vrot.slane %v8805, 4
    %v8807 = vadd.f32 %v8805, %v8806
    %v8808 = vrot.slane %v8807, 2
    %v8809 = vadd.f32 %v8807, %v8808
    %v8810 = vrot.slane %v8809, 1
    %v8811 = vadd.f32 %v8809, %v8810
    %v8812 = vsel %vm8594, %v8561, 0.0
    %v8813 = vrot.slane %v8812, 4
    %v8814 = vadd.f32 %v8812, %v8813
    %v8815 = vrot.slane %v8814, 2
    %v8816 = vadd.f32 %v8814, %v8815
    %v8817 = vrot.slane %v8816, 1
    %v8818 = vadd.f32 %v8816, %v8817
    %v8819 = vsel %vm8594, %v8562, 0.0
    %v8820 = vrot.slane %v8819, 4
    %v8821 = vadd.f32 %v8819, %v8820
    %v8822 = vrot.slane %v8821, 2
    %v8823 = vadd.f32 %v8821, %v8822
    %v8824 = vrot.slane %v8823, 1
    %v8825 = vadd.f32 %v8823, %v8824
    %v8826 = vsel %vm8594, %v8563, 0.0
    %v8827 = vrot.slane %v8826, 4
    %v8828 = vadd.f32 %v8826, %v8827
    %v8829 = vrot.slane %v8828, 2
    %v8830 = vadd.f32 %v8828, %v8829
    %v8831 = vrot.slane %v8830, 1
    %v8832 = vadd.f32 %v8830, %v8831
    %v8833 = vsel %vm8594, %v8564, 0.0
    %v8834 = vrot.slane %v8833, 4
    %v8835 = vadd.f32 %v8833, %v8834
    %v8836 = vrot.slane %v8835, 2
    %v8837 = vadd.f32 %v8835, %v8836
    %v8838 = vrot.slane %v8837, 1
    %v8839 = vadd.f32 %v8837, %v8838
    %v8840 = vsel %vm8594, %v8565, 0.0
    %v8841 = vrot.slane %v8840, 4
    %v8842 = vadd.f32 %v8840, %v8841
    %v8843 = vrot.slane %v8842, 2
    %v8844 = vadd.f32 %v8842, %v8843
    %v8845 = vrot.slane %v8844, 1
    %v8846 = vadd.f32 %v8844, %v8845
    %v8847 = vsel %vm8594, %v8566, 0.0
    %v8848 = vrot.slane %v8847, 4
    %v8849 = vadd.f32 %v8847, %v8848
    %v8850 = vrot.slane %v8849, 2
    %v8851 = vadd.f32 %v8849, %v8850
    %v8852 = vrot.slane %v8851, 1
    %v8853 = vadd.f32 %v8851, %v8852
    %v8854 = vsel %vm8594, %v8567, 0.0
    %v8855 = vrot.slane %v8854, 4
    %v8856 = vadd.f32 %v8854, %v8855
    %v8857 = vrot.slane %v8856, 2
    %v8858 = vadd.f32 %v8856, %v8857
    %v8859 = vrot.slane %v8858, 1
    %v8860 = vadd.f32 %v8858, %v8859
    %v8861 = vsel %vm8594, %v8568, 0.0
    %v8862 = vrot.slane %v8861, 4
    %v8863 = vadd.f32 %v8861, %v8862
    %v8864 = vrot.slane %v8863, 2
    %v8865 = vadd.f32 %v8863, %v8864
    %v8866 = vrot.slane %v8865, 1
    %v8867 = vadd.f32 %v8865, %v8866
    %v8868 = vsel %vm8594, %v8569, 0.0
    %v8869 = vrot.slane %v8868, 4
    %v8870 = vadd.f32 %v8868, %v8869
    %v8871 = vrot.slane %v8870, 2
    %v8872 = vadd.f32 %v8870, %v8871
    %v8873 = vrot.slane %v8872, 1
    %v8874 = vadd.f32 %v8872, %v8873
    %v8875 = vsel %vm8594, %v8570, 0.0
    %v8876 = vrot.slane %v8875, 4
    %v8877 = vadd.f32 %v8875, %v8876
    %v8878 = vrot.slane %v8877, 2
    %v8879 = vadd.f32 %v8877, %v8878
    %v8880 = vrot.slane %v8879, 1
    %v8881 = vadd.f32 %v8879, %v8880
    %v8882 = vsel %vm8594, %v8571, 0.0
    %v8883 = vrot.slane %v8882, 4
    %v8884 = vadd.f32 %v8882, %v8883
    %v8885 = vrot.slane %v8884, 2
    %v8886 = vadd.f32 %v8884, %v8885
    %v8887 = vrot.slane %v8886, 1
    %v8888 = vadd.f32 %v8886, %v8887
    %v8889 = vsel %vm8594, %v8572, 0.0
    %v8890 = vrot.slane %v8889, 4
    %v8891 = vadd.f32 %v8889, %v8890
    %v8892 = vrot.slane %v8891, 2
    %v8893 = vadd.f32 %v8891, %v8892
    %v8894 = vrot.slane %v8893, 1
    %v8895 = vadd.f32 %v8893, %v8894
    %v8896 = vsel %vm8594, %v8573, 0.0
    %v8897 = vrot.slane %v8896, 4
    %v8898 = vadd.f32 %v8896, %v8897
    %v8899 = vrot.slane %v8898, 2
    %v8900 = vadd.f32 %v8898, %v8899
    %v8901 = vrot.slane %v8900, 1
    %v8902 = vadd.f32 %v8900, %v8901
    %v8903 = vsel %vm8594, %v8574, 0.0
    %v8904 = vrot.slane %v8903, 4
    %v8905 = vadd.f32 %v8903, %v8904
    %v8906 = vrot.slane %v8905, 2
    %v8907 = vadd.f32 %v8905, %v8906
    %v8908 = vrot.slane %v8907, 1
    %v8909 = vadd.f32 %v8907, %v8908
    %v8910 = vsel %vm8594, %v8575, 0.0
    %v8911 = vrot.slane %v8910, 4
    %v8912 = vadd.f32 %v8910, %v8911
    %v8913 = vrot.slane %v8912, 2
    %v8914 = vadd.f32 %v8912, %v8913
    %v8915 = vrot.slane %v8914, 1
    %v8916 = vadd.f32 %v8914, %v8915
    %v8917 = vsel %vm8594, %v8576, 0.0
    %v8918 = vrot.slane %v8917, 4
    %v8919 = vadd.f32 %v8917, %v8918
    %v8920 = vrot.slane %v8919, 2
    %v8921 = vadd.f32 %v8919, %v8920
    %v8922 = vrot.slane %v8921, 1
    %v8923 = vadd.f32 %v8921, %v8922
    %v8924 = vsel %vm8594, %v8577, 0.0
    %v8925 = vrot.slane %v8924, 4
    %v8926 = vadd.f32 %v8924, %v8925
    %v8927 = vrot.slane %v8926, 2
    %v8928 = vadd.f32 %v8926, %v8927
    %v8929 = vrot.slane %v8928, 1
    %v8930 = vadd.f32 %v8928, %v8929
    %v8931 = vsel %vm8594, %v8578, 0.0
    %v8932 = vrot.slane %v8931, 4
    %v8933 = vadd.f32 %v8931, %v8932
    %v8934 = vrot.slane %v8933, 2
    %v8935 = vadd.f32 %v8933, %v8934
    %v8936 = vrot.slane %v8935, 1
    %v8937 = vadd.f32 %v8935, %v8936
    %v8938 = vsel %vm8594, %v8579, 0.0
    %v8939 = vrot.slane %v8938, 4
    %v8940 = vadd.f32 %v8938, %v8939
    %v8941 = vrot.slane %v8940, 2
    %v8942 = vadd.f32 %v8940, %v8941
    %v8943 = vrot.slane %v8942, 1
    %v8944 = vadd.f32 %v8942, %v8943
    %v8945 = vsel %vm8594, %v8580, 0.0
    %v8946 = vrot.slane %v8945, 4
    %v8947 = vadd.f32 %v8945, %v8946
    %v8948 = vrot.slane %v8947, 2
    %v8949 = vadd.f32 %v8947, %v8948
    %v8950 = vrot.slane %v8949, 1
    %v8951 = vadd.f32 %v8949, %v8950
    %v8952 = vsel %vm8594, %v8581, 0.0
    %v8953 = vrot.slane %v8952, 4
    %v8954 = vadd.f32 %v8952, %v8953
    %v8955 = vrot.slane %v8954, 2
    %v8956 = vadd.f32 %v8954, %v8955
    %v8957 = vrot.slane %v8956, 1
    %v8958 = vadd.f32 %v8956, %v8957
    %v8959 = vsel %vm8594, %v8582, 0.0
    %v8960 = vrot.slane %v8959, 4
    %v8961 = vadd.f32 %v8959, %v8960
    %v8962 = vrot.slane %v8961, 2
    %v8963 = vadd.f32 %v8961, %v8962
    %v8964 = vrot.slane %v8963, 1
    %v8965 = vadd.f32 %v8963, %v8964
    %v8966 = vsel %vm8594, %v8583, 0.0
    %v8967 = vrot.slane %v8966, 4
    %v8968 = vadd.f32 %v8966, %v8967
    %v8969 = vrot.slane %v8968, 2
    %v8970 = vadd.f32 %v8968, %v8969
    %v8971 = vrot.slane %v8970, 1
    %v8972 = vadd.f32 %v8970, %v8971
    %v8973 = vsel %vm8594, %v8584, 0.0
    %v8974 = vrot.slane %v8973, 4
    %v8975 = vadd.f32 %v8973, %v8974
    %v8976 = vrot.slane %v8975, 2
    %v8977 = vadd.f32 %v8975, %v8976
    %v8978 = vrot.slane %v8977, 1
    %v8979 = vadd.f32 %v8977, %v8978
    %v8980 = vsel %vm8594, %v8585, 0.0
    %v8981 = vrot.slane %v8980, 4
    %v8982 = vadd.f32 %v8980, %v8981
    %v8983 = vrot.slane %v8982, 2
    %v8984 = vadd.f32 %v8982, %v8983
    %v8985 = vrot.slane %v8984, 1
    %v8986 = vadd.f32 %v8984, %v8985
    %v8987 = vsel %vm8594, %v8586, 0.0
    %v8988 = vrot.slane %v8987, 4
    %v8989 = vadd.f32 %v8987, %v8988
    %v8990 = vrot.slane %v8989, 2
    %v8991 = vadd.f32 %v8989, %v8990
    %v8992 = vrot.slane %v8991, 1
    %v8993 = vadd.f32 %v8991, %v8992
    %v8994 = vsel %vm8594, %v8587, 0.0
    %v8995 = vrot.slane %v8994, 4
    %v8996 = vadd.f32 %v8994, %v8995
    %v8997 = vrot.slane %v8996, 2
    %v8998 = vadd.f32 %v8996, %v8997
    %v8999 = vrot.slane %v8998, 1
    %v9000 = vadd.f32 %v8998, %v8999
    %v9001 = vsel %vm8594, %v8588, 0.0
    %v9002 = vrot.slane %v9001, 4
    %v9003 = vadd.f32 %v9001, %v9002
    %v9004 = vrot.slane %v9003, 2
    %v9005 = vadd.f32 %v9003, %v9004
    %v9006 = vrot.slane %v9005, 1
    %v9007 = vadd.f32 %v9005, %v9006
    %v9008 = vsel %vm8594, %v8589, 0.0
    %v9009 = vrot.slane %v9008, 4
    %v9010 = vadd.f32 %v9008, %v9009
    %v9011 = vrot.slane %v9010, 2
    %v9012 = vadd.f32 %v9010, %v9011
    %v9013 = vrot.slane %v9012, 1
    %v9014 = vadd.f32 %v9012, %v9013
    %v9015 = vsel %vm8594, %v8590, 0.0
    %v9016 = vrot.slane %v9015, 4
    %v9017 = vadd.f32 %v9015, %v9016
    %v9018 = vrot.slane %v9017, 2
    %v9019 = vadd.f32 %v9017, %v9018
    %v9020 = vrot.slane %v9019, 1
    %v9021 = vadd.f32 %v9019, %v9020
    %v9022 = vsel %vm8594, %v8591, 0.0
    %v9023 = vrot.slane %v9022, 4
    %v9024 = vadd.f32 %v9022, %v9023
    %v9025 = vrot.slane %v9024, 2
    %v9026 = vadd.f32 %v9024, %v9025
    %v9027 = vrot.slane %v9026, 1
    %v9028 = vadd.f32 %v9026, %v9027
    %v9029 = vsel %vm8594, %v8592, 0.0
    %v9030 = vrot.slane %v9029, 4
    %v9031 = vadd.f32 %v9029, %v9030
    %v9032 = vrot.slane %v9031, 2
    %v9033 = vadd.f32 %v9031, %v9032
    %v9034 = vrot.slane %v9033, 1
    %v9035 = vadd.f32 %v9033, %v9034
    %v9036 = vsel %vm8594, %v8593, 0.0
    %v9037 = vrot.slane %v9036, 4
    %v9038 = vadd.f32 %v9036, %v9037
    %v9039 = vrot.slane %v9038, 2
    %v9040 = vadd.f32 %v9038, %v9039
    %v9041 = vrot.slane %v9040, 1
    %v9042 = vadd.f32 %v9040, %v9041
    %v9043 = vmul.f32 %v8601, 0.125
    %v9044 = vmul.f32 %v8608, 0.125
    %v9045 = vmul.f32 %v8615, 0.125
    %v9046 = vmul.f32 %v8622, 0.125
    %v9047 = vmul.f32 %v8629, 0.125
    %v9048 = vmul.f32 %v8636, 0.125
    %v9049 = vmul.f32 %v8643, 0.125
    %v9050 = vmul.f32 %v8650, 0.125
    %v9051 = vmul.f32 %v8657, 0.125
    %v9052 = vmul.f32 %v8664, 0.125
    %v9053 = vmul.f32 %v8671, 0.125
    %v9054 = vmul.f32 %v8678, 0.125
    %v9055 = vmul.f32 %v8685, 0.125
    %v9056 = vmul.f32 %v8692, 0.125
    %v9057 = vmul.f32 %v8699, 0.125
    %v9058 = vmul.f32 %v8706, 0.125
    %v9059 = vmul.f32 %v8713, 0.125
    %v9060 = vmul.f32 %v8720, 0.125
    %v9061 = vmul.f32 %v8727, 0.125
    %v9062 = vmul.f32 %v8734, 0.125
    %v9063 = vmul.f32 %v8741, 0.125
    %v9064 = vmul.f32 %v8748, 0.125
    %v9065 = vmul.f32 %v8755, 0.125
    %v9066 = vmul.f32 %v8762, 0.125
    %v9067 = vmul.f32 %v8769, 0.125
    %v9068 = vmul.f32 %v8776, 0.125
    %v9069 = vmul.f32 %v8783, 0.125
    %v9070 = vmul.f32 %v8790, 0.125
    %v9071 = vmul.f32 %v8797, 0.125
    %v9072 = vmul.f32 %v8804, 0.125
    %v9073 = vmul.f32 %v8811, 0.125
    %v9074 = vmul.f32 %v8818, 0.125
    %v9075 = vmul.f32 %v8825, 0.125
    %v9076 = vmul.f32 %v8832, 0.125
    %v9077 = vmul.f32 %v8839, 0.125
    %v9078 = vmul.f32 %v8846, 0.125
    %v9079 = vmul.f32 %v8853, 0.125
    %v9080 = vmul.f32 %v8860, 0.125
    %v9081 = vmul.f32 %v8867, 0.125
    %v9082 = vmul.f32 %v8874, 0.125
    %v9083 = vmul.f32 %v8881, 0.125
    %v9084 = vmul.f32 %v8888, 0.125
    %v9085 = vmul.f32 %v8895, 0.125
    %v9086 = vmul.f32 %v8902, 0.125
    %v9087 = vmul.f32 %v8909, 0.125
    %v9088 = vmul.f32 %v8916, 0.125
    %v9089 = vmul.f32 %v8923, 0.125
    %v9090 = vmul.f32 %v8930, 0.125
    %v9091 = vmul.f32 %v8937, 0.125
    %v9092 = vmul.f32 %v8944, 0.125
    %v9093 = vmul.f32 %v8951, 0.125
    %v9094 = vmul.f32 %v8958, 0.125
    %v9095 = vmul.f32 %v8965, 0.125
    %v9096 = vmul.f32 %v8972, 0.125
    %v9097 = vmul.f32 %v8979, 0.125
    %v9098 = vmul.f32 %v8986, 0.125
    %v9099 = vmul.f32 %v8993, 0.125
    %v9100 = vmul.f32 %v9000, 0.125
    %v9101 = vmul.f32 %v9007, 0.125
    %v9102 = vmul.f32 %v9014, 0.125
    %v9103 = vmul.f32 %v9021, 0.125
    %v9104 = vmul.f32 %v9028, 0.125
    %v9105 = vmul.f32 %v9035, 0.125
    %v9106 = vmul.f32 %v9042, 0.125
    %v9107 = vld [vmem:[%s7] sm:$0xff]
    %v9108 = vld [vmem:[%s7 + $0x8] sm:$0xff]
    %v9109 = vld [vmem:[%s7 + $0x10] sm:$0xff]
    %v9110 = vld [vmem:[%s7 + $0x18] sm:$0xff]
    %v9111 = vld [vmem:[%s7 + $0x20] sm:$0xff]
    %v9112 = vld [vmem:[%s7 + $0x28] sm:$0xff]
    %v9113 = vld [vmem:[%s7 + $0x30] sm:$0xff]
    %v9114 = vld [vmem:[%s7 + $0x38] sm:$0xff]
    %v9115 = vld [vmem:[%s8] sm:$0x1]
    %v9117 = vlaneseq
    %v9118 = vshrl.u32 %v9117, 7
    %v9119 = vsub.s32 0, %v9118
    %v9120 = vrot.slane %v9115, %v9119
    %vm9186 = vcmask 1041409
    %v9187 = vsel %vm9186, %v9044, %v9043
    %vm9188 = vcmask 1042434
    %v9189 = vsel %vm9188, %v9045, %v9187
    %vm9190 = vcmask 1043459
    %v9191 = vsel %vm9190, %v9046, %v9189
    %vm9192 = vcmask 1044484
    %v9193 = vsel %vm9192, %v9047, %v9191
    %vm9194 = vcmask 1045509
    %v9195 = vsel %vm9194, %v9048, %v9193
    %vm9196 = vcmask 1046534
    %v9197 = vsel %vm9196, %v9049, %v9195
    %vm9198 = vcmask 1047559
    %v9199 = vsel %vm9198, %v9050, %v9197
    %v9200 = vsel %vm9186, %v9052, %v9051
    %v9201 = vsel %vm9188, %v9053, %v9200
    %v9202 = vsel %vm9190, %v9054, %v9201
    %v9203 = vsel %vm9192, %v9055, %v9202
    %v9204 = vsel %vm9194, %v9056, %v9203
    %v9205 = vsel %vm9196, %v9057, %v9204
    %v9206 = vsel %vm9198, %v9058, %v9205
    %v9207 = vsel %vm9186, %v9060, %v9059
    %v9208 = vsel %vm9188, %v9061, %v9207
    %v9209 = vsel %vm9190, %v9062, %v9208
    %v9210 = vsel %vm9192, %v9063, %v9209
    %v9211 = vsel %vm9194, %v9064, %v9210
    %v9212 = vsel %vm9196, %v9065, %v9211
    %v9213 = vsel %vm9198, %v9066, %v9212
    %v9214 = vsel %vm9186, %v9068, %v9067
    %v9215 = vsel %vm9188, %v9069, %v9214
    %v9216 = vsel %vm9190, %v9070, %v9215
    %v9217 = vsel %vm9192, %v9071, %v9216
    %v9218 = vsel %vm9194, %v9072, %v9217
    %v9219 = vsel %vm9196, %v9073, %v9218
    %v9220 = vsel %vm9198, %v9074, %v9219
    %v9221 = vsel %vm9186, %v9076, %v9075
    %v9222 = vsel %vm9188, %v9077, %v9221
    %v9223 = vsel %vm9190, %v9078, %v9222
    %v9224 = vsel %vm9192, %v9079, %v9223
    %v9225 = vsel %vm9194, %v9080, %v9224
    %v9226 = vsel %vm9196, %v9081, %v9225
    %v9227 = vsel %vm9198, %v9082, %v9226
    %v9228 = vsel %vm9186, %v9084, %v9083
    %v9229 = vsel %vm9188, %v9085, %v9228
    %v9230 = vsel %vm9190, %v9086, %v9229
    %v9231 = vsel %vm9192, %v9087, %v9230
    %v9232 = vsel %vm9194, %v9088, %v9231
    %v9233 = vsel %vm9196, %v9089, %v9232
    %v9234 = vsel %vm9198, %v9090, %v9233
    %v9235 = vsel %vm9186, %v9092, %v9091
    %v9236 = vsel %vm9188, %v9093, %v9235
    %v9237 = vsel %vm9190, %v9094, %v9236
    %v9238 = vsel %vm9192, %v9095, %v9237
    %v9239 = vsel %vm9194, %v9096, %v9238
    %v9240 = vsel %vm9196, %v9097, %v9239
    %v9241 = vsel %vm9198, %v9098, %v9240
    %v9242 = vsel %vm9186, %v9100, %v9099
    %v9243 = vsel %vm9188, %v9101, %v9242
    %v9244 = vsel %vm9190, %v9102, %v9243
    %v9245 = vsel %vm9192, %v9103, %v9244
    %v9246 = vsel %vm9194, %v9104, %v9245
    %v9247 = vsel %vm9196, %v9105, %v9246
    %v9248 = vsel %vm9198, %v9106, %v9247
    %v9249 = vsel %vm8594, %v9199, 0
    %v9251 = vsel %vm8594, %v9206, 0
    %v9253 = vsel %vm8594, %v9213, 0
    %v9255 = vsel %vm8594, %v9220, 0
    %v9257 = vsel %vm8594, %v9227, 0
    %v9259 = vsel %vm8594, %v9234, 0
    %v9261 = vsel %vm8594, %v9241, 0
    %v9263 = vsel %vm8594, %v9248, 0
    %9265 = vmatprep.subr.mxu0 0.0
    %9266 = vmatpush1.msra.mxu0 %v9107
    %9267 = vmatprep.subr.mxu0 0.0
    %9268 = vmatpush1.msra.mxu0 %v9108
    %9269 = vmatprep.subr.mxu0 0.0
    %9270 = vmatpush1.msra.mxu0 %v9109
    %9271 = vmatprep.subr.mxu0 0.0
    %9272 = vmatpush1.msra.mxu0 %v9110
    %9273 = vmatprep.subr.mxu0 0.0
    %9274 = vmatpush1.msra.mxu0 %v9111
    %9275 = vmatprep.subr.mxu0 0.0
    %9276 = vmatpush1.msra.mxu0 %v9112
    %9277 = vmatprep.subr.mxu0 0.0
    %9278 = vmatpush1.msra.mxu0 %v9113
    %9279 = vmatprep.subr.mxu0 0.0
    %9280 = vmatpush1.msra.mxu0 %v9114
    %9281 = vmatprep.subr.mxu0 0.0
    %9282 = vmatpush1.msra.mxu0 0.0
    %9283 = vmatprep.subr.mxu0 0.0
    %9284 = vmatpush1.msra.mxu0 0.0
    %9285 = vmatprep.subr.mxu0 0.0
    %9286 = vmatpush1.msra.mxu0 0.0
    %9287 = vmatprep.subr.mxu0 0.0
    %9288 = vmatpush1.msra.mxu0 0.0
    %9289 = vmatprep.subr.mxu0 0.0
    %9290 = vmatpush1.msra.mxu0 0.0
    %9291 = vmatprep.subr.mxu0 0.0
    %9292 = vmatpush1.msra.mxu0 0.0
    %9293 = vmatprep.subr.mxu0 0.0
    %9294 = vmatpush1.msra.mxu0 0.0
    %9295 = vmatprep.subr.mxu0 0.0
    %9296 = vmatpush1.msra.mxu0 0.0
    %9297 = vmatprep.subr.mxu0 0.0
    %9298 = vmatpush1.msra.mxu0 0.0
    %9299 = vmatprep.subr.mxu0 0.0
    %9300 = vmatpush1.msra.mxu0 0.0
    %9301 = vmatprep.subr.mxu0 0.0
    %9302 = vmatpush1.msra.mxu0 0.0
    %9303 = vmatprep.subr.mxu0 0.0
    %9304 = vmatpush1.msra.mxu0 0.0
    %9305 = vmatprep.subr.mxu0 0.0
    %9306 = vmatpush1.msra.mxu0 0.0
    %9307 = vmatprep.subr.mxu0 0.0
    %9308 = vmatpush1.msra.mxu0 0.0
    %9309 = vmatprep.subr.mxu0 0.0
    %9310 = vmatpush1.msra.mxu0 0.0
    %9311 = vmatprep.subr.mxu0 0.0
    %9312 = vmatpush1.msra.mxu0 0.0
    %9313 = vmatprep.subr.mxu0 0.0
    %9314 = vmatpush1.msra.mxu0 0.0
    %9315 = vmatprep.subr.mxu0 0.0
    %9316 = vmatpush1.msra.mxu0 0.0
    %9317 = vmatprep.subr.mxu0 0.0
    %9318 = vmatpush1.msra.mxu0 0.0
    %9319 = vmatprep.subr.mxu0 0.0
    %9320 = vmatpush1.msra.mxu0 0.0
    %9321 = vmatprep.subr.mxu0 0.0
    %9322 = vmatpush1.msra.mxu0 0.0
    %9323 = vmatprep.subr.mxu0 0.0
    %9324 = vmatpush1.msra.mxu0 0.0
    %9325 = vmatprep.subr.mxu0 0.0
    %9326 = vmatpush1.msra.mxu0 0.0
    %9327 = vmatprep.subr.mxu0 0.0
    %9328 = vmatpush1.msra.mxu0 0.0
    %9329 = vmatprep.mubr.f32.mxu0 0.0
    %9330 = vmatmul.mubr.f32.gmra.mrb[0].mxu0 %v9249
    %v9331 = vpop.f32.mrb[0].mxu0
    %v9332 = vadd.f32 %v9120, %v9331
    %v9333 = vpop.f32.mrb[0].mxu0
    %9334 = vmatprep.mubr.f32.mxu0 0.0
    %9335 = vmatmul.mubr.f32.gmra.mrb[0].mxu0 %v9251
    %v9336 = vpop.f32.mrb[0].mxu0
    %v9337 = vadd.f32 %v9120, %v9336
    %v9338 = vpop.f32.mrb[0].mxu0
    %9339 = vmatprep.mubr.f32.mxu0 0.0
    %9340 = vmatmul.mubr.f32.gmra.mrb[0].mxu0 %v9253
    %v9341 = vpop.f32.mrb[0].mxu0
    %v9342 = vadd.f32 %v9120, %v9341
    %v9343 = vpop.f32.mrb[0].mxu0
    %9344 = vmatprep.mubr.f32.mxu0 0.0
    %9345 = vmatmul.mubr.f32.gmra.mrb[0].mxu0 %v9255
    %v9346 = vpop.f32.mrb[0].mxu0
    %v9347 = vadd.f32 %v9120, %v9346
    %v9348 = vpop.f32.mrb[0].mxu0
    %9349 = vmatprep.mubr.f32.mxu0 0.0
    %9350 = vmatmul.mubr.f32.gmra.mrb[0].mxu0 %v9257
    %v9351 = vpop.f32.mrb[0].mxu0
    %v9352 = vadd.f32 %v9120, %v9351
    %v9353 = vpop.f32.mrb[0].mxu0
    %9354 = vmatprep.mubr.f32.mxu0 0.0
    %9355 = vmatmul.mubr.f32.gmra.mrb[0].mxu0 %v9259
    %v9356 = vpop.f32.mrb[0].mxu0
    %v9357 = vadd.f32 %v9120, %v9356
    %v9358 = vpop.f32.mrb[0].mxu0
    %9359 = vmatprep.mubr.f32.mxu0 0.0
    %9360 = vmatmul.mubr.f32.gmra.mrb[0].mxu0 %v9261
    %v9361 = vpop.f32.mrb[0].mxu0
    %v9362 = vadd.f32 %v9120, %v9361
    %v9363 = vpop.f32.mrb[0].mxu0
    %9364 = vmatprep.mubr.f32.mxu0 0.0
    %9365 = vmatmul.mubr.f32.gmra.mrb[0].mxu0 %v9263
    %v9366 = vpop.f32.mrb[0].mxu0
    %v9367 = vadd.f32 %v9120, %v9366
    %v9368 = vpop.f32.mrb[0].mxu0
    %9369 = vdwg.mxu0
    %vm9370 = vcmask 48128
    %9371 = vst.msk [vmem:[%s9] sm:$0xff] %vm9370, %v9332
    %9372 = vst.msk [vmem:[%s9 + $0x8] sm:$0xff] %vm9370, %v9337
    %9373 = vst.msk [vmem:[%s9 + $0x10] sm:$0xff] %vm9370, %v9342
    %9374 = vst.msk [vmem:[%s9 + $0x18] sm:$0xff] %vm9370, %v9347
    %9375 = vst.msk [vmem:[%s9 + $0x20] sm:$0xff] %vm9370, %v9352
    %9376 = vst.msk [vmem:[%s9 + $0x28] sm:$0xff] %vm9370, %v9357
    %9377 = vst.msk [vmem:[%s9 + $0x30] sm:$0xff] %vm9370, %v9362
    %9378 = vst.msk [vmem:[%s9 + $0x38] sm:$0xff] %vm9370, %v9367
    // Predicated region
    $region46: #{tpu_custom_call.1} parent=1 // pred_check
      _
    $region47: #{tpu_custom_call.1} parent=1 // pred_check_branch
      %9380 = sbr.rel (0) target = $region49
    $region48: #{tpu_custom_call.1} parent=1 // pred_region
      _
    $region49: #{tpu_custom_call.1} parent=1 // pred_fallthru
      _
    // Predicated region
    $region50: #{tpu_custom_call.1} parent=1 // pred_check
      _
    $region51: #{tpu_custom_call.1} parent=1 // pred_check_branch
      %9382 = sbr.rel (0) target = $region53
    $region52: #{tpu_custom_call.1} parent=1 // pred_region
      _
    $region53: #{tpu_custom_call.1} parent=1 // pred_fallthru
      _
    %9383 = vsyncpa [#allocation3], 1
    %9384 = vsyncpa [#allocation5], 1

</llo_original>
